<compile_context>
chip_gen: v6e
topology: v6e:2x2x1
jax: 0.10.0
libtpu: 0.0.40
codegen_flags: <defaults>
</compile_context>

<pallas_src>
import functools

import jax
import jax.numpy as jnp
from jax.experimental import pallas as pl
from jax.experimental.pallas import tpu as pltpu


def _groupnorm_gelu(y, s, st, gmat, gmat_t, gamma, beta, inv_count, eps):
    """Per-sample GroupNorm (+affine) followed by exact erf-GELU.

    y      : (R, C) f32 pre-activations; row->sample membership given by s / st.
    s / st : (R, Nb) / (Nb, R) one-hot sample-membership matrices (f32, exact).
    gmat   : (C, G) one-hot channel->group matrix; gmat_t its transpose.
    gamma, beta : (1, C) affine parameters.
    """
    f32 = jnp.float32
    sum_c = jnp.dot(st, y, preferred_element_type=f32)             # (Nb, C)
    sqsum_c = jnp.dot(st, y * y, preferred_element_type=f32)       # (Nb, C)
    sum_g = jnp.dot(sum_c, gmat, preferred_element_type=f32)       # (Nb, G)
    sqsum_g = jnp.dot(sqsum_c, gmat, preferred_element_type=f32)   # (Nb, G)
    mean_g = sum_g * inv_count
    # Clamp the E[x^2] - E[x]^2 form so cancellation can never feed rsqrt < 0.
    var_g = jnp.maximum(sqsum_g * inv_count - mean_g * mean_g, 0.0)
    rstd_g = jax.lax.rsqrt(var_g + eps)
    mean_c = jnp.dot(mean_g, gmat_t, preferred_element_type=f32)   # (Nb, C)
    rstd_c = jnp.dot(rstd_g, gmat_t, preferred_element_type=f32)   # (Nb, C)
    scale_c = rstd_c * gamma                 # fold GN affine into per-sample scale/shift
    shift_c = beta - mean_c * scale_c
    scale_r = jnp.dot(s, scale_c, preferred_element_type=f32)      # (R, C)
    shift_r = jnp.dot(s, shift_c, preferred_element_type=f32)      # (R, C)
    a = y * scale_r + shift_r
    # Exact GELU (torch nn.GELU default, erf formulation), f32 on the VPU/EUP.
    return 0.5 * a * (1.0 + jax.lax.erf(a * 0.7071067811865476))


def _encoder_kernel(patches_ref, w1_ref, w2_ref,
                    s1_ref, s1t_ref, s2_ref, s2t_ref,
                    g1m_ref, g1mt_ref, g2m_ref, g2mt_ref,
                    gamma1_ref, beta1_ref, gamma2_ref, beta2_ref,
                    o_ref, *, kk, m2, eps, inv_cnt1, inv_cnt2, mm_dtype):
    f32 = jnp.float32
    c2 = o_ref.shape[-1]

    # ---- Stage 1: conv(k, stride=k) as one big MXU matmul over Nb samples. ----
    x = patches_ref[0]                                              # (R1, K1)
    y1 = jnp.dot(x, w1_ref[...], preferred_element_type=f32)        # (R1, C1) f32
    a1 = _groupnorm_gelu(y1, s1_ref[...], s1t_ref[...],
                         g1m_ref[...], g1mt_ref[...],
                         gamma1_ref[...], beta1_ref[...], inv_cnt1, eps)

    # ---- Stage 2: conv(k, stride=k) on the VMEM-resident stage-1 activations. --
    # Rows of a1 are ordered (kernel-pos, sample, out-position), so the slice for
    # kernel position `kpos` is a contiguous (M2, C1) block (tile-aligned when
    # M2 % 8 == 0) and the conv is a sum of kk small matmuls — no in-kernel
    # transpose / relayout and no HBM round trip of the intermediate.
    y2 = jnp.zeros((m2, c2), f32)
    for kpos in range(kk):                                          # static unroll (kk = 16)
        a_k = a1[kpos * m2:(kpos + 1) * m2, :].astype(mm_dtype)     # (M2, C1)
        y2 = y2 + jnp.dot(a_k, w2_ref[kpos], preferred_element_type=f32)

    a2 = _groupnorm_gelu(y2, s2_ref[...], s2t_ref[...],
                         g2m_ref[...], g2mt_ref[...],
                         gamma2_ref[...], beta2_ref[...], inv_cnt2, eps)
    o_ref[0] = a2.astype(o_ref.dtype)


def _extract_patches(xb, k, samples_per_block):
    """(N, C, H, W) -> (N/Nb, k*k*Nb*P2, C*k*k) stage-1 patch matrix.

    Rows ordered (block, stage-2 kernel position (ah, aw), sample-in-block,
    stage-2 output position (i, j)); per-row features ordered (c, kh, kw) to
    match the torch Conv2d weight layout.
    """
    N, C, H, W = xb.shape
    Nb = samples_per_block
    nblk = N // Nb
    h1, w1 = H // k, W // k            # stage-1 output grid
    h2, w2 = h1 // k, w1 // k          # stage-2 output grid
    K1 = C * k * k
    # stage-1 patches: (N, h1, w1, C*k*k), features (c, kh, kw)
    p = xb.reshape(N, C, h1, k, w1, k)
    p = jnp.transpose(p, (0, 2, 4, 1, 3, 5)).reshape(N, h1, w1, K1)
    # regroup rows to ((ah, aw), n_local, (i, j)) inside each sample block
    p = p.reshape(nblk, Nb, h2, k, w2, k, K1)
    p = jnp.transpose(p, (0, 3, 5, 1, 2, 4, 6))
    return p.reshape(nblk, k * k * Nb * h2 * w2, K1)


def _one_hot(idx, n):
    return (idx[:, None] == jnp.arange(n)[None, :]).astype(jnp.float32)


def hmlp_encoder_forward(x, params, *, kernel_size=4, groups=4,
                         samples_per_block=None, mm_dtype=jnp.bfloat16):
    """x: (T, B, C, H, W).  Returns (out, {}) with out (T, B, hidden, H//16, W//16).

    mm_dtype is the dtype of the conv-matmul MXU operands (bf16 recommended on
    v6e / v7x; pass jnp.float32 to keep everything f32, e.g. on v5e).  GroupNorm
    statistics and all elementwise math always run in f32.
    """
    T, B, C, H, W = x.shape
    k = kernel_size
    kk = k * k
    N = T * B
    assert H % kk == 0 and W % kk == 0, "H, W must be multiples of the full patch size"

    C1 = params["w1"].shape[0]          # hidden // 4
    C2 = params["w2"].shape[0]          # hidden
    G = groups
    assert C1 % G == 0 and C2 % G == 0, "groups must divide hidden//4 and hidden"

    h_out, w_out = H // kk, W // kk
    P2 = h_out * w_out                  # final positions per sample
    P1 = kk * P2                        # stage-1 positions per sample

    # Pick samples-per-block: fill the MXU M dimension (~256 rows), keep >= 2
    # grid steps (2 TensorCores on v7x / megacore), keep N divisible.
    if samples_per_block is None:
        target = max(1, 256 // P1)
        if N >= 2:
            target = min(max(target, 1), N // 2)
        samples_per_block = max(d for d in range(1, N + 1)
                                if N % d == 0 and d <= max(target, 1))
    Nb = samples_per_block
    assert N % Nb == 0, "T*B must be divisible by samples_per_block"
    nblk = N // Nb
    M2 = Nb * P2                        # stage-2 rows per grid step
    R1 = kk * M2                        # stage-1 rows per grid step
    K1 = C * kk

    xb = x.reshape(N, C, H, W)          # 'T B ... -> (T B) ...'; squeeze((-2,-1)) is a no-op (H, W > 1)
    patches = _extract_patches(xb, k, Nb).astype(mm_dtype)           # (nblk, R1, K1)

    # Conv weights (torch layout (Cout, Cin, kh, kw)) as matmul operands.
    w1_mm = params["w1"].reshape(C1, K1).T.astype(mm_dtype)          # (K1, C1)
    w2_mm = jnp.transpose(params["w2"], (2, 3, 1, 0)).reshape(kk, C1, C2).astype(mm_dtype)

    # One-hot helper matrices (exact in f32).
    g1m = _one_hot(jnp.arange(C1) // (C1 // G), G); g1mt = g1m.T     # (C1, G), (G, C1)
    g2m = _one_hot(jnp.arange(C2) // (C2 // G), G); g2mt = g2m.T     # (C2, G), (G, C2)
    s1 = _one_hot((jnp.arange(R1) // P2) % Nb, Nb); s1t = s1.T       # (R1, Nb), (Nb, R1)
    s2 = _one_hot(jnp.arange(M2) // P2, Nb); s2t = s2.T              # (M2, Nb), (Nb, M2)

    gamma1 = params["g1"].reshape(1, C1).astype(jnp.float32)
    beta1 = params["b1"].reshape(1, C1).astype(jnp.float32)
    gamma2 = params["g2"].reshape(1, C2).astype(jnp.float32)
    beta2 = params["b2"].reshape(1, C2).astype(jnp.float32)

    kernel = functools.partial(
        _encoder_kernel, kk=kk, m2=M2, eps=1e-5,
        inv_cnt1=1.0 / float(P1 * (C1 // G)),
        inv_cnt2=1.0 / float(P2 * (C2 // G)),
        mm_dtype=mm_dtype)

    operands = (patches, w1_mm, w2_mm, s1, s1t, s2, s2t,
                g1m, g1mt, g2m, g2mt, gamma1, beta1, gamma2, beta2)

    def _run(single_buffer_weights):
        # Grid-invariant conv weights: single-buffered (no double-buffer VMEM cost).
        wmode = dict(pipeline_mode=pl.Buffered(1)) if single_buffer_weights else {}
        in_specs = [
            pl.BlockSpec((1, R1, K1), lambda b: (b, 0, 0)),
            pl.BlockSpec((K1, C1), lambda b: (0, 0), **wmode),
            pl.BlockSpec((kk, C1, C2), lambda b: (0, 0, 0), **wmode),
            pl.BlockSpec((R1, Nb), lambda b: (0, 0)),
            pl.BlockSpec((Nb, R1), lambda b: (0, 0)),
            pl.BlockSpec((M2, Nb), lambda b: (0, 0)),
            pl.BlockSpec((Nb, M2), lambda b: (0, 0)),
            pl.BlockSpec((C1, G), lambda b: (0, 0)),
            pl.BlockSpec((G, C1), lambda b: (0, 0)),
            pl.BlockSpec((C2, G), lambda b: (0, 0)),
            pl.BlockSpec((G, C2), lambda b: (0, 0)),
            pl.BlockSpec((1, C1), lambda b: (0, 0)),
            pl.BlockSpec((1, C1), lambda b: (0, 0)),
            pl.BlockSpec((1, C2), lambda b: (0, 0)),
            pl.BlockSpec((1, C2), lambda b: (0, 0)),
        ]
        return pl.pallas_call(
            kernel,
            out_shape=jax.ShapeDtypeStruct((nblk, M2, C2), jnp.float32),
            grid=(nblk,),
            in_specs=in_specs,
            # Lane-dense output block: last dim = hidden (128-multiple for real configs).
            out_specs=pl.BlockSpec((1, M2, C2), lambda b: (b, 0, 0)),
            compiler_params=pltpu.CompilerParams(
                dimension_semantics=("parallel",),
                vmem_limit_bytes=48 * 1024 * 1024,   # stays under v7x's 64 MiB VMEM
            ),
        )(*operands)

    try:
        out = _run(True)
    except Exception:   # graceful fallback if pipeline_mode/Buffered(1) is unsupported
        out = _run(False)

    # (nblk, Nb*P2, C2) -> (T, B, C2, h_out, w_out); this transpose touches only the
    # small final output (the big intermediate never left VMEM).
    y = out.reshape(N, h_out, w_out, C2)
    y = jnp.transpose(y, (0, 3, 1, 2))
    y = y.reshape(T, B, C2, h_out, w_out)
    return y, {}


def init_params(key, in_chans, hidden_dim, kernel_size):
    """Synthetic params in torch Conv2d / GroupNorm layouts."""
    k = kernel_size
    c1 = hidden_dim // 4
    k1, k2, k3, k4, k5, k6 = jax.random.split(key, 6)
    return {
        "w1": 0.05 * jax.random.normal(k1, (c1, in_chans, k, k), jnp.float32),
        "w2": 0.05 * jax.random.normal(k2, (hidden_dim, c1, k, k), jnp.float32),
        # Non-trivial affine params so the GroupNorm affine path is exercised.
        "g1": 1.0 + 0.1 * jax.random.normal(k3, (c1,), jnp.float32),
        "b1": 0.05 * jax.random.normal(k4, (c1,), jnp.float32),
        "g2": 1.0 + 0.1 * jax.random.normal(k5, (hidden_dim,), jnp.float32),
        "b2": 0.05 * jax.random.normal(k6, (hidden_dim,), jnp.float32),
    }


def _reference_forward(x, params, *, kernel_size=4, groups=4):
    """Plain-JAX f32 reference implementing the torch module's forward."""
    T, B, C, H, W = x.shape
    k = kernel_size

    def conv_gn_gelu(z, w, gamma, beta):
        n, cin, hi, wi = z.shape
        cout = w.shape[0]
        ho, wo = hi // k, wi // k
        p = z.reshape(n, cin, ho, k, wo, k)
        p = jnp.transpose(p, (0, 2, 4, 1, 3, 5)).reshape(n, ho * wo, cin * k * k)
        y = jnp.einsum("npk,ck->npc", p, w.reshape(cout, cin * k * k))
        y = jnp.transpose(y, (0, 2, 1)).reshape(n, cout, ho, wo)
        yg = y.reshape(n, groups, cout // groups, ho, wo)
        mean = yg.mean(axis=(2, 3, 4), keepdims=True)
        var = ((yg - mean) ** 2).mean(axis=(2, 3, 4), keepdims=True)
        yn = ((yg - mean) * jax.lax.rsqrt(var + 1e-5)).reshape(n, cout, ho, wo)
        yn = yn * gamma.reshape(1, cout, 1, 1) + beta.reshape(1, cout, 1, 1)
        return 0.5 * yn * (1.0 + jax.lax.erf(yn * 0.7071067811865476))

    z = x.reshape(T * B, C, H, W)
    z = conv_gn_gelu(z, params["w1"], params["g1"], params["b1"])
    z = conv_gn_gelu(z, params["w2"], params["g2"], params["b2"])
    return z.reshape(T, B, *z.shape[1:])


if __name__ == "__main__":
    # Small config consistent with the module: patch_size=16 -> two k=4 convs.
    # hidden_dim=128 keeps the output lane-dense (128), groups=4 divides both
    # hidden//4=32 and hidden=128.
    T, B, C, H, W = 2, 8, 3, 16, 16
    hidden_dim, groups, kernel_size = 128, 4, 4

    key = jax.random.PRNGKey(0)
    kx, kp = jax.random.split(key)
    x = jax.random.normal(kx, (T, B, C, H, W), jnp.float32)
    params = init_params(kp, C, hidden_dim, kernel_size)

    out, aux = hmlp_encoder_forward(x, params, kernel_size=kernel_size, groups=groups)
    out = jax.block_until_ready(out)
    assert out.shape == (T, B, hidden_dim, 1, 1), out.shape
    assert aux == {}

    # Correctness check vs. a plain-JAX f32 reference (loose tolerance: the conv
    # matmuls run in bf16 on the MXU; GroupNorm statistics are f32).
    ref = _reference_forward(x, params, kernel_size=kernel_size, groups=groups)
    max_err = float(jnp.max(jnp.abs(out - ref)))
    assert max_err < 0.1, f"max |err| = {max_err}"
    print("KERNEL_OK")
</pallas_src>

<mosaic_0001>
module attributes {stable_mosaic.version = 11 : i64} {
  func.func @_encoder_kernel(%arg0: i32, %arg1: memref<1x128x48xbf16, #tpu.memory_space<vmem>>, %arg2: memref<48x32xbf16, #tpu.memory_space<vmem>>, %arg3: memref<16x32x128xbf16, #tpu.memory_space<vmem>>, %arg4: memref<128x8xf32, #tpu.memory_space<vmem>>, %arg5: memref<8x128xf32, #tpu.memory_space<vmem>>, %arg6: memref<8x8xf32, #tpu.memory_space<vmem>>, %arg7: memref<8x8xf32, #tpu.memory_space<vmem>>, %arg8: memref<32x4xf32, #tpu.memory_space<vmem>>, %arg9: memref<4x32xf32, #tpu.memory_space<vmem>>, %arg10: memref<128x4xf32, #tpu.memory_space<vmem>>, %arg11: memref<4x128xf32, #tpu.memory_space<vmem>>, %arg12: memref<1x32xf32, #tpu.memory_space<vmem>>, %arg13: memref<1x32xf32, #tpu.memory_space<vmem>>, %arg14: memref<1x128xf32, #tpu.memory_space<vmem>>, %arg15: memref<1x128xf32, #tpu.memory_space<vmem>>, %arg16: memref<1x8x128xf32, #tpu.memory_space<vmem>>) attributes {dimension_semantics = [#tpu.dimension_semantics<parallel>], iteration_bounds = array<i64: 2>, scalar_prefetch = 0 : i64, scratch_operands = 0 : i64, tpu.core_type = #tpu.core_type<tc>, window_params = [{transform_indices = @transform_0, window_bounds = array<i64: 1, 128, 48>}, {pipeline_mode = #tpu.pipeline_mode<synchronous>, transform_indices = @transform_1, window_bounds = array<i64: 48, 32>}, {pipeline_mode = #tpu.pipeline_mode<synchronous>, transform_indices = @transform_2, window_bounds = array<i64: 16, 32, 128>}, {pipeline_mode = #tpu.pipeline_mode<synchronous>, transform_indices = @transform_3, window_bounds = array<i64: 128, 8>}, {pipeline_mode = #tpu.pipeline_mode<synchronous>, transform_indices = @transform_4, window_bounds = array<i64: 8, 128>}, {pipeline_mode = #tpu.pipeline_mode<synchronous>, transform_indices = @transform_5, window_bounds = array<i64: 8, 8>}, {pipeline_mode = #tpu.pipeline_mode<synchronous>, transform_indices = @transform_6, window_bounds = array<i64: 8, 8>}, {pipeline_mode = #tpu.pipeline_mode<synchronous>, transform_indices = @transform_7, window_bounds = array<i64: 32, 4>}, {pipeline_mode = #tpu.pipeline_mode<synchronous>, transform_indices = @transform_8, window_bounds = array<i64: 4, 32>}, {pipeline_mode = #tpu.pipeline_mode<synchronous>, transform_indices = @transform_9, window_bounds = array<i64: 128, 4>}, {pipeline_mode = #tpu.pipeline_mode<synchronous>, transform_indices = @transform_10, window_bounds = array<i64: 4, 128>}, {pipeline_mode = #tpu.pipeline_mode<synchronous>, transform_indices = @transform_11, window_bounds = array<i64: 1, 32>}, {pipeline_mode = #tpu.pipeline_mode<synchronous>, transform_indices = @transform_12, window_bounds = array<i64: 1, 32>}, {pipeline_mode = #tpu.pipeline_mode<synchronous>, transform_indices = @transform_13, window_bounds = array<i64: 1, 128>}, {pipeline_mode = #tpu.pipeline_mode<synchronous>, transform_indices = @transform_14, window_bounds = array<i64: 1, 128>}, {transform_indices = @transform_15, window_bounds = array<i64: 1, 8, 128>}]} {
    %c0 = arith.constant 0 : index
    %c0_0 = arith.constant 0 : index
    %c0_1 = arith.constant 0 : index
    %0 = vector.load %arg1[%c0, %c0_0, %c0_1] : memref<1x128x48xbf16, #tpu.memory_space<vmem>>, vector<1x128x48xbf16>
    %1 = vector.shape_cast %0 : vector<1x128x48xbf16> to vector<128x48xbf16>
    %c0_2 = arith.constant 0 : index
    %c0_3 = arith.constant 0 : index
    %2 = vector.load %arg2[%c0_2, %c0_3] : memref<48x32xbf16, #tpu.memory_space<vmem>>, vector<48x32xbf16>
    %cst = arith.constant dense<0.000000e+00> : vector<128x32xf32>
    %3 = tpu.matmul %1, %2, %cst {dimension_numbers = #tpu.dot_dimension_numbers<[1], [0], [0], [1], [0, 0, 1, 1], [], []>} : vector<128x48xbf16>, vector<48x32xbf16>, vector<128x32xf32> -> vector<128x32xf32>
    %c0_4 = arith.constant 0 : index
    %c0_5 = arith.constant 0 : index
    %4 = vector.load %arg4[%c0_4, %c0_5] : memref<128x8xf32, #tpu.memory_space<vmem>>, vector<128x8xf32>
    %c0_6 = arith.constant 0 : index
    %c0_7 = arith.constant 0 : index
    %5 = vector.load %arg5[%c0_6, %c0_7] : memref<8x128xf32, #tpu.memory_space<vmem>>, vector<8x128xf32>
    %c0_8 = arith.constant 0 : index
    %c0_9 = arith.constant 0 : index
    %6 = vector.load %arg8[%c0_8, %c0_9] : memref<32x4xf32, #tpu.memory_space<vmem>>, vector<32x4xf32>
    %c0_10 = arith.constant 0 : index
    %c0_11 = arith.constant 0 : index
    %7 = vector.load %arg9[%c0_10, %c0_11] : memref<4x32xf32, #tpu.memory_space<vmem>>, vector<4x32xf32>
    %c0_12 = arith.constant 0 : index
    %c0_13 = arith.constant 0 : index
    %8 = vector.load %arg12[%c0_12, %c0_13] : memref<1x32xf32, #tpu.memory_space<vmem>>, vector<1x32xf32>
    %c0_14 = arith.constant 0 : index
    %c0_15 = arith.constant 0 : index
    %9 = vector.load %arg13[%c0_14, %c0_15] : memref<1x32xf32, #tpu.memory_space<vmem>>, vector<1x32xf32>
    %cst_16 = arith.constant dense<0.000000e+00> : vector<8x32xf32>
    %10 = tpu.matmul %5, %3, %cst_16 {dimension_numbers = #tpu.dot_dimension_numbers<[1], [0], [0], [1], [0, 0, 1, 1], [], []>} : vector<8x128xf32>, vector<128x32xf32>, vector<8x32xf32> -> vector<8x32xf32>
    %11 = arith.mulf %3, %3 : vector<128x32xf32>
    %cst_17 = arith.constant dense<0.000000e+00> : vector<8x32xf32>
    %12 = tpu.matmul %5, %11, %cst_17 {dimension_numbers = #tpu.dot_dimension_numbers<[1], [0], [0], [1], [0, 0, 1, 1], [], []>} : vector<8x128xf32>, vector<128x32xf32>, vector<8x32xf32> -> vector<8x32xf32>
    %cst_18 = arith.constant dense<0.000000e+00> : vector<8x4xf32>
    %13 = tpu.matmul %10, %6, %cst_18 {dimension_numbers = #tpu.dot_dimension_numbers<[1], [0], [0], [1], [0, 0, 1, 1], [], []>} : vector<8x32xf32>, vector<32x4xf32>, vector<8x4xf32> -> vector<8x4xf32>
    %cst_19 = arith.constant dense<0.000000e+00> : vector<8x4xf32>
    %14 = tpu.matmul %12, %6, %cst_19 {dimension_numbers = #tpu.dot_dimension_numbers<[1], [0], [0], [1], [0, 0, 1, 1], [], []>} : vector<8x32xf32>, vector<32x4xf32>, vector<8x4xf32> -> vector<8x4xf32>
    %cst_20 = arith.constant 7.812500e-03 : f32
    %15 = vector.broadcast %cst_20 : f32 to vector<8x4xf32>
    %16 = arith.mulf %13, %15 : vector<8x4xf32>
    %cst_21 = arith.constant 7.812500e-03 : f32
    %17 = vector.broadcast %cst_21 : f32 to vector<8x4xf32>
    %18 = arith.mulf %14, %17 : vector<8x4xf32>
    %19 = arith.mulf %16, %16 : vector<8x4xf32>
    %20 = arith.subf %18, %19 : vector<8x4xf32>
    %cst_22 = arith.constant 0.000000e+00 : f32
    %21 = vector.broadcast %cst_22 : f32 to vector<8x4xf32>
    %22 = arith.maximumf %20, %21 : vector<8x4xf32>
    %cst_23 = arith.constant 9.99999974E-6 : f32
    %23 = vector.broadcast %cst_23 : f32 to vector<8x4xf32>
    %24 = arith.addf %22, %23 : vector<8x4xf32>
    %25 = math.rsqrt %24 : vector<8x4xf32>
    %cst_24 = arith.constant dense<0.000000e+00> : vector<8x32xf32>
    %26 = tpu.matmul %16, %7, %cst_24 {dimension_numbers = #tpu.dot_dimension_numbers<[1], [0], [0], [1], [0, 0, 1, 1], [], []>} : vector<8x4xf32>, vector<4x32xf32>, vector<8x32xf32> -> vector<8x32xf32>
    %cst_25 = arith.constant dense<0.000000e+00> : vector<8x32xf32>
    %27 = tpu.matmul %25, %7, %cst_25 {dimension_numbers = #tpu.dot_dimension_numbers<[1], [0], [0], [1], [0, 0, 1, 1], [], []>} : vector<8x4xf32>, vector<4x32xf32>, vector<8x32xf32> -> vector<8x32xf32>
    %28 = vector.broadcast %8 : vector<1x32xf32> to vector<8x32xf32>
    %29 = arith.mulf %27, %28 : vector<8x32xf32>
    %30 = arith.mulf %26, %29 : vector<8x32xf32>
    %31 = vector.broadcast %9 : vector<1x32xf32> to vector<8x32xf32>
    %32 = arith.subf %31, %30 : vector<8x32xf32>
    %cst_26 = arith.constant dense<0.000000e+00> : vector<128x32xf32>
    %33 = tpu.matmul %4, %29, %cst_26 {dimension_numbers = #tpu.dot_dimension_numbers<[1], [0], [0], [1], [0, 0, 1, 1], [], []>} : vector<128x8xf32>, vector<8x32xf32>, vector<128x32xf32> -> vector<128x32xf32>
    %cst_27 = arith.constant dense<0.000000e+00> : vector<128x32xf32>
    %34 = tpu.matmul %4, %32, %cst_27 {dimension_numbers = #tpu.dot_dimension_numbers<[1], [0], [0], [1], [0, 0, 1, 1], [], []>} : vector<128x8xf32>, vector<8x32xf32>, vector<128x32xf32> -> vector<128x32xf32>
    %35 = arith.mulf %3, %33 : vector<128x32xf32>
    %36 = arith.addf %35, %34 : vector<128x32xf32>
    %cst_28 = arith.constant 5.000000e-01 : f32
    %37 = vector.broadcast %cst_28 : f32 to vector<128x32xf32>
    %38 = arith.mulf %37, %36 : vector<128x32xf32>
    %cst_29 = arith.constant 0.707106769 : f32
    %39 = vector.broadcast %cst_29 : f32 to vector<128x32xf32>
    %40 = arith.mulf %36, %39 : vector<128x32xf32>
    %41 = math.erf %40 : vector<128x32xf32>
    %cst_30 = arith.constant 1.000000e+00 : f32
    %42 = vector.broadcast %cst_30 : f32 to vector<128x32xf32>
    %43 = arith.addf %42, %41 : vector<128x32xf32>
    %44 = arith.mulf %38, %43 : vector<128x32xf32>
    %cst_31 = arith.constant 0.000000e+00 : f32
    %45 = vector.broadcast %cst_31 : f32 to vector<8x128xf32>
    %46 = vector.extract_strided_slice %44 {offsets = [0, 0], sizes = [8, 32], strides = [1, 1]} : vector<128x32xf32> to vector<8x32xf32>
    %47 = arith.truncf %46 : vector<8x32xf32> to vector<8x32xbf16>
    %c0_32 = arith.constant 0 : index
    %c0_33 = arith.constant 0 : index
    %c0_34 = arith.constant 0 : index
    %48 = vector.load %arg3[%c0_32, %c0_33, %c0_34] : memref<16x32x128xbf16, #tpu.memory_space<vmem>>, vector<1x32x128xbf16>
    %49 = vector.shape_cast %48 : vector<1x32x128xbf16> to vector<32x128xbf16>
    %cst_35 = arith.constant dense<0.000000e+00> : vector<8x128xf32>
    %50 = tpu.matmul %47, %49, %cst_35 {dimension_numbers = #tpu.dot_dimension_numbers<[1], [0], [0], [1], [0, 0, 1, 1], [], []>} : vector<8x32xbf16>, vector<32x128xbf16>, vector<8x128xf32> -> vector<8x128xf32>
    %51 = arith.addf %45, %50 : vector<8x128xf32>
    %52 = vector.extract_strided_slice %44 {offsets = [8, 0], sizes = [8, 32], strides = [1, 1]} : vector<128x32xf32> to vector<8x32xf32>
    %53 = arith.truncf %52 : vector<8x32xf32> to vector<8x32xbf16>
    %c1 = arith.constant 1 : index
    %c0_36 = arith.constant 0 : index
    %c0_37 = arith.constant 0 : index
    %54 = vector.load %arg3[%c1, %c0_36, %c0_37] : memref<16x32x128xbf16, #tpu.memory_space<vmem>>, vector<1x32x128xbf16>
    %55 = vector.shape_cast %54 : vector<1x32x128xbf16> to vector<32x128xbf16>
    %cst_38 = arith.constant dense<0.000000e+00> : vector<8x128xf32>
    %56 = tpu.matmul %53, %55, %cst_38 {dimension_numbers = #tpu.dot_dimension_numbers<[1], [0], [0], [1], [0, 0, 1, 1], [], []>} : vector<8x32xbf16>, vector<32x128xbf16>, vector<8x128xf32> -> vector<8x128xf32>
    %57 = arith.addf %51, %56 : vector<8x128xf32>
    %58 = vector.extract_strided_slice %44 {offsets = [16, 0], sizes = [8, 32], strides = [1, 1]} : vector<128x32xf32> to vector<8x32xf32>
    %59 = arith.truncf %58 : vector<8x32xf32> to vector<8x32xbf16>
    %c2 = arith.constant 2 : index
    %c0_39 = arith.constant 0 : index
    %c0_40 = arith.constant 0 : index
    %60 = vector.load %arg3[%c2, %c0_39, %c0_40] : memref<16x32x128xbf16, #tpu.memory_space<vmem>>, vector<1x32x128xbf16>
    %61 = vector.shape_cast %60 : vector<1x32x128xbf16> to vector<32x128xbf16>
    %cst_41 = arith.constant dense<0.000000e+00> : vector<8x128xf32>
    %62 = tpu.matmul %59, %61, %cst_41 {dimension_numbers = #tpu.dot_dimension_numbers<[1], [0], [0], [1], [0, 0, 1, 1], [], []>} : vector<8x32xbf16>, vector<32x128xbf16>, vector<8x128xf32> -> vector<8x128xf32>
    %63 = arith.addf %57, %62 : vector<8x128xf32>
    %64 = vector.extract_strided_slice %44 {offsets = [24, 0], sizes = [8, 32], strides = [1, 1]} : vector<128x32xf32> to vector<8x32xf32>
    %65 = arith.truncf %64 : vector<8x32xf32> to vector<8x32xbf16>
    %c3 = arith.constant 3 : index
    %c0_42 = arith.constant 0 : index
    %c0_43 = arith.constant 0 : index
    %66 = vector.load %arg3[%c3, %c0_42, %c0_43] : memref<16x32x128xbf16, #tpu.memory_space<vmem>>, vector<1x32x128xbf16>
    %67 = vector.shape_cast %66 : vector<1x32x128xbf16> to vector<32x128xbf16>
    %cst_44 = arith.constant dense<0.000000e+00> : vector<8x128xf32>
    %68 = tpu.matmul %65, %67, %cst_44 {dimension_numbers = #tpu.dot_dimension_numbers<[1], [0], [0], [1], [0, 0, 1, 1], [], []>} : vector<8x32xbf16>, vector<32x128xbf16>, vector<8x128xf32> -> vector<8x128xf32>
    %69 = arith.addf %63, %68 : vector<8x128xf32>
    %70 = vector.extract_strided_slice %44 {offsets = [32, 0], sizes = [8, 32], strides = [1, 1]} : vector<128x32xf32> to vector<8x32xf32>
    %71 = arith.truncf %70 : vector<8x32xf32> to vector<8x32xbf16>
    %c4 = arith.constant 4 : index
    %c0_45 = arith.constant 0 : index
    %c0_46 = arith.constant 0 : index
    %72 = vector.load %arg3[%c4, %c0_45, %c0_46] : memref<16x32x128xbf16, #tpu.memory_space<vmem>>, vector<1x32x128xbf16>
    %73 = vector.shape_cast %72 : vector<1x32x128xbf16> to vector<32x128xbf16>
    %cst_47 = arith.constant dense<0.000000e+00> : vector<8x128xf32>
    %74 = tpu.matmul %71, %73, %cst_47 {dimension_numbers = #tpu.dot_dimension_numbers<[1], [0], [0], [1], [0, 0, 1, 1], [], []>} : vector<8x32xbf16>, vector<32x128xbf16>, vector<8x128xf32> -> vector<8x128xf32>
    %75 = arith.addf %69, %74 : vector<8x128xf32>
    %76 = vector.extract_strided_slice %44 {offsets = [40, 0], sizes = [8, 32], strides = [1, 1]} : vector<128x32xf32> to vector<8x32xf32>
    %77 = arith.truncf %76 : vector<8x32xf32> to vector<8x32xbf16>
    %c5 = arith.constant 5 : index
    %c0_48 = arith.constant 0 : index
    %c0_49 = arith.constant 0 : index
    %78 = vector.load %arg3[%c5, %c0_48, %c0_49] : memref<16x32x128xbf16, #tpu.memory_space<vmem>>, vector<1x32x128xbf16>
    %79 = vector.shape_cast %78 : vector<1x32x128xbf16> to vector<32x128xbf16>
    %cst_50 = arith.constant dense<0.000000e+00> : vector<8x128xf32>
    %80 = tpu.matmul %77, %79, %cst_50 {dimension_numbers = #tpu.dot_dimension_numbers<[1], [0], [0], [1], [0, 0, 1, 1], [], []>} : vector<8x32xbf16>, vector<32x128xbf16>, vector<8x128xf32> -> vector<8x128xf32>
    %81 = arith.addf %75, %80 : vector<8x128xf32>
    %82 = vector.extract_strided_slice %44 {offsets = [48, 0], sizes = [8, 32], strides = [1, 1]} : vector<128x32xf32> to vector<8x32xf32>
    %83 = arith.truncf %82 : vector<8x32xf32> to vector<8x32xbf16>
    %c6 = arith.constant 6 : index
    %c0_51 = arith.constant 0 : index
    %c0_52 = arith.constant 0 : index
    %84 = vector.load %arg3[%c6, %c0_51, %c0_52] : memref<16x32x128xbf16, #tpu.memory_space<vmem>>, vector<1x32x128xbf16>
    %85 = vector.shape_cast %84 : vector<1x32x128xbf16> to vector<32x128xbf16>
    %cst_53 = arith.constant dense<0.000000e+00> : vector<8x128xf32>
    %86 = tpu.matmul %83, %85, %cst_53 {dimension_numbers = #tpu.dot_dimension_numbers<[1], [0], [0], [1], [0, 0, 1, 1], [], []>} : vector<8x32xbf16>, vector<32x128xbf16>, vector<8x128xf32> -> vector<8x128xf32>
    %87 = arith.addf %81, %86 : vector<8x128xf32>
    %88 = vector.extract_strided_slice %44 {offsets = [56, 0], sizes = [8, 32], strides = [1, 1]} : vector<128x32xf32> to vector<8x32xf32>
    %89 = arith.truncf %88 : vector<8x32xf32> to vector<8x32xbf16>
    %c7 = arith.constant 7 : index
    %c0_54 = arith.constant 0 : index
    %c0_55 = arith.constant 0 : index
    %90 = vector.load %arg3[%c7, %c0_54, %c0_55] : memref<16x32x128xbf16, #tpu.memory_space<vmem>>, vector<1x32x128xbf16>
    %91 = vector.shape_cast %90 : vector<1x32x128xbf16> to vector<32x128xbf16>
    %cst_56 = arith.constant dense<0.000000e+00> : vector<8x128xf32>
    %92 = tpu.matmul %89, %91, %cst_56 {dimension_numbers = #tpu.dot_dimension_numbers<[1], [0], [0], [1], [0, 0, 1, 1], [], []>} : vector<8x32xbf16>, vector<32x128xbf16>, vector<8x128xf32> -> vector<8x128xf32>
    %93 = arith.addf %87, %92 : vector<8x128xf32>
    %94 = vector.extract_strided_slice %44 {offsets = [64, 0], sizes = [8, 32], strides = [1, 1]} : vector<128x32xf32> to vector<8x32xf32>
    %95 = arith.truncf %94 : vector<8x32xf32> to vector<8x32xbf16>
    %c8 = arith.constant 8 : index
    %c0_57 = arith.constant 0 : index
    %c0_58 = arith.constant 0 : index
    %96 = vector.load %arg3[%c8, %c0_57, %c0_58] : memref<16x32x128xbf16, #tpu.memory_space<vmem>>, vector<1x32x128xbf16>
    %97 = vector.shape_cast %96 : vector<1x32x128xbf16> to vector<32x128xbf16>
    %cst_59 = arith.constant dense<0.000000e+00> : vector<8x128xf32>
    %98 = tpu.matmul %95, %97, %cst_59 {dimension_numbers = #tpu.dot_dimension_numbers<[1], [0], [0], [1], [0, 0, 1, 1], [], []>} : vector<8x32xbf16>, vector<32x128xbf16>, vector<8x128xf32> -> vector<8x128xf32>
    %99 = arith.addf %93, %98 : vector<8x128xf32>
    %100 = vector.extract_strided_slice %44 {offsets = [72, 0], sizes = [8, 32], strides = [1, 1]} : vector<128x32xf32> to vector<8x32xf32>
    %101 = arith.truncf %100 : vector<8x32xf32> to vector<8x32xbf16>
    %c9 = arith.constant 9 : index
    %c0_60 = arith.constant 0 : index
    %c0_61 = arith.constant 0 : index
    %102 = vector.load %arg3[%c9, %c0_60, %c0_61] : memref<16x32x128xbf16, #tpu.memory_space<vmem>>, vector<1x32x128xbf16>
    %103 = vector.shape_cast %102 : vector<1x32x128xbf16> to vector<32x128xbf16>
    %cst_62 = arith.constant dense<0.000000e+00> : vector<8x128xf32>
    %104 = tpu.matmul %101, %103, %cst_62 {dimension_numbers = #tpu.dot_dimension_numbers<[1], [0], [0], [1], [0, 0, 1, 1], [], []>} : vector<8x32xbf16>, vector<32x128xbf16>, vector<8x128xf32> -> vector<8x128xf32>
    %105 = arith.addf %99, %104 : vector<8x128xf32>
    %106 = vector.extract_strided_slice %44 {offsets = [80, 0], sizes = [8, 32], strides = [1, 1]} : vector<128x32xf32> to vector<8x32xf32>
    %107 = arith.truncf %106 : vector<8x32xf32> to vector<8x32xbf16>
    %c10 = arith.constant 10 : index
    %c0_63 = arith.constant 0 : index
    %c0_64 = arith.constant 0 : index
    %108 = vector.load %arg3[%c10, %c0_63, %c0_64] : memref<16x32x128xbf16, #tpu.memory_space<vmem>>, vector<1x32x128xbf16>
    %109 = vector.shape_cast %108 : vector<1x32x128xbf16> to vector<32x128xbf16>
    %cst_65 = arith.constant dense<0.000000e+00> : vector<8x128xf32>
    %110 = tpu.matmul %107, %109, %cst_65 {dimension_numbers = #tpu.dot_dimension_numbers<[1], [0], [0], [1], [0, 0, 1, 1], [], []>} : vector<8x32xbf16>, vector<32x128xbf16>, vector<8x128xf32> -> vector<8x128xf32>
    %111 = arith.addf %105, %110 : vector<8x128xf32>
    %112 = vector.extract_strided_slice %44 {offsets = [88, 0], sizes = [8, 32], strides = [1, 1]} : vector<128x32xf32> to vector<8x32xf32>
    %113 = arith.truncf %112 : vector<8x32xf32> to vector<8x32xbf16>
    %c11 = arith.constant 11 : index
    %c0_66 = arith.constant 0 : index
    %c0_67 = arith.constant 0 : index
    %114 = vector.load %arg3[%c11, %c0_66, %c0_67] : memref<16x32x128xbf16, #tpu.memory_space<vmem>>, vector<1x32x128xbf16>
    %115 = vector.shape_cast %114 : vector<1x32x128xbf16> to vector<32x128xbf16>
    %cst_68 = arith.constant dense<0.000000e+00> : vector<8x128xf32>
    %116 = tpu.matmul %113, %115, %cst_68 {dimension_numbers = #tpu.dot_dimension_numbers<[1], [0], [0], [1], [0, 0, 1, 1], [], []>} : vector<8x32xbf16>, vector<32x128xbf16>, vector<8x128xf32> -> vector<8x128xf32>
    %117 = arith.addf %111, %116 : vector<8x128xf32>
    %118 = vector.extract_strided_slice %44 {offsets = [96, 0], sizes = [8, 32], strides = [1, 1]} : vector<128x32xf32> to vector<8x32xf32>
    %119 = arith.truncf %118 : vector<8x32xf32> to vector<8x32xbf16>
    %c12 = arith.constant 12 : index
    %c0_69 = arith.constant 0 : index
    %c0_70 = arith.constant 0 : index
    %120 = vector.load %arg3[%c12, %c0_69, %c0_70] : memref<16x32x128xbf16, #tpu.memory_space<vmem>>, vector<1x32x128xbf16>
    %121 = vector.shape_cast %120 : vector<1x32x128xbf16> to vector<32x128xbf16>
    %cst_71 = arith.constant dense<0.000000e+00> : vector<8x128xf32>
    %122 = tpu.matmul %119, %121, %cst_71 {dimension_numbers = #tpu.dot_dimension_numbers<[1], [0], [0], [1], [0, 0, 1, 1], [], []>} : vector<8x32xbf16>, vector<32x128xbf16>, vector<8x128xf32> -> vector<8x128xf32>
    %123 = arith.addf %117, %122 : vector<8x128xf32>
    %124 = vector.extract_strided_slice %44 {offsets = [104, 0], sizes = [8, 32], strides = [1, 1]} : vector<128x32xf32> to vector<8x32xf32>
    %125 = arith.truncf %124 : vector<8x32xf32> to vector<8x32xbf16>
    %c13 = arith.constant 13 : index
    %c0_72 = arith.constant 0 : index
    %c0_73 = arith.constant 0 : index
    %126 = vector.load %arg3[%c13, %c0_72, %c0_73] : memref<16x32x128xbf16, #tpu.memory_space<vmem>>, vector<1x32x128xbf16>
    %127 = vector.shape_cast %126 : vector<1x32x128xbf16> to vector<32x128xbf16>
    %cst_74 = arith.constant dense<0.000000e+00> : vector<8x128xf32>
    %128 = tpu.matmul %125, %127, %cst_74 {dimension_numbers = #tpu.dot_dimension_numbers<[1], [0], [0], [1], [0, 0, 1, 1], [], []>} : vector<8x32xbf16>, vector<32x128xbf16>, vector<8x128xf32> -> vector<8x128xf32>
    %129 = arith.addf %123, %128 : vector<8x128xf32>
    %130 = vector.extract_strided_slice %44 {offsets = [112, 0], sizes = [8, 32], strides = [1, 1]} : vector<128x32xf32> to vector<8x32xf32>
    %131 = arith.truncf %130 : vector<8x32xf32> to vector<8x32xbf16>
    %c14 = arith.constant 14 : index
    %c0_75 = arith.constant 0 : index
    %c0_76 = arith.constant 0 : index
    %132 = vector.load %arg3[%c14, %c0_75, %c0_76] : memref<16x32x128xbf16, #tpu.memory_space<vmem>>, vector<1x32x128xbf16>
    %133 = vector.shape_cast %132 : vector<1x32x128xbf16> to vector<32x128xbf16>
    %cst_77 = arith.constant dense<0.000000e+00> : vector<8x128xf32>
    %134 = tpu.matmul %131, %133, %cst_77 {dimension_numbers = #tpu.dot_dimension_numbers<[1], [0], [0], [1], [0, 0, 1, 1], [], []>} : vector<8x32xbf16>, vector<32x128xbf16>, vector<8x128xf32> -> vector<8x128xf32>
    %135 = arith.addf %129, %134 : vector<8x128xf32>
    %136 = vector.extract_strided_slice %44 {offsets = [120, 0], sizes = [8, 32], strides = [1, 1]} : vector<128x32xf32> to vector<8x32xf32>
    %137 = arith.truncf %136 : vector<8x32xf32> to vector<8x32xbf16>
    %c15 = arith.constant 15 : index
    %c0_78 = arith.constant 0 : index
    %c0_79 = arith.constant 0 : index
    %138 = vector.load %arg3[%c15, %c0_78, %c0_79] : memref<16x32x128xbf16, #tpu.memory_space<vmem>>, vector<1x32x128xbf16>
    %139 = vector.shape_cast %138 : vector<1x32x128xbf16> to vector<32x128xbf16>
    %cst_80 = arith.constant dense<0.000000e+00> : vector<8x128xf32>
    %140 = tpu.matmul %137, %139, %cst_80 {dimension_numbers = #tpu.dot_dimension_numbers<[1], [0], [0], [1], [0, 0, 1, 1], [], []>} : vector<8x32xbf16>, vector<32x128xbf16>, vector<8x128xf32> -> vector<8x128xf32>
    %141 = arith.addf %135, %140 : vector<8x128xf32>
    %c0_81 = arith.constant 0 : index
    %c0_82 = arith.constant 0 : index
    %142 = vector.load %arg6[%c0_81, %c0_82] : memref<8x8xf32, #tpu.memory_space<vmem>>, vector<8x8xf32>
    %c0_83 = arith.constant 0 : index
    %c0_84 = arith.constant 0 : index
    %143 = vector.load %arg7[%c0_83, %c0_84] : memref<8x8xf32, #tpu.memory_space<vmem>>, vector<8x8xf32>
    %c0_85 = arith.constant 0 : index
    %c0_86 = arith.constant 0 : index
    %144 = vector.load %arg10[%c0_85, %c0_86] : memref<128x4xf32, #tpu.memory_space<vmem>>, vector<128x4xf32>
    %c0_87 = arith.constant 0 : index
    %c0_88 = arith.constant 0 : index
    %145 = vector.load %arg11[%c0_87, %c0_88] : memref<4x128xf32, #tpu.memory_space<vmem>>, vector<4x128xf32>
    %c0_89 = arith.constant 0 : index
    %c0_90 = arith.constant 0 : index
    %146 = vector.load %arg14[%c0_89, %c0_90] : memref<1x128xf32, #tpu.memory_space<vmem>>, vector<1x128xf32>
    %c0_91 = arith.constant 0 : index
    %c0_92 = arith.constant 0 : index
    %147 = vector.load %arg15[%c0_91, %c0_92] : memref<1x128xf32, #tpu.memory_space<vmem>>, vector<1x128xf32>
    %cst_93 = arith.constant dense<0.000000e+00> : vector<8x128xf32>
    %148 = tpu.matmul %143, %141, %cst_93 {dimension_numbers = #tpu.dot_dimension_numbers<[1], [0], [0], [1], [0, 0, 1, 1], [], []>} : vector<8x8xf32>, vector<8x128xf32>, vector<8x128xf32> -> vector<8x128xf32>
    %149 = arith.mulf %141, %141 : vector<8x128xf32>
    %cst_94 = arith.constant dense<0.000000e+00> : vector<8x128xf32>
    %150 = tpu.matmul %143, %149, %cst_94 {dimension_numbers = #tpu.dot_dimension_numbers<[1], [0], [0], [1], [0, 0, 1, 1], [], []>} : vector<8x8xf32>, vector<8x128xf32>, vector<8x128xf32> -> vector<8x128xf32>
    %cst_95 = arith.constant dense<0.000000e+00> : vector<8x4xf32>
    %151 = tpu.matmul %148, %144, %cst_95 {dimension_numbers = #tpu.dot_dimension_numbers<[1], [0], [0], [1], [0, 0, 1, 1], [], []>} : vector<8x128xf32>, vector<128x4xf32>, vector<8x4xf32> -> vector<8x4xf32>
    %cst_96 = arith.constant dense<0.000000e+00> : vector<8x4xf32>
    %152 = tpu.matmul %150, %144, %cst_96 {dimension_numbers = #tpu.dot_dimension_numbers<[1], [0], [0], [1], [0, 0, 1, 1], [], []>} : vector<8x128xf32>, vector<128x4xf32>, vector<8x4xf32> -> vector<8x4xf32>
    %cst_97 = arith.constant 3.125000e-02 : f32
    %153 = vector.broadcast %cst_97 : f32 to vector<8x4xf32>
    %154 = arith.mulf %151, %153 : vector<8x4xf32>
    %cst_98 = arith.constant 3.125000e-02 : f32
    %155 = vector.broadcast %cst_98 : f32 to vector<8x4xf32>
    %156 = arith.mulf %152, %155 : vector<8x4xf32>
    %157 = arith.mulf %154, %154 : vector<8x4xf32>
    %158 = arith.subf %156, %157 : vector<8x4xf32>
    %cst_99 = arith.constant 0.000000e+00 : f32
    %159 = vector.broadcast %cst_99 : f32 to vector<8x4xf32>
    %160 = arith.maximumf %158, %159 : vector<8x4xf32>
    %cst_100 = arith.constant 9.99999974E-6 : f32
    %161 = vector.broadcast %cst_100 : f32 to vector<8x4xf32>
    %162 = arith.addf %160, %161 : vector<8x4xf32>
    %163 = math.rsqrt %162 : vector<8x4xf32>
    %cst_101 = arith.constant dense<0.000000e+00> : vector<8x128xf32>
    %164 = tpu.matmul %154, %145, %cst_101 {dimension_numbers = #tpu.dot_dimension_numbers<[1], [0], [0], [1], [0, 0, 1, 1], [], []>} : vector<8x4xf32>, vector<4x128xf32>, vector<8x128xf32> -> vector<8x128xf32>
    %cst_102 = arith.constant dense<0.000000e+00> : vector<8x128xf32>
    %165 = tpu.matmul %163, %145, %cst_102 {dimension_numbers = #tpu.dot_dimension_numbers<[1], [0], [0], [1], [0, 0, 1, 1], [], []>} : vector<8x4xf32>, vector<4x128xf32>, vector<8x128xf32> -> vector<8x128xf32>
    %166 = vector.broadcast %146 : vector<1x128xf32> to vector<8x128xf32>
    %167 = arith.mulf %165, %166 : vector<8x128xf32>
    %168 = arith.mulf %164, %167 : vector<8x128xf32>
    %169 = vector.broadcast %147 : vector<1x128xf32> to vector<8x128xf32>
    %170 = arith.subf %169, %168 : vector<8x128xf32>
    %cst_103 = arith.constant dense<0.000000e+00> : vector<8x128xf32>
    %171 = tpu.matmul %142, %167, %cst_103 {dimension_numbers = #tpu.dot_dimension_numbers<[1], [0], [0], [1], [0, 0, 1, 1], [], []>} : vector<8x8xf32>, vector<8x128xf32>, vector<8x128xf32> -> vector<8x128xf32>
    %cst_104 = arith.constant dense<0.000000e+00> : vector<8x128xf32>
    %172 = tpu.matmul %142, %170, %cst_104 {dimension_numbers = #tpu.dot_dimension_numbers<[1], [0], [0], [1], [0, 0, 1, 1], [], []>} : vector<8x8xf32>, vector<8x128xf32>, vector<8x128xf32> -> vector<8x128xf32>
    %173 = arith.mulf %141, %171 : vector<8x128xf32>
    %174 = arith.addf %173, %172 : vector<8x128xf32>
    %cst_105 = arith.constant 5.000000e-01 : f32
    %175 = vector.broadcast %cst_105 : f32 to vector<8x128xf32>
    %176 = arith.mulf %175, %174 : vector<8x128xf32>
    %cst_106 = arith.constant 0.707106769 : f32
    %177 = vector.broadcast %cst_106 : f32 to vector<8x128xf32>
    %178 = arith.mulf %174, %177 : vector<8x128xf32>
    %179 = math.erf %178 : vector<8x128xf32>
    %cst_107 = arith.constant 1.000000e+00 : f32
    %180 = vector.broadcast %cst_107 : f32 to vector<8x128xf32>
    %181 = arith.addf %180, %179 : vector<8x128xf32>
    %182 = arith.mulf %176, %181 : vector<8x128xf32>
    %c0_108 = arith.constant 0 : index
    %c0_109 = arith.constant 0 : index
    %c0_110 = arith.constant 0 : index
    %183 = vector.load %arg16[%c0_108, %c0_109, %c0_110] : memref<1x8x128xf32, #tpu.memory_space<vmem>>, vector<1x8x128xf32>
    %184 = vector.shape_cast %183 : vector<1x8x128xf32> to vector<8x128xf32>
    %185 = vector.shape_cast %182 : vector<8x128xf32> to vector<1x8x128xf32>
    tpu.vector_store %arg16[%c0_108, %c0_109, %c0_110], %185 {strides = array<i32>} : memref<1x8x128xf32, #tpu.memory_space<vmem>>, vector<1x8x128xf32>,
    return
  }
  func.func @transform_0(%arg0: i32) -> (i32, i32, i32) {
    %c0_i32 = arith.constant 0 : i32
    %c0_i32_0 = arith.constant 0 : i32
    %c0_i32_1 = arith.constant 0 : i32
    return %arg0, %c0_i32, %c0_i32_0 : i32, i32, i32
  }
  func.func @transform_1(%arg0: i32) -> (i32, i32) {
    %c0_i32 = arith.constant 0 : i32
    %c0_i32_0 = arith.constant 0 : i32
    %c0_i32_1 = arith.constant 0 : i32
    return %c0_i32, %c0_i32_0 : i32, i32
  }
  func.func @transform_2(%arg0: i32) -> (i32, i32, i32) {
    %c0_i32 = arith.constant 0 : i32
    %c0_i32_0 = arith.constant 0 : i32
    %c0_i32_1 = arith.constant 0 : i32
    %c0_i32_2 = arith.constant 0 : i32
    return %c0_i32, %c0_i32_0, %c0_i32_1 : i32, i32, i32
  }
  func.func @transform_3(%arg0: i32) -> (i32, i32) {
    %c0_i32 = arith.constant 0 : i32
    %c0_i32_0 = arith.constant 0 : i32
    %c0_i32_1 = arith.constant 0 : i32
    return %c0_i32, %c0_i32_0 : i32, i32
  }
  func.func @transform_4(%arg0: i32) -> (i32, i32) {
    %c0_i32 = arith.constant 0 : i32
    %c0_i32_0 = arith.constant 0 : i32
    %c0_i32_1 = arith.constant 0 : i32
    return %c0_i32, %c0_i32_0 : i32, i32
  }
  func.func @transform_5(%arg0: i32) -> (i32, i32) {
    %c0_i32 = arith.constant 0 : i32
    %c0_i32_0 = arith.constant 0 : i32
    %c0_i32_1 = arith.constant 0 : i32
    return %c0_i32, %c0_i32_0 : i32, i32
  }
  func.func @transform_6(%arg0: i32) -> (i32, i32) {
    %c0_i32 = arith.constant 0 : i32
    %c0_i32_0 = arith.constant 0 : i32
    %c0_i32_1 = arith.constant 0 : i32
    return %c0_i32, %c0_i32_0 : i32, i32
  }
  func.func @transform_7(%arg0: i32) -> (i32, i32) {
    %c0_i32 = arith.constant 0 : i32
    %c0_i32_0 = arith.constant 0 : i32
    %c0_i32_1 = arith.constant 0 : i32
    return %c0_i32, %c0_i32_0 : i32, i32
  }
  func.func @transform_8(%arg0: i32) -> (i32, i32) {
    %c0_i32 = arith.constant 0 : i32
    %c0_i32_0 = arith.constant 0 : i32
    %c0_i32_1 = arith.constant 0 : i32
    return %c0_i32, %c0_i32_0 : i32, i32
  }
  func.func @transform_9(%arg0: i32) -> (i32, i32) {
    %c0_i32 = arith.constant 0 : i32
    %c0_i32_0 = arith.constant 0 : i32
    %c0_i32_1 = arith.constant 0 : i32
    return %c0_i32, %c0_i32_0 : i32, i32
  }
  func.func @transform_10(%arg0: i32) -> (i32, i32) {
    %c0_i32 = arith.constant 0 : i32
    %c0_i32_0 = arith.constant 0 : i32
    %c0_i32_1 = arith.constant 0 : i32
    return %c0_i32, %c0_i32_0 : i32, i32
  }
  func.func @transform_11(%arg0: i32) -> (i32, i32) {
    %c0_i32 = arith.constant 0 : i32
    %c0_i32_0 = arith.constant 0 : i32
    %c0_i32_1 = arith.constant 0 : i32
    return %c0_i32, %c0_i32_0 : i32, i32
  }
  func.func @transform_12(%arg0: i32) -> (i32, i32) {
    %c0_i32 = arith.constant 0 : i32
    %c0_i32_0 = arith.constant 0 : i32
    %c0_i32_1 = arith.constant 0 : i32
    return %c0_i32, %c0_i32_0 : i32, i32
  }
  func.func @transform_13(%arg0: i32) -> (i32, i32) {
    %c0_i32 = arith.constant 0 : i32
    %c0_i32_0 = arith.constant 0 : i32
    %c0_i32_1 = arith.constant 0 : i32
    return %c0_i32, %c0_i32_0 : i32, i32
  }
  func.func @transform_14(%arg0: i32) -> (i32, i32) {
    %c0_i32 = arith.constant 0 : i32
    %c0_i32_0 = arith.constant 0 : i32
    %c0_i32_1 = arith.constant 0 : i32
    return %c0_i32, %c0_i32_0 : i32, i32
  }
  func.func @transform_15(%arg0: i32) -> (i32, i32, i32) {
    %c0_i32 = arith.constant 0 : i32
    %c0_i32_0 = arith.constant 0 : i32
    %c0_i32_1 = arith.constant 0 : i32
    return %arg0, %c0_i32, %c0_i32_0 : i32, i32, i32
  }
}

module attributes {stable_mosaic.version = 11 : i64} {
  func.func @_encoder_kernel(%arg0: i32, %arg1: memref<1x128x48xbf16, #tpu.memory_space<vmem>>, %arg2: memref<48x32xbf16, #tpu.memory_space<vmem>>, %arg3: memref<16x32x128xbf16, #tpu.memory_space<vmem>>, %arg4: memref<128x8xf32, #tpu.memory_space<vmem>>, %arg5: memref<8x128xf32, #tpu.memory_space<vmem>>, %arg6: memref<8x8xf32, #tpu.memory_space<vmem>>, %arg7: memref<8x8xf32, #tpu.memory_space<vmem>>, %arg8: memref<32x4xf32, #tpu.memory_space<vmem>>, %arg9: memref<4x32xf32, #tpu.memory_space<vmem>>, %arg10: memref<128x4xf32, #tpu.memory_space<vmem>>, %arg11: memref<4x128xf32, #tpu.memory_space<vmem>>, %arg12: memref<1x32xf32, #tpu.memory_space<vmem>>, %arg13: memref<1x32xf32, #tpu.memory_space<vmem>>, %arg14: memref<1x128xf32, #tpu.memory_space<vmem>>, %arg15: memref<1x128xf32, #tpu.memory_space<vmem>>, %arg16: memref<1x8x128xf32, #tpu.memory_space<vmem>>) attributes {dimension_semantics = [#tpu.dimension_semantics<parallel>], iteration_bounds = array<i64: 2>, scalar_prefetch = 0 : i64, scratch_operands = 0 : i64, tpu.core_type = #tpu.core_type<tc>, window_params = [{transform_indices = @transform_0, window_bounds = array<i64: 1, 128, 48>}, {pipeline_mode = #tpu.pipeline_mode<synchronous>, transform_indices = @transform_1, window_bounds = array<i64: 48, 32>}, {pipeline_mode = #tpu.pipeline_mode<synchronous>, transform_indices = @transform_2, window_bounds = array<i64: 16, 32, 128>}, {pipeline_mode = #tpu.pipeline_mode<synchronous>, transform_indices = @transform_3, window_bounds = array<i64: 128, 8>}, {pipeline_mode = #tpu.pipeline_mode<synchronous>, transform_indices = @transform_4, window_bounds = array<i64: 8, 128>}, {pipeline_mode = #tpu.pipeline_mode<synchronous>, transform_indices = @transform_5, window_bounds = array<i64: 8, 8>}, {pipeline_mode = #tpu.pipeline_mode<synchronous>, transform_indices = @transform_6, window_bounds = array<i64: 8, 8>}, {pipeline_mode = #tpu.pipeline_mode<synchronous>, transform_indices = @transform_7, window_bounds = array<i64: 32, 4>}, {pipeline_mode = #tpu.pipeline_mode<synchronous>, transform_indices = @transform_8, window_bounds = array<i64: 4, 32>}, {pipeline_mode = #tpu.pipeline_mode<synchronous>, transform_indices = @transform_9, window_bounds = array<i64: 128, 4>}, {pipeline_mode = #tpu.pipeline_mode<synchronous>, transform_indices = @transform_10, window_bounds = array<i64: 4, 128>}, {pipeline_mode = #tpu.pipeline_mode<synchronous>, transform_indices = @transform_11, window_bounds = array<i64: 1, 32>}, {pipeline_mode = #tpu.pipeline_mode<synchronous>, transform_indices = @transform_12, window_bounds = array<i64: 1, 32>}, {pipeline_mode = #tpu.pipeline_mode<synchronous>, transform_indices = @transform_13, window_bounds = array<i64: 1, 128>}, {pipeline_mode = #tpu.pipeline_mode<synchronous>, transform_indices = @transform_14, window_bounds = array<i64: 1, 128>}, {transform_indices = @transform_15, window_bounds = array<i64: 1, 8, 128>}]} {
    %c0 = arith.constant 0 : index
    %c0_0 = arith.constant 0 : index
    %c0_1 = arith.constant 0 : index
    %0 = vector.load %arg1[%c0, %c0_0, %c0_1] : memref<1x128x48xbf16, #tpu.memory_space<vmem>>, vector<1x128x48xbf16>
    %1 = vector.shape_cast %0 : vector<1x128x48xbf16> to vector<128x48xbf16>
    %c0_2 = arith.constant 0 : index
    %c0_3 = arith.constant 0 : index
    %2 = vector.load %arg2[%c0_2, %c0_3] : memref<48x32xbf16, #tpu.memory_space<vmem>>, vector<48x32xbf16>
    %cst = arith.constant dense<0.000000e+00> : vector<128x32xf32>
    %3 = tpu.matmul %1, %2, %cst {dimension_numbers = #tpu.dot_dimension_numbers<[1], [0], [0], [1], [0, 0, 1, 1], [], []>} : vector<128x48xbf16>, vector<48x32xbf16>, vector<128x32xf32> -> vector<128x32xf32>
    %c0_4 = arith.constant 0 : index
    %c0_5 = arith.constant 0 : index
    %4 = vector.load %arg4[%c0_4, %c0_5] : memref<128x8xf32, #tpu.memory_space<vmem>>, vector<128x8xf32>
    %c0_6 = arith.constant 0 : index
    %c0_7 = arith.constant 0 : index
    %5 = vector.load %arg5[%c0_6, %c0_7] : memref<8x128xf32, #tpu.memory_space<vmem>>, vector<8x128xf32>
    %c0_8 = arith.constant 0 : index
    %c0_9 = arith.constant 0 : index
    %6 = vector.load %arg8[%c0_8, %c0_9] : memref<32x4xf32, #tpu.memory_space<vmem>>, vector<32x4xf32>
    %c0_10 = arith.constant 0 : index
    %c0_11 = arith.constant 0 : index
    %7 = vector.load %arg9[%c0_10, %c0_11] : memref<4x32xf32, #tpu.memory_space<vmem>>, vector<4x32xf32>
    %c0_12 = arith.constant 0 : index
    %c0_13 = arith.constant 0 : index
    %8 = vector.load %arg12[%c0_12, %c0_13] : memref<1x32xf32, #tpu.memory_space<vmem>>, vector<1x32xf32>
    %c0_14 = arith.constant 0 : index
    %c0_15 = arith.constant 0 : index
    %9 = vector.load %arg13[%c0_14, %c0_15] : memref<1x32xf32, #tpu.memory_space<vmem>>, vector<1x32xf32>
    %cst_16 = arith.constant dense<0.000000e+00> : vector<8x32xf32>
    %10 = tpu.matmul %5, %3, %cst_16 {dimension_numbers = #tpu.dot_dimension_numbers<[1], [0], [0], [1], [0, 0, 1, 1], [], []>} : vector<8x128xf32>, vector<128x32xf32>, vector<8x32xf32> -> vector<8x32xf32>
    %11 = arith.mulf %3, %3 : vector<128x32xf32>
    %cst_17 = arith.constant dense<0.000000e+00> : vector<8x32xf32>
    %12 = tpu.matmul %5, %11, %cst_17 {dimension_numbers = #tpu.dot_dimension_numbers<[1], [0], [0], [1], [0, 0, 1, 1], [], []>} : vector<8x128xf32>, vector<128x32xf32>, vector<8x32xf32> -> vector<8x32xf32>
    %cst_18 = arith.constant dense<0.000000e+00> : vector<8x4xf32>
    %13 = tpu.matmul %10, %6, %cst_18 {dimension_numbers = #tpu.dot_dimension_numbers<[1], [0], [0], [1], [0, 0, 1, 1], [], []>} : vector<8x32xf32>, vector<32x4xf32>, vector<8x4xf32> -> vector<8x4xf32>
    %cst_19 = arith.constant dense<0.000000e+00> : vector<8x4xf32>
    %14 = tpu.matmul %12, %6, %cst_19 {dimension_numbers = #tpu.dot_dimension_numbers<[1], [0], [0], [1], [0, 0, 1, 1], [], []>} : vector<8x32xf32>, vector<32x4xf32>, vector<8x4xf32> -> vector<8x4xf32>
    %cst_20 = arith.constant 7.812500e-03 : f32
    %15 = vector.broadcast %cst_20 : f32 to vector<8x4xf32>
    %16 = arith.mulf %13, %15 : vector<8x4xf32>
    %cst_21 = arith.constant 7.812500e-03 : f32
    %17 = vector.broadcast %cst_21 : f32 to vector<8x4xf32>
    %18 = arith.mulf %14, %17 : vector<8x4xf32>
    %19 = arith.mulf %16, %16 : vector<8x4xf32>
    %20 = arith.subf %18, %19 : vector<8x4xf32>
    %cst_22 = arith.constant 0.000000e+00 : f32
    %21 = vector.broadcast %cst_22 : f32 to vector<8x4xf32>
    %22 = arith.maximumf %20, %21 : vector<8x4xf32>
    %cst_23 = arith.constant 9.99999974E-6 : f32
    %23 = vector.broadcast %cst_23 : f32 to vector<8x4xf32>
    %24 = arith.addf %22, %23 : vector<8x4xf32>
    %25 = math.rsqrt %24 : vector<8x4xf32>
    %cst_24 = arith.constant dense<0.000000e+00> : vector<8x32xf32>
    %26 = tpu.matmul %16, %7, %cst_24 {dimension_numbers = #tpu.dot_dimension_numbers<[1], [0], [0], [1], [0, 0, 1, 1], [], []>} : vector<8x4xf32>, vector<4x32xf32>, vector<8x32xf32> -> vector<8x32xf32>
    %cst_25 = arith.constant dense<0.000000e+00> : vector<8x32xf32>
    %27 = tpu.matmul %25, %7, %cst_25 {dimension_numbers = #tpu.dot_dimension_numbers<[1], [0], [0], [1], [0, 0, 1, 1], [], []>} : vector<8x4xf32>, vector<4x32xf32>, vector<8x32xf32> -> vector<8x32xf32>
    %28 = vector.broadcast %8 : vector<1x32xf32> to vector<8x32xf32>
    %29 = arith.mulf %27, %28 : vector<8x32xf32>
    %30 = arith.mulf %26, %29 : vector<8x32xf32>
    %31 = vector.broadcast %9 : vector<1x32xf32> to vector<8x32xf32>
    %32 = arith.subf %31, %30 : vector<8x32xf32>
    %cst_26 = arith.constant dense<0.000000e+00> : vector<128x32xf32>
    %33 = tpu.matmul %4, %29, %cst_26 {dimension_numbers = #tpu.dot_dimension_numbers<[1], [0], [0], [1], [0, 0, 1, 1], [], []>} : vector<128x8xf32>, vector<8x32xf32>, vector<128x32xf32> -> vector<128x32xf32>
    %cst_27 = arith.constant dense<0.000000e+00> : vector<128x32xf32>
    %34 = tpu.matmul %4, %32, %cst_27 {dimension_numbers = #tpu.dot_dimension_numbers<[1], [0], [0], [1], [0, 0, 1, 1], [], []>} : vector<128x8xf32>, vector<8x32xf32>, vector<128x32xf32> -> vector<128x32xf32>
    %35 = arith.mulf %3, %33 : vector<128x32xf32>
    %36 = arith.addf %35, %34 : vector<128x32xf32>
    %cst_28 = arith.constant 5.000000e-01 : f32
    %37 = vector.broadcast %cst_28 : f32 to vector<128x32xf32>
    %38 = arith.mulf %37, %36 : vector<128x32xf32>
    %cst_29 = arith.constant 0.707106769 : f32
    %39 = vector.broadcast %cst_29 : f32 to vector<128x32xf32>
    %40 = arith.mulf %36, %39 : vector<128x32xf32>
    %41 = math.erf %40 : vector<128x32xf32>
    %cst_30 = arith.constant 1.000000e+00 : f32
    %42 = vector.broadcast %cst_30 : f32 to vector<128x32xf32>
    %43 = arith.addf %42, %41 : vector<128x32xf32>
    %44 = arith.mulf %38, %43 : vector<128x32xf32>
    %cst_31 = arith.constant 0.000000e+00 : f32
    %45 = vector.broadcast %cst_31 : f32 to vector<8x128xf32>
    %46 = vector.extract_strided_slice %44 {offsets = [0, 0], sizes = [8, 32], strides = [1, 1]} : vector<128x32xf32> to vector<8x32xf32>
    %47 = arith.truncf %46 : vector<8x32xf32> to vector<8x32xbf16>
    %c0_32 = arith.constant 0 : index
    %c0_33 = arith.constant 0 : index
    %c0_34 = arith.constant 0 : index
    %48 = vector.load %arg3[%c0_32, %c0_33, %c0_34] : memref<16x32x128xbf16, #tpu.memory_space<vmem>>, vector<1x32x128xbf16>
    %49 = vector.shape_cast %48 : vector<1x32x128xbf16> to vector<32x128xbf16>
    %cst_35 = arith.constant dense<0.000000e+00> : vector<8x128xf32>
    %50 = tpu.matmul %47, %49, %cst_35 {dimension_numbers = #tpu.dot_dimension_numbers<[1], [0], [0], [1], [0, 0, 1, 1], [], []>} : vector<8x32xbf16>, vector<32x128xbf16>, vector<8x128xf32> -> vector<8x128xf32>
    %51 = arith.addf %45, %50 : vector<8x128xf32>
    %52 = vector.extract_strided_slice %44 {offsets = [8, 0], sizes = [8, 32], strides = [1, 1]} : vector<128x32xf32> to vector<8x32xf32>
    %53 = arith.truncf %52 : vector<8x32xf32> to vector<8x32xbf16>
    %c1 = arith.constant 1 : index
    %c0_36 = arith.constant 0 : index
    %c0_37 = arith.constant 0 : index
    %54 = vector.load %arg3[%c1, %c0_36, %c0_37] : memref<16x32x128xbf16, #tpu.memory_space<vmem>>, vector<1x32x128xbf16>
    %55 = vector.shape_cast %54 : vector<1x32x128xbf16> to vector<32x128xbf16>
    %cst_38 = arith.constant dense<0.000000e+00> : vector<8x128xf32>
    %56 = tpu.matmul %53, %55, %cst_38 {dimension_numbers = #tpu.dot_dimension_numbers<[1], [0], [0], [1], [0, 0, 1, 1], [], []>} : vector<8x32xbf16>, vector<32x128xbf16>, vector<8x128xf32> -> vector<8x128xf32>
    %57 = arith.addf %51, %56 : vector<8x128xf32>
    %58 = vector.extract_strided_slice %44 {offsets = [16, 0], sizes = [8, 32], strides = [1, 1]} : vector<128x32xf32> to vector<8x32xf32>
    %59 = arith.truncf %58 : vector<8x32xf32> to vector<8x32xbf16>
    %c2 = arith.constant 2 : index
    %c0_39 = arith.constant 0 : index
    %c0_40 = arith.constant 0 : index
    %60 = vector.load %arg3[%c2, %c0_39, %c0_40] : memref<16x32x128xbf16, #tpu.memory_space<vmem>>, vector<1x32x128xbf16>
    %61 = vector.shape_cast %60 : vector<1x32x128xbf16> to vector<32x128xbf16>
    %cst_41 = arith.constant dense<0.000000e+00> : vector<8x128xf32>
    %62 = tpu.matmul %59, %61, %cst_41 {dimension_numbers = #tpu.dot_dimension_numbers<[1], [0], [0], [1], [0, 0, 1, 1], [], []>} : vector<8x32xbf16>, vector<32x128xbf16>, vector<8x128xf32> -> vector<8x128xf32>
    %63 = arith.addf %57, %62 : vector<8x128xf32>
    %64 = vector.extract_strided_slice %44 {offsets = [24, 0], sizes = [8, 32], strides = [1, 1]} : vector<128x32xf32> to vector<8x32xf32>
    %65 = arith.truncf %64 : vector<8x32xf32> to vector<8x32xbf16>
    %c3 = arith.constant 3 : index
    %c0_42 = arith.constant 0 : index
    %c0_43 = arith.constant 0 : index
    %66 = vector.load %arg3[%c3, %c0_42, %c0_43] : memref<16x32x128xbf16, #tpu.memory_space<vmem>>, vector<1x32x128xbf16>
    %67 = vector.shape_cast %66 : vector<1x32x128xbf16> to vector<32x128xbf16>
    %cst_44 = arith.constant dense<0.000000e+00> : vector<8x128xf32>
    %68 = tpu.matmul %65, %67, %cst_44 {dimension_numbers = #tpu.dot_dimension_numbers<[1], [0], [0], [1], [0, 0, 1, 1], [], []>} : vector<8x32xbf16>, vector<32x128xbf16>, vector<8x128xf32> -> vector<8x128xf32>
    %69 = arith.addf %63, %68 : vector<8x128xf32>
    %70 = vector.extract_strided_slice %44 {offsets = [32, 0], sizes = [8, 32], strides = [1, 1]} : vector<128x32xf32> to vector<8x32xf32>
    %71 = arith.truncf %70 : vector<8x32xf32> to vector<8x32xbf16>
    %c4 = arith.constant 4 : index
    %c0_45 = arith.constant 0 : index
    %c0_46 = arith.constant 0 : index
    %72 = vector.load %arg3[%c4, %c0_45, %c0_46] : memref<16x32x128xbf16, #tpu.memory_space<vmem>>, vector<1x32x128xbf16>
    %73 = vector.shape_cast %72 : vector<1x32x128xbf16> to vector<32x128xbf16>
    %cst_47 = arith.constant dense<0.000000e+00> : vector<8x128xf32>
    %74 = tpu.matmul %71, %73, %cst_47 {dimension_numbers = #tpu.dot_dimension_numbers<[1], [0], [0], [1], [0, 0, 1, 1], [], []>} : vector<8x32xbf16>, vector<32x128xbf16>, vector<8x128xf32> -> vector<8x128xf32>
    %75 = arith.addf %69, %74 : vector<8x128xf32>
    %76 = vector.extract_strided_slice %44 {offsets = [40, 0], sizes = [8, 32], strides = [1, 1]} : vector<128x32xf32> to vector<8x32xf32>
    %77 = arith.truncf %76 : vector<8x32xf32> to vector<8x32xbf16>
    %c5 = arith.constant 5 : index
    %c0_48 = arith.constant 0 : index
    %c0_49 = arith.constant 0 : index
    %78 = vector.load %arg3[%c5, %c0_48, %c0_49] : memref<16x32x128xbf16, #tpu.memory_space<vmem>>, vector<1x32x128xbf16>
    %79 = vector.shape_cast %78 : vector<1x32x128xbf16> to vector<32x128xbf16>
    %cst_50 = arith.constant dense<0.000000e+00> : vector<8x128xf32>
    %80 = tpu.matmul %77, %79, %cst_50 {dimension_numbers = #tpu.dot_dimension_numbers<[1], [0], [0], [1], [0, 0, 1, 1], [], []>} : vector<8x32xbf16>, vector<32x128xbf16>, vector<8x128xf32> -> vector<8x128xf32>
    %81 = arith.addf %75, %80 : vector<8x128xf32>
    %82 = vector.extract_strided_slice %44 {offsets = [48, 0], sizes = [8, 32], strides = [1, 1]} : vector<128x32xf32> to vector<8x32xf32>
    %83 = arith.truncf %82 : vector<8x32xf32> to vector<8x32xbf16>
    %c6 = arith.constant 6 : index
    %c0_51 = arith.constant 0 : index
    %c0_52 = arith.constant 0 : index
    %84 = vector.load %arg3[%c6, %c0_51, %c0_52] : memref<16x32x128xbf16, #tpu.memory_space<vmem>>, vector<1x32x128xbf16>
    %85 = vector.shape_cast %84 : vector<1x32x128xbf16> to vector<32x128xbf16>
    %cst_53 = arith.constant dense<0.000000e+00> : vector<8x128xf32>
    %86 = tpu.matmul %83, %85, %cst_53 {dimension_numbers = #tpu.dot_dimension_numbers<[1], [0], [0], [1], [0, 0, 1, 1], [], []>} : vector<8x32xbf16>, vector<32x128xbf16>, vector<8x128xf32> -> vector<8x128xf32>
    %87 = arith.addf %81, %86 : vector<8x128xf32>
    %88 = vector.extract_strided_slice %44 {offsets = [56, 0], sizes = [8, 32], strides = [1, 1]} : vector<128x32xf32> to vector<8x32xf32>
    %89 = arith.truncf %88 : vector<8x32xf32> to vector<8x32xbf16>
    %c7 = arith.constant 7 : index
    %c0_54 = arith.constant 0 : index
    %c0_55 = arith.constant 0 : index
    %90 = vector.load %arg3[%c7, %c0_54, %c0_55] : memref<16x32x128xbf16, #tpu.memory_space<vmem>>, vector<1x32x128xbf16>
    %91 = vector.shape_cast %90 : vector<1x32x128xbf16> to vector<32x128xbf16>
    %cst_56 = arith.constant dense<0.000000e+00> : vector<8x128xf32>
    %92 = tpu.matmul %89, %91, %cst_56 {dimension_numbers = #tpu.dot_dimension_numbers<[1], [0], [0], [1], [0, 0, 1, 1], [], []>} : vector<8x32xbf16>, vector<32x128xbf16>, vector<8x128xf32> -> vector<8x128xf32>
    %93 = arith.addf %87, %92 : vector<8x128xf32>
    %94 = vector.extract_strided_slice %44 {offsets = [64, 0], sizes = [8, 32], strides = [1, 1]} : vector<128x32xf32> to vector<8x32xf32>
    %95 = arith.truncf %94 : vector<8x32xf32> to vector<8x32xbf16>
    %c8 = arith.constant 8 : index
    %c0_57 = arith.constant 0 : index
    %c0_58 = arith.constant 0 : index
    %96 = vector.load %arg3[%c8, %c0_57, %c0_58] : memref<16x32x128xbf16, #tpu.memory_space<vmem>>, vector<1x32x128xbf16>
    %97 = vector.shape_cast %96 : vector<1x32x128xbf16> to vector<32x128xbf16>
    %cst_59 = arith.constant dense<0.000000e+00> : vector<8x128xf32>
    %98 = tpu.matmul %95, %97, %cst_59 {dimension_numbers = #tpu.dot_dimension_numbers<[1], [0], [0], [1], [0, 0, 1, 1], [], []>} : vector<8x32xbf16>, vector<32x128xbf16>, vector<8x128xf32> -> vector<8x128xf32>
    %99 = arith.addf %93, %98 : vector<8x128xf32>
    %100 = vector.extract_strided_slice %44 {offsets = [72, 0], sizes = [8, 32], strides = [1, 1]} : vector<128x32xf32> to vector<8x32xf32>
    %101 = arith.truncf %100 : vector<8x32xf32> to vector<8x32xbf16>
    %c9 = arith.constant 9 : index
    %c0_60 = arith.constant 0 : index
    %c0_61 = arith.constant 0 : index
    %102 = vector.load %arg3[%c9, %c0_60, %c0_61] : memref<16x32x128xbf16, #tpu.memory_space<vmem>>, vector<1x32x128xbf16>
    %103 = vector.shape_cast %102 : vector<1x32x128xbf16> to vector<32x128xbf16>
    %cst_62 = arith.constant dense<0.000000e+00> : vector<8x128xf32>
    %104 = tpu.matmul %101, %103, %cst_62 {dimension_numbers = #tpu.dot_dimension_numbers<[1], [0], [0], [1], [0, 0, 1, 1], [], []>} : vector<8x32xbf16>, vector<32x128xbf16>, vector<8x128xf32> -> vector<8x128xf32>
    %105 = arith.addf %99, %104 : vector<8x128xf32>
    %106 = vector.extract_strided_slice %44 {offsets = [80, 0], sizes = [8, 32], strides = [1, 1]} : vector<128x32xf32> to vector<8x32xf32>
    %107 = arith.truncf %106 : vector<8x32xf32> to vector<8x32xbf16>
    %c10 = arith.constant 10 : index
    %c0_63 = arith.constant 0 : index
    %c0_64 = arith.constant 0 : index
    %108 = vector.load %arg3[%c10, %c0_63, %c0_64] : memref<16x32x128xbf16, #tpu.memory_space<vmem>>, vector<1x32x128xbf16>
    %109 = vector.shape_cast %108 : vector<1x32x128xbf16> to vector<32x128xbf16>
    %cst_65 = arith.constant dense<0.000000e+00> : vector<8x128xf32>
    %110 = tpu.matmul %107, %109, %cst_65 {dimension_numbers = #tpu.dot_dimension_numbers<[1], [0], [0], [1], [0, 0, 1, 1], [], []>} : vector<8x32xbf16>, vector<32x128xbf16>, vector<8x128xf32> -> vector<8x128xf32>
    %111 = arith.addf %105, %110 : vector<8x128xf32>
    %112 = vector.extract_strided_slice %44 {offsets = [88, 0], sizes = [8, 32], strides = [1, 1]} : vector<128x32xf32> to vector<8x32xf32>
    %113 = arith.truncf %112 : vector<8x32xf32> to vector<8x32xbf16>
    %c11 = arith.constant 11 : index
    %c0_66 = arith.constant 0 : index
    %c0_67 = arith.constant 0 : index
    %114 = vector.load %arg3[%c11, %c0_66, %c0_67] : memref<16x32x128xbf16, #tpu.memory_space<vmem>>, vector<1x32x128xbf16>
    %115 = vector.shape_cast %114 : vector<1x32x128xbf16> to vector<32x128xbf16>
    %cst_68 = arith.constant dense<0.000000e+00> : vector<8x128xf32>
    %116 = tpu.matmul %113, %115, %cst_68 {dimension_numbers = #tpu.dot_dimension_numbers<[1], [0], [0], [1], [0, 0, 1, 1], [], []>} : vector<8x32xbf16>, vector<32x128xbf16>, vector<8x128xf32> -> vector<8x128xf32>
    %117 = arith.addf %111, %116 : vector<8x128xf32>
    %118 = vector.extract_strided_slice %44 {offsets = [96, 0], sizes = [8, 32], strides = [1, 1]} : vector<128x32xf32> to vector<8x32xf32>
    %119 = arith.truncf %118 : vector<8x32xf32> to vector<8x32xbf16>
    %c12 = arith.constant 12 : index
    %c0_69 = arith.constant 0 : index
    %c0_70 = arith.constant 0 : index
    %120 = vector.load %arg3[%c12, %c0_69, %c0_70] : memref<16x32x128xbf16, #tpu.memory_space<vmem>>, vector<1x32x128xbf16>
    %121 = vector.shape_cast %120 : vector<1x32x128xbf16> to vector<32x128xbf16>
    %cst_71 = arith.constant dense<0.000000e+00> : vector<8x128xf32>
    %122 = tpu.matmul %119, %121, %cst_71 {dimension_numbers = #tpu.dot_dimension_numbers<[1], [0], [0], [1], [0, 0, 1, 1], [], []>} : vector<8x32xbf16>, vector<32x128xbf16>, vector<8x128xf32> -> vector<8x128xf32>
    %123 = arith.addf %117, %122 : vector<8x128xf32>
    %124 = vector.extract_strided_slice %44 {offsets = [104, 0], sizes = [8, 32], strides = [1, 1]} : vector<128x32xf32> to vector<8x32xf32>
    %125 = arith.truncf %124 : vector<8x32xf32> to vector<8x32xbf16>
    %c13 = arith.constant 13 : index
    %c0_72 = arith.constant 0 : index
    %c0_73 = arith.constant 0 : index
    %126 = vector.load %arg3[%c13, %c0_72, %c0_73] : memref<16x32x128xbf16, #tpu.memory_space<vmem>>, vector<1x32x128xbf16>
    %127 = vector.shape_cast %126 : vector<1x32x128xbf16> to vector<32x128xbf16>
    %cst_74 = arith.constant dense<0.000000e+00> : vector<8x128xf32>
    %128 = tpu.matmul %125, %127, %cst_74 {dimension_numbers = #tpu.dot_dimension_numbers<[1], [0], [0], [1], [0, 0, 1, 1], [], []>} : vector<8x32xbf16>, vector<32x128xbf16>, vector<8x128xf32> -> vector<8x128xf32>
    %129 = arith.addf %123, %128 : vector<8x128xf32>
    %130 = vector.extract_strided_slice %44 {offsets = [112, 0], sizes = [8, 32], strides = [1, 1]} : vector<128x32xf32> to vector<8x32xf32>
    %131 = arith.truncf %130 : vector<8x32xf32> to vector<8x32xbf16>
    %c14 = arith.constant 14 : index
    %c0_75 = arith.constant 0 : index
    %c0_76 = arith.constant 0 : index
    %132 = vector.load %arg3[%c14, %c0_75, %c0_76] : memref<16x32x128xbf16, #tpu.memory_space<vmem>>, vector<1x32x128xbf16>
    %133 = vector.shape_cast %132 : vector<1x32x128xbf16> to vector<32x128xbf16>
    %cst_77 = arith.constant dense<0.000000e+00> : vector<8x128xf32>
    %134 = tpu.matmul %131, %133, %cst_77 {dimension_numbers = #tpu.dot_dimension_numbers<[1], [0], [0], [1], [0, 0, 1, 1], [], []>} : vector<8x32xbf16>, vector<32x128xbf16>, vector<8x128xf32> -> vector<8x128xf32>
    %135 = arith.addf %129, %134 : vector<8x128xf32>
    %136 = vector.extract_strided_slice %44 {offsets = [120, 0], sizes = [8, 32], strides = [1, 1]} : vector<128x32xf32> to vector<8x32xf32>
    %137 = arith.truncf %136 : vector<8x32xf32> to vector<8x32xbf16>
    %c15 = arith.constant 15 : index
    %c0_78 = arith.constant 0 : index
    %c0_79 = arith.constant 0 : index
    %138 = vector.load %arg3[%c15, %c0_78, %c0_79] : memref<16x32x128xbf16, #tpu.memory_space<vmem>>, vector<1x32x128xbf16>
    %139 = vector.shape_cast %138 : vector<1x32x128xbf16> to vector<32x128xbf16>
    %cst_80 = arith.constant dense<0.000000e+00> : vector<8x128xf32>
    %140 = tpu.matmul %137, %139, %cst_80 {dimension_numbers = #tpu.dot_dimension_numbers<[1], [0], [0], [1], [0, 0, 1, 1], [], []>} : vector<8x32xbf16>, vector<32x128xbf16>, vector<8x128xf32> -> vector<8x128xf32>
    %141 = arith.addf %135, %140 : vector<8x128xf32>
    %c0_81 = arith.constant 0 : index
    %c0_82 = arith.constant 0 : index
    %142 = vector.load %arg6[%c0_81, %c0_82] : memref<8x8xf32, #tpu.memory_space<vmem>>, vector<8x8xf32>
    %c0_83 = arith.constant 0 : index
    %c0_84 = arith.constant 0 : index
    %143 = vector.load %arg7[%c0_83, %c0_84] : memref<8x8xf32, #tpu.memory_space<vmem>>, vector<8x8xf32>
    %c0_85 = arith.constant 0 : index
    %c0_86 = arith.constant 0 : index
    %144 = vector.load %arg10[%c0_85, %c0_86] : memref<128x4xf32, #tpu.memory_space<vmem>>, vector<128x4xf32>
    %c0_87 = arith.constant 0 : index
    %c0_88 = arith.constant 0 : index
    %145 = vector.load %arg11[%c0_87, %c0_88] : memref<4x128xf32, #tpu.memory_space<vmem>>, vector<4x128xf32>
    %c0_89 = arith.constant 0 : index
    %c0_90 = arith.constant 0 : index
    %146 = vector.load %arg14[%c0_89, %c0_90] : memref<1x128xf32, #tpu.memory_space<vmem>>, vector<1x128xf32>
    %c0_91 = arith.constant 0 : index
    %c0_92 = arith.constant 0 : index
    %147 = vector.load %arg15[%c0_91, %c0_92] : memref<1x128xf32, #tpu.memory_space<vmem>>, vector<1x128xf32>
    %cst_93 = arith.constant dense<0.000000e+00> : vector<8x128xf32>
    %148 = tpu.matmul %143, %141, %cst_93 {dimension_numbers = #tpu.dot_dimension_numbers<[1], [0], [0], [1], [0, 0, 1, 1], [], []>} : vector<8x8xf32>, vector<8x128xf32>, vector<8x128xf32> -> vector<8x128xf32>
    %149 = arith.mulf %141, %141 : vector<8x128xf32>
    %cst_94 = arith.constant dense<0.000000e+00> : vector<8x128xf32>
    %150 = tpu.matmul %143, %149, %cst_94 {dimension_numbers = #tpu.dot_dimension_numbers<[1], [0], [0], [1], [0, 0, 1, 1], [], []>} : vector<8x8xf32>, vector<8x128xf32>, vector<8x128xf32> -> vector<8x128xf32>
    %cst_95 = arith.constant dense<0.000000e+00> : vector<8x4xf32>
    %151 = tpu.matmul %148, %144, %cst_95 {dimension_numbers = #tpu.dot_dimension_numbers<[1], [0], [0], [1], [0, 0, 1, 1], [], []>} : vector<8x128xf32>, vector<128x4xf32>, vector<8x4xf32> -> vector<8x4xf32>
    %cst_96 = arith.constant dense<0.000000e+00> : vector<8x4xf32>
    %152 = tpu.matmul %150, %144, %cst_96 {dimension_numbers = #tpu.dot_dimension_numbers<[1], [0], [0], [1], [0, 0, 1, 1], [], []>} : vector<8x128xf32>, vector<128x4xf32>, vector<8x4xf32> -> vector<8x4xf32>
    %cst_97 = arith.constant 3.125000e-02 : f32
    %153 = vector.broadcast %cst_97 : f32 to vector<8x4xf32>
    %154 = arith.mulf %151, %153 : vector<8x4xf32>
    %cst_98 = arith.constant 3.125000e-02 : f32
    %155 = vector.broadcast %cst_98 : f32 to vector<8x4xf32>
    %156 = arith.mulf %152, %155 : vector<8x4xf32>
    %157 = arith.mulf %154, %154 : vector<8x4xf32>
    %158 = arith.subf %156, %157 : vector<8x4xf32>
    %cst_99 = arith.constant 0.000000e+00 : f32
    %159 = vector.broadcast %cst_99 : f32 to vector<8x4xf32>
    %160 = arith.maximumf %158, %159 : vector<8x4xf32>
    %cst_100 = arith.constant 9.99999974E-6 : f32
    %161 = vector.broadcast %cst_100 : f32 to vector<8x4xf32>
    %162 = arith.addf %160, %161 : vector<8x4xf32>
    %163 = math.rsqrt %162 : vector<8x4xf32>
    %cst_101 = arith.constant dense<0.000000e+00> : vector<8x128xf32>
    %164 = tpu.matmul %154, %145, %cst_101 {dimension_numbers = #tpu.dot_dimension_numbers<[1], [0], [0], [1], [0, 0, 1, 1], [], []>} : vector<8x4xf32>, vector<4x128xf32>, vector<8x128xf32> -> vector<8x128xf32>
    %cst_102 = arith.constant dense<0.000000e+00> : vector<8x128xf32>
    %165 = tpu.matmul %163, %145, %cst_102 {dimension_numbers = #tpu.dot_dimension_numbers<[1], [0], [0], [1], [0, 0, 1, 1], [], []>} : vector<8x4xf32>, vector<4x128xf32>, vector<8x128xf32> -> vector<8x128xf32>
    %166 = vector.broadcast %146 : vector<1x128xf32> to vector<8x128xf32>
    %167 = arith.mulf %165, %166 : vector<8x128xf32>
    %168 = arith.mulf %164, %167 : vector<8x128xf32>
    %169 = vector.broadcast %147 : vector<1x128xf32> to vector<8x128xf32>
    %170 = arith.subf %169, %168 : vector<8x128xf32>
    %cst_103 = arith.constant dense<0.000000e+00> : vector<8x128xf32>
    %171 = tpu.matmul %142, %167, %cst_103 {dimension_numbers = #tpu.dot_dimension_numbers<[1], [0], [0], [1], [0, 0, 1, 1], [], []>} : vector<8x8xf32>, vector<8x128xf32>, vector<8x128xf32> -> vector<8x128xf32>
    %cst_104 = arith.constant dense<0.000000e+00> : vector<8x128xf32>
    %172 = tpu.matmul %142, %170, %cst_104 {dimension_numbers = #tpu.dot_dimension_numbers<[1], [0], [0], [1], [0, 0, 1, 1], [], []>} : vector<8x8xf32>, vector<8x128xf32>, vector<8x128xf32> -> vector<8x128xf32>
    %173 = arith.mulf %141, %171 : vector<8x128xf32>
    %174 = arith.addf %173, %172 : vector<8x128xf32>
    %cst_105 = arith.constant 5.000000e-01 : f32
    %175 = vector.broadcast %cst_105 : f32 to vector<8x128xf32>
    %176 = arith.mulf %175, %174 : vector<8x128xf32>
    %cst_106 = arith.constant 0.707106769 : f32
    %177 = vector.broadcast %cst_106 : f32 to vector<8x128xf32>
    %178 = arith.mulf %174, %177 : vector<8x128xf32>
    %179 = math.erf %178 : vector<8x128xf32>
    %cst_107 = arith.constant 1.000000e+00 : f32
    %180 = vector.broadcast %cst_107 : f32 to vector<8x128xf32>
    %181 = arith.addf %180, %179 : vector<8x128xf32>
    %182 = arith.mulf %176, %181 : vector<8x128xf32>
    %c0_108 = arith.constant 0 : index
    %c0_109 = arith.constant 0 : index
    %c0_110 = arith.constant 0 : index
    %183 = vector.load %arg16[%c0_108, %c0_109, %c0_110] : memref<1x8x128xf32, #tpu.memory_space<vmem>>, vector<1x8x128xf32>
    %184 = vector.shape_cast %183 : vector<1x8x128xf32> to vector<8x128xf32>
    %185 = vector.shape_cast %182 : vector<8x128xf32> to vector<1x8x128xf32>
    tpu.vector_store %arg16[%c0_108, %c0_109, %c0_110], %185 {strides = array<i32>} : memref<1x8x128xf32, #tpu.memory_space<vmem>>, vector<1x8x128xf32>,
    return
  }
  func.func @transform_0(%arg0: i32) -> (i32, i32, i32) {
    %c0_i32 = arith.constant 0 : i32
    %c0_i32_0 = arith.constant 0 : i32
    %c0_i32_1 = arith.constant 0 : i32
    return %arg0, %c0_i32, %c0_i32_0 : i32, i32, i32
  }
  func.func @transform_1(%arg0: i32) -> (i32, i32) {
    %c0_i32 = arith.constant 0 : i32
    %c0_i32_0 = arith.constant 0 : i32
    %c0_i32_1 = arith.constant 0 : i32
    return %c0_i32, %c0_i32_0 : i32, i32
  }
  func.func @transform_2(%arg0: i32) -> (i32, i32, i32) {
    %c0_i32 = arith.constant 0 : i32
    %c0_i32_0 = arith.constant 0 : i32
    %c0_i32_1 = arith.constant 0 : i32
    %c0_i32_2 = arith.constant 0 : i32
    return %c0_i32, %c0_i32_0, %c0_i32_1 : i32, i32, i32
  }
  func.func @transform_3(%arg0: i32) -> (i32, i32) {
    %c0_i32 = arith.constant 0 : i32
    %c0_i32_0 = arith.constant 0 : i32
    %c0_i32_1 = arith.constant 0 : i32
    return %c0_i32, %c0_i32_0 : i32, i32
  }
  func.func @transform_4(%arg0: i32) -> (i32, i32) {
    %c0_i32 = arith.constant 0 : i32
    %c0_i32_0 = arith.constant 0 : i32
    %c0_i32_1 = arith.constant 0 : i32
    return %c0_i32, %c0_i32_0 : i32, i32
  }
  func.func @transform_5(%arg0: i32) -> (i32, i32) {
    %c0_i32 = arith.constant 0 : i32
    %c0_i32_0 = arith.constant 0 : i32
    %c0_i32_1 = arith.constant 0 : i32
    return %c0_i32, %c0_i32_0 : i32, i32
  }
  func.func @transform_6(%arg0: i32) -> (i32, i32) {
    %c0_i32 = arith.constant 0 : i32
    %c0_i32_0 = arith.constant 0 : i32
    %c0_i32_1 = arith.constant 0 : i32
    return %c0_i32, %c0_i32_0 : i32, i32
  }
  func.func @transform_7(%arg0: i32) -> (i32, i32) {
    %c0_i32 = arith.constant 0 : i32
    %c0_i32_0 = arith.constant 0 : i32
    %c0_i32_1 = arith.constant 0 : i32
    return %c0_i32, %c0_i32_0 : i32, i32
  }
  func.func @transform_8(%arg0: i32) -> (i32, i32) {
    %c0_i32 = arith.constant 0 : i32
    %c0_i32_0 = arith.constant 0 : i32
    %c0_i32_1 = arith.constant 0 : i32
    return %c0_i32, %c0_i32_0 : i32, i32
  }
  func.func @transform_9(%arg0: i32) -> (i32, i32) {
    %c0_i32 = arith.constant 0 : i32
    %c0_i32_0 = arith.constant 0 : i32
    %c0_i32_1 = arith.constant 0 : i32
    return %c0_i32, %c0_i32_0 : i32, i32
  }
  func.func @transform_10(%arg0: i32) -> (i32, i32) {
    %c0_i32 = arith.constant 0 : i32
    %c0_i32_0 = arith.constant 0 : i32
    %c0_i32_1 = arith.constant 0 : i32
    return %c0_i32, %c0_i32_0 : i32, i32
  }
  func.func @transform_11(%arg0: i32) -> (i32, i32) {
    %c0_i32 = arith.constant 0 : i32
    %c0_i32_0 = arith.constant 0 : i32
    %c0_i32_1 = arith.constant 0 : i32
    return %c0_i32, %c0_i32_0 : i32, i32
  }
  func.func @transform_12(%arg0: i32) -> (i32, i32) {
    %c0_i32 = arith.constant 0 : i32
    %c0_i32_0 = arith.constant 0 : i32
    %c0_i32_1 = arith.constant 0 : i32
    return %c0_i32, %c0_i32_0 : i32, i32
  }
  func.func @transform_13(%arg0: i32) -> (i32, i32) {
    %c0_i32 = arith.constant 0 : i32
    %c0_i32_0 = arith.constant 0 : i32
    %c0_i32_1 = arith.constant 0 : i32
    return %c0_i32, %c0_i32_0 : i32, i32
  }
  func.func @transform_14(%arg0: i32) -> (i32, i32) {
    %c0_i32 = arith.constant 0 : i32
    %c0_i32_0 = arith.constant 0 : i32
    %c0_i32_1 = arith.constant 0 : i32
    return %c0_i32, %c0_i32_0 : i32, i32
  }
  func.func @transform_15(%arg0: i32) -> (i32, i32, i32) {
    %c0_i32 = arith.constant 0 : i32
    %c0_i32_0 = arith.constant 0 : i32
    %c0_i32_1 = arith.constant 0 : i32
    return %arg0, %c0_i32, %c0_i32_0 : i32, i32, i32
  }
}

</mosaic_0001>

<llo_original>
// kernel: tpu_custom_call.1
$region0: #{tpu_custom_call.1}
  #allocation0 [shape = 'u32[]', space=smem, size = 0x4, offset = 0x4, fixed_abs, tag = 'smem constant byte address 0x4 - core index']
  #allocation1 [shape = 'u32[144,128]{1,0:T(1,128)}', space=vmem, size = 0x12000, scoped, tag = 'internal scratch']
  %s0 = inlined_call_operand.vmem [shape: bf16[2,128,48], index: 0, kind: input, shape index: {}]
  %s1 = inlined_call_operand.vmem [shape: bf16[48,32], index: 1, kind: input, shape index: {}]
  %s2 = inlined_call_operand.vmem [shape: bf16[16,32,128], index: 2, kind: input, shape index: {}]
  %s3 = inlined_call_operand.vmem [shape: f32[128,8], index: 3, kind: input, shape index: {}]
  %s4 = inlined_call_operand.vmem [shape: f32[8,128], index: 4, kind: input, shape index: {}]
  %s5 = inlined_call_operand.vmem [shape: f32[8,8], index: 5, kind: input, shape index: {}]
  %s6 = inlined_call_operand.vmem [shape: f32[8,8], index: 6, kind: input, shape index: {}]
  %s7 = inlined_call_operand.vmem [shape: f32[32,4], index: 7, kind: input, shape index: {}]
  %s8 = inlined_call_operand.vmem [shape: f32[4,32], index: 8, kind: input, shape index: {}]
  %s9 = inlined_call_operand.vmem [shape: f32[128,4], index: 9, kind: input, shape index: {}]
  %s10 = inlined_call_operand.vmem [shape: f32[4,128], index: 10, kind: input, shape index: {}]
  %s11 = inlined_call_operand.vmem [shape: f32[1,32], index: 11, kind: input, shape index: {}]
  %s12 = inlined_call_operand.vmem [shape: f32[1,32], index: 12, kind: input, shape index: {}]
  %s13 = inlined_call_operand.vmem [shape: f32[1,128], index: 13, kind: input, shape index: {}]
  %s14 = inlined_call_operand.vmem [shape: f32[1,128], index: 14, kind: input, shape index: {}]
  %s15 = inlined_call_operand.hbm [shape: f32[2,8,128], index: 15, kind: output, shape index: {}]
  %s16 = sld [smem:[#allocation0]]
  $region93: #{tpu_custom_call.1} parent=0
    _
  %s18 = ssub.s32 1, %s16
  %s19 = scalar_select 0, %s18, %s16
  $region1: #{tpu_custom_call.1} parent=0
    #allocation2 [shape = 'u8[8192]{0}', space=vmem, size = 0x2000, scoped, tag = 'output window, operand 0']
    #allocation3 [shape = 's32[2]{0}', space=sflag, size = 0x8, scoped, tag = 'scoped memory for tpu_custom_call.1']
    %20 = vsyncpa [#allocation3], 0
    %s21 = scalar_lea.sflag [#allocation3], 1
    %22 = vsyncpa %s21, 0
    loop: start=0, step=1, limit=4
    $region2: #{tpu_custom_call.1} parent=1 // loop_pre_header
      _
    $region3: #{tpu_custom_call.1} parent=1 // loop_header
      %s24 = sphi 0, %s28
      %p25 = scmp.ge.s32.totalorder %s24, 4
      %s34 = sphi 0, %s36
      %s37 = sphi 0, %s34
      %s38 = sphi 0, %s37
      %s54 = sphi 0, %s38
      %s58 = sphi 0, %s58
      %s60 = sphi 0, %s58
      %s61 = sphi 0, %s60
      %s75 = sphi 0, %s61
      %s79 = sphi 0, %s79
      %s81 = sphi 0, %s79
      %s82 = sphi 0, %s81
      %s96 = sphi 0, %s82
      %s100 = sphi 0, %s100
      %s102 = sphi 0, %s100
      %s103 = sphi 0, %s102
      %s117 = sphi 0, %s103
      %s121 = sphi 0, %s121
      %s123 = sphi 0, %s121
      %s124 = sphi 0, %s123
      %s138 = sphi 0, %s124
      %s142 = sphi 0, %s142
      %s144 = sphi 0, %s142
      %s145 = sphi 0, %s144
      %s159 = sphi 0, %s145
      %s163 = sphi 0, %s163
      %s165 = sphi 0, %s163
      %s166 = sphi 0, %s165
      %s180 = sphi 0, %s166
      %s184 = sphi 0, %s184
      %s186 = sphi 0, %s184
      %s187 = sphi 0, %s186
      %s201 = sphi 0, %s187
      %s205 = sphi 0, %s205
      %s207 = sphi 0, %s205
      %s208 = sphi 0, %s207
      %s222 = sphi 0, %s208
      %s226 = sphi 0, %s226
      %s228 = sphi 0, %s226
      %s229 = sphi 0, %s228
      %s243 = sphi 0, %s229
      %s247 = sphi 0, %s247
      %s249 = sphi 0, %s247
      %s250 = sphi 0, %s249
      %s264 = sphi 0, %s250
      %s268 = sphi 0, %s268
      %s270 = sphi 0, %s268
      %s271 = sphi 0, %s270
      %s285 = sphi 0, %s271
      %s289 = sphi 0, %s289
      %s291 = sphi 0, %s289
      %s292 = sphi 0, %s291
      %s306 = sphi 0, %s292
      %s310 = sphi 0, %s310
      %s312 = sphi 0, %s310
      %s313 = sphi 0, %s312
      %s327 = sphi 0, %s313
      %s331 = sphi 0, %s331
      %s333 = sphi 0, %s331
      %s334 = sphi 0, %s333
      %s348 = sphi 0, %s334
      %s354 = sphi 0, %s356
      %s357 = sphi 0, %s354
      %s358 = sphi 0, %s357
      %s374 = sphi 0, %s358
    $region4: #{tpu_custom_call.1} parent=1 // loop_header_branch
      %27 = sbr.rel (%p25) target = $region8
    $region5: #{tpu_custom_call.1} parent=1 // loop_body
      %s29 = ssub.s32 %s24, 1
      %s30 = ssub.s32 %s24, 2
      %s31 = sadd.s32 %s24, 1
      %s32 = ssub.s32 %s24, %s31
      %p33 = scmp.eq.s32.totalorder %s32, 0
      %s35 = sadd.s32 %s34, 1
      %s36 = scalar_select %p33, %s34, %s35
      %p39 = pneg %p33
      %p40 = scmp.eq.s32.totalorder %s24, 1
      %p41 = por %p39, %p40
      %p42 = scmp.ne.s32.totalorder %s34, %s37
      %p43 = scmp.eq.s32.totalorder %s24, 0
      %p44 = por %p42, %p43
      %p45 = scmp.ne.s32.totalorder %s34, %s37
      %p46 = scmp.eq.s32.totalorder %s29, 1
      %p47 = por %p45, %p46
      %p48 = scmp.ne.s32.totalorder %s37, %s38
      %p49 = scmp.eq.s32.totalorder %s29, 0
      %p50 = por %p48, %p49
      %p51 = scmp.ne.s32.totalorder %s37, %s38
      %p52 = scmp.eq.s32.totalorder %s30, 1
      %p53 = por %p51, %p52
      %p55 = scmp.ne.s32.totalorder %s38, %s54
      %p56 = scmp.eq.s32.totalorder %s30, 0
      %p57 = por %p55, %p56
      %s59 = sadd.s32 %s58, 1
      %p62 = scmp.eq.s32.totalorder %s24, 1
      %p63 = scmp.ne.s32.totalorder %s58, %s60
      %p64 = scmp.eq.s32.totalorder %s24, 0
      %p65 = por %p63, %p64
      %p66 = scmp.ne.s32.totalorder %s58, %s60
      %p67 = scmp.eq.s32.totalorder %s29, 1
      %p68 = por %p66, %p67
      %p69 = scmp.ne.s32.totalorder %s60, %s61
      %p70 = scmp.eq.s32.totalorder %s29, 0
      %p71 = por %p69, %p70
      %p72 = scmp.ne.s32.totalorder %s60, %s61
      %p73 = scmp.eq.s32.totalorder %s30, 1
      %p74 = por %p72, %p73
      %p76 = scmp.ne.s32.totalorder %s61, %s75
      %p77 = scmp.eq.s32.totalorder %s30, 0
      %p78 = por %p76, %p77
      %s80 = sadd.s32 %s79, 1
      %p83 = scmp.eq.s32.totalorder %s24, 1
      %p84 = scmp.ne.s32.totalorder %s79, %s81
      %p85 = scmp.eq.s32.totalorder %s24, 0
      %p86 = por %p84, %p85
      %p87 = scmp.ne.s32.totalorder %s79, %s81
      %p88 = scmp.eq.s32.totalorder %s29, 1
      %p89 = por %p87, %p88
      %p90 = scmp.ne.s32.totalorder %s81, %s82
      %p91 = scmp.eq.s32.totalorder %s29, 0
      %p92 = por %p90, %p91
      %p93 = scmp.ne.s32.totalorder %s81, %s82
      %p94 = scmp.eq.s32.totalorder %s30, 1
      %p95 = por %p93, %p94
      %p97 = scmp.ne.s32.totalorder %s82, %s96
      %p98 = scmp.eq.s32.totalorder %s30, 0
      %p99 = por %p97, %p98
      %s101 = sadd.s32 %s100, 1
      %p104 = scmp.eq.s32.totalorder %s24, 1
      %p105 = scmp.ne.s32.totalorder %s100, %s102
      %p106 = scmp.eq.s32.totalorder %s24, 0
      %p107 = por %p105, %p106
      %p108 = scmp.ne.s32.totalorder %s100, %s102
      %p109 = scmp.eq.s32.totalorder %s29, 1
      %p110 = por %p108, %p109
      %p111 = scmp.ne.s32.totalorder %s102, %s103
      %p112 = scmp.eq.s32.totalorder %s29, 0
      %p113 = por %p111, %p112
      %p114 = scmp.ne.s32.totalorder %s102, %s103
      %p115 = scmp.eq.s32.totalorder %s30, 1
      %p116 = por %p114, %p115
      %p118 = scmp.ne.s32.totalorder %s103, %s117
      %p119 = scmp.eq.s32.totalorder %s30, 0
      %p120 = por %p118, %p119
      %s122 = sadd.s32 %s121, 1
      %p125 = scmp.eq.s32.totalorder %s24, 1
      %p126 = scmp.ne.s32.totalorder %s121, %s123
      %p127 = scmp.eq.s32.totalorder %s24, 0
      %p128 = por %p126, %p127
      %p129 = scmp.ne.s32.totalorder %s121, %s123
      %p130 = scmp.eq.s32.totalorder %s29, 1
      %p131 = por %p129, %p130
      %p132 = scmp.ne.s32.totalorder %s123, %s124
      %p133 = scmp.eq.s32.totalorder %s29, 0
      %p134 = por %p132, %p133
      %p135 = scmp.ne.s32.totalorder %s123, %s124
      %p136 = scmp.eq.s32.totalorder %s30, 1
      %p137 = por %p135, %p136
      %p139 = scmp.ne.s32.totalorder %s124, %s138
      %p140 = scmp.eq.s32.totalorder %s30, 0
      %p141 = por %p139, %p140
      %s143 = sadd.s32 %s142, 1
      %p146 = scmp.eq.s32.totalorder %s24, 1
      %p147 = scmp.ne.s32.totalorder %s142, %s144
      %p148 = scmp.eq.s32.totalorder %s24, 0
      %p149 = por %p147, %p148
      %p150 = scmp.ne.s32.totalorder %s142, %s144
      %p151 = scmp.eq.s32.totalorder %s29, 1
      %p152 = por %p150, %p151
      %p153 = scmp.ne.s32.totalorder %s144, %s145
      %p154 = scmp.eq.s32.totalorder %s29, 0
      %p155 = por %p153, %p154
      %p156 = scmp.ne.s32.totalorder %s144, %s145
      %p157 = scmp.eq.s32.totalorder %s30, 1
      %p158 = por %p156, %p157
      %p160 = scmp.ne.s32.totalorder %s145, %s159
      %p161 = scmp.eq.s32.totalorder %s30, 0
      %p162 = por %p160, %p161
      %s164 = sadd.s32 %s163, 1
      %p167 = scmp.eq.s32.totalorder %s24, 1
      %p168 = scmp.ne.s32.totalorder %s163, %s165
      %p169 = scmp.eq.s32.totalorder %s24, 0
      %p170 = por %p168, %p169
      %p171 = scmp.ne.s32.totalorder %s163, %s165
      %p172 = scmp.eq.s32.totalorder %s29, 1
      %p173 = por %p171, %p172
      %p174 = scmp.ne.s32.totalorder %s165, %s166
      %p175 = scmp.eq.s32.totalorder %s29, 0
      %p176 = por %p174, %p175
      %p177 = scmp.ne.s32.totalorder %s165, %s166
      %p178 = scmp.eq.s32.totalorder %s30, 1
      %p179 = por %p177, %p178
      %p181 = scmp.ne.s32.totalorder %s166, %s180
      %p182 = scmp.eq.s32.totalorder %s30, 0
      %p183 = por %p181, %p182
      %s185 = sadd.s32 %s184, 1
      %p188 = scmp.eq.s32.totalorder %s24, 1
      %p189 = scmp.ne.s32.totalorder %s184, %s186
      %p190 = scmp.eq.s32.totalorder %s24, 0
      %p191 = por %p189, %p190
      %p192 = scmp.ne.s32.totalorder %s184, %s186
      %p193 = scmp.eq.s32.totalorder %s29, 1
      %p194 = por %p192, %p193
      %p195 = scmp.ne.s32.totalorder %s186, %s187
      %p196 = scmp.eq.s32.totalorder %s29, 0
      %p197 = por %p195, %p196
      %p198 = scmp.ne.s32.totalorder %s186, %s187
      %p199 = scmp.eq.s32.totalorder %s30, 1
      %p200 = por %p198, %p199
      %p202 = scmp.ne.s32.totalorder %s187, %s201
      %p203 = scmp.eq.s32.totalorder %s30, 0
      %p204 = por %p202, %p203
      %s206 = sadd.s32 %s205, 1
      %p209 = scmp.eq.s32.totalorder %s24, 1
      %p210 = scmp.ne.s32.totalorder %s205, %s207
      %p211 = scmp.eq.s32.totalorder %s24, 0
      %p212 = por %p210, %p211
      %p213 = scmp.ne.s32.totalorder %s205, %s207
      %p214 = scmp.eq.s32.totalorder %s29, 1
      %p215 = por %p213, %p214
      %p216 = scmp.ne.s32.totalorder %s207, %s208
      %p217 = scmp.eq.s32.totalorder %s29, 0
      %p218 = por %p216, %p217
      %p219 = scmp.ne.s32.totalorder %s207, %s208
      %p220 = scmp.eq.s32.totalorder %s30, 1
      %p221 = por %p219, %p220
      %p223 = scmp.ne.s32.totalorder %s208, %s222
      %p224 = scmp.eq.s32.totalorder %s30, 0
      %p225 = por %p223, %p224
      %s227 = sadd.s32 %s226, 1
      %p230 = scmp.eq.s32.totalorder %s24, 1
      %p231 = scmp.ne.s32.totalorder %s226, %s228
      %p232 = scmp.eq.s32.totalorder %s24, 0
      %p233 = por %p231, %p232
      %p234 = scmp.ne.s32.totalorder %s226, %s228
      %p235 = scmp.eq.s32.totalorder %s29, 1
      %p236 = por %p234, %p235
      %p237 = scmp.ne.s32.totalorder %s228, %s229
      %p238 = scmp.eq.s32.totalorder %s29, 0
      %p239 = por %p237, %p238
      %p240 = scmp.ne.s32.totalorder %s228, %s229
      %p241 = scmp.eq.s32.totalorder %s30, 1
      %p242 = por %p240, %p241
      %p244 = scmp.ne.s32.totalorder %s229, %s243
      %p245 = scmp.eq.s32.totalorder %s30, 0
      %p246 = por %p244, %p245
      %s248 = sadd.s32 %s247, 1
      %p251 = scmp.eq.s32.totalorder %s24, 1
      %p252 = scmp.ne.s32.totalorder %s247, %s249
      %p253 = scmp.eq.s32.totalorder %s24, 0
      %p254 = por %p252, %p253
      %p255 = scmp.ne.s32.totalorder %s247, %s249
      %p256 = scmp.eq.s32.totalorder %s29, 1
      %p257 = por %p255, %p256
      %p258 = scmp.ne.s32.totalorder %s249, %s250
      %p259 = scmp.eq.s32.totalorder %s29, 0
      %p260 = por %p258, %p259
      %p261 = scmp.ne.s32.totalorder %s249, %s250
      %p262 = scmp.eq.s32.totalorder %s30, 1
      %p263 = por %p261, %p262
      %p265 = scmp.ne.s32.totalorder %s250, %s264
      %p266 = scmp.eq.s32.totalorder %s30, 0
      %p267 = por %p265, %p266
      %s269 = sadd.s32 %s268, 1
      %p272 = scmp.eq.s32.totalorder %s24, 1
      %p273 = scmp.ne.s32.totalorder %s268, %s270
      %p274 = scmp.eq.s32.totalorder %s24, 0
      %p275 = por %p273, %p274
      %p276 = scmp.ne.s32.totalorder %s268, %s270
      %p277 = scmp.eq.s32.totalorder %s29, 1
      %p278 = por %p276, %p277
      %p279 = scmp.ne.s32.totalorder %s270, %s271
      %p280 = scmp.eq.s32.totalorder %s29, 0
      %p281 = por %p279, %p280
      %p282 = scmp.ne.s32.totalorder %s270, %s271
      %p283 = scmp.eq.s32.totalorder %s30, 1
      %p284 = por %p282, %p283
      %p286 = scmp.ne.s32.totalorder %s271, %s285
      %p287 = scmp.eq.s32.totalorder %s30, 0
      %p288 = por %p286, %p287
      %s290 = sadd.s32 %s289, 1
      %p293 = scmp.eq.s32.totalorder %s24, 1
      %p294 = scmp.ne.s32.totalorder %s289, %s291
      %p295 = scmp.eq.s32.totalorder %s24, 0
      %p296 = por %p294, %p295
      %p297 = scmp.ne.s32.totalorder %s289, %s291
      %p298 = scmp.eq.s32.totalorder %s29, 1
      %p299 = por %p297, %p298
      %p300 = scmp.ne.s32.totalorder %s291, %s292
      %p301 = scmp.eq.s32.totalorder %s29, 0
      %p302 = por %p300, %p301
      %p303 = scmp.ne.s32.totalorder %s291, %s292
      %p304 = scmp.eq.s32.totalorder %s30, 1
      %p305 = por %p303, %p304
      %p307 = scmp.ne.s32.totalorder %s292, %s306
      %p308 = scmp.eq.s32.totalorder %s30, 0
      %p309 = por %p307, %p308
      %s311 = sadd.s32 %s310, 1
      %p314 = scmp.eq.s32.totalorder %s24, 1
      %p315 = scmp.ne.s32.totalorder %s310, %s312
      %p316 = scmp.eq.s32.totalorder %s24, 0
      %p317 = por %p315, %p316
      %p318 = scmp.ne.s32.totalorder %s310, %s312
      %p319 = scmp.eq.s32.totalorder %s29, 1
      %p320 = por %p318, %p319
      %p321 = scmp.ne.s32.totalorder %s312, %s313
      %p322 = scmp.eq.s32.totalorder %s29, 0
      %p323 = por %p321, %p322
      %p324 = scmp.ne.s32.totalorder %s312, %s313
      %p325 = scmp.eq.s32.totalorder %s30, 1
      %p326 = por %p324, %p325
      %p328 = scmp.ne.s32.totalorder %s313, %s327
      %p329 = scmp.eq.s32.totalorder %s30, 0
      %p330 = por %p328, %p329
      %s332 = sadd.s32 %s331, 1
      %p335 = scmp.eq.s32.totalorder %s24, 1
      %p336 = scmp.ne.s32.totalorder %s331, %s333
      %p337 = scmp.eq.s32.totalorder %s24, 0
      %p338 = por %p336, %p337
      %p339 = scmp.ne.s32.totalorder %s331, %s333
      %p340 = scmp.eq.s32.totalorder %s29, 1
      %p341 = por %p339, %p340
      %p342 = scmp.ne.s32.totalorder %s333, %s334
      %p343 = scmp.eq.s32.totalorder %s29, 0
      %p344 = por %p342, %p343
      %p345 = scmp.ne.s32.totalorder %s333, %s334
      %p346 = scmp.eq.s32.totalorder %s30, 1
      %p347 = por %p345, %p346
      %p349 = scmp.ne.s32.totalorder %s334, %s348
      %p350 = scmp.eq.s32.totalorder %s30, 0
      %p351 = por %p349, %p350
      %s352 = ssub.s32 %s24, %s31
      %p353 = scmp.eq.s32.totalorder %s352, 0
      %s355 = sadd.s32 %s354, 1
      %s356 = scalar_select %p353, %s354, %s355
      %p359 = pneg %p353
      %p360 = scmp.eq.s32.totalorder %s24, 1
      %p361 = por %p359, %p360
      %p362 = scmp.ne.s32.totalorder %s354, %s357
      %p363 = scmp.eq.s32.totalorder %s24, 0
      %p364 = por %p362, %p363
      %p365 = scmp.ne.s32.totalorder %s354, %s357
      %p366 = scmp.eq.s32.totalorder %s29, 1
      %p367 = por %p365, %p366
      %p368 = scmp.ne.s32.totalorder %s357, %s358
      %p369 = scmp.eq.s32.totalorder %s29, 0
      %p370 = por %p368, %p369
      %p371 = scmp.ne.s32.totalorder %s357, %s358
      %p372 = scmp.eq.s32.totalorder %s30, 1
      %p373 = por %p371, %p372
      %p375 = scmp.ne.s32.totalorder %s358, %s374
      %p376 = scmp.eq.s32.totalorder %s30, 0
      %p377 = por %p375, %p376
      %p378 = scmp.le.s32.totalorder 1, %s24
      %p379 = scmp.lt.s32.totalorder %s24, 3
      %p380 = pnand %p378, %p379
      %p381 = pneg %p380
      // Predicated region
      $region9: #{tpu_custom_call.1} parent=5 // pred_check
        _
      $region10: #{tpu_custom_call.1} parent=5 // pred_check_branch
        %383 = sbr.rel (%p380) target = $region12
      $region11: #{tpu_custom_call.1} parent=5 // pred_region
        %s384 = ssub.s32 %s24, 1
        // Predicated region
        $region13: #{tpu_custom_call.1} parent=11 // pred_check
          %p385 = pneg %p71
        $region14: #{tpu_custom_call.1} parent=11 // pred_check_branch
          %387 = sbr.rel (%p385) target = $region16
        $region15: #{tpu_custom_call.1} parent=11 // pred_region
          _
        $region16: #{tpu_custom_call.1} parent=11 // pred_fallthru
          _
        // Predicated region
        $region17: #{tpu_custom_call.1} parent=11 // pred_check
          %p388 = pneg %p92
        $region18: #{tpu_custom_call.1} parent=11 // pred_check_branch
          %390 = sbr.rel (%p388) target = $region20
        $region19: #{tpu_custom_call.1} parent=11 // pred_region
          _
        $region20: #{tpu_custom_call.1} parent=11 // pred_fallthru
          _
        // Predicated region
        $region21: #{tpu_custom_call.1} parent=11 // pred_check
          %p391 = pneg %p113
        $region22: #{tpu_custom_call.1} parent=11 // pred_check_branch
          %393 = sbr.rel (%p391) target = $region24
        $region23: #{tpu_custom_call.1} parent=11 // pred_region
          _
        $region24: #{tpu_custom_call.1} parent=11 // pred_fallthru
          _
        // Predicated region
        $region25: #{tpu_custom_call.1} parent=11 // pred_check
          %p394 = pneg %p134
        $region26: #{tpu_custom_call.1} parent=11 // pred_check_branch
          %396 = sbr.rel (%p394) target = $region28
        $region27: #{tpu_custom_call.1} parent=11 // pred_region
          _
        $region28: #{tpu_custom_call.1} parent=11 // pred_fallthru
          _
        // Predicated region
        $region29: #{tpu_custom_call.1} parent=11 // pred_check
          %p397 = pneg %p155
        $region30: #{tpu_custom_call.1} parent=11 // pred_check_branch
          %399 = sbr.rel (%p397) target = $region32
        $region31: #{tpu_custom_call.1} parent=11 // pred_region
          _
        $region32: #{tpu_custom_call.1} parent=11 // pred_fallthru
          _
        // Predicated region
        $region33: #{tpu_custom_call.1} parent=11 // pred_check
          %p400 = pneg %p176
        $region34: #{tpu_custom_call.1} parent=11 // pred_check_branch
          %402 = sbr.rel (%p400) target = $region36
        $region35: #{tpu_custom_call.1} parent=11 // pred_region
          _
        $region36: #{tpu_custom_call.1} parent=11 // pred_fallthru
          _
        // Predicated region
        $region37: #{tpu_custom_call.1} parent=11 // pred_check
          %p403 = pneg %p197
        $region38: #{tpu_custom_call.1} parent=11 // pred_check_branch
          %405 = sbr.rel (%p403) target = $region40
        $region39: #{tpu_custom_call.1} parent=11 // pred_region
          _
        $region40: #{tpu_custom_call.1} parent=11 // pred_fallthru
          _
        // Predicated region
        $region41: #{tpu_custom_call.1} parent=11 // pred_check
          %p406 = pneg %p218
        $region42: #{tpu_custom_call.1} parent=11 // pred_check_branch
          %408 = sbr.rel (%p406) target = $region44
        $region43: #{tpu_custom_call.1} parent=11 // pred_region
          _
        $region44: #{tpu_custom_call.1} parent=11 // pred_fallthru
          _
        // Predicated region
        $region45: #{tpu_custom_call.1} parent=11 // pred_check
          %p409 = pneg %p239
        $region46: #{tpu_custom_call.1} parent=11 // pred_check_branch
          %411 = sbr.rel (%p409) target = $region48
        $region47: #{tpu_custom_call.1} parent=11 // pred_region
          _
        $region48: #{tpu_custom_call.1} parent=11 // pred_fallthru
          _
        // Predicated region
        $region49: #{tpu_custom_call.1} parent=11 // pred_check
          %p412 = pneg %p260
        $region50: #{tpu_custom_call.1} parent=11 // pred_check_branch
          %414 = sbr.rel (%p412) target = $region52
        $region51: #{tpu_custom_call.1} parent=11 // pred_region
          _
        $region52: #{tpu_custom_call.1} parent=11 // pred_fallthru
          _
        // Predicated region
        $region53: #{tpu_custom_call.1} parent=11 // pred_check
          %p415 = pneg %p281
        $region54: #{tpu_custom_call.1} parent=11 // pred_check_branch
          %417 = sbr.rel (%p415) target = $region56
        $region55: #{tpu_custom_call.1} parent=11 // pred_region
          _
        $region56: #{tpu_custom_call.1} parent=11 // pred_fallthru
          _
        // Predicated region
        $region57: #{tpu_custom_call.1} parent=11 // pred_check
          %p418 = pneg %p302
        $region58: #{tpu_custom_call.1} parent=11 // pred_check_branch
          %420 = sbr.rel (%p418) target = $region60
        $region59: #{tpu_custom_call.1} parent=11 // pred_region
          _
        $region60: #{tpu_custom_call.1} parent=11 // pred_fallthru
          _
        // Predicated region
        $region61: #{tpu_custom_call.1} parent=11 // pred_check
          %p421 = pneg %p323
        $region62: #{tpu_custom_call.1} parent=11 // pred_check_branch
          %423 = sbr.rel (%p421) target = $region64
        $region63: #{tpu_custom_call.1} parent=11 // pred_region
          _
        $region64: #{tpu_custom_call.1} parent=11 // pred_fallthru
          _
        // Predicated region
        $region65: #{tpu_custom_call.1} parent=11 // pred_check
          %p424 = pneg %p344
        $region66: #{tpu_custom_call.1} parent=11 // pred_check_branch
          %426 = sbr.rel (%p424) target = $region68
        $region67: #{tpu_custom_call.1} parent=11 // pred_region
          _
        $region68: #{tpu_custom_call.1} parent=11 // pred_fallthru
          _
      $region12: #{tpu_custom_call.1} parent=5 // pred_fallthru
        _
      %p427 = scmp.lt.s32.totalorder %s24, 2
      // Predicated region
      $region69: #{tpu_custom_call.1} parent=5 // pred_check
        %p428 = pneg %p427
      $region70: #{tpu_custom_call.1} parent=5 // pred_check_branch
        %430 = sbr.rel (%p428) target = $region72
      $region71: #{tpu_custom_call.1} parent=5 // pred_region
        // Predicated region
        $region73: #{tpu_custom_call.1} parent=71 // pred_check
          %p431 = pneg %p44
        $region74: #{tpu_custom_call.1} parent=71 // pred_check_branch
          %433 = sbr.rel (%p431) target = $region76
        $region75: #{tpu_custom_call.1} parent=71 // pred_region
          %p434 = scmp.lt.s32.totalorder %s24, 1
          %s435 = scalar_select %p434, %s24, 1
          %s436 = smul.addr %s435, 16
          %s437 = smul.addr %s436, 4
          %s438 = scalar_lea.vmem %s0, %s437
        $region76: #{tpu_custom_call.1} parent=71 // pred_fallthru
          _
      $region72: #{tpu_custom_call.1} parent=5 // pred_fallthru
        _
      %p439 = scmp.le.s32.totalorder 1, %s24
      %p440 = scmp.lt.s32.totalorder %s24, 3
      %p441 = pnand %p439, %p440
      %p442 = pneg %p441
      // Predicated region
      $region77: #{tpu_custom_call.1} parent=5 // pred_check
        _
      $region78: #{tpu_custom_call.1} parent=5 // pred_check_branch
        %444 = sbr.rel (%p441) target = $region80
      $region79: #{tpu_custom_call.1} parent=5 // pred_region
        %s445 = ssub.s32 %s24, 1
        %p446 = scmp.lt.s32.totalorder %s29, 1
        %s447 = scalar_select %p446, %s29, 1
        %s448 = smul.addr %s447, 16
        %s449 = smul.addr %s448, 4
        %s450 = scalar_lea.vmem %s0, %s449
        %p451 = pneg %p50
        %p452 = pneg %p47
        %p453 = pneg %p71
        %p454 = pneg %p68
        %p455 = pneg %p92
        %p456 = pneg %p89
        %p457 = pneg %p113
        %p458 = pneg %p110
        %p459 = pneg %p134
        %p460 = pneg %p131
        %p461 = pneg %p155
        %p462 = pneg %p152
        %p463 = pneg %p176
        %p464 = pneg %p173
        %p465 = pneg %p197
        %p466 = pneg %p194
        %p467 = pneg %p218
        %p468 = pneg %p215
        %p469 = pneg %p239
        %p470 = pneg %p236
        %p471 = pneg %p260
        %p472 = pneg %p257
        %p473 = pneg %p281
        %p474 = pneg %p278
        %p475 = pneg %p302
        %p476 = pneg %p299
        %p477 = pneg %p323
        %p478 = pneg %p320
        %p479 = pneg %p344
        %p480 = pneg %p341
        %p481 = pneg %p370
        %p482 = pneg %p367
        %s483 = sand.u32 %s357, 1
        %s484 = scalar_lea.sflag [#allocation3], %s483
        %s485 = sand.u32 %s357, 1
        %s486 = smul.addr %s485, 8
        %s487 = scalar_lea.vmem [#allocation2], %s486
        %p488 = scmp.lt.s32.totalorder %s29, 1
        %s489 = scalar_select %p488, %s29, 1
        %s490 = smul.addr %s489, 16
        %s491 = smul.addr %s490, 4
        %s492 = scalar_lea.vmem %s0, %s491
        %v494 = vld [vmem:[%s492] sm:$0xf]
        %v495 = vld [vmem:[%s492 + $0x4] sm:$0xf]
        %v496 = vld [vmem:[%s492 + $0x8] sm:$0xf]
        %v497 = vld [vmem:[%s492 + $0xc] sm:$0xf]
        %v498 = vld [vmem:[%s492 + $0x10] sm:$0xf]
        %v499 = vld [vmem:[%s492 + $0x14] sm:$0xf]
        %v500 = vld [vmem:[%s492 + $0x18] sm:$0xf]
        %v501 = vld [vmem:[%s492 + $0x1c] sm:$0xf]
        %v502 = vld [vmem:[%s492 + $0x20] sm:$0xf]
        %v503 = vld [vmem:[%s492 + $0x24] sm:$0xf]
        %v504 = vld [vmem:[%s492 + $0x28] sm:$0xf]
        %v505 = vld [vmem:[%s492 + $0x2c] sm:$0xf]
        %v506 = vld [vmem:[%s492 + $0x30] sm:$0xf]
        %v507 = vld [vmem:[%s492 + $0x34] sm:$0xf]
        %v508 = vld [vmem:[%s492 + $0x38] sm:$0xf]
        %v509 = vld [vmem:[%s492 + $0x3c] sm:$0xf]
        %v510 = vld [vmem:[%s1] sm:$0xf]
        %v511 = vld [vmem:[%s1 + $0x4] sm:$0xf]
        %v512 = vld [vmem:[%s1 + $0x8] sm:$0xf]
        %v513 = vld [vmem:[%s1 + $0xc] sm:$0xf]
        %v514 = vld [vmem:[%s1 + $0x10] sm:$0xf]
        %v515 = vld [vmem:[%s1 + $0x14] sm:$0xf]
        %v532 = vunpack.c.l.b16 %v494
        %v533 = vunpack.c.l.b16 %v495
        %v534 = vunpack.c.l.b16 %v496
        %v535 = vunpack.c.l.b16 %v497
        %v536 = vunpack.c.l.b16 %v498
        %v537 = vunpack.c.l.b16 %v499
        %v538 = vunpack.c.l.b16 %v500
        %v539 = vunpack.c.l.b16 %v501
        %v540 = vunpack.c.l.b16 %v502
        %v541 = vunpack.c.l.b16 %v503
        %v542 = vunpack.c.l.b16 %v504
        %v543 = vunpack.c.l.b16 %v505
        %v544 = vunpack.c.l.b16 %v506
        %v545 = vunpack.c.l.b16 %v507
        %v546 = vunpack.c.l.b16 %v508
        %v547 = vunpack.c.l.b16 %v509
        %v548 = vpack.c.b16 %v533, %v532
        %v549 = vpack.c.b16 %v535, %v534
        %v550 = vpack.c.b16 %v537, %v536
        %v551 = vpack.c.b16 %v539, %v538
        %v552 = vpack.c.b16 %v541, %v540
        %v553 = vpack.c.b16 %v543, %v542
        %v554 = vpack.c.b16 %v545, %v544
        %v555 = vpack.c.b16 %v547, %v546
        %v562 = vunpack.c.l.b16 %v510
        %v563 = vunpack.c.l.b16 %v511
        %v564 = vunpack.c.l.b16 %v512
        %v565 = vunpack.c.l.b16 %v513
        %v566 = vunpack.c.l.b16 %v514
        %v567 = vunpack.c.l.b16 %v515
        %v568 = vpack.c.b16 %v563, %v562
        %v569 = vpack.c.b16 %v565, %v564
        %v570 = vpack.c.b16 %v567, %v566
        %vm574 = vcmask 392192
        %v576 = vsel %vm574, %v548, 0
        %v579 = vsel %vm574, %v549, 0
        %v582 = vsel %vm574, %v550, 0
        %v585 = vsel %vm574, %v551, 0
        %v588 = vsel %vm574, %v552, 0
        %v591 = vsel %vm574, %v553, 0
        %v594 = vsel %vm574, %v554, 0
        %v597 = vsel %vm574, %v555, 0
        %599 = vmatprep.subr.bf16.mxu0 0
        %600 = vmatpush1.bf16.msra.mxu0 0
        %601 = vmatprep.subr.bf16.mxu0 0
        %602 = vmatpush1.bf16.msra.mxu0 0
        %603 = vmatprep.subr.bf16.mxu0 0
        %604 = vmatpush1.bf16.msra.mxu0 0
        %605 = vmatprep.subr.bf16.mxu0 0
        %606 = vmatpush1.bf16.msra.mxu0 0
        %607 = vmatprep.subr.bf16.mxu0 0
        %608 = vmatpush1.bf16.msra.mxu0 0
        %609 = vmatprep.subr.bf16.mxu0 0
        %610 = vmatpush1.bf16.msra.mxu0 %v570
        %611 = vmatprep.subr.bf16.mxu0 0
        %612 = vmatpush1.bf16.msra.mxu0 %v569
        %613 = vmatprep.subr.bf16.mxu0 0
        %614 = vmatpush1.bf16.msra.mxu0 %v568
        %615 = vmatprep.subr.bf16.mxu0 0
        %616 = vmatpush2.bf16.msra.mxu0 0
        %617 = vmatprep.subr.bf16.mxu0 0
        %618 = vmatpush2.bf16.msra.mxu0 0
        %619 = vmatprep.subr.bf16.mxu0 0
        %620 = vmatpush2.bf16.msra.mxu0 0
        %621 = vmatprep.subr.bf16.mxu0 0
        %622 = vmatpush2.bf16.msra.mxu0 0
        %623 = vmatprep.subr.bf16.mxu0 0
        %624 = vmatpush2.bf16.msra.mxu0 0
        %625 = vmatprep.subr.bf16.mxu0 0
        %626 = vmatpush2.bf16.msra.mxu0 0
        %627 = vmatprep.subr.bf16.mxu0 0
        %628 = vmatpush2.bf16.msra.mxu0 0
        %629 = vmatprep.subr.bf16.mxu0 0
        %630 = vmatpush2.bf16.msra.mxu0 0
        %631 = vmatprep.mubr.bf16.mxu0 0
        %632 = vmatmul.mubr.bf16.gmra.mxu0 %v576
        %v633 = vpop.f32.mrf.mxu0
        %v634 = vadd.f32 0.0, %v633
        %v635 = vpop.f32.mrf.mxu0
        %v636 = vpop.f32.mrf.mxu0
        %v637 = vadd.f32 0.0, %v636
        %v638 = vpop.f32.mrf.mxu0
        %639 = vmatprep.mubr.bf16.mxu0 0
        %640 = vmatmul.mubr.bf16.gmra.mxu0 %v579
        %v641 = vpop.f32.mrf.mxu0
        %v642 = vadd.f32 0.0, %v641
        %v643 = vpop.f32.mrf.mxu0
        %v644 = vpop.f32.mrf.mxu0
        %v645 = vadd.f32 0.0, %v644
        %v646 = vpop.f32.mrf.mxu0
        %647 = vmatprep.mubr.bf16.mxu0 0
        %648 = vmatmul.mubr.bf16.gmra.mxu0 %v582
        %v649 = vpop.f32.mrf.mxu0
        %v650 = vadd.f32 0.0, %v649
        %v651 = vpop.f32.mrf.mxu0
        %v652 = vpop.f32.mrf.mxu0
        %v653 = vadd.f32 0.0, %v652
        %v654 = vpop.f32.mrf.mxu0
        %655 = vmatprep.mubr.bf16.mxu0 0
        %656 = vmatmul.mubr.bf16.gmra.mxu0 %v585
        %v657 = vpop.f32.mrf.mxu0
        %v658 = vadd.f32 0.0, %v657
        %v659 = vpop.f32.mrf.mxu0
        %v660 = vpop.f32.mrf.mxu0
        %v661 = vadd.f32 0.0, %v660
        %v662 = vpop.f32.mrf.mxu0
        %663 = vmatprep.mubr.bf16.mxu0 0
        %664 = vmatmul.mubr.bf16.gmra.mxu0 %v588
        %v665 = vpop.f32.mrf.mxu0
        %v666 = vadd.f32 0.0, %v665
        %v667 = vpop.f32.mrf.mxu0
        %v668 = vpop.f32.mrf.mxu0
        %v669 = vadd.f32 0.0, %v668
        %v670 = vpop.f32.mrf.mxu0
        %671 = vmatprep.mubr.bf16.mxu0 0
        %672 = vmatmul.mubr.bf16.gmra.mxu0 %v591
        %v673 = vpop.f32.mrf.mxu0
        %v674 = vadd.f32 0.0, %v673
        %v675 = vpop.f32.mrf.mxu0
        %v676 = vpop.f32.mrf.mxu0
        %v677 = vadd.f32 0.0, %v676
        %v678 = vpop.f32.mrf.mxu0
        %679 = vmatprep.mubr.bf16.mxu0 0
        %680 = vmatmul.mubr.bf16.gmra.mxu0 %v594
        %v681 = vpop.f32.mrf.mxu0
        %v682 = vadd.f32 0.0, %v681
        %v683 = vpop.f32.mrf.mxu0
        %v684 = vpop.f32.mrf.mxu0
        %v685 = vadd.f32 0.0, %v684
        %v686 = vpop.f32.mrf.mxu0
        %687 = vmatprep.mubr.bf16.mxu0 0
        %688 = vmatmul.mubr.bf16.gmra.mxu0 %v597
        %v689 = vpop.f32.mrf.mxu0
        %v690 = vadd.f32 0.0, %v689
        %v691 = vpop.f32.mrf.mxu0
        %v692 = vpop.f32.mrf.mxu0
        %v693 = vadd.f32 0.0, %v692
        %v694 = vpop.f32.mrf.mxu0
        %695 = vdwg.mxu0
        %v696 = vld [vmem:[%s3] sm:$0xff]
        %v697 = vld [vmem:[%s3 + $0x8] sm:$0xff]
        %v698 = vld [vmem:[%s3 + $0x10] sm:$0xff]
        %v699 = vld [vmem:[%s3 + $0x18] sm:$0xff]
        %v700 = vld [vmem:[%s3 + $0x20] sm:$0xff]
        %v701 = vld [vmem:[%s3 + $0x28] sm:$0xff]
        %v702 = vld [vmem:[%s3 + $0x30] sm:$0xff]
        %v703 = vld [vmem:[%s3 + $0x38] sm:$0xff]
        %v704 = vld [vmem:[%s3 + $0x40] sm:$0xff]
        %v705 = vld [vmem:[%s3 + $0x48] sm:$0xff]
        %v706 = vld [vmem:[%s3 + $0x50] sm:$0xff]
        %v707 = vld [vmem:[%s3 + $0x58] sm:$0xff]
        %v708 = vld [vmem:[%s3 + $0x60] sm:$0xff]
        %v709 = vld [vmem:[%s3 + $0x68] sm:$0xff]
        %v710 = vld [vmem:[%s3 + $0x70] sm:$0xff]
        %v711 = vld [vmem:[%s3 + $0x78] sm:$0xff]
        %v712 = vld [vmem:[%s4] sm:$0xff]
        %v713 = vld [vmem:[%s7] sm:$0xff]
        %v714 = vld [vmem:[%s7 + $0x8] sm:$0xff]
        %v715 = vld [vmem:[%s7 + $0x10] sm:$0xff]
        %v716 = vld [vmem:[%s7 + $0x18] sm:$0xff]
        %v717 = vld [vmem:[%s8] sm:$0xf]
        %v718 = vld [vmem:[%s11] sm:$0x1]
        %v719 = vld [vmem:[%s12] sm:$0x1]
        %720 = vmatprep.subr.mxu0 0.0
        %721 = vmatpush1.msra.mxu0 %v693
        %722 = vmatprep.subr.mxu0 0.0
        %723 = vmatpush1.msra.mxu0 %v690
        %724 = vmatprep.subr.mxu0 0.0
        %725 = vmatpush1.msra.mxu0 %v685
        %726 = vmatprep.subr.mxu0 0.0
        %727 = vmatpush1.msra.mxu0 %v682
        %728 = vmatprep.subr.mxu0 0.0
        %729 = vmatpush1.msra.mxu0 %v677
        %730 = vmatprep.subr.mxu0 0.0
        %731 = vmatpush1.msra.mxu0 %v674
        %732 = vmatprep.subr.mxu0 0.0
        %733 = vmatpush1.msra.mxu0 %v669
        %734 = vmatprep.subr.mxu0 0.0
        %735 = vmatpush1.msra.mxu0 %v666
        %736 = vmatprep.subr.mxu0 0.0
        %737 = vmatpush1.msra.mxu0 %v661
        %738 = vmatprep.subr.mxu0 0.0
        %739 = vmatpush1.msra.mxu0 %v658
        %740 = vmatprep.subr.mxu0 0.0
        %741 = vmatpush1.msra.mxu0 %v653
        %742 = vmatprep.subr.mxu0 0.0
        %743 = vmatpush1.msra.mxu0 %v650
        %744 = vmatprep.subr.mxu0 0.0
        %745 = vmatpush1.msra.mxu0 %v645
        %746 = vmatprep.subr.mxu0 0.0
        %747 = vmatpush1.msra.mxu0 %v642
        %748 = vmatprep.subr.mxu0 0.0
        %749 = vmatpush1.msra.mxu0 %v637
        %750 = vmatprep.subr.mxu0 0.0
        %751 = vmatpush1.msra.mxu0 %v634
        %752 = vmatprep.subr.mxu0 0.0
        %753 = vmatpush2.msra.mxu0 0.0
        %754 = vmatprep.subr.mxu0 0.0
        %755 = vmatpush2.msra.mxu0 0.0
        %756 = vmatprep.subr.mxu0 0.0
        %757 = vmatpush2.msra.mxu0 0.0
        %758 = vmatprep.subr.mxu0 0.0
        %759 = vmatpush2.msra.mxu0 0.0
        %760 = vmatprep.subr.mxu0 0.0
        %761 = vmatpush2.msra.mxu0 0.0
        %762 = vmatprep.subr.mxu0 0.0
        %763 = vmatpush2.msra.mxu0 0.0
        %764 = vmatprep.subr.mxu0 0.0
        %765 = vmatpush2.msra.mxu0 0.0
        %766 = vmatprep.subr.mxu0 0.0
        %767 = vmatpush2.msra.mxu0 0.0
        %768 = vmatprep.subr.mxu0 0.0
        %769 = vmatpush2.msra.mxu0 0.0
        %770 = vmatprep.subr.mxu0 0.0
        %771 = vmatpush2.msra.mxu0 0.0
        %772 = vmatprep.subr.mxu0 0.0
        %773 = vmatpush2.msra.mxu0 0.0
        %774 = vmatprep.subr.mxu0 0.0
        %775 = vmatpush2.msra.mxu0 0.0
        %776 = vmatprep.subr.mxu0 0.0
        %777 = vmatpush2.msra.mxu0 0.0
        %778 = vmatprep.subr.mxu0 0.0
        %779 = vmatpush2.msra.mxu0 0.0
        %780 = vmatprep.subr.mxu0 0.0
        %781 = vmatpush2.msra.mxu0 0.0
        %782 = vmatprep.subr.mxu0 0.0
        %783 = vmatpush2.msra.mxu0 0.0
        %784 = vmatprep.mubr.f32.mxu0 0.0
        %785 = vmatmul.mubr.f32.gmra.mxu0 %v712
        %v786 = vpop.f32.mrf.mxu0
        %v787 = vadd.f32 0.0, %v786
        %v788 = vpop.f32.mrf.mxu0
        %789 = vdwg.mxu0
        %v790 = vmul.f32 %v634, %v634
        %v791 = vmul.f32 %v637, %v637
        %v792 = vmul.f32 %v642, %v642
        %v793 = vmul.f32 %v645, %v645
        %v794 = vmul.f32 %v650, %v650
        %v795 = vmul.f32 %v653, %v653
        %v796 = vmul.f32 %v658, %v658
        %v797 = vmul.f32 %v661, %v661
        %v798 = vmul.f32 %v666, %v666
        %v799 = vmul.f32 %v669, %v669
        %v800 = vmul.f32 %v674, %v674
        %v801 = vmul.f32 %v677, %v677
        %v802 = vmul.f32 %v682, %v682
        %v803 = vmul.f32 %v685, %v685
        %v804 = vmul.f32 %v690, %v690
        %v805 = vmul.f32 %v693, %v693
        %806 = vmatprep.subr.mxu0 0.0
        %807 = vmatpush1.msra.mxu0 %v805
        %808 = vmatprep.subr.mxu0 0.0
        %809 = vmatpush1.msra.mxu0 %v804
        %810 = vmatprep.subr.mxu0 0.0
        %811 = vmatpush1.msra.mxu0 %v803
        %812 = vmatprep.subr.mxu0 0.0
        %813 = vmatpush1.msra.mxu0 %v802
        %814 = vmatprep.subr.mxu0 0.0
        %815 = vmatpush1.msra.mxu0 %v801
        %816 = vmatprep.subr.mxu0 0.0
        %817 = vmatpush1.msra.mxu0 %v800
        %818 = vmatprep.subr.mxu0 0.0
        %819 = vmatpush1.msra.mxu0 %v799
        %820 = vmatprep.subr.mxu0 0.0
        %821 = vmatpush1.msra.mxu0 %v798
        %822 = vmatprep.subr.mxu0 0.0
        %823 = vmatpush1.msra.mxu0 %v797
        %824 = vmatprep.subr.mxu0 0.0
        %825 = vmatpush1.msra.mxu0 %v796
        %826 = vmatprep.subr.mxu0 0.0
        %827 = vmatpush1.msra.mxu0 %v795
        %828 = vmatprep.subr.mxu0 0.0
        %829 = vmatpush1.msra.mxu0 %v794
        %830 = vmatprep.subr.mxu0 0.0
        %831 = vmatpush1.msra.mxu0 %v793
        %832 = vmatprep.subr.mxu0 0.0
        %833 = vmatpush1.msra.mxu0 %v792
        %834 = vmatprep.subr.mxu0 0.0
        %835 = vmatpush1.msra.mxu0 %v791
        %836 = vmatprep.subr.mxu0 0.0
        %837 = vmatpush1.msra.mxu0 %v790
        %838 = vmatprep.subr.mxu0 0.0
        %839 = vmatpush2.msra.mxu0 0.0
        %840 = vmatprep.subr.mxu0 0.0
        %841 = vmatpush2.msra.mxu0 0.0
        %842 = vmatprep.subr.mxu0 0.0
        %843 = vmatpush2.msra.mxu0 0.0
        %844 = vmatprep.subr.mxu0 0.0
        %845 = vmatpush2.msra.mxu0 0.0
        %846 = vmatprep.subr.mxu0 0.0
        %847 = vmatpush2.msra.mxu0 0.0
        %848 = vmatprep.subr.mxu0 0.0
        %849 = vmatpush2.msra.mxu0 0.0
        %850 = vmatprep.subr.mxu0 0.0
        %851 = vmatpush2.msra.mxu0 0.0
        %852 = vmatprep.subr.mxu0 0.0
        %853 = vmatpush2.msra.mxu0 0.0
        %854 = vmatprep.subr.mxu0 0.0
        %855 = vmatpush2.msra.mxu0 0.0
        %856 = vmatprep.subr.mxu0 0.0
        %857 = vmatpush2.msra.mxu0 0.0
        %858 = vmatprep.subr.mxu0 0.0
        %859 = vmatpush2.msra.mxu0 0.0
        %860 = vmatprep.subr.mxu0 0.0
        %861 = vmatpush2.msra.mxu0 0.0
        %862 = vmatprep.subr.mxu0 0.0
        %863 = vmatpush2.msra.mxu0 0.0
        %864 = vmatprep.subr.mxu0 0.0
        %865 = vmatpush2.msra.mxu0 0.0
        %866 = vmatprep.subr.mxu0 0.0
        %867 = vmatpush2.msra.mxu0 0.0
        %868 = vmatprep.subr.mxu0 0.0
        %869 = vmatpush2.msra.mxu0 0.0
        %870 = vmatprep.mubr.f32.mxu0 0.0
        %871 = vmatmul.mubr.f32.gmra.mxu0 %v712
        %v872 = vpop.f32.mrf.mxu0
        %v873 = vadd.f32 0.0, %v872
        %v874 = vpop.f32.mrf.mxu0
        %875 = vdwg.mxu0
        %vm876 = vcmask 261120
        %v878 = vsel %vm876, %v787, 0
        %880 = vmatprep.subr.mxu0 0.0
        %881 = vmatpush1.msra.mxu0 0.0
        %882 = vmatprep.subr.mxu0 0.0
        %883 = vmatpush1.msra.mxu0 0.0
        %884 = vmatprep.subr.mxu0 0.0
        %885 = vmatpush1.msra.mxu0 0.0
        %886 = vmatprep.subr.mxu0 0.0
        %887 = vmatpush1.msra.mxu0 0.0
        %888 = vmatprep.subr.mxu0 0.0
        %889 = vmatpush1.msra.mxu0 0.0
        %890 = vmatprep.subr.mxu0 0.0
        %891 = vmatpush1.msra.mxu0 0.0
        %892 = vmatprep.subr.mxu0 0.0
        %893 = vmatpush1.msra.mxu0 0.0
        %894 = vmatprep.subr.mxu0 0.0
        %895 = vmatpush1.msra.mxu0 0.0
        %896 = vmatprep.subr.mxu0 0.0
        %897 = vmatpush1.msra.mxu0 0.0
        %898 = vmatprep.subr.mxu0 0.0
        %899 = vmatpush1.msra.mxu0 0.0
        %900 = vmatprep.subr.mxu0 0.0
        %901 = vmatpush1.msra.mxu0 0.0
        %902 = vmatprep.subr.mxu0 0.0
        %903 = vmatpush1.msra.mxu0 0.0
        %904 = vmatprep.subr.mxu0 0.0
        %905 = vmatpush1.msra.mxu0 %v716
        %906 = vmatprep.subr.mxu0 0.0
        %907 = vmatpush1.msra.mxu0 %v715
        %908 = vmatprep.subr.mxu0 0.0
        %909 = vmatpush1.msra.mxu0 %v714
        %910 = vmatprep.subr.mxu0 0.0
        %911 = vmatpush1.msra.mxu0 %v713
        %912 = vmatprep.subr.mxu0 0.0
        %913 = vmatpush2.msra.mxu0 0.0
        %914 = vmatprep.subr.mxu0 0.0
        %915 = vmatpush2.msra.mxu0 0.0
        %916 = vmatprep.subr.mxu0 0.0
        %917 = vmatpush2.msra.mxu0 0.0
        %918 = vmatprep.subr.mxu0 0.0
        %919 = vmatpush2.msra.mxu0 0.0
        %920 = vmatprep.subr.mxu0 0.0
        %921 = vmatpush2.msra.mxu0 0.0
        %922 = vmatprep.subr.mxu0 0.0
        %923 = vmatpush2.msra.mxu0 0.0
        %924 = vmatprep.subr.mxu0 0.0
        %925 = vmatpush2.msra.mxu0 0.0
        %926 = vmatprep.subr.mxu0 0.0
        %927 = vmatpush2.msra.mxu0 0.0
        %928 = vmatprep.subr.mxu0 0.0
        %929 = vmatpush2.msra.mxu0 0.0
        %930 = vmatprep.subr.mxu0 0.0
        %931 = vmatpush2.msra.mxu0 0.0
        %932 = vmatprep.subr.mxu0 0.0
        %933 = vmatpush2.msra.mxu0 0.0
        %934 = vmatprep.subr.mxu0 0.0
        %935 = vmatpush2.msra.mxu0 0.0
        %936 = vmatprep.subr.mxu0 0.0
        %937 = vmatpush2.msra.mxu0 0.0
        %938 = vmatprep.subr.mxu0 0.0
        %939 = vmatpush2.msra.mxu0 0.0
        %940 = vmatprep.subr.mxu0 0.0
        %941 = vmatpush2.msra.mxu0 0.0
        %942 = vmatprep.subr.mxu0 0.0
        %943 = vmatpush2.msra.mxu0 0.0
        %944 = vmatprep.mubr.f32.mxu0 0.0
        %945 = vmatmul.mubr.f32.gmra.mxu0 %v878
        %v946 = vpop.f32.mrf.mxu0
        %v947 = vadd.f32 0.0, %v946
        %v948 = vpop.f32.mrf.mxu0
        %949 = vdwg.mxu0
        %v951 = vsel %vm876, %v873, 0
        %953 = vmatprep.subr.mxu0 0.0
        %954 = vmatpush1.msra.mxu0 0.0
        %955 = vmatprep.subr.mxu0 0.0
        %956 = vmatpush1.msra.mxu0 0.0
        %957 = vmatprep.subr.mxu0 0.0
        %958 = vmatpush1.msra.mxu0 0.0
        %959 = vmatprep.subr.mxu0 0.0
        %960 = vmatpush1.msra.mxu0 0.0
        %961 = vmatprep.subr.mxu0 0.0
        %962 = vmatpush1.msra.mxu0 0.0
        %963 = vmatprep.subr.mxu0 0.0
        %964 = vmatpush1.msra.mxu0 0.0
        %965 = vmatprep.subr.mxu0 0.0
        %966 = vmatpush1.msra.mxu0 0.0
        %967 = vmatprep.subr.mxu0 0.0
        %968 = vmatpush1.msra.mxu0 0.0
        %969 = vmatprep.subr.mxu0 0.0
        %970 = vmatpush1.msra.mxu0 0.0
        %971 = vmatprep.subr.mxu0 0.0
        %972 = vmatpush1.msra.mxu0 0.0
        %973 = vmatprep.subr.mxu0 0.0
        %974 = vmatpush1.msra.mxu0 0.0
        %975 = vmatprep.subr.mxu0 0.0
        %976 = vmatpush1.msra.mxu0 0.0
        %977 = vmatprep.subr.mxu0 0.0
        %978 = vmatpush1.msra.mxu0 %v716
        %979 = vmatprep.subr.mxu0 0.0
        %980 = vmatpush1.msra.mxu0 %v715
        %981 = vmatprep.subr.mxu0 0.0
        %982 = vmatpush1.msra.mxu0 %v714
        %983 = vmatprep.subr.mxu0 0.0
        %984 = vmatpush1.msra.mxu0 %v713
        %985 = vmatprep.subr.mxu0 0.0
        %986 = vmatpush2.msra.mxu0 0.0
        %987 = vmatprep.subr.mxu0 0.0
        %988 = vmatpush2.msra.mxu0 0.0
        %989 = vmatprep.subr.mxu0 0.0
        %990 = vmatpush2.msra.mxu0 0.0
        %991 = vmatprep.subr.mxu0 0.0
        %992 = vmatpush2.msra.mxu0 0.0
        %993 = vmatprep.subr.mxu0 0.0
        %994 = vmatpush2.msra.mxu0 0.0
        %995 = vmatprep.subr.mxu0 0.0
        %996 = vmatpush2.msra.mxu0 0.0
        %997 = vmatprep.subr.mxu0 0.0
        %998 = vmatpush2.msra.mxu0 0.0
        %999 = vmatprep.subr.mxu0 0.0
        %1000 = vmatpush2.msra.mxu0 0.0
        %1001 = vmatprep.subr.mxu0 0.0
        %1002 = vmatpush2.msra.mxu0 0.0
        %1003 = vmatprep.subr.mxu0 0.0
        %1004 = vmatpush2.msra.mxu0 0.0
        %1005 = vmatprep.subr.mxu0 0.0
        %1006 = vmatpush2.msra.mxu0 0.0
        %1007 = vmatprep.subr.mxu0 0.0
        %1008 = vmatpush2.msra.mxu0 0.0
        %1009 = vmatprep.subr.mxu0 0.0
        %1010 = vmatpush2.msra.mxu0 0.0
        %1011 = vmatprep.subr.mxu0 0.0
        %1012 = vmatpush2.msra.mxu0 0.0
        %1013 = vmatprep.subr.mxu0 0.0
        %1014 = vmatpush2.msra.mxu0 0.0
        %1015 = vmatprep.subr.mxu0 0.0
        %1016 = vmatpush2.msra.mxu0 0.0
        %1017 = vmatprep.mubr.f32.mxu0 0.0
        %1018 = vmatmul.mubr.f32.gmra.mxu0 %v951
        %v1019 = vpop.f32.mrf.mxu0
        %v1020 = vadd.f32 0.0, %v1019
        %v1021 = vpop.f32.mrf.mxu0
        %1022 = vdwg.mxu0
        %v1023 = vmul.f32 %v947, 0.0078125
        %v1024 = vmul.f32 %v1020, 0.0078125
        %v1025 = vmul.f32 %v1023, %v1023
        %v1026 = vsub.f32 %v1024, %v1025
        %v1027 = vmax.f32 %v1026, 0.0
        %v1028 = vadd.f32 %v1027, 1e-05
        %v1029 = vrsqrt.pop %v1028
        %vm1030 = vcmask 31744
        %v1032 = vsel %vm1030, %v1023, 0
        %vm1034 = vcmask 1043456
        %v1036 = vsel %vm1034, %v717, 0
        %1038 = vmatprep.subr.mxu0 0.0
        %1039 = vmatpush1.msra.mxu0 0.0
        %1040 = vmatprep.subr.mxu0 0.0
        %1041 = vmatpush1.msra.mxu0 0.0
        %1042 = vmatprep.subr.mxu0 0.0
        %1043 = vmatpush1.msra.mxu0 0.0
        %1044 = vmatprep.subr.mxu0 0.0
        %1045 = vmatpush1.msra.mxu0 0.0
        %1046 = vmatprep.subr.mxu0 0.0
        %1047 = vmatpush1.msra.mxu0 0.0
        %1048 = vmatprep.subr.mxu0 0.0
        %1049 = vmatpush1.msra.mxu0 0.0
        %1050 = vmatprep.subr.mxu0 0.0
        %1051 = vmatpush1.msra.mxu0 0.0
        %1052 = vmatprep.subr.mxu0 0.0
        %1053 = vmatpush1.msra.mxu0 0.0
        %1054 = vmatprep.subr.mxu0 0.0
        %1055 = vmatpush1.msra.mxu0 0.0
        %1056 = vmatprep.subr.mxu0 0.0
        %1057 = vmatpush1.msra.mxu0 0.0
        %1058 = vmatprep.subr.mxu0 0.0
        %1059 = vmatpush1.msra.mxu0 0.0
        %1060 = vmatprep.subr.mxu0 0.0
        %1061 = vmatpush1.msra.mxu0 0.0
        %1062 = vmatprep.subr.mxu0 0.0
        %1063 = vmatpush1.msra.mxu0 0.0
        %1064 = vmatprep.subr.mxu0 0.0
        %1065 = vmatpush1.msra.mxu0 0.0
        %1066 = vmatprep.subr.mxu0 0.0
        %1067 = vmatpush1.msra.mxu0 0.0
        %1068 = vmatprep.subr.mxu0 0.0
        %1069 = vmatpush1.msra.mxu0 %v1036
        %1070 = vmatprep.subr.mxu0 0.0
        %1071 = vmatpush2.msra.mxu0 0.0
        %1072 = vmatprep.subr.mxu0 0.0
        %1073 = vmatpush2.msra.mxu0 0.0
        %1074 = vmatprep.subr.mxu0 0.0
        %1075 = vmatpush2.msra.mxu0 0.0
        %1076 = vmatprep.subr.mxu0 0.0
        %1077 = vmatpush2.msra.mxu0 0.0
        %1078 = vmatprep.subr.mxu0 0.0
        %1079 = vmatpush2.msra.mxu0 0.0
        %1080 = vmatprep.subr.mxu0 0.0
        %1081 = vmatpush2.msra.mxu0 0.0
        %1082 = vmatprep.subr.mxu0 0.0
        %1083 = vmatpush2.msra.mxu0 0.0
        %1084 = vmatprep.subr.mxu0 0.0
        %1085 = vmatpush2.msra.mxu0 0.0
        %1086 = vmatprep.subr.mxu0 0.0
        %1087 = vmatpush2.msra.mxu0 0.0
        %1088 = vmatprep.subr.mxu0 0.0
        %1089 = vmatpush2.msra.mxu0 0.0
        %1090 = vmatprep.subr.mxu0 0.0
        %1091 = vmatpush2.msra.mxu0 0.0
        %1092 = vmatprep.subr.mxu0 0.0
        %1093 = vmatpush2.msra.mxu0 0.0
        %1094 = vmatprep.subr.mxu0 0.0
        %1095 = vmatpush2.msra.mxu0 0.0
        %1096 = vmatprep.subr.mxu0 0.0
        %1097 = vmatpush2.msra.mxu0 0.0
        %1098 = vmatprep.subr.mxu0 0.0
        %1099 = vmatpush2.msra.mxu0 0.0
        %1100 = vmatprep.subr.mxu0 0.0
        %1101 = vmatpush2.msra.mxu0 0.0
        %1102 = vmatprep.mubr.f32.mxu0 0.0
        %1103 = vmatmul.mubr.f32.gmra.mxu0 %v1032
        %v1104 = vpop.f32.mrf.mxu0
        %v1105 = vadd.f32 0.0, %v1104
        %v1106 = vpop.f32.mrf.mxu0
        %1107 = vdwg.mxu0
        %v1109 = vsel %vm1030, %v1029, 0
        %1111 = vmatprep.subr.mxu0 0.0
        %1112 = vmatpush1.msra.mxu0 0.0
        %1113 = vmatprep.subr.mxu0 0.0
        %1114 = vmatpush1.msra.mxu0 0.0
        %1115 = vmatprep.subr.mxu0 0.0
        %1116 = vmatpush1.msra.mxu0 0.0
        %1117 = vmatprep.subr.mxu0 0.0
        %1118 = vmatpush1.msra.mxu0 0.0
        %1119 = vmatprep.subr.mxu0 0.0
        %1120 = vmatpush1.msra.mxu0 0.0
        %1121 = vmatprep.subr.mxu0 0.0
        %1122 = vmatpush1.msra.mxu0 0.0
        %1123 = vmatprep.subr.mxu0 0.0
        %1124 = vmatpush1.msra.mxu0 0.0
        %1125 = vmatprep.subr.mxu0 0.0
        %1126 = vmatpush1.msra.mxu0 0.0
        %1127 = vmatprep.subr.mxu0 0.0
        %1128 = vmatpush1.msra.mxu0 0.0
        %1129 = vmatprep.subr.mxu0 0.0
        %1130 = vmatpush1.msra.mxu0 0.0
        %1131 = vmatprep.subr.mxu0 0.0
        %1132 = vmatpush1.msra.mxu0 0.0
        %1133 = vmatprep.subr.mxu0 0.0
        %1134 = vmatpush1.msra.mxu0 0.0
        %1135 = vmatprep.subr.mxu0 0.0
        %1136 = vmatpush1.msra.mxu0 0.0
        %1137 = vmatprep.subr.mxu0 0.0
        %1138 = vmatpush1.msra.mxu0 0.0
        %1139 = vmatprep.subr.mxu0 0.0
        %1140 = vmatpush1.msra.mxu0 0.0
        %1141 = vmatprep.subr.mxu0 0.0
        %1142 = vmatpush1.msra.mxu0 %v1036
        %1143 = vmatprep.subr.mxu0 0.0
        %1144 = vmatpush2.msra.mxu0 0.0
        %1145 = vmatprep.subr.mxu0 0.0
        %1146 = vmatpush2.msra.mxu0 0.0
        %1147 = vmatprep.subr.mxu0 0.0
        %1148 = vmatpush2.msra.mxu0 0.0
        %1149 = vmatprep.subr.mxu0 0.0
        %1150 = vmatpush2.msra.mxu0 0.0
        %1151 = vmatprep.subr.mxu0 0.0
        %1152 = vmatpush2.msra.mxu0 0.0
        %1153 = vmatprep.subr.mxu0 0.0
        %1154 = vmatpush2.msra.mxu0 0.0
        %1155 = vmatprep.subr.mxu0 0.0
        %1156 = vmatpush2.msra.mxu0 0.0
        %1157 = vmatprep.subr.mxu0 0.0
        %1158 = vmatpush2.msra.mxu0 0.0
        %1159 = vmatprep.subr.mxu0 0.0
        %1160 = vmatpush2.msra.mxu0 0.0
        %1161 = vmatprep.subr.mxu0 0.0
        %1162 = vmatpush2.msra.mxu0 0.0
        %1163 = vmatprep.subr.mxu0 0.0
        %1164 = vmatpush2.msra.mxu0 0.0
        %1165 = vmatprep.subr.mxu0 0.0
        %1166 = vmatpush2.msra.mxu0 0.0
        %1167 = vmatprep.subr.mxu0 0.0
        %1168 = vmatpush2.msra.mxu0 0.0
        %1169 = vmatprep.subr.mxu0 0.0
        %1170 = vmatpush2.msra.mxu0 0.0
        %1171 = vmatprep.subr.mxu0 0.0
        %1172 = vmatpush2.msra.mxu0 0.0
        %1173 = vmatprep.subr.mxu0 0.0
        %1174 = vmatpush2.msra.mxu0 0.0
        %1175 = vmatprep.mubr.f32.mxu0 0.0
        %1176 = vmatmul.mubr.f32.gmra.mxu0 %v1109
        %v1177 = vpop.f32.mrf.mxu0
        %v1178 = vadd.f32 0.0, %v1177
        %v1179 = vpop.f32.mrf.mxu0
        %1180 = vdwg.mxu0
        %v1182 = vlaneseq
        %v1183 = vshrl.u32 %v1182, 7
        %v1184 = vsub.s32 0, %v1183
        %v1185 = vrot.slane %v718, %v1184
        %v1187 = vmul.f32 %v1178, %v1185
        %v1188 = vmul.f32 %v1105, %v1187
        %v1190 = vlaneseq
        %v1191 = vshrl.u32 %v1190, 7
        %v1192 = vsub.s32 0, %v1191
        %v1193 = vrot.slane %v719, %v1192
        %v1195 = vsub.f32 %v1193, %v1188
        %vm1196 = vcmask 64512
        %v1198 = vsel %vm1196, %v696, 0
        %v1201 = vsel %vm1196, %v697, 0
        %v1204 = vsel %vm1196, %v698, 0
        %v1207 = vsel %vm1196, %v699, 0
        %v1210 = vsel %vm1196, %v700, 0
        %v1213 = vsel %vm1196, %v701, 0
        %v1216 = vsel %vm1196, %v702, 0
        %v1219 = vsel %vm1196, %v703, 0
        %v1222 = vsel %vm1196, %v704, 0
        %v1225 = vsel %vm1196, %v705, 0
        %v1228 = vsel %vm1196, %v706, 0
        %v1231 = vsel %vm1196, %v707, 0
        %v1234 = vsel %vm1196, %v708, 0
        %v1237 = vsel %vm1196, %v709, 0
        %v1240 = vsel %vm1196, %v710, 0
        %v1243 = vsel %vm1196, %v711, 0
        %1245 = vmatprep.subr.mxu0 0.0
        %1246 = vmatpush1.msra.mxu0 0.0
        %1247 = vmatprep.subr.mxu0 0.0
        %1248 = vmatpush1.msra.mxu0 0.0
        %1249 = vmatprep.subr.mxu0 0.0
        %1250 = vmatpush1.msra.mxu0 0.0
        %1251 = vmatprep.subr.mxu0 0.0
        %1252 = vmatpush1.msra.mxu0 0.0
        %1253 = vmatprep.subr.mxu0 0.0
        %1254 = vmatpush1.msra.mxu0 0.0
        %1255 = vmatprep.subr.mxu0 0.0
        %1256 = vmatpush1.msra.mxu0 0.0
        %1257 = vmatprep.subr.mxu0 0.0
        %1258 = vmatpush1.msra.mxu0 0.0
        %1259 = vmatprep.subr.mxu0 0.0
        %1260 = vmatpush1.msra.mxu0 0.0
        %1261 = vmatprep.subr.mxu0 0.0
        %1262 = vmatpush1.msra.mxu0 0.0
        %1263 = vmatprep.subr.mxu0 0.0
        %1264 = vmatpush1.msra.mxu0 0.0
        %1265 = vmatprep.subr.mxu0 0.0
        %1266 = vmatpush1.msra.mxu0 0.0
        %1267 = vmatprep.subr.mxu0 0.0
        %1268 = vmatpush1.msra.mxu0 0.0
        %1269 = vmatprep.subr.mxu0 0.0
        %1270 = vmatpush1.msra.mxu0 0.0
        %1271 = vmatprep.subr.mxu0 0.0
        %1272 = vmatpush1.msra.mxu0 0.0
        %1273 = vmatprep.subr.mxu0 0.0
        %1274 = vmatpush1.msra.mxu0 0.0
        %1275 = vmatprep.subr.mxu0 0.0
        %1276 = vmatpush1.msra.mxu0 %v1187
        %1277 = vmatprep.subr.mxu0 0.0
        %1278 = vmatpush2.msra.mxu0 0.0
        %1279 = vmatprep.subr.mxu0 0.0
        %1280 = vmatpush2.msra.mxu0 0.0
        %1281 = vmatprep.subr.mxu0 0.0
        %1282 = vmatpush2.msra.mxu0 0.0
        %1283 = vmatprep.subr.mxu0 0.0
        %1284 = vmatpush2.msra.mxu0 0.0
        %1285 = vmatprep.subr.mxu0 0.0
        %1286 = vmatpush2.msra.mxu0 0.0
        %1287 = vmatprep.subr.mxu0 0.0
        %1288 = vmatpush2.msra.mxu0 0.0
        %1289 = vmatprep.subr.mxu0 0.0
        %1290 = vmatpush2.msra.mxu0 0.0
        %1291 = vmatprep.subr.mxu0 0.0
        %1292 = vmatpush2.msra.mxu0 0.0
        %1293 = vmatprep.subr.mxu0 0.0
        %1294 = vmatpush2.msra.mxu0 0.0
        %1295 = vmatprep.subr.mxu0 0.0
        %1296 = vmatpush2.msra.mxu0 0.0
        %1297 = vmatprep.subr.mxu0 0.0
        %1298 = vmatpush2.msra.mxu0 0.0
        %1299 = vmatprep.subr.mxu0 0.0
        %1300 = vmatpush2.msra.mxu0 0.0
        %1301 = vmatprep.subr.mxu0 0.0
        %1302 = vmatpush2.msra.mxu0 0.0
        %1303 = vmatprep.subr.mxu0 0.0
        %1304 = vmatpush2.msra.mxu0 0.0
        %1305 = vmatprep.subr.mxu0 0.0
        %1306 = vmatpush2.msra.mxu0 0.0
        %1307 = vmatprep.subr.mxu0 0.0
        %1308 = vmatpush2.msra.mxu0 0.0
        %1309 = vmatprep.mubr.f32.mxu0 0.0
        %1310 = vmatmul.mubr.f32.gmra.mxu0 %v1198
        %v1311 = vpop.f32.mrf.mxu0
        %v1312 = vadd.f32 0.0, %v1311
        %v1313 = vpop.f32.mrf.mxu0
        %1314 = vmatprep.mubr.f32.mxu0 0.0
        %1315 = vmatmul.mubr.f32.gmra.mxu0 %v1201
        %v1316 = vpop.f32.mrf.mxu0
        %v1317 = vadd.f32 0.0, %v1316
        %v1318 = vpop.f32.mrf.mxu0
        %1319 = vmatprep.mubr.f32.mxu0 0.0
        %1320 = vmatmul.mubr.f32.gmra.mxu0 %v1204
        %v1321 = vpop.f32.mrf.mxu0
        %v1322 = vadd.f32 0.0, %v1321
        %v1323 = vpop.f32.mrf.mxu0
        %1324 = vmatprep.mubr.f32.mxu0 0.0
        %1325 = vmatmul.mubr.f32.gmra.mxu0 %v1207
        %v1326 = vpop.f32.mrf.mxu0
        %v1327 = vadd.f32 0.0, %v1326
        %v1328 = vpop.f32.mrf.mxu0
        %1329 = vmatprep.mubr.f32.mxu0 0.0
        %1330 = vmatmul.mubr.f32.gmra.mxu0 %v1210
        %v1331 = vpop.f32.mrf.mxu0
        %v1332 = vadd.f32 0.0, %v1331
        %v1333 = vpop.f32.mrf.mxu0
        %1334 = vmatprep.mubr.f32.mxu0 0.0
        %1335 = vmatmul.mubr.f32.gmra.mxu0 %v1213
        %v1336 = vpop.f32.mrf.mxu0
        %v1337 = vadd.f32 0.0, %v1336
        %v1338 = vpop.f32.mrf.mxu0
        %1339 = vmatprep.mubr.f32.mxu0 0.0
        %1340 = vmatmul.mubr.f32.gmra.mxu0 %v1216
        %v1341 = vpop.f32.mrf.mxu0
        %v1342 = vadd.f32 0.0, %v1341
        %v1343 = vpop.f32.mrf.mxu0
        %1344 = vmatprep.mubr.f32.mxu0 0.0
        %1345 = vmatmul.mubr.f32.gmra.mxu0 %v1219
        %v1346 = vpop.f32.mrf.mxu0
        %v1347 = vadd.f32 0.0, %v1346
        %v1348 = vpop.f32.mrf.mxu0
        %1349 = vmatprep.mubr.f32.mxu0 0.0
        %1350 = vmatmul.mubr.f32.gmra.mxu0 %v1222
        %v1351 = vpop.f32.mrf.mxu0
        %v1352 = vadd.f32 0.0, %v1351
        %v1353 = vpop.f32.mrf.mxu0
        %1354 = vmatprep.mubr.f32.mxu0 0.0
        %1355 = vmatmul.mubr.f32.gmra.mxu0 %v1225
        %v1356 = vpop.f32.mrf.mxu0
        %v1357 = vadd.f32 0.0, %v1356
        %v1358 = vpop.f32.mrf.mxu0
        %1359 = vmatprep.mubr.f32.mxu0 0.0
        %1360 = vmatmul.mubr.f32.gmra.mxu0 %v1228
        %v1361 = vpop.f32.mrf.mxu0
        %v1362 = vadd.f32 0.0, %v1361
        %v1363 = vpop.f32.mrf.mxu0
        %1364 = vmatprep.mubr.f32.mxu0 0.0
        %1365 = vmatmul.mubr.f32.gmra.mxu0 %v1231
        %v1366 = vpop.f32.mrf.mxu0
        %v1367 = vadd.f32 0.0, %v1366
        %v1368 = vpop.f32.mrf.mxu0
        %1369 = vmatprep.mubr.f32.mxu0 0.0
        %1370 = vmatmul.mubr.f32.gmra.mxu0 %v1234
        %v1371 = vpop.f32.mrf.mxu0
        %v1372 = vadd.f32 0.0, %v1371
        %v1373 = vpop.f32.mrf.mxu0
        %1374 = vmatprep.mubr.f32.mxu0 0.0
        %1375 = vmatmul.mubr.f32.gmra.mxu0 %v1237
        %v1376 = vpop.f32.mrf.mxu0
        %v1377 = vadd.f32 0.0, %v1376
        %v1378 = vpop.f32.mrf.mxu0
        %1379 = vmatprep.mubr.f32.mxu0 0.0
        %1380 = vmatmul.mubr.f32.gmra.mxu0 %v1240
        %v1381 = vpop.f32.mrf.mxu0
        %v1382 = vadd.f32 0.0, %v1381
        %v1383 = vpop.f32.mrf.mxu0
        %1384 = vmatprep.mubr.f32.mxu0 0.0
        %1385 = vmatmul.mubr.f32.gmra.mxu0 %v1243
        %v1386 = vpop.f32.mrf.mxu0
        %v1387 = vadd.f32 0.0, %v1386
        %v1388 = vpop.f32.mrf.mxu0
        %1389 = vdwg.mxu0
        %1390 = vmatprep.subr.mxu0 0.0
        %1391 = vmatpush1.msra.mxu0 0.0
        %1392 = vmatprep.subr.mxu0 0.0
        %1393 = vmatpush1.msra.mxu0 0.0
        %1394 = vmatprep.subr.mxu0 0.0
        %1395 = vmatpush1.msra.mxu0 0.0
        %1396 = vmatprep.subr.mxu0 0.0
        %1397 = vmatpush1.msra.mxu0 0.0
        %1398 = vmatprep.subr.mxu0 0.0
        %1399 = vmatpush1.msra.mxu0 0.0
        %1400 = vmatprep.subr.mxu0 0.0
        %1401 = vmatpush1.msra.mxu0 0.0
        %1402 = vmatprep.subr.mxu0 0.0
        %1403 = vmatpush1.msra.mxu0 0.0
        %1404 = vmatprep.subr.mxu0 0.0
        %1405 = vmatpush1.msra.mxu0 0.0
        %1406 = vmatprep.subr.mxu0 0.0
        %1407 = vmatpush1.msra.mxu0 0.0
        %1408 = vmatprep.subr.mxu0 0.0
        %1409 = vmatpush1.msra.mxu0 0.0
        %1410 = vmatprep.subr.mxu0 0.0
        %1411 = vmatpush1.msra.mxu0 0.0
        %1412 = vmatprep.subr.mxu0 0.0
        %1413 = vmatpush1.msra.mxu0 0.0
        %1414 = vmatprep.subr.mxu0 0.0
        %1415 = vmatpush1.msra.mxu0 0.0
        %1416 = vmatprep.subr.mxu0 0.0
        %1417 = vmatpush1.msra.mxu0 0.0
        %1418 = vmatprep.subr.mxu0 0.0
        %1419 = vmatpush1.msra.mxu0 0.0
        %1420 = vmatprep.subr.mxu0 0.0
        %1421 = vmatpush1.msra.mxu0 %v1195
        %1422 = vmatprep.subr.mxu0 0.0
        %1423 = vmatpush2.msra.mxu0 0.0
        %1424 = vmatprep.subr.mxu0 0.0
        %1425 = vmatpush2.msra.mxu0 0.0
        %1426 = vmatprep.subr.mxu0 0.0
        %1427 = vmatpush2.msra.mxu0 0.0
        %1428 = vmatprep.subr.mxu0 0.0
        %1429 = vmatpush2.msra.mxu0 0.0
        %1430 = vmatprep.subr.mxu0 0.0
        %1431 = vmatpush2.msra.mxu0 0.0
        %1432 = vmatprep.subr.mxu0 0.0
        %1433 = vmatpush2.msra.mxu0 0.0
        %1434 = vmatprep.subr.mxu0 0.0
        %1435 = vmatpush2.msra.mxu0 0.0
        %1436 = vmatprep.subr.mxu0 0.0
        %1437 = vmatpush2.msra.mxu0 0.0
        %1438 = vmatprep.subr.mxu0 0.0
        %1439 = vmatpush2.msra.mxu0 0.0
        %1440 = vmatprep.subr.mxu0 0.0
        %1441 = vmatpush2.msra.mxu0 0.0
        %1442 = vmatprep.subr.mxu0 0.0
        %1443 = vmatpush2.msra.mxu0 0.0
        %1444 = vmatprep.subr.mxu0 0.0
        %1445 = vmatpush2.msra.mxu0 0.0
        %1446 = vmatprep.subr.mxu0 0.0
        %1447 = vmatpush2.msra.mxu0 0.0
        %1448 = vmatprep.subr.mxu0 0.0
        %1449 = vmatpush2.msra.mxu0 0.0
        %1450 = vmatprep.subr.mxu0 0.0
        %1451 = vmatpush2.msra.mxu0 0.0
        %1452 = vmatprep.subr.mxu0 0.0
        %1453 = vmatpush2.msra.mxu0 0.0
        %1454 = vmatprep.mubr.f32.mxu0 0.0
        %1455 = vmatmul.mubr.f32.gmra.mxu0 %v1198
        %v1456 = vpop.f32.mrf.mxu0
        %v1457 = vadd.f32 0.0, %v1456
        %v1458 = vpop.f32.mrf.mxu0
        %1459 = vmatprep.mubr.f32.mxu0 0.0
        %1460 = vmatmul.mubr.f32.gmra.mxu0 %v1201
        %v1461 = vpop.f32.mrf.mxu0
        %v1462 = vadd.f32 0.0, %v1461
        %v1463 = vpop.f32.mrf.mxu0
        %1464 = vmatprep.mubr.f32.mxu0 0.0
        %1465 = vmatmul.mubr.f32.gmra.mxu0 %v1204
        %v1466 = vpop.f32.mrf.mxu0
        %v1467 = vadd.f32 0.0, %v1466
        %v1468 = vpop.f32.mrf.mxu0
        %1469 = vmatprep.mubr.f32.mxu0 0.0
        %1470 = vmatmul.mubr.f32.gmra.mxu0 %v1207
        %v1471 = vpop.f32.mrf.mxu0
        %v1472 = vadd.f32 0.0, %v1471
        %v1473 = vpop.f32.mrf.mxu0
        %1474 = vmatprep.mubr.f32.mxu0 0.0
        %1475 = vmatmul.mubr.f32.gmra.mxu0 %v1210
        %v1476 = vpop.f32.mrf.mxu0
        %v1477 = vadd.f32 0.0, %v1476
        %v1478 = vpop.f32.mrf.mxu0
        %1479 = vmatprep.mubr.f32.mxu0 0.0
        %1480 = vmatmul.mubr.f32.gmra.mxu0 %v1213
        %v1481 = vpop.f32.mrf.mxu0
        %v1482 = vadd.f32 0.0, %v1481
        %v1483 = vpop.f32.mrf.mxu0
        %1484 = vmatprep.mubr.f32.mxu0 0.0
        %1485 = vmatmul.mubr.f32.gmra.mxu0 %v1216
        %v1486 = vpop.f32.mrf.mxu0
        %v1487 = vadd.f32 0.0, %v1486
        %v1488 = vpop.f32.mrf.mxu0
        %1489 = vmatprep.mubr.f32.mxu0 0.0
        %1490 = vmatmul.mubr.f32.gmra.mxu0 %v1219
        %v1491 = vpop.f32.mrf.mxu0
        %v1492 = vadd.f32 0.0, %v1491
        %v1493 = vpop.f32.mrf.mxu0
        %1494 = vmatprep.mubr.f32.mxu0 0.0
        %1495 = vmatmul.mubr.f32.gmra.mxu0 %v1222
        %v1496 = vpop.f32.mrf.mxu0
        %v1497 = vadd.f32 0.0, %v1496
        %v1498 = vpop.f32.mrf.mxu0
        %1499 = vmatprep.mubr.f32.mxu0 0.0
        %1500 = vmatmul.mubr.f32.gmra.mxu0 %v1225
        %v1501 = vpop.f32.mrf.mxu0
        %v1502 = vadd.f32 0.0, %v1501
        %v1503 = vpop.f32.mrf.mxu0
        %1504 = vmatprep.mubr.f32.mxu0 0.0
        %1505 = vmatmul.mubr.f32.gmra.mxu0 %v1228
        %v1506 = vpop.f32.mrf.mxu0
        %v1507 = vadd.f32 0.0, %v1506
        %v1508 = vpop.f32.mrf.mxu0
        %1509 = vmatprep.mubr.f32.mxu0 0.0
        %1510 = vmatmul.mubr.f32.gmra.mxu0 %v1231
        %v1511 = vpop.f32.mrf.mxu0
        %v1512 = vadd.f32 0.0, %v1511
        %v1513 = vpop.f32.mrf.mxu0
        %1514 = vmatprep.mubr.f32.mxu0 0.0
        %1515 = vmatmul.mubr.f32.gmra.mxu0 %v1234
        %v1516 = vpop.f32.mrf.mxu0
        %v1517 = vadd.f32 0.0, %v1516
        %v1518 = vpop.f32.mrf.mxu0
        %1519 = vmatprep.mubr.f32.mxu0 0.0
        %1520 = vmatmul.mubr.f32.gmra.mxu0 %v1237
        %v1521 = vpop.f32.mrf.mxu0
        %v1522 = vadd.f32 0.0, %v1521
        %v1523 = vpop.f32.mrf.mxu0
        %1524 = vmatprep.mubr.f32.mxu0 0.0
        %1525 = vmatmul.mubr.f32.gmra.mxu0 %v1240
        %v1526 = vpop.f32.mrf.mxu0
        %v1527 = vadd.f32 0.0, %v1526
        %v1528 = vpop.f32.mrf.mxu0
        %1529 = vmatprep.mubr.f32.mxu0 0.0
        %1530 = vmatmul.mubr.f32.gmra.mxu0 %v1243
        %v1531 = vpop.f32.mrf.mxu0
        %v1532 = vadd.f32 0.0, %v1531
        %v1533 = vpop.f32.mrf.mxu0
        %1534 = vdwg.mxu0
        %v1535 = vmul.f32 %v634, %v1312
        %v1536 = vmul.f32 %v637, %v1317
        %v1537 = vmul.f32 %v642, %v1322
        %v1538 = vmul.f32 %v645, %v1327
        %v1539 = vmul.f32 %v650, %v1332
        %v1540 = vmul.f32 %v653, %v1337
        %v1541 = vmul.f32 %v658, %v1342
        %v1542 = vmul.f32 %v661, %v1347
        %v1543 = vmul.f32 %v666, %v1352
        %v1544 = vmul.f32 %v669, %v1357
        %v1545 = vmul.f32 %v674, %v1362
        %v1546 = vmul.f32 %v677, %v1367
        %v1547 = vmul.f32 %v682, %v1372
        %v1548 = vmul.f32 %v685, %v1377
        %v1549 = vmul.f32 %v690, %v1382
        %v1550 = vmul.f32 %v693, %v1387
        %v1551 = vadd.f32 %v1535, %v1457
        %v1552 = vadd.f32 %v1536, %v1462
        %v1553 = vadd.f32 %v1537, %v1467
        %v1554 = vadd.f32 %v1538, %v1472
        %v1555 = vadd.f32 %v1539, %v1477
        %v1556 = vadd.f32 %v1540, %v1482
        %v1557 = vadd.f32 %v1541, %v1487
        %v1558 = vadd.f32 %v1542, %v1492
        %v1559 = vadd.f32 %v1543, %v1497
        %v1560 = vadd.f32 %v1544, %v1502
        %v1561 = vadd.f32 %v1545, %v1507
        %v1562 = vadd.f32 %v1546, %v1512
        %v1563 = vadd.f32 %v1547, %v1517
        %v1564 = vadd.f32 %v1548, %v1522
        %v1565 = vadd.f32 %v1549, %v1527
        %v1566 = vadd.f32 %v1550, %v1532
        %v1567 = vmul.f32 %v1551, 0.5
        %v1568 = vmul.f32 %v1552, 0.5
        %v1569 = vmul.f32 %v1553, 0.5
        %v1570 = vmul.f32 %v1554, 0.5
        %v1571 = vmul.f32 %v1555, 0.5
        %v1572 = vmul.f32 %v1556, 0.5
        %v1573 = vmul.f32 %v1557, 0.5
        %v1574 = vmul.f32 %v1558, 0.5
        %v1575 = vmul.f32 %v1559, 0.5
        %v1576 = vmul.f32 %v1560, 0.5
        %v1577 = vmul.f32 %v1561, 0.5
        %v1578 = vmul.f32 %v1562, 0.5
        %v1579 = vmul.f32 %v1563, 0.5
        %v1580 = vmul.f32 %v1564, 0.5
        %v1581 = vmul.f32 %v1565, 0.5
        %v1582 = vmul.f32 %v1566, 0.5
        %v1583 = vmul.f32 %v1551, 0.70710677
        %v1584 = vmul.f32 %v1552, 0.70710677
        %v1585 = vmul.f32 %v1553, 0.70710677
        %v1586 = vmul.f32 %v1554, 0.70710677
        %v1587 = vmul.f32 %v1555, 0.70710677
        %v1588 = vmul.f32 %v1556, 0.70710677
        %v1589 = vmul.f32 %v1557, 0.70710677
        %v1590 = vmul.f32 %v1558, 0.70710677
        %v1591 = vmul.f32 %v1559, 0.70710677
        %v1592 = vmul.f32 %v1560, 0.70710677
        %v1593 = vmul.f32 %v1561, 0.70710677
        %v1594 = vmul.f32 %v1562, 0.70710677
        %v1595 = vmul.f32 %v1563, 0.70710677
        %v1596 = vmul.f32 %v1564, 0.70710677
        %v1597 = vmul.f32 %v1565, 0.70710677
        %v1598 = vmul.f32 %v1566, 0.70710677
        %v1599 = verf.f32.pop %v1583
        %v1600 = verf.f32.pop %v1584
        %v1601 = verf.f32.pop %v1585
        %v1602 = verf.f32.pop %v1586
        %v1603 = verf.f32.pop %v1587
        %v1604 = verf.f32.pop %v1588
        %v1605 = verf.f32.pop %v1589
        %v1606 = verf.f32.pop %v1590
        %v1607 = verf.f32.pop %v1591
        %v1608 = verf.f32.pop %v1592
        %v1609 = verf.f32.pop %v1593
        %v1610 = verf.f32.pop %v1594
        %v1611 = verf.f32.pop %v1595
        %v1612 = verf.f32.pop %v1596
        %v1613 = verf.f32.pop %v1597
        %v1614 = verf.f32.pop %v1598
        %v1615 = vadd.f32 %v1599, 1.0
        %v1616 = vadd.f32 %v1600, 1.0
        %v1617 = vadd.f32 %v1601, 1.0
        %v1618 = vadd.f32 %v1602, 1.0
        %v1619 = vadd.f32 %v1603, 1.0
        %v1620 = vadd.f32 %v1604, 1.0
        %v1621 = vadd.f32 %v1605, 1.0
        %v1622 = vadd.f32 %v1606, 1.0
        %v1623 = vadd.f32 %v1607, 1.0
        %v1624 = vadd.f32 %v1608, 1.0
        %v1625 = vadd.f32 %v1609, 1.0
        %v1626 = vadd.f32 %v1610, 1.0
        %v1627 = vadd.f32 %v1611, 1.0
        %v1628 = vadd.f32 %v1612, 1.0
        %v1629 = vadd.f32 %v1613, 1.0
        %v1630 = vadd.f32 %v1614, 1.0
        %v1631 = vmul.f32 %v1567, %v1615
        %v1632 = vmul.f32 %v1568, %v1616
        %v1633 = vmul.f32 %v1569, %v1617
        %v1634 = vmul.f32 %v1570, %v1618
        %v1635 = vmul.f32 %v1571, %v1619
        %v1636 = vmul.f32 %v1572, %v1620
        %v1637 = vmul.f32 %v1573, %v1621
        %v1638 = vmul.f32 %v1574, %v1622
        %v1639 = vmul.f32 %v1575, %v1623
        %v1640 = vmul.f32 %v1576, %v1624
        %v1641 = vmul.f32 %v1577, %v1625
        %v1642 = vmul.f32 %v1578, %v1626
        %v1643 = vmul.f32 %v1579, %v1627
        %v1644 = vmul.f32 %v1580, %v1628
        %v1645 = vmul.f32 %v1581, %v1629
        %v1646 = vmul.f32 %v1582, %v1630
        %v1647 = vpack.c.bf16 %v1631, %v1631
        %v1648 = vld [vmem:[%s2] sm:$0xf]
        %v1649 = vld [vmem:[%s2 + $0x4] sm:$0xf]
        %v1650 = vld [vmem:[%s2 + $0x8] sm:$0xf]
        %v1651 = vld [vmem:[%s2 + $0xc] sm:$0xf]
        %v1652 = vpack.c.bf16 %v1632, %v1632
        %s1653 = scalar_lea.vmem %s2, 16
        %v1654 = vld [vmem:[%s1653] sm:$0xf]
        %v1655 = vld [vmem:[%s1653 + $0x4] sm:$0xf]
        %v1656 = vld [vmem:[%s1653 + $0x8] sm:$0xf]
        %v1657 = vld [vmem:[%s1653 + $0xc] sm:$0xf]
        %v1662 = vunpack.c.l.b16 %v1654
        %v1663 = vunpack.c.l.b16 %v1655
        %v1664 = vunpack.c.l.b16 %v1656
        %v1665 = vunpack.c.l.b16 %v1657
        %v1666 = vpack.c.b16 %v1663, %v1662
        %v1667 = vpack.c.b16 %v1665, %v1664
        %v1671 = vsel %vm876, %v1652, 0
        %1673 = vmatprep.subr.bf16.mxu0 0
        %1674 = vmatpush1.bf16.msra.mxu0 0
        %1675 = vmatprep.subr.bf16.mxu0 0
        %1676 = vmatpush1.bf16.msra.mxu0 0
        %1677 = vmatprep.subr.bf16.mxu0 0
        %1678 = vmatpush1.bf16.msra.mxu0 0
        %1679 = vmatprep.subr.bf16.mxu0 0
        %1680 = vmatpush1.bf16.msra.mxu0 0
        %1681 = vmatprep.subr.bf16.mxu0 0
        %1682 = vmatpush1.bf16.msra.mxu0 0
        %1683 = vmatprep.subr.bf16.mxu0 0
        %1684 = vmatpush1.bf16.msra.mxu0 0
        %1685 = vmatprep.subr.bf16.mxu0 0
        %1686 = vmatpush1.bf16.msra.mxu0 %v1667
        %1687 = vmatprep.subr.bf16.mxu0 0
        %1688 = vmatpush1.bf16.msra.mxu0 %v1666
        %1689 = vmatprep.subr.bf16.mxu0 0
        %1690 = vmatpush2.bf16.msra.mxu0 0
        %1691 = vmatprep.subr.bf16.mxu0 0
        %1692 = vmatpush2.bf16.msra.mxu0 0
        %1693 = vmatprep.subr.bf16.mxu0 0
        %1694 = vmatpush2.bf16.msra.mxu0 0
        %1695 = vmatprep.subr.bf16.mxu0 0
        %1696 = vmatpush2.bf16.msra.mxu0 0
        %1697 = vmatprep.subr.bf16.mxu0 0
        %1698 = vmatpush2.bf16.msra.mxu0 0
        %1699 = vmatprep.subr.bf16.mxu0 0
        %1700 = vmatpush2.bf16.msra.mxu0 0
        %1701 = vmatprep.subr.bf16.mxu0 0
        %1702 = vmatpush2.bf16.msra.mxu0 0
        %1703 = vmatprep.subr.bf16.mxu0 0
        %1704 = vmatpush2.bf16.msra.mxu0 0
        %1705 = vmatprep.mubr.bf16.mxu0 0
        %1706 = vmatmul.mubr.bf16.gmra.mxu0 %v1671
        %v1707 = vpop.f32.mrf.mxu0
        %v1708 = vadd.f32 0.0, %v1707
        %v1709 = vpop.f32.mrf.mxu0
        %v1710 = vpop.f32.mrf.mxu0
        %v1711 = vpop.f32.mrf.mxu0
        %1712 = vdwg.mxu0
        %v1717 = vunpack.c.l.b16 %v1648
        %v1718 = vunpack.c.l.b16 %v1649
        %v1719 = vunpack.c.l.b16 %v1650
        %v1720 = vunpack.c.l.b16 %v1651
        %v1721 = vpack.c.b16 %v1718, %v1717
        %v1722 = vpack.c.b16 %v1720, %v1719
        %v1726 = vsel %vm876, %v1647, 0
        %1728 = vmatprep.subr.bf16.mxu0 0
        %1729 = vmatpush1.bf16.msra.mxu0 0
        %1730 = vmatprep.subr.bf16.mxu0 0
        %1731 = vmatpush1.bf16.msra.mxu0 0
        %1732 = vmatprep.subr.bf16.mxu0 0
        %1733 = vmatpush1.bf16.msra.mxu0 0
        %1734 = vmatprep.subr.bf16.mxu0 0
        %1735 = vmatpush1.bf16.msra.mxu0 0
        %1736 = vmatprep.subr.bf16.mxu0 0
        %1737 = vmatpush1.bf16.msra.mxu0 0
        %1738 = vmatprep.subr.bf16.mxu0 0
        %1739 = vmatpush1.bf16.msra.mxu0 0
        %1740 = vmatprep.subr.bf16.mxu0 0
        %1741 = vmatpush1.bf16.msra.mxu0 %v1722
        %1742 = vmatprep.subr.bf16.mxu0 0
        %1743 = vmatpush1.bf16.msra.mxu0 %v1721
        %1744 = vmatprep.subr.bf16.mxu0 0
        %1745 = vmatpush2.bf16.msra.mxu0 0
        %1746 = vmatprep.subr.bf16.mxu0 0
        %1747 = vmatpush2.bf16.msra.mxu0 0
        %1748 = vmatprep.subr.bf16.mxu0 0
        %1749 = vmatpush2.bf16.msra.mxu0 0
        %1750 = vmatprep.subr.bf16.mxu0 0
        %1751 = vmatpush2.bf16.msra.mxu0 0
        %1752 = vmatprep.subr.bf16.mxu0 0
        %1753 = vmatpush2.bf16.msra.mxu0 0
        %1754 = vmatprep.subr.bf16.mxu0 0
        %1755 = vmatpush2.bf16.msra.mxu0 0
        %1756 = vmatprep.subr.bf16.mxu0 0
        %1757 = vmatpush2.bf16.msra.mxu0 0
        %1758 = vmatprep.subr.bf16.mxu0 0
        %1759 = vmatpush2.bf16.msra.mxu0 0
        %1760 = vmatprep.mubr.bf16.mxu0 0
        %1761 = vmatmul.mubr.bf16.gmra.mxu0 %v1726
        %v1762 = vpop.f32.mrf.mxu0
        %v1763 = vadd.f32 %v1708, %v1762
        %v1764 = vpop.f32.mrf.mxu0
        %v1765 = vpop.f32.mrf.mxu0
        %v1766 = vpop.f32.mrf.mxu0
        %1767 = vdwg.mxu0
        %v1768 = vpack.c.bf16 %v1633, %v1633
        %s1769 = scalar_lea.vmem %s2, 32
        %v1770 = vld [vmem:[%s1769] sm:$0xf]
        %v1771 = vld [vmem:[%s1769 + $0x4] sm:$0xf]
        %v1772 = vld [vmem:[%s1769 + $0x8] sm:$0xf]
        %v1773 = vld [vmem:[%s1769 + $0xc] sm:$0xf]
        %v1778 = vunpack.c.l.b16 %v1770
        %v1779 = vunpack.c.l.b16 %v1771
        %v1780 = vunpack.c.l.b16 %v1772
        %v1781 = vunpack.c.l.b16 %v1773
        %v1782 = vpack.c.b16 %v1779, %v1778
        %v1783 = vpack.c.b16 %v1781, %v1780
        %v1787 = vsel %vm876, %v1768, 0
        %1789 = vmatprep.subr.bf16.mxu0 0
        %1790 = vmatpush1.bf16.msra.mxu0 0
        %1791 = vmatprep.subr.bf16.mxu0 0
        %1792 = vmatpush1.bf16.msra.mxu0 0
        %1793 = vmatprep.subr.bf16.mxu0 0
        %1794 = vmatpush1.bf16.msra.mxu0 0
        %1795 = vmatprep.subr.bf16.mxu0 0
        %1796 = vmatpush1.bf16.msra.mxu0 0
        %1797 = vmatprep.subr.bf16.mxu0 0
        %1798 = vmatpush1.bf16.msra.mxu0 0
        %1799 = vmatprep.subr.bf16.mxu0 0
        %1800 = vmatpush1.bf16.msra.mxu0 0
        %1801 = vmatprep.subr.bf16.mxu0 0
        %1802 = vmatpush1.bf16.msra.mxu0 %v1783
        %1803 = vmatprep.subr.bf16.mxu0 0
        %1804 = vmatpush1.bf16.msra.mxu0 %v1782
        %1805 = vmatprep.subr.bf16.mxu0 0
        %1806 = vmatpush2.bf16.msra.mxu0 0
        %1807 = vmatprep.subr.bf16.mxu0 0
        %1808 = vmatpush2.bf16.msra.mxu0 0
        %1809 = vmatprep.subr.bf16.mxu0 0
        %1810 = vmatpush2.bf16.msra.mxu0 0
        %1811 = vmatprep.subr.bf16.mxu0 0
        %1812 = vmatpush2.bf16.msra.mxu0 0
        %1813 = vmatprep.subr.bf16.mxu0 0
        %1814 = vmatpush2.bf16.msra.mxu0 0
        %1815 = vmatprep.subr.bf16.mxu0 0
        %1816 = vmatpush2.bf16.msra.mxu0 0
        %1817 = vmatprep.subr.bf16.mxu0 0
        %1818 = vmatpush2.bf16.msra.mxu0 0
        %1819 = vmatprep.subr.bf16.mxu0 0
        %1820 = vmatpush2.bf16.msra.mxu0 0
        %1821 = vmatprep.mubr.bf16.mxu0 0
        %1822 = vmatmul.mubr.bf16.gmra.mxu0 %v1787
        %v1823 = vpop.f32.mrf.mxu0
        %v1824 = vadd.f32 0.0, %v1823
        %v1825 = vpop.f32.mrf.mxu0
        %v1826 = vpop.f32.mrf.mxu0
        %v1827 = vpop.f32.mrf.mxu0
        %1828 = vdwg.mxu0
        %v1829 = vadd.f32 %v1763, %v1824
        %v1830 = vpack.c.bf16 %v1634, %v1634
        %s1831 = scalar_lea.vmem %s2, 48
        %v1832 = vld [vmem:[%s1831] sm:$0xf]
        %v1833 = vld [vmem:[%s1831 + $0x4] sm:$0xf]
        %v1834 = vld [vmem:[%s1831 + $0x8] sm:$0xf]
        %v1835 = vld [vmem:[%s1831 + $0xc] sm:$0xf]
        %v1840 = vunpack.c.l.b16 %v1832
        %v1841 = vunpack.c.l.b16 %v1833
        %v1842 = vunpack.c.l.b16 %v1834
        %v1843 = vunpack.c.l.b16 %v1835
        %v1844 = vpack.c.b16 %v1841, %v1840
        %v1845 = vpack.c.b16 %v1843, %v1842
        %v1849 = vsel %vm876, %v1830, 0
        %1851 = vmatprep.subr.bf16.mxu0 0
        %1852 = vmatpush1.bf16.msra.mxu0 0
        %1853 = vmatprep.subr.bf16.mxu0 0
        %1854 = vmatpush1.bf16.msra.mxu0 0
        %1855 = vmatprep.subr.bf16.mxu0 0
        %1856 = vmatpush1.bf16.msra.mxu0 0
        %1857 = vmatprep.subr.bf16.mxu0 0
        %1858 = vmatpush1.bf16.msra.mxu0 0
        %1859 = vmatprep.subr.bf16.mxu0 0
        %1860 = vmatpush1.bf16.msra.mxu0 0
        %1861 = vmatprep.subr.bf16.mxu0 0
        %1862 = vmatpush1.bf16.msra.mxu0 0
        %1863 = vmatprep.subr.bf16.mxu0 0
        %1864 = vmatpush1.bf16.msra.mxu0 %v1845
        %1865 = vmatprep.subr.bf16.mxu0 0
        %1866 = vmatpush1.bf16.msra.mxu0 %v1844
        %1867 = vmatprep.subr.bf16.mxu0 0
        %1868 = vmatpush2.bf16.msra.mxu0 0
        %1869 = vmatprep.subr.bf16.mxu0 0
        %1870 = vmatpush2.bf16.msra.mxu0 0
        %1871 = vmatprep.subr.bf16.mxu0 0
        %1872 = vmatpush2.bf16.msra.mxu0 0
        %1873 = vmatprep.subr.bf16.mxu0 0
        %1874 = vmatpush2.bf16.msra.mxu0 0
        %1875 = vmatprep.subr.bf16.mxu0 0
        %1876 = vmatpush2.bf16.msra.mxu0 0
        %1877 = vmatprep.subr.bf16.mxu0 0
        %1878 = vmatpush2.bf16.msra.mxu0 0
        %1879 = vmatprep.subr.bf16.mxu0 0
        %1880 = vmatpush2.bf16.msra.mxu0 0
        %1881 = vmatprep.subr.bf16.mxu0 0
        %1882 = vmatpush2.bf16.msra.mxu0 0
        %1883 = vmatprep.mubr.bf16.mxu0 0
        %1884 = vmatmul.mubr.bf16.gmra.mxu0 %v1849
        %v1885 = vpop.f32.mrf.mxu0
        %v1886 = vadd.f32 0.0, %v1885
        %v1887 = vpop.f32.mrf.mxu0
        %v1888 = vpop.f32.mrf.mxu0
        %v1889 = vpop.f32.mrf.mxu0
        %1890 = vdwg.mxu0
        %v1891 = vadd.f32 %v1829, %v1886
        %v1892 = vpack.c.bf16 %v1635, %v1635
        %s1893 = scalar_lea.vmem %s2, 64
        %v1894 = vld [vmem:[%s1893] sm:$0xf]
        %v1895 = vld [vmem:[%s1893 + $0x4] sm:$0xf]
        %v1896 = vld [vmem:[%s1893 + $0x8] sm:$0xf]
        %v1897 = vld [vmem:[%s1893 + $0xc] sm:$0xf]
        %v1902 = vunpack.c.l.b16 %v1894
        %v1903 = vunpack.c.l.b16 %v1895
        %v1904 = vunpack.c.l.b16 %v1896
        %v1905 = vunpack.c.l.b16 %v1897
        %v1906 = vpack.c.b16 %v1903, %v1902
        %v1907 = vpack.c.b16 %v1905, %v1904
        %v1911 = vsel %vm876, %v1892, 0
        %1913 = vmatprep.subr.bf16.mxu0 0
        %1914 = vmatpush1.bf16.msra.mxu0 0
        %1915 = vmatprep.subr.bf16.mxu0 0
        %1916 = vmatpush1.bf16.msra.mxu0 0
        %1917 = vmatprep.subr.bf16.mxu0 0
        %1918 = vmatpush1.bf16.msra.mxu0 0
        %1919 = vmatprep.subr.bf16.mxu0 0
        %1920 = vmatpush1.bf16.msra.mxu0 0
        %1921 = vmatprep.subr.bf16.mxu0 0
        %1922 = vmatpush1.bf16.msra.mxu0 0
        %1923 = vmatprep.subr.bf16.mxu0 0
        %1924 = vmatpush1.bf16.msra.mxu0 0
        %1925 = vmatprep.subr.bf16.mxu0 0
        %1926 = vmatpush1.bf16.msra.mxu0 %v1907
        %1927 = vmatprep.subr.bf16.mxu0 0
        %1928 = vmatpush1.bf16.msra.mxu0 %v1906
        %1929 = vmatprep.subr.bf16.mxu0 0
        %1930 = vmatpush2.bf16.msra.mxu0 0
        %1931 = vmatprep.subr.bf16.mxu0 0
        %1932 = vmatpush2.bf16.msra.mxu0 0
        %1933 = vmatprep.subr.bf16.mxu0 0
        %1934 = vmatpush2.bf16.msra.mxu0 0
        %1935 = vmatprep.subr.bf16.mxu0 0
        %1936 = vmatpush2.bf16.msra.mxu0 0
        %1937 = vmatprep.subr.bf16.mxu0 0
        %1938 = vmatpush2.bf16.msra.mxu0 0
        %1939 = vmatprep.subr.bf16.mxu0 0
        %1940 = vmatpush2.bf16.msra.mxu0 0
        %1941 = vmatprep.subr.bf16.mxu0 0
        %1942 = vmatpush2.bf16.msra.mxu0 0
        %1943 = vmatprep.subr.bf16.mxu0 0
        %1944 = vmatpush2.bf16.msra.mxu0 0
        %1945 = vmatprep.mubr.bf16.mxu0 0
        %1946 = vmatmul.mubr.bf16.gmra.mxu0 %v1911
        %v1947 = vpop.f32.mrf.mxu0
        %v1948 = vadd.f32 0.0, %v1947
        %v1949 = vpop.f32.mrf.mxu0
        %v1950 = vpop.f32.mrf.mxu0
        %v1951 = vpop.f32.mrf.mxu0
        %1952 = vdwg.mxu0
        %v1953 = vadd.f32 %v1891, %v1948
        %v1954 = vpack.c.bf16 %v1636, %v1636
        %s1955 = scalar_lea.vmem %s2, 80
        %v1956 = vld [vmem:[%s1955] sm:$0xf]
        %v1957 = vld [vmem:[%s1955 + $0x4] sm:$0xf]
        %v1958 = vld [vmem:[%s1955 + $0x8] sm:$0xf]
        %v1959 = vld [vmem:[%s1955 + $0xc] sm:$0xf]
        %v1964 = vunpack.c.l.b16 %v1956
        %v1965 = vunpack.c.l.b16 %v1957
        %v1966 = vunpack.c.l.b16 %v1958
        %v1967 = vunpack.c.l.b16 %v1959
        %v1968 = vpack.c.b16 %v1965, %v1964
        %v1969 = vpack.c.b16 %v1967, %v1966
        %v1973 = vsel %vm876, %v1954, 0
        %1975 = vmatprep.subr.bf16.mxu0 0
        %1976 = vmatpush1.bf16.msra.mxu0 0
        %1977 = vmatprep.subr.bf16.mxu0 0
        %1978 = vmatpush1.bf16.msra.mxu0 0
        %1979 = vmatprep.subr.bf16.mxu0 0
        %1980 = vmatpush1.bf16.msra.mxu0 0
        %1981 = vmatprep.subr.bf16.mxu0 0
        %1982 = vmatpush1.bf16.msra.mxu0 0
        %1983 = vmatprep.subr.bf16.mxu0 0
        %1984 = vmatpush1.bf16.msra.mxu0 0
        %1985 = vmatprep.subr.bf16.mxu0 0
        %1986 = vmatpush1.bf16.msra.mxu0 0
        %1987 = vmatprep.subr.bf16.mxu0 0
        %1988 = vmatpush1.bf16.msra.mxu0 %v1969
        %1989 = vmatprep.subr.bf16.mxu0 0
        %1990 = vmatpush1.bf16.msra.mxu0 %v1968
        %1991 = vmatprep.subr.bf16.mxu0 0
        %1992 = vmatpush2.bf16.msra.mxu0 0
        %1993 = vmatprep.subr.bf16.mxu0 0
        %1994 = vmatpush2.bf16.msra.mxu0 0
        %1995 = vmatprep.subr.bf16.mxu0 0
        %1996 = vmatpush2.bf16.msra.mxu0 0
        %1997 = vmatprep.subr.bf16.mxu0 0
        %1998 = vmatpush2.bf16.msra.mxu0 0
        %1999 = vmatprep.subr.bf16.mxu0 0
        %2000 = vmatpush2.bf16.msra.mxu0 0
        %2001 = vmatprep.subr.bf16.mxu0 0
        %2002 = vmatpush2.bf16.msra.mxu0 0
        %2003 = vmatprep.subr.bf16.mxu0 0
        %2004 = vmatpush2.bf16.msra.mxu0 0
        %2005 = vmatprep.subr.bf16.mxu0 0
        %2006 = vmatpush2.bf16.msra.mxu0 0
        %2007 = vmatprep.mubr.bf16.mxu0 0
        %2008 = vmatmul.mubr.bf16.gmra.mxu0 %v1973
        %v2009 = vpop.f32.mrf.mxu0
        %v2010 = vadd.f32 0.0, %v2009
        %v2011 = vpop.f32.mrf.mxu0
        %v2012 = vpop.f32.mrf.mxu0
        %v2013 = vpop.f32.mrf.mxu0
        %2014 = vdwg.mxu0
        %v2015 = vadd.f32 %v1953, %v2010
        %v2016 = vpack.c.bf16 %v1637, %v1637
        %s2017 = scalar_lea.vmem %s2, 96
        %v2018 = vld [vmem:[%s2017] sm:$0xf]
        %v2019 = vld [vmem:[%s2017 + $0x4] sm:$0xf]
        %v2020 = vld [vmem:[%s2017 + $0x8] sm:$0xf]
        %v2021 = vld [vmem:[%s2017 + $0xc] sm:$0xf]
        %v2026 = vunpack.c.l.b16 %v2018
        %v2027 = vunpack.c.l.b16 %v2019
        %v2028 = vunpack.c.l.b16 %v2020
        %v2029 = vunpack.c.l.b16 %v2021
        %v2030 = vpack.c.b16 %v2027, %v2026
        %v2031 = vpack.c.b16 %v2029, %v2028
        %v2035 = vsel %vm876, %v2016, 0
        %2037 = vmatprep.subr.bf16.mxu0 0
        %2038 = vmatpush1.bf16.msra.mxu0 0
        %2039 = vmatprep.subr.bf16.mxu0 0
        %2040 = vmatpush1.bf16.msra.mxu0 0
        %2041 = vmatprep.subr.bf16.mxu0 0
        %2042 = vmatpush1.bf16.msra.mxu0 0
        %2043 = vmatprep.subr.bf16.mxu0 0
        %2044 = vmatpush1.bf16.msra.mxu0 0
        %2045 = vmatprep.subr.bf16.mxu0 0
        %2046 = vmatpush1.bf16.msra.mxu0 0
        %2047 = vmatprep.subr.bf16.mxu0 0
        %2048 = vmatpush1.bf16.msra.mxu0 0
        %2049 = vmatprep.subr.bf16.mxu0 0
        %2050 = vmatpush1.bf16.msra.mxu0 %v2031
        %2051 = vmatprep.subr.bf16.mxu0 0
        %2052 = vmatpush1.bf16.msra.mxu0 %v2030
        %2053 = vmatprep.subr.bf16.mxu0 0
        %2054 = vmatpush2.bf16.msra.mxu0 0
        %2055 = vmatprep.subr.bf16.mxu0 0
        %2056 = vmatpush2.bf16.msra.mxu0 0
        %2057 = vmatprep.subr.bf16.mxu0 0
        %2058 = vmatpush2.bf16.msra.mxu0 0
        %2059 = vmatprep.subr.bf16.mxu0 0
        %2060 = vmatpush2.bf16.msra.mxu0 0
        %2061 = vmatprep.subr.bf16.mxu0 0
        %2062 = vmatpush2.bf16.msra.mxu0 0
        %2063 = vmatprep.subr.bf16.mxu0 0
        %2064 = vmatpush2.bf16.msra.mxu0 0
        %2065 = vmatprep.subr.bf16.mxu0 0
        %2066 = vmatpush2.bf16.msra.mxu0 0
        %2067 = vmatprep.subr.bf16.mxu0 0
        %2068 = vmatpush2.bf16.msra.mxu0 0
        %2069 = vmatprep.mubr.bf16.mxu0 0
        %2070 = vmatmul.mubr.bf16.gmra.mxu0 %v2035
        %v2071 = vpop.f32.mrf.mxu0
        %v2072 = vadd.f32 0.0, %v2071
        %v2073 = vpop.f32.mrf.mxu0
        %v2074 = vpop.f32.mrf.mxu0
        %v2075 = vpop.f32.mrf.mxu0
        %2076 = vdwg.mxu0
        %v2077 = vadd.f32 %v2015, %v2072
        %v2078 = vpack.c.bf16 %v1638, %v1638
        %s2079 = scalar_lea.vmem %s2, 112
        %v2080 = vld [vmem:[%s2079] sm:$0xf]
        %v2081 = vld [vmem:[%s2079 + $0x4] sm:$0xf]
        %v2082 = vld [vmem:[%s2079 + $0x8] sm:$0xf]
        %v2083 = vld [vmem:[%s2079 + $0xc] sm:$0xf]
        %v2088 = vunpack.c.l.b16 %v2080
        %v2089 = vunpack.c.l.b16 %v2081
        %v2090 = vunpack.c.l.b16 %v2082
        %v2091 = vunpack.c.l.b16 %v2083
        %v2092 = vpack.c.b16 %v2089, %v2088
        %v2093 = vpack.c.b16 %v2091, %v2090
        %v2097 = vsel %vm876, %v2078, 0
        %2099 = vmatprep.subr.bf16.mxu0 0
        %2100 = vmatpush1.bf16.msra.mxu0 0
        %2101 = vmatprep.subr.bf16.mxu0 0
        %2102 = vmatpush1.bf16.msra.mxu0 0
        %2103 = vmatprep.subr.bf16.mxu0 0
        %2104 = vmatpush1.bf16.msra.mxu0 0
        %2105 = vmatprep.subr.bf16.mxu0 0
        %2106 = vmatpush1.bf16.msra.mxu0 0
        %2107 = vmatprep.subr.bf16.mxu0 0
        %2108 = vmatpush1.bf16.msra.mxu0 0
        %2109 = vmatprep.subr.bf16.mxu0 0
        %2110 = vmatpush1.bf16.msra.mxu0 0
        %2111 = vmatprep.subr.bf16.mxu0 0
        %2112 = vmatpush1.bf16.msra.mxu0 %v2093
        %2113 = vmatprep.subr.bf16.mxu0 0
        %2114 = vmatpush1.bf16.msra.mxu0 %v2092
        %2115 = vmatprep.subr.bf16.mxu0 0
        %2116 = vmatpush2.bf16.msra.mxu0 0
        %2117 = vmatprep.subr.bf16.mxu0 0
        %2118 = vmatpush2.bf16.msra.mxu0 0
        %2119 = vmatprep.subr.bf16.mxu0 0
        %2120 = vmatpush2.bf16.msra.mxu0 0
        %2121 = vmatprep.subr.bf16.mxu0 0
        %2122 = vmatpush2.bf16.msra.mxu0 0
        %2123 = vmatprep.subr.bf16.mxu0 0
        %2124 = vmatpush2.bf16.msra.mxu0 0
        %2125 = vmatprep.subr.bf16.mxu0 0
        %2126 = vmatpush2.bf16.msra.mxu0 0
        %2127 = vmatprep.subr.bf16.mxu0 0
        %2128 = vmatpush2.bf16.msra.mxu0 0
        %2129 = vmatprep.subr.bf16.mxu0 0
        %2130 = vmatpush2.bf16.msra.mxu0 0
        %2131 = vmatprep.mubr.bf16.mxu0 0
        %2132 = vmatmul.mubr.bf16.gmra.mxu0 %v2097
        %v2133 = vpop.f32.mrf.mxu0
        %v2134 = vadd.f32 0.0, %v2133
        %v2135 = vpop.f32.mrf.mxu0
        %v2136 = vpop.f32.mrf.mxu0
        %v2137 = vpop.f32.mrf.mxu0
        %2138 = vdwg.mxu0
        %v2139 = vadd.f32 %v2077, %v2134
        %v2140 = vpack.c.bf16 %v1639, %v1639
        %s2141 = scalar_lea.vmem %s2, 128
        %v2142 = vld [vmem:[%s2141] sm:$0xf]
        %v2143 = vld [vmem:[%s2141 + $0x4] sm:$0xf]
        %v2144 = vld [vmem:[%s2141 + $0x8] sm:$0xf]
        %v2145 = vld [vmem:[%s2141 + $0xc] sm:$0xf]
        %v2150 = vunpack.c.l.b16 %v2142
        %v2151 = vunpack.c.l.b16 %v2143
        %v2152 = vunpack.c.l.b16 %v2144
        %v2153 = vunpack.c.l.b16 %v2145
        %v2154 = vpack.c.b16 %v2151, %v2150
        %v2155 = vpack.c.b16 %v2153, %v2152
        %v2159 = vsel %vm876, %v2140, 0
        %2161 = vmatprep.subr.bf16.mxu0 0
        %2162 = vmatpush1.bf16.msra.mxu0 0
        %2163 = vmatprep.subr.bf16.mxu0 0
        %2164 = vmatpush1.bf16.msra.mxu0 0
        %2165 = vmatprep.subr.bf16.mxu0 0
        %2166 = vmatpush1.bf16.msra.mxu0 0
        %2167 = vmatprep.subr.bf16.mxu0 0
        %2168 = vmatpush1.bf16.msra.mxu0 0
        %2169 = vmatprep.subr.bf16.mxu0 0
        %2170 = vmatpush1.bf16.msra.mxu0 0
        %2171 = vmatprep.subr.bf16.mxu0 0
        %2172 = vmatpush1.bf16.msra.mxu0 0
        %2173 = vmatprep.subr.bf16.mxu0 0
        %2174 = vmatpush1.bf16.msra.mxu0 %v2155
        %2175 = vmatprep.subr.bf16.mxu0 0
        %2176 = vmatpush1.bf16.msra.mxu0 %v2154
        %2177 = vmatprep.subr.bf16.mxu0 0
        %2178 = vmatpush2.bf16.msra.mxu0 0
        %2179 = vmatprep.subr.bf16.mxu0 0
        %2180 = vmatpush2.bf16.msra.mxu0 0
        %2181 = vmatprep.subr.bf16.mxu0 0
        %2182 = vmatpush2.bf16.msra.mxu0 0
        %2183 = vmatprep.subr.bf16.mxu0 0
        %2184 = vmatpush2.bf16.msra.mxu0 0
        %2185 = vmatprep.subr.bf16.mxu0 0
        %2186 = vmatpush2.bf16.msra.mxu0 0
        %2187 = vmatprep.subr.bf16.mxu0 0
        %2188 = vmatpush2.bf16.msra.mxu0 0
        %2189 = vmatprep.subr.bf16.mxu0 0
        %2190 = vmatpush2.bf16.msra.mxu0 0
        %2191 = vmatprep.subr.bf16.mxu0 0
        %2192 = vmatpush2.bf16.msra.mxu0 0
        %2193 = vmatprep.mubr.bf16.mxu0 0
        %2194 = vmatmul.mubr.bf16.gmra.mxu0 %v2159
        %v2195 = vpop.f32.mrf.mxu0
        %v2196 = vadd.f32 0.0, %v2195
        %v2197 = vpop.f32.mrf.mxu0
        %v2198 = vpop.f32.mrf.mxu0
        %v2199 = vpop.f32.mrf.mxu0
        %2200 = vdwg.mxu0
        %v2201 = vadd.f32 %v2139, %v2196
        %v2202 = vpack.c.bf16 %v1640, %v1640
        %s2203 = scalar_lea.vmem %s2, 144
        %v2204 = vld [vmem:[%s2203] sm:$0xf]
        %v2205 = vld [vmem:[%s2203 + $0x4] sm:$0xf]
        %v2206 = vld [vmem:[%s2203 + $0x8] sm:$0xf]
        %v2207 = vld [vmem:[%s2203 + $0xc] sm:$0xf]
        %v2212 = vunpack.c.l.b16 %v2204
        %v2213 = vunpack.c.l.b16 %v2205
        %v2214 = vunpack.c.l.b16 %v2206
        %v2215 = vunpack.c.l.b16 %v2207
        %v2216 = vpack.c.b16 %v2213, %v2212
        %v2217 = vpack.c.b16 %v2215, %v2214
        %v2221 = vsel %vm876, %v2202, 0
        %2223 = vmatprep.subr.bf16.mxu0 0
        %2224 = vmatpush1.bf16.msra.mxu0 0
        %2225 = vmatprep.subr.bf16.mxu0 0
        %2226 = vmatpush1.bf16.msra.mxu0 0
        %2227 = vmatprep.subr.bf16.mxu0 0
        %2228 = vmatpush1.bf16.msra.mxu0 0
        %2229 = vmatprep.subr.bf16.mxu0 0
        %2230 = vmatpush1.bf16.msra.mxu0 0
        %2231 = vmatprep.subr.bf16.mxu0 0
        %2232 = vmatpush1.bf16.msra.mxu0 0
        %2233 = vmatprep.subr.bf16.mxu0 0
        %2234 = vmatpush1.bf16.msra.mxu0 0
        %2235 = vmatprep.subr.bf16.mxu0 0
        %2236 = vmatpush1.bf16.msra.mxu0 %v2217
        %2237 = vmatprep.subr.bf16.mxu0 0
        %2238 = vmatpush1.bf16.msra.mxu0 %v2216
        %2239 = vmatprep.subr.bf16.mxu0 0
        %2240 = vmatpush2.bf16.msra.mxu0 0
        %2241 = vmatprep.subr.bf16.mxu0 0
        %2242 = vmatpush2.bf16.msra.mxu0 0
        %2243 = vmatprep.subr.bf16.mxu0 0
        %2244 = vmatpush2.bf16.msra.mxu0 0
        %2245 = vmatprep.subr.bf16.mxu0 0
        %2246 = vmatpush2.bf16.msra.mxu0 0
        %2247 = vmatprep.subr.bf16.mxu0 0
        %2248 = vmatpush2.bf16.msra.mxu0 0
        %2249 = vmatprep.subr.bf16.mxu0 0
        %2250 = vmatpush2.bf16.msra.mxu0 0
        %2251 = vmatprep.subr.bf16.mxu0 0
        %2252 = vmatpush2.bf16.msra.mxu0 0
        %2253 = vmatprep.subr.bf16.mxu0 0
        %2254 = vmatpush2.bf16.msra.mxu0 0
        %2255 = vmatprep.mubr.bf16.mxu0 0
        %2256 = vmatmul.mubr.bf16.gmra.mxu0 %v2221
        %v2257 = vpop.f32.mrf.mxu0
        %v2258 = vadd.f32 0.0, %v2257
        %v2259 = vpop.f32.mrf.mxu0
        %v2260 = vpop.f32.mrf.mxu0
        %v2261 = vpop.f32.mrf.mxu0
        %2262 = vdwg.mxu0
        %v2263 = vadd.f32 %v2201, %v2258
        %v2264 = vpack.c.bf16 %v1641, %v1641
        %s2265 = scalar_lea.vmem %s2, 160
        %v2266 = vld [vmem:[%s2265] sm:$0xf]
        %v2267 = vld [vmem:[%s2265 + $0x4] sm:$0xf]
        %v2268 = vld [vmem:[%s2265 + $0x8] sm:$0xf]
        %v2269 = vld [vmem:[%s2265 + $0xc] sm:$0xf]
        %v2274 = vunpack.c.l.b16 %v2266
        %v2275 = vunpack.c.l.b16 %v2267
        %v2276 = vunpack.c.l.b16 %v2268
        %v2277 = vunpack.c.l.b16 %v2269
        %v2278 = vpack.c.b16 %v2275, %v2274
        %v2279 = vpack.c.b16 %v2277, %v2276
        %v2283 = vsel %vm876, %v2264, 0
        %2285 = vmatprep.subr.bf16.mxu0 0
        %2286 = vmatpush1.bf16.msra.mxu0 0
        %2287 = vmatprep.subr.bf16.mxu0 0
        %2288 = vmatpush1.bf16.msra.mxu0 0
        %2289 = vmatprep.subr.bf16.mxu0 0
        %2290 = vmatpush1.bf16.msra.mxu0 0
        %2291 = vmatprep.subr.bf16.mxu0 0
        %2292 = vmatpush1.bf16.msra.mxu0 0
        %2293 = vmatprep.subr.bf16.mxu0 0
        %2294 = vmatpush1.bf16.msra.mxu0 0
        %2295 = vmatprep.subr.bf16.mxu0 0
        %2296 = vmatpush1.bf16.msra.mxu0 0
        %2297 = vmatprep.subr.bf16.mxu0 0
        %2298 = vmatpush1.bf16.msra.mxu0 %v2279
        %2299 = vmatprep.subr.bf16.mxu0 0
        %2300 = vmatpush1.bf16.msra.mxu0 %v2278
        %2301 = vmatprep.subr.bf16.mxu0 0
        %2302 = vmatpush2.bf16.msra.mxu0 0
        %2303 = vmatprep.subr.bf16.mxu0 0
        %2304 = vmatpush2.bf16.msra.mxu0 0
        %2305 = vmatprep.subr.bf16.mxu0 0
        %2306 = vmatpush2.bf16.msra.mxu0 0
        %2307 = vmatprep.subr.bf16.mxu0 0
        %2308 = vmatpush2.bf16.msra.mxu0 0
        %2309 = vmatprep.subr.bf16.mxu0 0
        %2310 = vmatpush2.bf16.msra.mxu0 0
        %2311 = vmatprep.subr.bf16.mxu0 0
        %2312 = vmatpush2.bf16.msra.mxu0 0
        %2313 = vmatprep.subr.bf16.mxu0 0
        %2314 = vmatpush2.bf16.msra.mxu0 0
        %2315 = vmatprep.subr.bf16.mxu0 0
        %2316 = vmatpush2.bf16.msra.mxu0 0
        %2317 = vmatprep.mubr.bf16.mxu0 0
        %2318 = vmatmul.mubr.bf16.gmra.mxu0 %v2283
        %v2319 = vpop.f32.mrf.mxu0
        %v2320 = vadd.f32 0.0, %v2319
        %v2321 = vpop.f32.mrf.mxu0
        %v2322 = vpop.f32.mrf.mxu0
        %v2323 = vpop.f32.mrf.mxu0
        %2324 = vdwg.mxu0
        %v2325 = vadd.f32 %v2263, %v2320
        %v2326 = vpack.c.bf16 %v1642, %v1642
        %s2327 = scalar_lea.vmem %s2, 176
        %v2328 = vld [vmem:[%s2327] sm:$0xf]
        %v2329 = vld [vmem:[%s2327 + $0x4] sm:$0xf]
        %v2330 = vld [vmem:[%s2327 + $0x8] sm:$0xf]
        %v2331 = vld [vmem:[%s2327 + $0xc] sm:$0xf]
        %v2336 = vunpack.c.l.b16 %v2328
        %v2337 = vunpack.c.l.b16 %v2329
        %v2338 = vunpack.c.l.b16 %v2330
        %v2339 = vunpack.c.l.b16 %v2331
        %v2340 = vpack.c.b16 %v2337, %v2336
        %v2341 = vpack.c.b16 %v2339, %v2338
        %v2345 = vsel %vm876, %v2326, 0
        %2347 = vmatprep.subr.bf16.mxu0 0
        %2348 = vmatpush1.bf16.msra.mxu0 0
        %2349 = vmatprep.subr.bf16.mxu0 0
        %2350 = vmatpush1.bf16.msra.mxu0 0
        %2351 = vmatprep.subr.bf16.mxu0 0
        %2352 = vmatpush1.bf16.msra.mxu0 0
        %2353 = vmatprep.subr.bf16.mxu0 0
        %2354 = vmatpush1.bf16.msra.mxu0 0
        %2355 = vmatprep.subr.bf16.mxu0 0
        %2356 = vmatpush1.bf16.msra.mxu0 0
        %2357 = vmatprep.subr.bf16.mxu0 0
        %2358 = vmatpush1.bf16.msra.mxu0 0
        %2359 = vmatprep.subr.bf16.mxu0 0
        %2360 = vmatpush1.bf16.msra.mxu0 %v2341
        %2361 = vmatprep.subr.bf16.mxu0 0
        %2362 = vmatpush1.bf16.msra.mxu0 %v2340
        %2363 = vmatprep.subr.bf16.mxu0 0
        %2364 = vmatpush2.bf16.msra.mxu0 0
        %2365 = vmatprep.subr.bf16.mxu0 0
        %2366 = vmatpush2.bf16.msra.mxu0 0
        %2367 = vmatprep.subr.bf16.mxu0 0
        %2368 = vmatpush2.bf16.msra.mxu0 0
        %2369 = vmatprep.subr.bf16.mxu0 0
        %2370 = vmatpush2.bf16.msra.mxu0 0
        %2371 = vmatprep.subr.bf16.mxu0 0
        %2372 = vmatpush2.bf16.msra.mxu0 0
        %2373 = vmatprep.subr.bf16.mxu0 0
        %2374 = vmatpush2.bf16.msra.mxu0 0
        %2375 = vmatprep.subr.bf16.mxu0 0
        %2376 = vmatpush2.bf16.msra.mxu0 0
        %2377 = vmatprep.subr.bf16.mxu0 0
        %2378 = vmatpush2.bf16.msra.mxu0 0
        %2379 = vmatprep.mubr.bf16.mxu0 0
        %2380 = vmatmul.mubr.bf16.gmra.mxu0 %v2345
        %v2381 = vpop.f32.mrf.mxu0
        %v2382 = vadd.f32 0.0, %v2381
        %v2383 = vpop.f32.mrf.mxu0
        %v2384 = vpop.f32.mrf.mxu0
        %v2385 = vpop.f32.mrf.mxu0
        %2386 = vdwg.mxu0
        %v2387 = vadd.f32 %v2325, %v2382
        %v2388 = vpack.c.bf16 %v1643, %v1643
        %s2389 = scalar_lea.vmem %s2, 192
        %v2390 = vld [vmem:[%s2389] sm:$0xf]
        %v2391 = vld [vmem:[%s2389 + $0x4] sm:$0xf]
        %v2392 = vld [vmem:[%s2389 + $0x8] sm:$0xf]
        %v2393 = vld [vmem:[%s2389 + $0xc] sm:$0xf]
        %v2398 = vunpack.c.l.b16 %v2390
        %v2399 = vunpack.c.l.b16 %v2391
        %v2400 = vunpack.c.l.b16 %v2392
        %v2401 = vunpack.c.l.b16 %v2393
        %v2402 = vpack.c.b16 %v2399, %v2398
        %v2403 = vpack.c.b16 %v2401, %v2400
        %v2407 = vsel %vm876, %v2388, 0
        %2409 = vmatprep.subr.bf16.mxu0 0
        %2410 = vmatpush1.bf16.msra.mxu0 0
        %2411 = vmatprep.subr.bf16.mxu0 0
        %2412 = vmatpush1.bf16.msra.mxu0 0
        %2413 = vmatprep.subr.bf16.mxu0 0
        %2414 = vmatpush1.bf16.msra.mxu0 0
        %2415 = vmatprep.subr.bf16.mxu0 0
        %2416 = vmatpush1.bf16.msra.mxu0 0
        %2417 = vmatprep.subr.bf16.mxu0 0
        %2418 = vmatpush1.bf16.msra.mxu0 0
        %2419 = vmatprep.subr.bf16.mxu0 0
        %2420 = vmatpush1.bf16.msra.mxu0 0
        %2421 = vmatprep.subr.bf16.mxu0 0
        %2422 = vmatpush1.bf16.msra.mxu0 %v2403
        %2423 = vmatprep.subr.bf16.mxu0 0
        %2424 = vmatpush1.bf16.msra.mxu0 %v2402
        %2425 = vmatprep.subr.bf16.mxu0 0
        %2426 = vmatpush2.bf16.msra.mxu0 0
        %2427 = vmatprep.subr.bf16.mxu0 0
        %2428 = vmatpush2.bf16.msra.mxu0 0
        %2429 = vmatprep.subr.bf16.mxu0 0
        %2430 = vmatpush2.bf16.msra.mxu0 0
        %2431 = vmatprep.subr.bf16.mxu0 0
        %2432 = vmatpush2.bf16.msra.mxu0 0
        %2433 = vmatprep.subr.bf16.mxu0 0
        %2434 = vmatpush2.bf16.msra.mxu0 0
        %2435 = vmatprep.subr.bf16.mxu0 0
        %2436 = vmatpush2.bf16.msra.mxu0 0
        %2437 = vmatprep.subr.bf16.mxu0 0
        %2438 = vmatpush2.bf16.msra.mxu0 0
        %2439 = vmatprep.subr.bf16.mxu0 0
        %2440 = vmatpush2.bf16.msra.mxu0 0
        %2441 = vmatprep.mubr.bf16.mxu0 0
        %2442 = vmatmul.mubr.bf16.gmra.mxu0 %v2407
        %v2443 = vpop.f32.mrf.mxu0
        %v2444 = vadd.f32 0.0, %v2443
        %v2445 = vpop.f32.mrf.mxu0
        %v2446 = vpop.f32.mrf.mxu0
        %v2447 = vpop.f32.mrf.mxu0
        %2448 = vdwg.mxu0
        %v2449 = vadd.f32 %v2387, %v2444
        %v2450 = vpack.c.bf16 %v1644, %v1644
        %s2451 = scalar_lea.vmem %s2, 208
        %v2452 = vld [vmem:[%s2451] sm:$0xf]
        %v2453 = vld [vmem:[%s2451 + $0x4] sm:$0xf]
        %v2454 = vld [vmem:[%s2451 + $0x8] sm:$0xf]
        %v2455 = vld [vmem:[%s2451 + $0xc] sm:$0xf]
        %v2460 = vunpack.c.l.b16 %v2452
        %v2461 = vunpack.c.l.b16 %v2453
        %v2462 = vunpack.c.l.b16 %v2454
        %v2463 = vunpack.c.l.b16 %v2455
        %v2464 = vpack.c.b16 %v2461, %v2460
        %v2465 = vpack.c.b16 %v2463, %v2462
        %v2469 = vsel %vm876, %v2450, 0
        %2471 = vmatprep.subr.bf16.mxu0 0
        %2472 = vmatpush1.bf16.msra.mxu0 0
        %2473 = vmatprep.subr.bf16.mxu0 0
        %2474 = vmatpush1.bf16.msra.mxu0 0
        %2475 = vmatprep.subr.bf16.mxu0 0
        %2476 = vmatpush1.bf16.msra.mxu0 0
        %2477 = vmatprep.subr.bf16.mxu0 0
        %2478 = vmatpush1.bf16.msra.mxu0 0
        %2479 = vmatprep.subr.bf16.mxu0 0
        %2480 = vmatpush1.bf16.msra.mxu0 0
        %2481 = vmatprep.subr.bf16.mxu0 0
        %2482 = vmatpush1.bf16.msra.mxu0 0
        %2483 = vmatprep.subr.bf16.mxu0 0
        %2484 = vmatpush1.bf16.msra.mxu0 %v2465
        %2485 = vmatprep.subr.bf16.mxu0 0
        %2486 = vmatpush1.bf16.msra.mxu0 %v2464
        %2487 = vmatprep.subr.bf16.mxu0 0
        %2488 = vmatpush2.bf16.msra.mxu0 0
        %2489 = vmatprep.subr.bf16.mxu0 0
        %2490 = vmatpush2.bf16.msra.mxu0 0
        %2491 = vmatprep.subr.bf16.mxu0 0
        %2492 = vmatpush2.bf16.msra.mxu0 0
        %2493 = vmatprep.subr.bf16.mxu0 0
        %2494 = vmatpush2.bf16.msra.mxu0 0
        %2495 = vmatprep.subr.bf16.mxu0 0
        %2496 = vmatpush2.bf16.msra.mxu0 0
        %2497 = vmatprep.subr.bf16.mxu0 0
        %2498 = vmatpush2.bf16.msra.mxu0 0
        %2499 = vmatprep.subr.bf16.mxu0 0
        %2500 = vmatpush2.bf16.msra.mxu0 0
        %2501 = vmatprep.subr.bf16.mxu0 0
        %2502 = vmatpush2.bf16.msra.mxu0 0
        %2503 = vmatprep.mubr.bf16.mxu0 0
        %2504 = vmatmul.mubr.bf16.gmra.mxu0 %v2469
        %v2505 = vpop.f32.mrf.mxu0
        %v2506 = vadd.f32 0.0, %v2505
        %v2507 = vpop.f32.mrf.mxu0
        %v2508 = vpop.f32.mrf.mxu0
        %v2509 = vpop.f32.mrf.mxu0
        %2510 = vdwg.mxu0
        %v2511 = vadd.f32 %v2449, %v2506
        %v2512 = vpack.c.bf16 %v1645, %v1645
        %s2513 = scalar_lea.vmem %s2, 224
        %v2514 = vld [vmem:[%s2513] sm:$0xf]
        %v2515 = vld [vmem:[%s2513 + $0x4] sm:$0xf]
        %v2516 = vld [vmem:[%s2513 + $0x8] sm:$0xf]
        %v2517 = vld [vmem:[%s2513 + $0xc] sm:$0xf]
        %v2522 = vunpack.c.l.b16 %v2514
        %v2523 = vunpack.c.l.b16 %v2515
        %v2524 = vunpack.c.l.b16 %v2516
        %v2525 = vunpack.c.l.b16 %v2517
        %v2526 = vpack.c.b16 %v2523, %v2522
        %v2527 = vpack.c.b16 %v2525, %v2524
        %v2531 = vsel %vm876, %v2512, 0
        %2533 = vmatprep.subr.bf16.mxu0 0
        %2534 = vmatpush1.bf16.msra.mxu0 0
        %2535 = vmatprep.subr.bf16.mxu0 0
        %2536 = vmatpush1.bf16.msra.mxu0 0
        %2537 = vmatprep.subr.bf16.mxu0 0
        %2538 = vmatpush1.bf16.msra.mxu0 0
        %2539 = vmatprep.subr.bf16.mxu0 0
        %2540 = vmatpush1.bf16.msra.mxu0 0
        %2541 = vmatprep.subr.bf16.mxu0 0
        %2542 = vmatpush1.bf16.msra.mxu0 0
        %2543 = vmatprep.subr.bf16.mxu0 0
        %2544 = vmatpush1.bf16.msra.mxu0 0
        %2545 = vmatprep.subr.bf16.mxu0 0
        %2546 = vmatpush1.bf16.msra.mxu0 %v2527
        %2547 = vmatprep.subr.bf16.mxu0 0
        %2548 = vmatpush1.bf16.msra.mxu0 %v2526
        %2549 = vmatprep.subr.bf16.mxu0 0
        %2550 = vmatpush2.bf16.msra.mxu0 0
        %2551 = vmatprep.subr.bf16.mxu0 0
        %2552 = vmatpush2.bf16.msra.mxu0 0
        %2553 = vmatprep.subr.bf16.mxu0 0
        %2554 = vmatpush2.bf16.msra.mxu0 0
        %2555 = vmatprep.subr.bf16.mxu0 0
        %2556 = vmatpush2.bf16.msra.mxu0 0
        %2557 = vmatprep.subr.bf16.mxu0 0
        %2558 = vmatpush2.bf16.msra.mxu0 0
        %2559 = vmatprep.subr.bf16.mxu0 0
        %2560 = vmatpush2.bf16.msra.mxu0 0
        %2561 = vmatprep.subr.bf16.mxu0 0
        %2562 = vmatpush2.bf16.msra.mxu0 0
        %2563 = vmatprep.subr.bf16.mxu0 0
        %2564 = vmatpush2.bf16.msra.mxu0 0
        %2565 = vmatprep.mubr.bf16.mxu0 0
        %2566 = vmatmul.mubr.bf16.gmra.mxu0 %v2531
        %v2567 = vpop.f32.mrf.mxu0
        %v2568 = vadd.f32 0.0, %v2567
        %v2569 = vpop.f32.mrf.mxu0
        %v2570 = vpop.f32.mrf.mxu0
        %v2571 = vpop.f32.mrf.mxu0
        %2572 = vdwg.mxu0
        %v2573 = vadd.f32 %v2511, %v2568
        %v2574 = vpack.c.bf16 %v1646, %v1646
        %s2575 = scalar_lea.vmem %s2, 240
        %v2576 = vld [vmem:[%s2575] sm:$0xf]
        %v2577 = vld [vmem:[%s2575 + $0x4] sm:$0xf]
        %v2578 = vld [vmem:[%s2575 + $0x8] sm:$0xf]
        %v2579 = vld [vmem:[%s2575 + $0xc] sm:$0xf]
        %v2584 = vunpack.c.l.b16 %v2576
        %v2585 = vunpack.c.l.b16 %v2577
        %v2586 = vunpack.c.l.b16 %v2578
        %v2587 = vunpack.c.l.b16 %v2579
        %v2588 = vpack.c.b16 %v2585, %v2584
        %v2589 = vpack.c.b16 %v2587, %v2586
        %v2593 = vsel %vm876, %v2574, 0
        %2595 = vmatprep.subr.bf16.mxu0 0
        %2596 = vmatpush1.bf16.msra.mxu0 0
        %2597 = vmatprep.subr.bf16.mxu0 0
        %2598 = vmatpush1.bf16.msra.mxu0 0
        %2599 = vmatprep.subr.bf16.mxu0 0
        %2600 = vmatpush1.bf16.msra.mxu0 0
        %2601 = vmatprep.subr.bf16.mxu0 0
        %2602 = vmatpush1.bf16.msra.mxu0 0
        %2603 = vmatprep.subr.bf16.mxu0 0
        %2604 = vmatpush1.bf16.msra.mxu0 0
        %2605 = vmatprep.subr.bf16.mxu0 0
        %2606 = vmatpush1.bf16.msra.mxu0 0
        %2607 = vmatprep.subr.bf16.mxu0 0
        %2608 = vmatpush1.bf16.msra.mxu0 %v2589
        %2609 = vmatprep.subr.bf16.mxu0 0
        %2610 = vmatpush1.bf16.msra.mxu0 %v2588
        %2611 = vmatprep.subr.bf16.mxu0 0
        %2612 = vmatpush2.bf16.msra.mxu0 0
        %2613 = vmatprep.subr.bf16.mxu0 0
        %2614 = vmatpush2.bf16.msra.mxu0 0
        %2615 = vmatprep.subr.bf16.mxu0 0
        %2616 = vmatpush2.bf16.msra.mxu0 0
        %2617 = vmatprep.subr.bf16.mxu0 0
        %2618 = vmatpush2.bf16.msra.mxu0 0
        %2619 = vmatprep.subr.bf16.mxu0 0
        %2620 = vmatpush2.bf16.msra.mxu0 0
        %2621 = vmatprep.subr.bf16.mxu0 0
        %2622 = vmatpush2.bf16.msra.mxu0 0
        %2623 = vmatprep.subr.bf16.mxu0 0
        %2624 = vmatpush2.bf16.msra.mxu0 0
        %2625 = vmatprep.subr.bf16.mxu0 0
        %2626 = vmatpush2.bf16.msra.mxu0 0
        %2627 = vmatprep.mubr.bf16.mxu0 0
        %2628 = vmatmul.mubr.bf16.gmra.mxu0 %v2593
        %v2629 = vpop.f32.mrf.mxu0
        %v2630 = vadd.f32 0.0, %v2629
        %v2631 = vpop.f32.mrf.mxu0
        %v2632 = vpop.f32.mrf.mxu0
        %v2633 = vpop.f32.mrf.mxu0
        %2634 = vdwg.mxu0
        %v2635 = vadd.f32 %v2573, %v2630
        %v2636 = vld [vmem:[%s5] sm:$0xff]
        %v2637 = vld [vmem:[%s6] sm:$0xff]
        %v2638 = vld [vmem:[%s9] sm:$0xff]
        %v2639 = vld [vmem:[%s9 + $0x8] sm:$0xff]
        %v2640 = vld [vmem:[%s9 + $0x10] sm:$0xff]
        %v2641 = vld [vmem:[%s9 + $0x18] sm:$0xff]
        %v2642 = vld [vmem:[%s9 + $0x20] sm:$0xff]
        %v2643 = vld [vmem:[%s9 + $0x28] sm:$0xff]
        %v2644 = vld [vmem:[%s9 + $0x30] sm:$0xff]
        %v2645 = vld [vmem:[%s9 + $0x38] sm:$0xff]
        %v2646 = vld [vmem:[%s9 + $0x40] sm:$0xff]
        %v2647 = vld [vmem:[%s9 + $0x48] sm:$0xff]
        %v2648 = vld [vmem:[%s9 + $0x50] sm:$0xff]
        %v2649 = vld [vmem:[%s9 + $0x58] sm:$0xff]
        %v2650 = vld [vmem:[%s9 + $0x60] sm:$0xff]
        %v2651 = vld [vmem:[%s9 + $0x68] sm:$0xff]
        %v2652 = vld [vmem:[%s9 + $0x70] sm:$0xff]
        %v2653 = vld [vmem:[%s9 + $0x78] sm:$0xff]
        %v2654 = vld [vmem:[%s10] sm:$0xf]
        %v2655 = vld [vmem:[%s13] sm:$0x1]
        %v2656 = vld [vmem:[%s14] sm:$0x1]
        %v2658 = vsel %vm1196, %v2637, 0
        %2660 = vmatprep.subr.mxu0 0.0
        %2661 = vmatpush1.msra.mxu0 0.0
        %2662 = vmatprep.subr.mxu0 0.0
        %2663 = vmatpush1.msra.mxu0 0.0
        %2664 = vmatprep.subr.mxu0 0.0
        %2665 = vmatpush1.msra.mxu0 0.0
        %2666 = vmatprep.subr.mxu0 0.0
        %2667 = vmatpush1.msra.mxu0 0.0
        %2668 = vmatprep.subr.mxu0 0.0
        %2669 = vmatpush1.msra.mxu0 0.0
        %2670 = vmatprep.subr.mxu0 0.0
        %2671 = vmatpush1.msra.mxu0 0.0
        %2672 = vmatprep.subr.mxu0 0.0
        %2673 = vmatpush1.msra.mxu0 0.0
        %2674 = vmatprep.subr.mxu0 0.0
        %2675 = vmatpush1.msra.mxu0 0.0
        %2676 = vmatprep.subr.mxu0 0.0
        %2677 = vmatpush1.msra.mxu0 0.0
        %2678 = vmatprep.subr.mxu0 0.0
        %2679 = vmatpush1.msra.mxu0 0.0
        %2680 = vmatprep.subr.mxu0 0.0
        %2681 = vmatpush1.msra.mxu0 0.0
        %2682 = vmatprep.subr.mxu0 0.0
        %2683 = vmatpush1.msra.mxu0 0.0
        %2684 = vmatprep.subr.mxu0 0.0
        %2685 = vmatpush1.msra.mxu0 0.0
        %2686 = vmatprep.subr.mxu0 0.0
        %2687 = vmatpush1.msra.mxu0 0.0
        %2688 = vmatprep.subr.mxu0 0.0
        %2689 = vmatpush1.msra.mxu0 0.0
        %2690 = vmatprep.subr.mxu0 0.0
        %2691 = vmatpush1.msra.mxu0 %v2635
        %2692 = vmatprep.subr.mxu0 0.0
        %2693 = vmatpush2.msra.mxu0 0.0
        %2694 = vmatprep.subr.mxu0 0.0
        %2695 = vmatpush2.msra.mxu0 0.0
        %2696 = vmatprep.subr.mxu0 0.0
        %2697 = vmatpush2.msra.mxu0 0.0
        %2698 = vmatprep.subr.mxu0 0.0
        %2699 = vmatpush2.msra.mxu0 0.0
        %2700 = vmatprep.subr.mxu0 0.0
        %2701 = vmatpush2.msra.mxu0 0.0
        %2702 = vmatprep.subr.mxu0 0.0
        %2703 = vmatpush2.msra.mxu0 0.0
        %2704 = vmatprep.subr.mxu0 0.0
        %2705 = vmatpush2.msra.mxu0 0.0
        %2706 = vmatprep.subr.mxu0 0.0
        %2707 = vmatpush2.msra.mxu0 0.0
        %2708 = vmatprep.subr.mxu0 0.0
        %2709 = vmatpush2.msra.mxu0 0.0
        %2710 = vmatprep.subr.mxu0 0.0
        %2711 = vmatpush2.msra.mxu0 0.0
        %2712 = vmatprep.subr.mxu0 0.0
        %2713 = vmatpush2.msra.mxu0 0.0
        %2714 = vmatprep.subr.mxu0 0.0
        %2715 = vmatpush2.msra.mxu0 0.0
        %2716 = vmatprep.subr.mxu0 0.0
        %2717 = vmatpush2.msra.mxu0 0.0
        %2718 = vmatprep.subr.mxu0 0.0
        %2719 = vmatpush2.msra.mxu0 0.0
        %2720 = vmatprep.subr.mxu0 0.0
        %2721 = vmatpush2.msra.mxu0 0.0
        %2722 = vmatprep.subr.mxu0 0.0
        %2723 = vmatpush2.msra.mxu0 0.0
        %2724 = vmatprep.mubr.f32.mxu0 0.0
        %2725 = vmatmul.mubr.f32.gmra.mxu0 %v2658
        %v2726 = vpop.f32.mrf.mxu0
        %v2727 = vadd.f32 0.0, %v2726
        %v2728 = vpop.f32.mrf.mxu0
        %2729 = vdwg.mxu0
        %v2730 = vmul.f32 %v2635, %v2635
        %2731 = vmatprep.subr.mxu0 0.0
        %2732 = vmatpush1.msra.mxu0 0.0
        %2733 = vmatprep.subr.mxu0 0.0
        %2734 = vmatpush1.msra.mxu0 0.0
        %2735 = vmatprep.subr.mxu0 0.0
        %2736 = vmatpush1.msra.mxu0 0.0
        %2737 = vmatprep.subr.mxu0 0.0
        %2738 = vmatpush1.msra.mxu0 0.0
        %2739 = vmatprep.subr.mxu0 0.0
        %2740 = vmatpush1.msra.mxu0 0.0
        %2741 = vmatprep.subr.mxu0 0.0
        %2742 = vmatpush1.msra.mxu0 0.0
        %2743 = vmatprep.subr.mxu0 0.0
        %2744 = vmatpush1.msra.mxu0 0.0
        %2745 = vmatprep.subr.mxu0 0.0
        %2746 = vmatpush1.msra.mxu0 0.0
        %2747 = vmatprep.subr.mxu0 0.0
        %2748 = vmatpush1.msra.mxu0 0.0
        %2749 = vmatprep.subr.mxu0 0.0
        %2750 = vmatpush1.msra.mxu0 0.0
        %2751 = vmatprep.subr.mxu0 0.0
        %2752 = vmatpush1.msra.mxu0 0.0
        %2753 = vmatprep.subr.mxu0 0.0
        %2754 = vmatpush1.msra.mxu0 0.0
        %2755 = vmatprep.subr.mxu0 0.0
        %2756 = vmatpush1.msra.mxu0 0.0
        %2757 = vmatprep.subr.mxu0 0.0
        %2758 = vmatpush1.msra.mxu0 0.0
        %2759 = vmatprep.subr.mxu0 0.0
        %2760 = vmatpush1.msra.mxu0 0.0
        %2761 = vmatprep.subr.mxu0 0.0
        %2762 = vmatpush1.msra.mxu0 %v2730
        %2763 = vmatprep.subr.mxu0 0.0
        %2764 = vmatpush2.msra.mxu0 0.0
        %2765 = vmatprep.subr.mxu0 0.0
        %2766 = vmatpush2.msra.mxu0 0.0
        %2767 = vmatprep.subr.mxu0 0.0
        %2768 = vmatpush2.msra.mxu0 0.0
        %2769 = vmatprep.subr.mxu0 0.0
        %2770 = vmatpush2.msra.mxu0 0.0
        %2771 = vmatprep.subr.mxu0 0.0
        %2772 = vmatpush2.msra.mxu0 0.0
        %2773 = vmatprep.subr.mxu0 0.0
        %2774 = vmatpush2.msra.mxu0 0.0
        %2775 = vmatprep.subr.mxu0 0.0
        %2776 = vmatpush2.msra.mxu0 0.0
        %2777 = vmatprep.subr.mxu0 0.0
        %2778 = vmatpush2.msra.mxu0 0.0
        %2779 = vmatprep.subr.mxu0 0.0
        %2780 = vmatpush2.msra.mxu0 0.0
        %2781 = vmatprep.subr.mxu0 0.0
        %2782 = vmatpush2.msra.mxu0 0.0
        %2783 = vmatprep.subr.mxu0 0.0
        %2784 = vmatpush2.msra.mxu0 0.0
        %2785 = vmatprep.subr.mxu0 0.0
        %2786 = vmatpush2.msra.mxu0 0.0
        %2787 = vmatprep.subr.mxu0 0.0
        %2788 = vmatpush2.msra.mxu0 0.0
        %2789 = vmatprep.subr.mxu0 0.0
        %2790 = vmatpush2.msra.mxu0 0.0
        %2791 = vmatprep.subr.mxu0 0.0
        %2792 = vmatpush2.msra.mxu0 0.0
        %2793 = vmatprep.subr.mxu0 0.0
        %2794 = vmatpush2.msra.mxu0 0.0
        %2795 = vmatprep.mubr.f32.mxu0 0.0
        %2796 = vmatmul.mubr.f32.gmra.mxu0 %v2658
        %v2797 = vpop.f32.mrf.mxu0
        %v2798 = vadd.f32 0.0, %v2797
        %v2799 = vpop.f32.mrf.mxu0
        %2800 = vdwg.mxu0
        %2801 = vmatprep.subr.mxu0 0.0
        %2802 = vmatpush1.msra.mxu0 %v2653
        %2803 = vmatprep.subr.mxu0 0.0
        %2804 = vmatpush1.msra.mxu0 %v2652
        %2805 = vmatprep.subr.mxu0 0.0
        %2806 = vmatpush1.msra.mxu0 %v2651
        %2807 = vmatprep.subr.mxu0 0.0
        %2808 = vmatpush1.msra.mxu0 %v2650
        %2809 = vmatprep.subr.mxu0 0.0
        %2810 = vmatpush1.msra.mxu0 %v2649
        %2811 = vmatprep.subr.mxu0 0.0
        %2812 = vmatpush1.msra.mxu0 %v2648
        %2813 = vmatprep.subr.mxu0 0.0
        %2814 = vmatpush1.msra.mxu0 %v2647
        %2815 = vmatprep.subr.mxu0 0.0
        %2816 = vmatpush1.msra.mxu0 %v2646
        %2817 = vmatprep.subr.mxu0 0.0
        %2818 = vmatpush1.msra.mxu0 %v2645
        %2819 = vmatprep.subr.mxu0 0.0
        %2820 = vmatpush1.msra.mxu0 %v2644
        %2821 = vmatprep.subr.mxu0 0.0
        %2822 = vmatpush1.msra.mxu0 %v2643
        %2823 = vmatprep.subr.mxu0 0.0
        %2824 = vmatpush1.msra.mxu0 %v2642
        %2825 = vmatprep.subr.mxu0 0.0
        %2826 = vmatpush1.msra.mxu0 %v2641
        %2827 = vmatprep.subr.mxu0 0.0
        %2828 = vmatpush1.msra.mxu0 %v2640
        %2829 = vmatprep.subr.mxu0 0.0
        %2830 = vmatpush1.msra.mxu0 %v2639
        %2831 = vmatprep.subr.mxu0 0.0
        %2832 = vmatpush1.msra.mxu0 %v2638
        %2833 = vmatprep.subr.mxu0 0.0
        %2834 = vmatpush2.msra.mxu0 0.0
        %2835 = vmatprep.subr.mxu0 0.0
        %2836 = vmatpush2.msra.mxu0 0.0
        %2837 = vmatprep.subr.mxu0 0.0
        %2838 = vmatpush2.msra.mxu0 0.0
        %2839 = vmatprep.subr.mxu0 0.0
        %2840 = vmatpush2.msra.mxu0 0.0
        %2841 = vmatprep.subr.mxu0 0.0
        %2842 = vmatpush2.msra.mxu0 0.0
        %2843 = vmatprep.subr.mxu0 0.0
        %2844 = vmatpush2.msra.mxu0 0.0
        %2845 = vmatprep.subr.mxu0 0.0
        %2846 = vmatpush2.msra.mxu0 0.0
        %2847 = vmatprep.subr.mxu0 0.0
        %2848 = vmatpush2.msra.mxu0 0.0
        %2849 = vmatprep.subr.mxu0 0.0
        %2850 = vmatpush2.msra.mxu0 0.0
        %2851 = vmatprep.subr.mxu0 0.0
        %2852 = vmatpush2.msra.mxu0 0.0
        %2853 = vmatprep.subr.mxu0 0.0
        %2854 = vmatpush2.msra.mxu0 0.0
        %2855 = vmatprep.subr.mxu0 0.0
        %2856 = vmatpush2.msra.mxu0 0.0
        %2857 = vmatprep.subr.mxu0 0.0
        %2858 = vmatpush2.msra.mxu0 0.0
        %2859 = vmatprep.subr.mxu0 0.0
        %2860 = vmatpush2.msra.mxu0 0.0
        %2861 = vmatprep.subr.mxu0 0.0
        %2862 = vmatpush2.msra.mxu0 0.0
        %2863 = vmatprep.subr.mxu0 0.0
        %2864 = vmatpush2.msra.mxu0 0.0
        %2865 = vmatprep.mubr.f32.mxu0 0.0
        %2866 = vmatmul.mubr.f32.gmra.mxu0 %v2727
        %v2867 = vpop.f32.mrf.mxu0
        %v2868 = vadd.f32 0.0, %v2867
        %v2869 = vpop.f32.mrf.mxu0
        %2870 = vdwg.mxu0
        %2871 = vmatprep.subr.mxu0 0.0
        %2872 = vmatpush1.msra.mxu0 %v2653
        %2873 = vmatprep.subr.mxu0 0.0
        %2874 = vmatpush1.msra.mxu0 %v2652
        %2875 = vmatprep.subr.mxu0 0.0
        %2876 = vmatpush1.msra.mxu0 %v2651
        %2877 = vmatprep.subr.mxu0 0.0
        %2878 = vmatpush1.msra.mxu0 %v2650
        %2879 = vmatprep.subr.mxu0 0.0
        %2880 = vmatpush1.msra.mxu0 %v2649
        %2881 = vmatprep.subr.mxu0 0.0
        %2882 = vmatpush1.msra.mxu0 %v2648
        %2883 = vmatprep.subr.mxu0 0.0
        %2884 = vmatpush1.msra.mxu0 %v2647
        %2885 = vmatprep.subr.mxu0 0.0
        %2886 = vmatpush1.msra.mxu0 %v2646
        %2887 = vmatprep.subr.mxu0 0.0
        %2888 = vmatpush1.msra.mxu0 %v2645
        %2889 = vmatprep.subr.mxu0 0.0
        %2890 = vmatpush1.msra.mxu0 %v2644
        %2891 = vmatprep.subr.mxu0 0.0
        %2892 = vmatpush1.msra.mxu0 %v2643
        %2893 = vmatprep.subr.mxu0 0.0
        %2894 = vmatpush1.msra.mxu0 %v2642
        %2895 = vmatprep.subr.mxu0 0.0
        %2896 = vmatpush1.msra.mxu0 %v2641
        %2897 = vmatprep.subr.mxu0 0.0
        %2898 = vmatpush1.msra.mxu0 %v2640
        %2899 = vmatprep.subr.mxu0 0.0
        %2900 = vmatpush1.msra.mxu0 %v2639
        %2901 = vmatprep.subr.mxu0 0.0
        %2902 = vmatpush1.msra.mxu0 %v2638
        %2903 = vmatprep.subr.mxu0 0.0
        %2904 = vmatpush2.msra.mxu0 0.0
        %2905 = vmatprep.subr.mxu0 0.0
        %2906 = vmatpush2.msra.mxu0 0.0
        %2907 = vmatprep.subr.mxu0 0.0
        %2908 = vmatpush2.msra.mxu0 0.0
        %2909 = vmatprep.subr.mxu0 0.0
        %2910 = vmatpush2.msra.mxu0 0.0
        %2911 = vmatprep.subr.mxu0 0.0
        %2912 = vmatpush2.msra.mxu0 0.0
        %2913 = vmatprep.subr.mxu0 0.0
        %2914 = vmatpush2.msra.mxu0 0.0
        %2915 = vmatprep.subr.mxu0 0.0
        %2916 = vmatpush2.msra.mxu0 0.0
        %2917 = vmatprep.subr.mxu0 0.0
        %2918 = vmatpush2.msra.mxu0 0.0
        %2919 = vmatprep.subr.mxu0 0.0
        %2920 = vmatpush2.msra.mxu0 0.0
        %2921 = vmatprep.subr.mxu0 0.0
        %2922 = vmatpush2.msra.mxu0 0.0
        %2923 = vmatprep.subr.mxu0 0.0
        %2924 = vmatpush2.msra.mxu0 0.0
        %2925 = vmatprep.subr.mxu0 0.0
        %2926 = vmatpush2.msra.mxu0 0.0
        %2927 = vmatprep.subr.mxu0 0.0
        %2928 = vmatpush2.msra.mxu0 0.0
        %2929 = vmatprep.subr.mxu0 0.0
        %2930 = vmatpush2.msra.mxu0 0.0
        %2931 = vmatprep.subr.mxu0 0.0
        %2932 = vmatpush2.msra.mxu0 0.0
        %2933 = vmatprep.subr.mxu0 0.0
        %2934 = vmatpush2.msra.mxu0 0.0
        %2935 = vmatprep.mubr.f32.mxu0 0.0
        %2936 = vmatmul.mubr.f32.gmra.mxu0 %v2798
        %v2937 = vpop.f32.mrf.mxu0
        %v2938 = vadd.f32 0.0, %v2937
        %v2939 = vpop.f32.mrf.mxu0
        %2940 = vdwg.mxu0
        %v2941 = vmul.f32 %v2868, 0.03125
        %v2942 = vmul.f32 %v2938, 0.03125
        %v2943 = vmul.f32 %v2941, %v2941
        %v2944 = vsub.f32 %v2942, %v2943
        %v2945 = vmax.f32 %v2944, 0.0
        %v2946 = vadd.f32 %v2945, 1e-05
        %v2947 = vrsqrt.pop %v2946
        %v2949 = vsel %vm1030, %v2941, 0
        %v2952 = vsel %vm1034, %v2654, 0
        %2954 = vmatprep.subr.mxu0 0.0
        %2955 = vmatpush1.msra.mxu0 0.0
        %2956 = vmatprep.subr.mxu0 0.0
        %2957 = vmatpush1.msra.mxu0 0.0
        %2958 = vmatprep.subr.mxu0 0.0
        %2959 = vmatpush1.msra.mxu0 0.0
        %2960 = vmatprep.subr.mxu0 0.0
        %2961 = vmatpush1.msra.mxu0 0.0
        %2962 = vmatprep.subr.mxu0 0.0
        %2963 = vmatpush1.msra.mxu0 0.0
        %2964 = vmatprep.subr.mxu0 0.0
        %2965 = vmatpush1.msra.mxu0 0.0
        %2966 = vmatprep.subr.mxu0 0.0
        %2967 = vmatpush1.msra.mxu0 0.0
        %2968 = vmatprep.subr.mxu0 0.0
        %2969 = vmatpush1.msra.mxu0 0.0
        %2970 = vmatprep.subr.mxu0 0.0
        %2971 = vmatpush1.msra.mxu0 0.0
        %2972 = vmatprep.subr.mxu0 0.0
        %2973 = vmatpush1.msra.mxu0 0.0
        %2974 = vmatprep.subr.mxu0 0.0
        %2975 = vmatpush1.msra.mxu0 0.0
        %2976 = vmatprep.subr.mxu0 0.0
        %2977 = vmatpush1.msra.mxu0 0.0
        %2978 = vmatprep.subr.mxu0 0.0
        %2979 = vmatpush1.msra.mxu0 0.0
        %2980 = vmatprep.subr.mxu0 0.0
        %2981 = vmatpush1.msra.mxu0 0.0
        %2982 = vmatprep.subr.mxu0 0.0
        %2983 = vmatpush1.msra.mxu0 0.0
        %2984 = vmatprep.subr.mxu0 0.0
        %2985 = vmatpush1.msra.mxu0 %v2952
        %2986 = vmatprep.subr.mxu0 0.0
        %2987 = vmatpush2.msra.mxu0 0.0
        %2988 = vmatprep.subr.mxu0 0.0
        %2989 = vmatpush2.msra.mxu0 0.0
        %2990 = vmatprep.subr.mxu0 0.0
        %2991 = vmatpush2.msra.mxu0 0.0
        %2992 = vmatprep.subr.mxu0 0.0
        %2993 = vmatpush2.msra.mxu0 0.0
        %2994 = vmatprep.subr.mxu0 0.0
        %2995 = vmatpush2.msra.mxu0 0.0
        %2996 = vmatprep.subr.mxu0 0.0
        %2997 = vmatpush2.msra.mxu0 0.0
        %2998 = vmatprep.subr.mxu0 0.0
        %2999 = vmatpush2.msra.mxu0 0.0
        %3000 = vmatprep.subr.mxu0 0.0
        %3001 = vmatpush2.msra.mxu0 0.0
        %3002 = vmatprep.subr.mxu0 0.0
        %3003 = vmatpush2.msra.mxu0 0.0
        %3004 = vmatprep.subr.mxu0 0.0
        %3005 = vmatpush2.msra.mxu0 0.0
        %3006 = vmatprep.subr.mxu0 0.0
        %3007 = vmatpush2.msra.mxu0 0.0
        %3008 = vmatprep.subr.mxu0 0.0
        %3009 = vmatpush2.msra.mxu0 0.0
        %3010 = vmatprep.subr.mxu0 0.0
        %3011 = vmatpush2.msra.mxu0 0.0
        %3012 = vmatprep.subr.mxu0 0.0
        %3013 = vmatpush2.msra.mxu0 0.0
        %3014 = vmatprep.subr.mxu0 0.0
        %3015 = vmatpush2.msra.mxu0 0.0
        %3016 = vmatprep.subr.mxu0 0.0
        %3017 = vmatpush2.msra.mxu0 0.0
        %3018 = vmatprep.mubr.f32.mxu0 0.0
        %3019 = vmatmul.mubr.f32.gmra.mxu0 %v2949
        %v3020 = vpop.f32.mrf.mxu0
        %v3021 = vadd.f32 0.0, %v3020
        %v3022 = vpop.f32.mrf.mxu0
        %3023 = vdwg.mxu0
        %v3025 = vsel %vm1030, %v2947, 0
        %3027 = vmatprep.subr.mxu0 0.0
        %3028 = vmatpush1.msra.mxu0 0.0
        %3029 = vmatprep.subr.mxu0 0.0
        %3030 = vmatpush1.msra.mxu0 0.0
        %3031 = vmatprep.subr.mxu0 0.0
        %3032 = vmatpush1.msra.mxu0 0.0
        %3033 = vmatprep.subr.mxu0 0.0
        %3034 = vmatpush1.msra.mxu0 0.0
        %3035 = vmatprep.subr.mxu0 0.0
        %3036 = vmatpush1.msra.mxu0 0.0
        %3037 = vmatprep.subr.mxu0 0.0
        %3038 = vmatpush1.msra.mxu0 0.0
        %3039 = vmatprep.subr.mxu0 0.0
        %3040 = vmatpush1.msra.mxu0 0.0
        %3041 = vmatprep.subr.mxu0 0.0
        %3042 = vmatpush1.msra.mxu0 0.0
        %3043 = vmatprep.subr.mxu0 0.0
        %3044 = vmatpush1.msra.mxu0 0.0
        %3045 = vmatprep.subr.mxu0 0.0
        %3046 = vmatpush1.msra.mxu0 0.0
        %3047 = vmatprep.subr.mxu0 0.0
        %3048 = vmatpush1.msra.mxu0 0.0
        %3049 = vmatprep.subr.mxu0 0.0
        %3050 = vmatpush1.msra.mxu0 0.0
        %3051 = vmatprep.subr.mxu0 0.0
        %3052 = vmatpush1.msra.mxu0 0.0
        %3053 = vmatprep.subr.mxu0 0.0
        %3054 = vmatpush1.msra.mxu0 0.0
        %3055 = vmatprep.subr.mxu0 0.0
        %3056 = vmatpush1.msra.mxu0 0.0
        %3057 = vmatprep.subr.mxu0 0.0
        %3058 = vmatpush1.msra.mxu0 %v2952
        %3059 = vmatprep.subr.mxu0 0.0
        %3060 = vmatpush2.msra.mxu0 0.0
        %3061 = vmatprep.subr.mxu0 0.0
        %3062 = vmatpush2.msra.mxu0 0.0
        %3063 = vmatprep.subr.mxu0 0.0
        %3064 = vmatpush2.msra.mxu0 0.0
        %3065 = vmatprep.subr.mxu0 0.0
        %3066 = vmatpush2.msra.mxu0 0.0
        %3067 = vmatprep.subr.mxu0 0.0
        %3068 = vmatpush2.msra.mxu0 0.0
        %3069 = vmatprep.subr.mxu0 0.0
        %3070 = vmatpush2.msra.mxu0 0.0
        %3071 = vmatprep.subr.mxu0 0.0
        %3072 = vmatpush2.msra.mxu0 0.0
        %3073 = vmatprep.subr.mxu0 0.0
        %3074 = vmatpush2.msra.mxu0 0.0
        %3075 = vmatprep.subr.mxu0 0.0
        %3076 = vmatpush2.msra.mxu0 0.0
        %3077 = vmatprep.subr.mxu0 0.0
        %3078 = vmatpush2.msra.mxu0 0.0
        %3079 = vmatprep.subr.mxu0 0.0
        %3080 = vmatpush2.msra.mxu0 0.0
        %3081 = vmatprep.subr.mxu0 0.0
        %3082 = vmatpush2.msra.mxu0 0.0
        %3083 = vmatprep.subr.mxu0 0.0
        %3084 = vmatpush2.msra.mxu0 0.0
        %3085 = vmatprep.subr.mxu0 0.0
        %3086 = vmatpush2.msra.mxu0 0.0
        %3087 = vmatprep.subr.mxu0 0.0
        %3088 = vmatpush2.msra.mxu0 0.0
        %3089 = vmatprep.subr.mxu0 0.0
        %3090 = vmatpush2.msra.mxu0 0.0
        %3091 = vmatprep.mubr.f32.mxu0 0.0
        %3092 = vmatmul.mubr.f32.gmra.mxu0 %v3025
        %v3093 = vpop.f32.mrf.mxu0
        %v3094 = vadd.f32 0.0, %v3093
        %v3095 = vpop.f32.mrf.mxu0
        %3096 = vdwg.mxu0
        %v3098 = vlaneseq
        %v3099 = vshrl.u32 %v3098, 7
        %v3100 = vsub.s32 0, %v3099
        %v3101 = vrot.slane %v2655, %v3100
        %v3103 = vmul.f32 %v3094, %v3101
        %v3104 = vmul.f32 %v3021, %v3103
        %v3106 = vlaneseq
        %v3107 = vshrl.u32 %v3106, 7
        %v3108 = vsub.s32 0, %v3107
        %v3109 = vrot.slane %v2656, %v3108
        %v3111 = vsub.f32 %v3109, %v3104
        %v3113 = vsel %vm1196, %v2636, 0
        %3115 = vmatprep.subr.mxu0 0.0
        %3116 = vmatpush1.msra.mxu0 0.0
        %3117 = vmatprep.subr.mxu0 0.0
        %3118 = vmatpush1.msra.mxu0 0.0
        %3119 = vmatprep.subr.mxu0 0.0
        %3120 = vmatpush1.msra.mxu0 0.0
        %3121 = vmatprep.subr.mxu0 0.0
        %3122 = vmatpush1.msra.mxu0 0.0
        %3123 = vmatprep.subr.mxu0 0.0
        %3124 = vmatpush1.msra.mxu0 0.0
        %3125 = vmatprep.subr.mxu0 0.0
        %3126 = vmatpush1.msra.mxu0 0.0
        %3127 = vmatprep.subr.mxu0 0.0
        %3128 = vmatpush1.msra.mxu0 0.0
        %3129 = vmatprep.subr.mxu0 0.0
        %3130 = vmatpush1.msra.mxu0 0.0
        %3131 = vmatprep.subr.mxu0 0.0
        %3132 = vmatpush1.msra.mxu0 0.0
        %3133 = vmatprep.subr.mxu0 0.0
        %3134 = vmatpush1.msra.mxu0 0.0
        %3135 = vmatprep.subr.mxu0 0.0
        %3136 = vmatpush1.msra.mxu0 0.0
        %3137 = vmatprep.subr.mxu0 0.0
        %3138 = vmatpush1.msra.mxu0 0.0
        %3139 = vmatprep.subr.mxu0 0.0
        %3140 = vmatpush1.msra.mxu0 0.0
        %3141 = vmatprep.subr.mxu0 0.0
        %3142 = vmatpush1.msra.mxu0 0.0
        %3143 = vmatprep.subr.mxu0 0.0
        %3144 = vmatpush1.msra.mxu0 0.0
        %3145 = vmatprep.subr.mxu0 0.0
        %3146 = vmatpush1.msra.mxu0 %v3103
        %3147 = vmatprep.subr.mxu0 0.0
        %3148 = vmatpush2.msra.mxu0 0.0
        %3149 = vmatprep.subr.mxu0 0.0
        %3150 = vmatpush2.msra.mxu0 0.0
        %3151 = vmatprep.subr.mxu0 0.0
        %3152 = vmatpush2.msra.mxu0 0.0
        %3153 = vmatprep.subr.mxu0 0.0
        %3154 = vmatpush2.msra.mxu0 0.0
        %3155 = vmatprep.subr.mxu0 0.0
        %3156 = vmatpush2.msra.mxu0 0.0
        %3157 = vmatprep.subr.mxu0 0.0
        %3158 = vmatpush2.msra.mxu0 0.0
        %3159 = vmatprep.subr.mxu0 0.0
        %3160 = vmatpush2.msra.mxu0 0.0
        %3161 = vmatprep.subr.mxu0 0.0
        %3162 = vmatpush2.msra.mxu0 0.0
        %3163 = vmatprep.subr.mxu0 0.0
        %3164 = vmatpush2.msra.mxu0 0.0
        %3165 = vmatprep.subr.mxu0 0.0
        %3166 = vmatpush2.msra.mxu0 0.0
        %3167 = vmatprep.subr.mxu0 0.0
        %3168 = vmatpush2.msra.mxu0 0.0
        %3169 = vmatprep.subr.mxu0 0.0
        %3170 = vmatpush2.msra.mxu0 0.0
        %3171 = vmatprep.subr.mxu0 0.0
        %3172 = vmatpush2.msra.mxu0 0.0
        %3173 = vmatprep.subr.mxu0 0.0
        %3174 = vmatpush2.msra.mxu0 0.0
        %3175 = vmatprep.subr.mxu0 0.0
        %3176 = vmatpush2.msra.mxu0 0.0
        %3177 = vmatprep.subr.mxu0 0.0
        %3178 = vmatpush2.msra.mxu0 0.0
        %3179 = vmatprep.mubr.f32.mxu0 0.0
        %3180 = vmatmul.mubr.f32.gmra.mxu0 %v3113
        %v3181 = vpop.f32.mrf.mxu0
        %v3182 = vadd.f32 0.0, %v3181
        %v3183 = vpop.f32.mrf.mxu0
        %3184 = vdwg.mxu0
        %3185 = vmatprep.subr.mxu0 0.0
        %3186 = vmatpush1.msra.mxu0 0.0
        %3187 = vmatprep.subr.mxu0 0.0
        %3188 = vmatpush1.msra.mxu0 0.0
        %3189 = vmatprep.subr.mxu0 0.0
        %3190 = vmatpush1.msra.mxu0 0.0
        %3191 = vmatprep.subr.mxu0 0.0
        %3192 = vmatpush1.msra.mxu0 0.0
        %3193 = vmatprep.subr.mxu0 0.0
        %3194 = vmatpush1.msra.mxu0 0.0
        %3195 = vmatprep.subr.mxu0 0.0
        %3196 = vmatpush1.msra.mxu0 0.0
        %3197 = vmatprep.subr.mxu0 0.0
        %3198 = vmatpush1.msra.mxu0 0.0
        %3199 = vmatprep.subr.mxu0 0.0
        %3200 = vmatpush1.msra.mxu0 0.0
        %3201 = vmatprep.subr.mxu0 0.0
        %3202 = vmatpush1.msra.mxu0 0.0
        %3203 = vmatprep.subr.mxu0 0.0
        %3204 = vmatpush1.msra.mxu0 0.0
        %3205 = vmatprep.subr.mxu0 0.0
        %3206 = vmatpush1.msra.mxu0 0.0
        %3207 = vmatprep.subr.mxu0 0.0
        %3208 = vmatpush1.msra.mxu0 0.0
        %3209 = vmatprep.subr.mxu0 0.0
        %3210 = vmatpush1.msra.mxu0 0.0
        %3211 = vmatprep.subr.mxu0 0.0
        %3212 = vmatpush1.msra.mxu0 0.0
        %3213 = vmatprep.subr.mxu0 0.0
        %3214 = vmatpush1.msra.mxu0 0.0
        %3215 = vmatprep.subr.mxu0 0.0
        %3216 = vmatpush1.msra.mxu0 %v3111
        %3217 = vmatprep.subr.mxu0 0.0
        %3218 = vmatpush2.msra.mxu0 0.0
        %3219 = vmatprep.subr.mxu0 0.0
        %3220 = vmatpush2.msra.mxu0 0.0
        %3221 = vmatprep.subr.mxu0 0.0
        %3222 = vmatpush2.msra.mxu0 0.0
        %3223 = vmatprep.subr.mxu0 0.0
        %3224 = vmatpush2.msra.mxu0 0.0
        %3225 = vmatprep.subr.mxu0 0.0
        %3226 = vmatpush2.msra.mxu0 0.0
        %3227 = vmatprep.subr.mxu0 0.0
        %3228 = vmatpush2.msra.mxu0 0.0
        %3229 = vmatprep.subr.mxu0 0.0
        %3230 = vmatpush2.msra.mxu0 0.0
        %3231 = vmatprep.subr.mxu0 0.0
        %3232 = vmatpush2.msra.mxu0 0.0
        %3233 = vmatprep.subr.mxu0 0.0
        %3234 = vmatpush2.msra.mxu0 0.0
        %3235 = vmatprep.subr.mxu0 0.0
        %3236 = vmatpush2.msra.mxu0 0.0
        %3237 = vmatprep.subr.mxu0 0.0
        %3238 = vmatpush2.msra.mxu0 0.0
        %3239 = vmatprep.subr.mxu0 0.0
        %3240 = vmatpush2.msra.mxu0 0.0
        %3241 = vmatprep.subr.mxu0 0.0
        %3242 = vmatpush2.msra.mxu0 0.0
        %3243 = vmatprep.subr.mxu0 0.0
        %3244 = vmatpush2.msra.mxu0 0.0
        %3245 = vmatprep.subr.mxu0 0.0
        %3246 = vmatpush2.msra.mxu0 0.0
        %3247 = vmatprep.subr.mxu0 0.0
        %3248 = vmatpush2.msra.mxu0 0.0
        %3249 = vmatprep.mubr.f32.mxu0 0.0
        %3250 = vmatmul.mubr.f32.gmra.mxu0 %v3113
        %v3251 = vpop.f32.mrf.mxu0
        %v3252 = vadd.f32 0.0, %v3251
        %v3253 = vpop.f32.mrf.mxu0
        %3254 = vdwg.mxu0
        %v3255 = vmul.f32 %v2635, %v3182
        %v3256 = vadd.f32 %v3255, %v3252
        %v3257 = vmul.f32 %v3256, 0.5
        %v3258 = vmul.f32 %v3256, 0.70710677
        %v3259 = verf.f32.pop %v3258
        %v3260 = vadd.f32 %v3259, 1.0
        %v3261 = vmul.f32 %v3257, %v3260
        %3262 = vst [vmem:[%s487] sm:$0xff] %v3261
        %s3263 = sand.u32 %s357, 1
        %s3264 = scalar_lea.sflag [#allocation3], %s3263
        %s3265 = sand.u32 %s357, 1
        %s3266 = smul.addr %s3265, 8
        %s3267 = scalar_lea.vmem [#allocation2], %s3266
        // Predicated region
        $region81: #{tpu_custom_call.1} parent=79 // pred_check
          %p3268 = pneg %p367
        $region82: #{tpu_custom_call.1} parent=79 // pred_check_branch
          %3270 = sbr.rel (%p3268) target = $region84
        $region83: #{tpu_custom_call.1} parent=79 // pred_region
          %s3272 = ssub.s32 128, 128
          %3273 = vsyncadd %s3264, %s3272
          %s3274 = smul.addr %s29, 128
          %s3275 = scalar_lea.hbm %s15, %s3274
          %s3277 = sshll.u32 %s3267, 4
          %s3278 = int_to_ptr.vmem [resolvable:$true] %s3277
          %3280 = dma.vmem_to_hbm [thread:$0]  %s3278, 128, %s3275, %s3264
        $region84: #{tpu_custom_call.1} parent=79 // pred_fallthru
          _
      $region80: #{tpu_custom_call.1} parent=5 // pred_fallthru
        _
      %p3281 = scmp.le.s32.totalorder 2, %s24
      // Predicated region
      $region85: #{tpu_custom_call.1} parent=5 // pred_check
        %p3282 = pneg %p3281
      $region86: #{tpu_custom_call.1} parent=5 // pred_check_branch
        %3284 = sbr.rel (%p3282) target = $region88
      $region87: #{tpu_custom_call.1} parent=5 // pred_region
        %s3285 = ssub.s32 %s24, 2
        // Predicated region
        $region89: #{tpu_custom_call.1} parent=87 // pred_check
          %p3286 = pneg %p373
        $region90: #{tpu_custom_call.1} parent=87 // pred_check_branch
          %3288 = sbr.rel (%p3286) target = $region92
        $region91: #{tpu_custom_call.1} parent=87 // pred_region
          %s3289 = sand.u32 %s358, 1
          %s3290 = scalar_lea.sflag [#allocation3], %s3289
          %s3291 = sand.u32 %s358, 1
          %s3292 = smul.addr %s3291, 8
          %s3293 = scalar_lea.vmem [#allocation2], %s3292
          %3294 = dma.done %s3290, 128
        $region92: #{tpu_custom_call.1} parent=87 // pred_fallthru
          _
      $region88: #{tpu_custom_call.1} parent=5 // pred_fallthru
        _
    $region6: #{tpu_custom_call.1} parent=1 // loop_footer
      %s28 = sadd.s32 1, %s24
    $region7: #{tpu_custom_call.1} parent=1 // loop_footer_branch
      %23 = sbr.rel target = $region3
    $region8: #{tpu_custom_call.1} parent=1 // loop_exit
      _
    %3295 = vsyncpa [#allocation3], 1
    %s3296 = scalar_lea.sflag [#allocation3], 1
    %3297 = vsyncpa %s3296, 1

// kernel: tpu_custom_call.1
$region0: #{tpu_custom_call.1}
  #allocation0 [shape = 'u32[]', space=smem, size = 0x4, offset = 0x4, fixed_abs, tag = 'smem constant byte address 0x4 - core index']
  #allocation1 [shape = 'u32[144,128]{1,0:T(1,128)}', space=vmem, size = 0x12000, scoped, tag = 'internal scratch']
  %s0 = inlined_call_operand.vmem [shape: bf16[2,128,48], index: 0, kind: input, shape index: {}]
  %s1 = inlined_call_operand.vmem [shape: bf16[48,32], index: 1, kind: input, shape index: {}]
  %s2 = inlined_call_operand.vmem [shape: bf16[16,32,128], index: 2, kind: input, shape index: {}]
  %s3 = inlined_call_operand.vmem [shape: f32[128,8], index: 3, kind: input, shape index: {}]
  %s4 = inlined_call_operand.vmem [shape: f32[8,128], index: 4, kind: input, shape index: {}]
  %s5 = inlined_call_operand.vmem [shape: f32[8,8], index: 5, kind: input, shape index: {}]
  %s6 = inlined_call_operand.vmem [shape: f32[8,8], index: 6, kind: input, shape index: {}]
  %s7 = inlined_call_operand.vmem [shape: f32[32,4], index: 7, kind: input, shape index: {}]
  %s8 = inlined_call_operand.vmem [shape: f32[4,32], index: 8, kind: input, shape index: {}]
  %s9 = inlined_call_operand.vmem [shape: f32[128,4], index: 9, kind: input, shape index: {}]
  %s10 = inlined_call_operand.vmem [shape: f32[4,128], index: 10, kind: input, shape index: {}]
  %s11 = inlined_call_operand.vmem [shape: f32[1,32], index: 11, kind: input, shape index: {}]
  %s12 = inlined_call_operand.vmem [shape: f32[1,32], index: 12, kind: input, shape index: {}]
  %s13 = inlined_call_operand.vmem [shape: f32[1,128], index: 13, kind: input, shape index: {}]
  %s14 = inlined_call_operand.vmem [shape: f32[1,128], index: 14, kind: input, shape index: {}]
  %s15 = inlined_call_operand.hbm [shape: f32[2,8,128], index: 15, kind: output, shape index: {}]
  %s16 = sld [smem:[#allocation0]]
  $region93: #{tpu_custom_call.1} parent=0
    _
  %s18 = ssub.s32 1, %s16
  %s19 = scalar_select 0, %s18, %s16
  $region1: #{tpu_custom_call.1} parent=0
    #allocation2 [shape = 'u8[8192]{0}', space=vmem, size = 0x2000, scoped, tag = 'output window, operand 0']
    #allocation3 [shape = 's32[2]{0}', space=sflag, size = 0x8, scoped, tag = 'scoped memory for tpu_custom_call.1']
    %20 = vsyncpa [#allocation3], 0
    %s21 = scalar_lea.sflag [#allocation3], 1
    %22 = vsyncpa %s21, 0
    loop: start=0, step=1, limit=4
    $region2: #{tpu_custom_call.1} parent=1 // loop_pre_header
      _
    $region3: #{tpu_custom_call.1} parent=1 // loop_header
      %s24 = sphi 0, %s28
      %p25 = scmp.ge.s32.totalorder %s24, 4
      %s34 = sphi 0, %s36
      %s37 = sphi 0, %s34
      %s38 = sphi 0, %s37
      %s54 = sphi 0, %s38
      %s58 = sphi 0, %s58
      %s60 = sphi 0, %s58
      %s61 = sphi 0, %s60
      %s75 = sphi 0, %s61
      %s79 = sphi 0, %s79
      %s81 = sphi 0, %s79
      %s82 = sphi 0, %s81
      %s96 = sphi 0, %s82
      %s100 = sphi 0, %s100
      %s102 = sphi 0, %s100
      %s103 = sphi 0, %s102
      %s117 = sphi 0, %s103
      %s121 = sphi 0, %s121
      %s123 = sphi 0, %s121
      %s124 = sphi 0, %s123
      %s138 = sphi 0, %s124
      %s142 = sphi 0, %s142
      %s144 = sphi 0, %s142
      %s145 = sphi 0, %s144
      %s159 = sphi 0, %s145
      %s163 = sphi 0, %s163
      %s165 = sphi 0, %s163
      %s166 = sphi 0, %s165
      %s180 = sphi 0, %s166
      %s184 = sphi 0, %s184
      %s186 = sphi 0, %s184
      %s187 = sphi 0, %s186
      %s201 = sphi 0, %s187
      %s205 = sphi 0, %s205
      %s207 = sphi 0, %s205
      %s208 = sphi 0, %s207
      %s222 = sphi 0, %s208
      %s226 = sphi 0, %s226
      %s228 = sphi 0, %s226
      %s229 = sphi 0, %s228
      %s243 = sphi 0, %s229
      %s247 = sphi 0, %s247
      %s249 = sphi 0, %s247
      %s250 = sphi 0, %s249
      %s264 = sphi 0, %s250
      %s268 = sphi 0, %s268
      %s270 = sphi 0, %s268
      %s271 = sphi 0, %s270
      %s285 = sphi 0, %s271
      %s289 = sphi 0, %s289
      %s291 = sphi 0, %s289
      %s292 = sphi 0, %s291
      %s306 = sphi 0, %s292
      %s310 = sphi 0, %s310
      %s312 = sphi 0, %s310
      %s313 = sphi 0, %s312
      %s327 = sphi 0, %s313
      %s331 = sphi 0, %s331
      %s333 = sphi 0, %s331
      %s334 = sphi 0, %s333
      %s348 = sphi 0, %s334
      %s354 = sphi 0, %s356
      %s357 = sphi 0, %s354
      %s358 = sphi 0, %s357
      %s374 = sphi 0, %s358
    $region4: #{tpu_custom_call.1} parent=1 // loop_header_branch
      %27 = sbr.rel (%p25) target = $region8
    $region5: #{tpu_custom_call.1} parent=1 // loop_body
      %s29 = ssub.s32 %s24, 1
      %s30 = ssub.s32 %s24, 2
      %s31 = sadd.s32 %s24, 1
      %s32 = ssub.s32 %s24, %s31
      %p33 = scmp.eq.s32.totalorder %s32, 0
      %s35 = sadd.s32 %s34, 1
      %s36 = scalar_select %p33, %s34, %s35
      %p39 = pneg %p33
      %p40 = scmp.eq.s32.totalorder %s24, 1
      %p41 = por %p39, %p40
      %p42 = scmp.ne.s32.totalorder %s34, %s37
      %p43 = scmp.eq.s32.totalorder %s24, 0
      %p44 = por %p42, %p43
      %p45 = scmp.ne.s32.totalorder %s34, %s37
      %p46 = scmp.eq.s32.totalorder %s29, 1
      %p47 = por %p45, %p46
      %p48 = scmp.ne.s32.totalorder %s37, %s38
      %p49 = scmp.eq.s32.totalorder %s29, 0
      %p50 = por %p48, %p49
      %p51 = scmp.ne.s32.totalorder %s37, %s38
      %p52 = scmp.eq.s32.totalorder %s30, 1
      %p53 = por %p51, %p52
      %p55 = scmp.ne.s32.totalorder %s38, %s54
      %p56 = scmp.eq.s32.totalorder %s30, 0
      %p57 = por %p55, %p56
      %s59 = sadd.s32 %s58, 1
      %p62 = scmp.eq.s32.totalorder %s24, 1
      %p63 = scmp.ne.s32.totalorder %s58, %s60
      %p64 = scmp.eq.s32.totalorder %s24, 0
      %p65 = por %p63, %p64
      %p66 = scmp.ne.s32.totalorder %s58, %s60
      %p67 = scmp.eq.s32.totalorder %s29, 1
      %p68 = por %p66, %p67
      %p69 = scmp.ne.s32.totalorder %s60, %s61
      %p70 = scmp.eq.s32.totalorder %s29, 0
      %p71 = por %p69, %p70
      %p72 = scmp.ne.s32.totalorder %s60, %s61
      %p73 = scmp.eq.s32.totalorder %s30, 1
      %p74 = por %p72, %p73
      %p76 = scmp.ne.s32.totalorder %s61, %s75
      %p77 = scmp.eq.s32.totalorder %s30, 0
      %p78 = por %p76, %p77
      %s80 = sadd.s32 %s79, 1
      %p83 = scmp.eq.s32.totalorder %s24, 1
      %p84 = scmp.ne.s32.totalorder %s79, %s81
      %p85 = scmp.eq.s32.totalorder %s24, 0
      %p86 = por %p84, %p85
      %p87 = scmp.ne.s32.totalorder %s79, %s81
      %p88 = scmp.eq.s32.totalorder %s29, 1
      %p89 = por %p87, %p88
      %p90 = scmp.ne.s32.totalorder %s81, %s82
      %p91 = scmp.eq.s32.totalorder %s29, 0
      %p92 = por %p90, %p91
      %p93 = scmp.ne.s32.totalorder %s81, %s82
      %p94 = scmp.eq.s32.totalorder %s30, 1
      %p95 = por %p93, %p94
      %p97 = scmp.ne.s32.totalorder %s82, %s96
      %p98 = scmp.eq.s32.totalorder %s30, 0
      %p99 = por %p97, %p98
      %s101 = sadd.s32 %s100, 1
      %p104 = scmp.eq.s32.totalorder %s24, 1
      %p105 = scmp.ne.s32.totalorder %s100, %s102
      %p106 = scmp.eq.s32.totalorder %s24, 0
      %p107 = por %p105, %p106
      %p108 = scmp.ne.s32.totalorder %s100, %s102
      %p109 = scmp.eq.s32.totalorder %s29, 1
      %p110 = por %p108, %p109
      %p111 = scmp.ne.s32.totalorder %s102, %s103
      %p112 = scmp.eq.s32.totalorder %s29, 0
      %p113 = por %p111, %p112
      %p114 = scmp.ne.s32.totalorder %s102, %s103
      %p115 = scmp.eq.s32.totalorder %s30, 1
      %p116 = por %p114, %p115
      %p118 = scmp.ne.s32.totalorder %s103, %s117
      %p119 = scmp.eq.s32.totalorder %s30, 0
      %p120 = por %p118, %p119
      %s122 = sadd.s32 %s121, 1
      %p125 = scmp.eq.s32.totalorder %s24, 1
      %p126 = scmp.ne.s32.totalorder %s121, %s123
      %p127 = scmp.eq.s32.totalorder %s24, 0
      %p128 = por %p126, %p127
      %p129 = scmp.ne.s32.totalorder %s121, %s123
      %p130 = scmp.eq.s32.totalorder %s29, 1
      %p131 = por %p129, %p130
      %p132 = scmp.ne.s32.totalorder %s123, %s124
      %p133 = scmp.eq.s32.totalorder %s29, 0
      %p134 = por %p132, %p133
      %p135 = scmp.ne.s32.totalorder %s123, %s124
      %p136 = scmp.eq.s32.totalorder %s30, 1
      %p137 = por %p135, %p136
      %p139 = scmp.ne.s32.totalorder %s124, %s138
      %p140 = scmp.eq.s32.totalorder %s30, 0
      %p141 = por %p139, %p140
      %s143 = sadd.s32 %s142, 1
      %p146 = scmp.eq.s32.totalorder %s24, 1
      %p147 = scmp.ne.s32.totalorder %s142, %s144
      %p148 = scmp.eq.s32.totalorder %s24, 0
      %p149 = por %p147, %p148
      %p150 = scmp.ne.s32.totalorder %s142, %s144
      %p151 = scmp.eq.s32.totalorder %s29, 1
      %p152 = por %p150, %p151
      %p153 = scmp.ne.s32.totalorder %s144, %s145
      %p154 = scmp.eq.s32.totalorder %s29, 0
      %p155 = por %p153, %p154
      %p156 = scmp.ne.s32.totalorder %s144, %s145
      %p157 = scmp.eq.s32.totalorder %s30, 1
      %p158 = por %p156, %p157
      %p160 = scmp.ne.s32.totalorder %s145, %s159
      %p161 = scmp.eq.s32.totalorder %s30, 0
      %p162 = por %p160, %p161
      %s164 = sadd.s32 %s163, 1
      %p167 = scmp.eq.s32.totalorder %s24, 1
      %p168 = scmp.ne.s32.totalorder %s163, %s165
      %p169 = scmp.eq.s32.totalorder %s24, 0
      %p170 = por %p168, %p169
      %p171 = scmp.ne.s32.totalorder %s163, %s165
      %p172 = scmp.eq.s32.totalorder %s29, 1
      %p173 = por %p171, %p172
      %p174 = scmp.ne.s32.totalorder %s165, %s166
      %p175 = scmp.eq.s32.totalorder %s29, 0
      %p176 = por %p174, %p175
      %p177 = scmp.ne.s32.totalorder %s165, %s166
      %p178 = scmp.eq.s32.totalorder %s30, 1
      %p179 = por %p177, %p178
      %p181 = scmp.ne.s32.totalorder %s166, %s180
      %p182 = scmp.eq.s32.totalorder %s30, 0
      %p183 = por %p181, %p182
      %s185 = sadd.s32 %s184, 1
      %p188 = scmp.eq.s32.totalorder %s24, 1
      %p189 = scmp.ne.s32.totalorder %s184, %s186
      %p190 = scmp.eq.s32.totalorder %s24, 0
      %p191 = por %p189, %p190
      %p192 = scmp.ne.s32.totalorder %s184, %s186
      %p193 = scmp.eq.s32.totalorder %s29, 1
      %p194 = por %p192, %p193
      %p195 = scmp.ne.s32.totalorder %s186, %s187
      %p196 = scmp.eq.s32.totalorder %s29, 0
      %p197 = por %p195, %p196
      %p198 = scmp.ne.s32.totalorder %s186, %s187
      %p199 = scmp.eq.s32.totalorder %s30, 1
      %p200 = por %p198, %p199
      %p202 = scmp.ne.s32.totalorder %s187, %s201
      %p203 = scmp.eq.s32.totalorder %s30, 0
      %p204 = por %p202, %p203
      %s206 = sadd.s32 %s205, 1
      %p209 = scmp.eq.s32.totalorder %s24, 1
      %p210 = scmp.ne.s32.totalorder %s205, %s207
      %p211 = scmp.eq.s32.totalorder %s24, 0
      %p212 = por %p210, %p211
      %p213 = scmp.ne.s32.totalorder %s205, %s207
      %p214 = scmp.eq.s32.totalorder %s29, 1
      %p215 = por %p213, %p214
      %p216 = scmp.ne.s32.totalorder %s207, %s208
      %p217 = scmp.eq.s32.totalorder %s29, 0
      %p218 = por %p216, %p217
      %p219 = scmp.ne.s32.totalorder %s207, %s208
      %p220 = scmp.eq.s32.totalorder %s30, 1
      %p221 = por %p219, %p220
      %p223 = scmp.ne.s32.totalorder %s208, %s222
      %p224 = scmp.eq.s32.totalorder %s30, 0
      %p225 = por %p223, %p224
      %s227 = sadd.s32 %s226, 1
      %p230 = scmp.eq.s32.totalorder %s24, 1
      %p231 = scmp.ne.s32.totalorder %s226, %s228
      %p232 = scmp.eq.s32.totalorder %s24, 0
      %p233 = por %p231, %p232
      %p234 = scmp.ne.s32.totalorder %s226, %s228
      %p235 = scmp.eq.s32.totalorder %s29, 1
      %p236 = por %p234, %p235
      %p237 = scmp.ne.s32.totalorder %s228, %s229
      %p238 = scmp.eq.s32.totalorder %s29, 0
      %p239 = por %p237, %p238
      %p240 = scmp.ne.s32.totalorder %s228, %s229
      %p241 = scmp.eq.s32.totalorder %s30, 1
      %p242 = por %p240, %p241
      %p244 = scmp.ne.s32.totalorder %s229, %s243
      %p245 = scmp.eq.s32.totalorder %s30, 0
      %p246 = por %p244, %p245
      %s248 = sadd.s32 %s247, 1
      %p251 = scmp.eq.s32.totalorder %s24, 1
      %p252 = scmp.ne.s32.totalorder %s247, %s249
      %p253 = scmp.eq.s32.totalorder %s24, 0
      %p254 = por %p252, %p253
      %p255 = scmp.ne.s32.totalorder %s247, %s249
      %p256 = scmp.eq.s32.totalorder %s29, 1
      %p257 = por %p255, %p256
      %p258 = scmp.ne.s32.totalorder %s249, %s250
      %p259 = scmp.eq.s32.totalorder %s29, 0
      %p260 = por %p258, %p259
      %p261 = scmp.ne.s32.totalorder %s249, %s250
      %p262 = scmp.eq.s32.totalorder %s30, 1
      %p263 = por %p261, %p262
      %p265 = scmp.ne.s32.totalorder %s250, %s264
      %p266 = scmp.eq.s32.totalorder %s30, 0
      %p267 = por %p265, %p266
      %s269 = sadd.s32 %s268, 1
      %p272 = scmp.eq.s32.totalorder %s24, 1
      %p273 = scmp.ne.s32.totalorder %s268, %s270
      %p274 = scmp.eq.s32.totalorder %s24, 0
      %p275 = por %p273, %p274
      %p276 = scmp.ne.s32.totalorder %s268, %s270
      %p277 = scmp.eq.s32.totalorder %s29, 1
      %p278 = por %p276, %p277
      %p279 = scmp.ne.s32.totalorder %s270, %s271
      %p280 = scmp.eq.s32.totalorder %s29, 0
      %p281 = por %p279, %p280
      %p282 = scmp.ne.s32.totalorder %s270, %s271
      %p283 = scmp.eq.s32.totalorder %s30, 1
      %p284 = por %p282, %p283
      %p286 = scmp.ne.s32.totalorder %s271, %s285
      %p287 = scmp.eq.s32.totalorder %s30, 0
      %p288 = por %p286, %p287
      %s290 = sadd.s32 %s289, 1
      %p293 = scmp.eq.s32.totalorder %s24, 1
      %p294 = scmp.ne.s32.totalorder %s289, %s291
      %p295 = scmp.eq.s32.totalorder %s24, 0
      %p296 = por %p294, %p295
      %p297 = scmp.ne.s32.totalorder %s289, %s291
      %p298 = scmp.eq.s32.totalorder %s29, 1
      %p299 = por %p297, %p298
      %p300 = scmp.ne.s32.totalorder %s291, %s292
      %p301 = scmp.eq.s32.totalorder %s29, 0
      %p302 = por %p300, %p301
      %p303 = scmp.ne.s32.totalorder %s291, %s292
      %p304 = scmp.eq.s32.totalorder %s30, 1
      %p305 = por %p303, %p304
      %p307 = scmp.ne.s32.totalorder %s292, %s306
      %p308 = scmp.eq.s32.totalorder %s30, 0
      %p309 = por %p307, %p308
      %s311 = sadd.s32 %s310, 1
      %p314 = scmp.eq.s32.totalorder %s24, 1
      %p315 = scmp.ne.s32.totalorder %s310, %s312
      %p316 = scmp.eq.s32.totalorder %s24, 0
      %p317 = por %p315, %p316
      %p318 = scmp.ne.s32.totalorder %s310, %s312
      %p319 = scmp.eq.s32.totalorder %s29, 1
      %p320 = por %p318, %p319
      %p321 = scmp.ne.s32.totalorder %s312, %s313
      %p322 = scmp.eq.s32.totalorder %s29, 0
      %p323 = por %p321, %p322
      %p324 = scmp.ne.s32.totalorder %s312, %s313
      %p325 = scmp.eq.s32.totalorder %s30, 1
      %p326 = por %p324, %p325
      %p328 = scmp.ne.s32.totalorder %s313, %s327
      %p329 = scmp.eq.s32.totalorder %s30, 0
      %p330 = por %p328, %p329
      %s332 = sadd.s32 %s331, 1
      %p335 = scmp.eq.s32.totalorder %s24, 1
      %p336 = scmp.ne.s32.totalorder %s331, %s333
      %p337 = scmp.eq.s32.totalorder %s24, 0
      %p338 = por %p336, %p337
      %p339 = scmp.ne.s32.totalorder %s331, %s333
      %p340 = scmp.eq.s32.totalorder %s29, 1
      %p341 = por %p339, %p340
      %p342 = scmp.ne.s32.totalorder %s333, %s334
      %p343 = scmp.eq.s32.totalorder %s29, 0
      %p344 = por %p342, %p343
      %p345 = scmp.ne.s32.totalorder %s333, %s334
      %p346 = scmp.eq.s32.totalorder %s30, 1
      %p347 = por %p345, %p346
      %p349 = scmp.ne.s32.totalorder %s334, %s348
      %p350 = scmp.eq.s32.totalorder %s30, 0
      %p351 = por %p349, %p350
      %s352 = ssub.s32 %s24, %s31
      %p353 = scmp.eq.s32.totalorder %s352, 0
      %s355 = sadd.s32 %s354, 1
      %s356 = scalar_select %p353, %s354, %s355
      %p359 = pneg %p353
      %p360 = scmp.eq.s32.totalorder %s24, 1
      %p361 = por %p359, %p360
      %p362 = scmp.ne.s32.totalorder %s354, %s357
      %p363 = scmp.eq.s32.totalorder %s24, 0
      %p364 = por %p362, %p363
      %p365 = scmp.ne.s32.totalorder %s354, %s357
      %p366 = scmp.eq.s32.totalorder %s29, 1
      %p367 = por %p365, %p366
      %p368 = scmp.ne.s32.totalorder %s357, %s358
      %p369 = scmp.eq.s32.totalorder %s29, 0
      %p370 = por %p368, %p369
      %p371 = scmp.ne.s32.totalorder %s357, %s358
      %p372 = scmp.eq.s32.totalorder %s30, 1
      %p373 = por %p371, %p372
      %p375 = scmp.ne.s32.totalorder %s358, %s374
      %p376 = scmp.eq.s32.totalorder %s30, 0
      %p377 = por %p375, %p376
      %p378 = scmp.le.s32.totalorder 1, %s24
      %p379 = scmp.lt.s32.totalorder %s24, 3
      %p380 = pnand %p378, %p379
      %p381 = pneg %p380
      // Predicated region
      $region9: #{tpu_custom_call.1} parent=5 // pred_check
        _
      $region10: #{tpu_custom_call.1} parent=5 // pred_check_branch
        %383 = sbr.rel (%p380) target = $region12
      $region11: #{tpu_custom_call.1} parent=5 // pred_region
        %s384 = ssub.s32 %s24, 1
        // Predicated region
        $region13: #{tpu_custom_call.1} parent=11 // pred_check
          %p385 = pneg %p71
        $region14: #{tpu_custom_call.1} parent=11 // pred_check_branch
          %387 = sbr.rel (%p385) target = $region16
        $region15: #{tpu_custom_call.1} parent=11 // pred_region
          _
        $region16: #{tpu_custom_call.1} parent=11 // pred_fallthru
          _
        // Predicated region
        $region17: #{tpu_custom_call.1} parent=11 // pred_check
          %p388 = pneg %p92
        $region18: #{tpu_custom_call.1} parent=11 // pred_check_branch
          %390 = sbr.rel (%p388) target = $region20
        $region19: #{tpu_custom_call.1} parent=11 // pred_region
          _
        $region20: #{tpu_custom_call.1} parent=11 // pred_fallthru
          _
        // Predicated region
        $region21: #{tpu_custom_call.1} parent=11 // pred_check
          %p391 = pneg %p113
        $region22: #{tpu_custom_call.1} parent=11 // pred_check_branch
          %393 = sbr.rel (%p391) target = $region24
        $region23: #{tpu_custom_call.1} parent=11 // pred_region
          _
        $region24: #{tpu_custom_call.1} parent=11 // pred_fallthru
          _
        // Predicated region
        $region25: #{tpu_custom_call.1} parent=11 // pred_check
          %p394 = pneg %p134
        $region26: #{tpu_custom_call.1} parent=11 // pred_check_branch
          %396 = sbr.rel (%p394) target = $region28
        $region27: #{tpu_custom_call.1} parent=11 // pred_region
          _
        $region28: #{tpu_custom_call.1} parent=11 // pred_fallthru
          _
        // Predicated region
        $region29: #{tpu_custom_call.1} parent=11 // pred_check
          %p397 = pneg %p155
        $region30: #{tpu_custom_call.1} parent=11 // pred_check_branch
          %399 = sbr.rel (%p397) target = $region32
        $region31: #{tpu_custom_call.1} parent=11 // pred_region
          _
        $region32: #{tpu_custom_call.1} parent=11 // pred_fallthru
          _
        // Predicated region
        $region33: #{tpu_custom_call.1} parent=11 // pred_check
          %p400 = pneg %p176
        $region34: #{tpu_custom_call.1} parent=11 // pred_check_branch
          %402 = sbr.rel (%p400) target = $region36
        $region35: #{tpu_custom_call.1} parent=11 // pred_region
          _
        $region36: #{tpu_custom_call.1} parent=11 // pred_fallthru
          _
        // Predicated region
        $region37: #{tpu_custom_call.1} parent=11 // pred_check
          %p403 = pneg %p197
        $region38: #{tpu_custom_call.1} parent=11 // pred_check_branch
          %405 = sbr.rel (%p403) target = $region40
        $region39: #{tpu_custom_call.1} parent=11 // pred_region
          _
        $region40: #{tpu_custom_call.1} parent=11 // pred_fallthru
          _
        // Predicated region
        $region41: #{tpu_custom_call.1} parent=11 // pred_check
          %p406 = pneg %p218
        $region42: #{tpu_custom_call.1} parent=11 // pred_check_branch
          %408 = sbr.rel (%p406) target = $region44
        $region43: #{tpu_custom_call.1} parent=11 // pred_region
          _
        $region44: #{tpu_custom_call.1} parent=11 // pred_fallthru
          _
        // Predicated region
        $region45: #{tpu_custom_call.1} parent=11 // pred_check
          %p409 = pneg %p239
        $region46: #{tpu_custom_call.1} parent=11 // pred_check_branch
          %411 = sbr.rel (%p409) target = $region48
        $region47: #{tpu_custom_call.1} parent=11 // pred_region
          _
        $region48: #{tpu_custom_call.1} parent=11 // pred_fallthru
          _
        // Predicated region
        $region49: #{tpu_custom_call.1} parent=11 // pred_check
          %p412 = pneg %p260
        $region50: #{tpu_custom_call.1} parent=11 // pred_check_branch
          %414 = sbr.rel (%p412) target = $region52
        $region51: #{tpu_custom_call.1} parent=11 // pred_region
          _
        $region52: #{tpu_custom_call.1} parent=11 // pred_fallthru
          _
        // Predicated region
        $region53: #{tpu_custom_call.1} parent=11 // pred_check
          %p415 = pneg %p281
        $region54: #{tpu_custom_call.1} parent=11 // pred_check_branch
          %417 = sbr.rel (%p415) target = $region56
        $region55: #{tpu_custom_call.1} parent=11 // pred_region
          _
        $region56: #{tpu_custom_call.1} parent=11 // pred_fallthru
          _
        // Predicated region
        $region57: #{tpu_custom_call.1} parent=11 // pred_check
          %p418 = pneg %p302
        $region58: #{tpu_custom_call.1} parent=11 // pred_check_branch
          %420 = sbr.rel (%p418) target = $region60
        $region59: #{tpu_custom_call.1} parent=11 // pred_region
          _
        $region60: #{tpu_custom_call.1} parent=11 // pred_fallthru
          _
        // Predicated region
        $region61: #{tpu_custom_call.1} parent=11 // pred_check
          %p421 = pneg %p323
        $region62: #{tpu_custom_call.1} parent=11 // pred_check_branch
          %423 = sbr.rel (%p421) target = $region64
        $region63: #{tpu_custom_call.1} parent=11 // pred_region
          _
        $region64: #{tpu_custom_call.1} parent=11 // pred_fallthru
          _
        // Predicated region
        $region65: #{tpu_custom_call.1} parent=11 // pred_check
          %p424 = pneg %p344
        $region66: #{tpu_custom_call.1} parent=11 // pred_check_branch
          %426 = sbr.rel (%p424) target = $region68
        $region67: #{tpu_custom_call.1} parent=11 // pred_region
          _
        $region68: #{tpu_custom_call.1} parent=11 // pred_fallthru
          _
      $region12: #{tpu_custom_call.1} parent=5 // pred_fallthru
        _
      %p427 = scmp.lt.s32.totalorder %s24, 2
      // Predicated region
      $region69: #{tpu_custom_call.1} parent=5 // pred_check
        %p428 = pneg %p427
      $region70: #{tpu_custom_call.1} parent=5 // pred_check_branch
        %430 = sbr.rel (%p428) target = $region72
      $region71: #{tpu_custom_call.1} parent=5 // pred_region
        // Predicated region
        $region73: #{tpu_custom_call.1} parent=71 // pred_check
          %p431 = pneg %p44
        $region74: #{tpu_custom_call.1} parent=71 // pred_check_branch
          %433 = sbr.rel (%p431) target = $region76
        $region75: #{tpu_custom_call.1} parent=71 // pred_region
          %p434 = scmp.lt.s32.totalorder %s24, 1
          %s435 = scalar_select %p434, %s24, 1
          %s436 = smul.addr %s435, 16
          %s437 = smul.addr %s436, 4
          %s438 = scalar_lea.vmem %s0, %s437
        $region76: #{tpu_custom_call.1} parent=71 // pred_fallthru
          _
      $region72: #{tpu_custom_call.1} parent=5 // pred_fallthru
        _
      %p439 = scmp.le.s32.totalorder 1, %s24
      %p440 = scmp.lt.s32.totalorder %s24, 3
      %p441 = pnand %p439, %p440
      %p442 = pneg %p441
      // Predicated region
      $region77: #{tpu_custom_call.1} parent=5 // pred_check
        _
      $region78: #{tpu_custom_call.1} parent=5 // pred_check_branch
        %444 = sbr.rel (%p441) target = $region80
      $region79: #{tpu_custom_call.1} parent=5 // pred_region
        %s445 = ssub.s32 %s24, 1
        %p446 = scmp.lt.s32.totalorder %s29, 1
        %s447 = scalar_select %p446, %s29, 1
        %s448 = smul.addr %s447, 16
        %s449 = smul.addr %s448, 4
        %s450 = scalar_lea.vmem %s0, %s449
        %p451 = pneg %p50
        %p452 = pneg %p47
        %p453 = pneg %p71
        %p454 = pneg %p68
        %p455 = pneg %p92
        %p456 = pneg %p89
        %p457 = pneg %p113
        %p458 = pneg %p110
        %p459 = pneg %p134
        %p460 = pneg %p131
        %p461 = pneg %p155
        %p462 = pneg %p152
        %p463 = pneg %p176
        %p464 = pneg %p173
        %p465 = pneg %p197
        %p466 = pneg %p194
        %p467 = pneg %p218
        %p468 = pneg %p215
        %p469 = pneg %p239
        %p470 = pneg %p236
        %p471 = pneg %p260
        %p472 = pneg %p257
        %p473 = pneg %p281
        %p474 = pneg %p278
        %p475 = pneg %p302
        %p476 = pneg %p299
        %p477 = pneg %p323
        %p478 = pneg %p320
        %p479 = pneg %p344
        %p480 = pneg %p341
        %p481 = pneg %p370
        %p482 = pneg %p367
        %s483 = sand.u32 %s357, 1
        %s484 = scalar_lea.sflag [#allocation3], %s483
        %s485 = sand.u32 %s357, 1
        %s486 = smul.addr %s485, 8
        %s487 = scalar_lea.vmem [#allocation2], %s486
        %p488 = scmp.lt.s32.totalorder %s29, 1
        %s489 = scalar_select %p488, %s29, 1
        %s490 = smul.addr %s489, 16
        %s491 = smul.addr %s490, 4
        %s492 = scalar_lea.vmem %s0, %s491
        %v494 = vld [vmem:[%s492] sm:$0xf]
        %v495 = vld [vmem:[%s492 + $0x4] sm:$0xf]
        %v496 = vld [vmem:[%s492 + $0x8] sm:$0xf]
        %v497 = vld [vmem:[%s492 + $0xc] sm:$0xf]
        %v498 = vld [vmem:[%s492 + $0x10] sm:$0xf]
        %v499 = vld [vmem:[%s492 + $0x14] sm:$0xf]
        %v500 = vld [vmem:[%s492 + $0x18] sm:$0xf]
        %v501 = vld [vmem:[%s492 + $0x1c] sm:$0xf]
        %v502 = vld [vmem:[%s492 + $0x20] sm:$0xf]
        %v503 = vld [vmem:[%s492 + $0x24] sm:$0xf]
        %v504 = vld [vmem:[%s492 + $0x28] sm:$0xf]
        %v505 = vld [vmem:[%s492 + $0x2c] sm:$0xf]
        %v506 = vld [vmem:[%s492 + $0x30] sm:$0xf]
        %v507 = vld [vmem:[%s492 + $0x34] sm:$0xf]
        %v508 = vld [vmem:[%s492 + $0x38] sm:$0xf]
        %v509 = vld [vmem:[%s492 + $0x3c] sm:$0xf]
        %v510 = vld [vmem:[%s1] sm:$0xf]
        %v511 = vld [vmem:[%s1 + $0x4] sm:$0xf]
        %v512 = vld [vmem:[%s1 + $0x8] sm:$0xf]
        %v513 = vld [vmem:[%s1 + $0xc] sm:$0xf]
        %v514 = vld [vmem:[%s1 + $0x10] sm:$0xf]
        %v515 = vld [vmem:[%s1 + $0x14] sm:$0xf]
        %v532 = vunpack.c.l.b16 %v494
        %v533 = vunpack.c.l.b16 %v495
        %v534 = vunpack.c.l.b16 %v496
        %v535 = vunpack.c.l.b16 %v497
        %v536 = vunpack.c.l.b16 %v498
        %v537 = vunpack.c.l.b16 %v499
        %v538 = vunpack.c.l.b16 %v500
        %v539 = vunpack.c.l.b16 %v501
        %v540 = vunpack.c.l.b16 %v502
        %v541 = vunpack.c.l.b16 %v503
        %v542 = vunpack.c.l.b16 %v504
        %v543 = vunpack.c.l.b16 %v505
        %v544 = vunpack.c.l.b16 %v506
        %v545 = vunpack.c.l.b16 %v507
        %v546 = vunpack.c.l.b16 %v508
        %v547 = vunpack.c.l.b16 %v509
        %v548 = vpack.c.b16 %v533, %v532
        %v549 = vpack.c.b16 %v535, %v534
        %v550 = vpack.c.b16 %v537, %v536
        %v551 = vpack.c.b16 %v539, %v538
        %v552 = vpack.c.b16 %v541, %v540
        %v553 = vpack.c.b16 %v543, %v542
        %v554 = vpack.c.b16 %v545, %v544
        %v555 = vpack.c.b16 %v547, %v546
        %v562 = vunpack.c.l.b16 %v510
        %v563 = vunpack.c.l.b16 %v511
        %v564 = vunpack.c.l.b16 %v512
        %v565 = vunpack.c.l.b16 %v513
        %v566 = vunpack.c.l.b16 %v514
        %v567 = vunpack.c.l.b16 %v515
        %v568 = vpack.c.b16 %v563, %v562
        %v569 = vpack.c.b16 %v565, %v564
        %v570 = vpack.c.b16 %v567, %v566
        %vm574 = vcmask 392192
        %v576 = vsel %vm574, %v548, 0
        %v579 = vsel %vm574, %v549, 0
        %v582 = vsel %vm574, %v550, 0
        %v585 = vsel %vm574, %v551, 0
        %v588 = vsel %vm574, %v552, 0
        %v591 = vsel %vm574, %v553, 0
        %v594 = vsel %vm574, %v554, 0
        %v597 = vsel %vm574, %v555, 0
        %599 = vmatprep.subr.bf16.mxu0 0
        %600 = vmatpush1.bf16.msra.mxu0 0
        %601 = vmatprep.subr.bf16.mxu0 0
        %602 = vmatpush1.bf16.msra.mxu0 0
        %603 = vmatprep.subr.bf16.mxu0 0
        %604 = vmatpush1.bf16.msra.mxu0 0
        %605 = vmatprep.subr.bf16.mxu0 0
        %606 = vmatpush1.bf16.msra.mxu0 0
        %607 = vmatprep.subr.bf16.mxu0 0
        %608 = vmatpush1.bf16.msra.mxu0 0
        %609 = vmatprep.subr.bf16.mxu0 0
        %610 = vmatpush1.bf16.msra.mxu0 %v570
        %611 = vmatprep.subr.bf16.mxu0 0
        %612 = vmatpush1.bf16.msra.mxu0 %v569
        %613 = vmatprep.subr.bf16.mxu0 0
        %614 = vmatpush1.bf16.msra.mxu0 %v568
        %615 = vmatprep.subr.bf16.mxu0 0
        %616 = vmatpush2.bf16.msra.mxu0 0
        %617 = vmatprep.subr.bf16.mxu0 0
        %618 = vmatpush2.bf16.msra.mxu0 0
        %619 = vmatprep.subr.bf16.mxu0 0
        %620 = vmatpush2.bf16.msra.mxu0 0
        %621 = vmatprep.subr.bf16.mxu0 0
        %622 = vmatpush2.bf16.msra.mxu0 0
        %623 = vmatprep.subr.bf16.mxu0 0
        %624 = vmatpush2.bf16.msra.mxu0 0
        %625 = vmatprep.subr.bf16.mxu0 0
        %626 = vmatpush2.bf16.msra.mxu0 0
        %627 = vmatprep.subr.bf16.mxu0 0
        %628 = vmatpush2.bf16.msra.mxu0 0
        %629 = vmatprep.subr.bf16.mxu0 0
        %630 = vmatpush2.bf16.msra.mxu0 0
        %631 = vmatprep.mubr.bf16.mxu0 0
        %632 = vmatmul.mubr.bf16.gmra.mxu0 %v576
        %v633 = vpop.f32.mrf.mxu0
        %v634 = vadd.f32 0.0, %v633
        %v635 = vpop.f32.mrf.mxu0
        %v636 = vpop.f32.mrf.mxu0
        %v637 = vadd.f32 0.0, %v636
        %v638 = vpop.f32.mrf.mxu0
        %639 = vmatprep.mubr.bf16.mxu0 0
        %640 = vmatmul.mubr.bf16.gmra.mxu0 %v579
        %v641 = vpop.f32.mrf.mxu0
        %v642 = vadd.f32 0.0, %v641
        %v643 = vpop.f32.mrf.mxu0
        %v644 = vpop.f32.mrf.mxu0
        %v645 = vadd.f32 0.0, %v644
        %v646 = vpop.f32.mrf.mxu0
        %647 = vmatprep.mubr.bf16.mxu0 0
        %648 = vmatmul.mubr.bf16.gmra.mxu0 %v582
        %v649 = vpop.f32.mrf.mxu0
        %v650 = vadd.f32 0.0, %v649
        %v651 = vpop.f32.mrf.mxu0
        %v652 = vpop.f32.mrf.mxu0
        %v653 = vadd.f32 0.0, %v652
        %v654 = vpop.f32.mrf.mxu0
        %655 = vmatprep.mubr.bf16.mxu0 0
        %656 = vmatmul.mubr.bf16.gmra.mxu0 %v585
        %v657 = vpop.f32.mrf.mxu0
        %v658 = vadd.f32 0.0, %v657
        %v659 = vpop.f32.mrf.mxu0
        %v660 = vpop.f32.mrf.mxu0
        %v661 = vadd.f32 0.0, %v660
        %v662 = vpop.f32.mrf.mxu0
        %663 = vmatprep.mubr.bf16.mxu0 0
        %664 = vmatmul.mubr.bf16.gmra.mxu0 %v588
        %v665 = vpop.f32.mrf.mxu0
        %v666 = vadd.f32 0.0, %v665
        %v667 = vpop.f32.mrf.mxu0
        %v668 = vpop.f32.mrf.mxu0
        %v669 = vadd.f32 0.0, %v668
        %v670 = vpop.f32.mrf.mxu0
        %671 = vmatprep.mubr.bf16.mxu0 0
        %672 = vmatmul.mubr.bf16.gmra.mxu0 %v591
        %v673 = vpop.f32.mrf.mxu0
        %v674 = vadd.f32 0.0, %v673
        %v675 = vpop.f32.mrf.mxu0
        %v676 = vpop.f32.mrf.mxu0
        %v677 = vadd.f32 0.0, %v676
        %v678 = vpop.f32.mrf.mxu0
        %679 = vmatprep.mubr.bf16.mxu0 0
        %680 = vmatmul.mubr.bf16.gmra.mxu0 %v594
        %v681 = vpop.f32.mrf.mxu0
        %v682 = vadd.f32 0.0, %v681
        %v683 = vpop.f32.mrf.mxu0
        %v684 = vpop.f32.mrf.mxu0
        %v685 = vadd.f32 0.0, %v684
        %v686 = vpop.f32.mrf.mxu0
        %687 = vmatprep.mubr.bf16.mxu0 0
        %688 = vmatmul.mubr.bf16.gmra.mxu0 %v597
        %v689 = vpop.f32.mrf.mxu0
        %v690 = vadd.f32 0.0, %v689
        %v691 = vpop.f32.mrf.mxu0
        %v692 = vpop.f32.mrf.mxu0
        %v693 = vadd.f32 0.0, %v692
        %v694 = vpop.f32.mrf.mxu0
        %695 = vdwg.mxu0
        %v696 = vld [vmem:[%s3] sm:$0xff]
        %v697 = vld [vmem:[%s3 + $0x8] sm:$0xff]
        %v698 = vld [vmem:[%s3 + $0x10] sm:$0xff]
        %v699 = vld [vmem:[%s3 + $0x18] sm:$0xff]
        %v700 = vld [vmem:[%s3 + $0x20] sm:$0xff]
        %v701 = vld [vmem:[%s3 + $0x28] sm:$0xff]
        %v702 = vld [vmem:[%s3 + $0x30] sm:$0xff]
        %v703 = vld [vmem:[%s3 + $0x38] sm:$0xff]
        %v704 = vld [vmem:[%s3 + $0x40] sm:$0xff]
        %v705 = vld [vmem:[%s3 + $0x48] sm:$0xff]
        %v706 = vld [vmem:[%s3 + $0x50] sm:$0xff]
        %v707 = vld [vmem:[%s3 + $0x58] sm:$0xff]
        %v708 = vld [vmem:[%s3 + $0x60] sm:$0xff]
        %v709 = vld [vmem:[%s3 + $0x68] sm:$0xff]
        %v710 = vld [vmem:[%s3 + $0x70] sm:$0xff]
        %v711 = vld [vmem:[%s3 + $0x78] sm:$0xff]
        %v712 = vld [vmem:[%s4] sm:$0xff]
        %v713 = vld [vmem:[%s7] sm:$0xff]
        %v714 = vld [vmem:[%s7 + $0x8] sm:$0xff]
        %v715 = vld [vmem:[%s7 + $0x10] sm:$0xff]
        %v716 = vld [vmem:[%s7 + $0x18] sm:$0xff]
        %v717 = vld [vmem:[%s8] sm:$0xf]
        %v718 = vld [vmem:[%s11] sm:$0x1]
        %v719 = vld [vmem:[%s12] sm:$0x1]
        %720 = vmatprep.subr.mxu0 0.0
        %721 = vmatpush1.msra.mxu0 %v693
        %722 = vmatprep.subr.mxu0 0.0
        %723 = vmatpush1.msra.mxu0 %v690
        %724 = vmatprep.subr.mxu0 0.0
        %725 = vmatpush1.msra.mxu0 %v685
        %726 = vmatprep.subr.mxu0 0.0
        %727 = vmatpush1.msra.mxu0 %v682
        %728 = vmatprep.subr.mxu0 0.0
        %729 = vmatpush1.msra.mxu0 %v677
        %730 = vmatprep.subr.mxu0 0.0
        %731 = vmatpush1.msra.mxu0 %v674
        %732 = vmatprep.subr.mxu0 0.0
        %733 = vmatpush1.msra.mxu0 %v669
        %734 = vmatprep.subr.mxu0 0.0
        %735 = vmatpush1.msra.mxu0 %v666
        %736 = vmatprep.subr.mxu0 0.0
        %737 = vmatpush1.msra.mxu0 %v661
        %738 = vmatprep.subr.mxu0 0.0
        %739 = vmatpush1.msra.mxu0 %v658
        %740 = vmatprep.subr.mxu0 0.0
        %741 = vmatpush1.msra.mxu0 %v653
        %742 = vmatprep.subr.mxu0 0.0
        %743 = vmatpush1.msra.mxu0 %v650
        %744 = vmatprep.subr.mxu0 0.0
        %745 = vmatpush1.msra.mxu0 %v645
        %746 = vmatprep.subr.mxu0 0.0
        %747 = vmatpush1.msra.mxu0 %v642
        %748 = vmatprep.subr.mxu0 0.0
        %749 = vmatpush1.msra.mxu0 %v637
        %750 = vmatprep.subr.mxu0 0.0
        %751 = vmatpush1.msra.mxu0 %v634
        %752 = vmatprep.subr.mxu0 0.0
        %753 = vmatpush2.msra.mxu0 0.0
        %754 = vmatprep.subr.mxu0 0.0
        %755 = vmatpush2.msra.mxu0 0.0
        %756 = vmatprep.subr.mxu0 0.0
        %757 = vmatpush2.msra.mxu0 0.0
        %758 = vmatprep.subr.mxu0 0.0
        %759 = vmatpush2.msra.mxu0 0.0
        %760 = vmatprep.subr.mxu0 0.0
        %761 = vmatpush2.msra.mxu0 0.0
        %762 = vmatprep.subr.mxu0 0.0
        %763 = vmatpush2.msra.mxu0 0.0
        %764 = vmatprep.subr.mxu0 0.0
        %765 = vmatpush2.msra.mxu0 0.0
        %766 = vmatprep.subr.mxu0 0.0
        %767 = vmatpush2.msra.mxu0 0.0
        %768 = vmatprep.subr.mxu0 0.0
        %769 = vmatpush2.msra.mxu0 0.0
        %770 = vmatprep.subr.mxu0 0.0
        %771 = vmatpush2.msra.mxu0 0.0
        %772 = vmatprep.subr.mxu0 0.0
        %773 = vmatpush2.msra.mxu0 0.0
        %774 = vmatprep.subr.mxu0 0.0
        %775 = vmatpush2.msra.mxu0 0.0
        %776 = vmatprep.subr.mxu0 0.0
        %777 = vmatpush2.msra.mxu0 0.0
        %778 = vmatprep.subr.mxu0 0.0
        %779 = vmatpush2.msra.mxu0 0.0
        %780 = vmatprep.subr.mxu0 0.0
        %781 = vmatpush2.msra.mxu0 0.0
        %782 = vmatprep.subr.mxu0 0.0
        %783 = vmatpush2.msra.mxu0 0.0
        %784 = vmatprep.mubr.f32.mxu0 0.0
        %785 = vmatmul.mubr.f32.gmra.mxu0 %v712
        %v786 = vpop.f32.mrf.mxu0
        %v787 = vadd.f32 0.0, %v786
        %v788 = vpop.f32.mrf.mxu0
        %789 = vdwg.mxu0
        %v790 = vmul.f32 %v634, %v634
        %v791 = vmul.f32 %v637, %v637
        %v792 = vmul.f32 %v642, %v642
        %v793 = vmul.f32 %v645, %v645
        %v794 = vmul.f32 %v650, %v650
        %v795 = vmul.f32 %v653, %v653
        %v796 = vmul.f32 %v658, %v658
        %v797 = vmul.f32 %v661, %v661
        %v798 = vmul.f32 %v666, %v666
        %v799 = vmul.f32 %v669, %v669
        %v800 = vmul.f32 %v674, %v674
        %v801 = vmul.f32 %v677, %v677
        %v802 = vmul.f32 %v682, %v682
        %v803 = vmul.f32 %v685, %v685
        %v804 = vmul.f32 %v690, %v690
        %v805 = vmul.f32 %v693, %v693
        %806 = vmatprep.subr.mxu0 0.0
        %807 = vmatpush1.msra.mxu0 %v805
        %808 = vmatprep.subr.mxu0 0.0
        %809 = vmatpush1.msra.mxu0 %v804
        %810 = vmatprep.subr.mxu0 0.0
        %811 = vmatpush1.msra.mxu0 %v803
        %812 = vmatprep.subr.mxu0 0.0
        %813 = vmatpush1.msra.mxu0 %v802
        %814 = vmatprep.subr.mxu0 0.0
        %815 = vmatpush1.msra.mxu0 %v801
        %816 = vmatprep.subr.mxu0 0.0
        %817 = vmatpush1.msra.mxu0 %v800
        %818 = vmatprep.subr.mxu0 0.0
        %819 = vmatpush1.msra.mxu0 %v799
        %820 = vmatprep.subr.mxu0 0.0
        %821 = vmatpush1.msra.mxu0 %v798
        %822 = vmatprep.subr.mxu0 0.0
        %823 = vmatpush1.msra.mxu0 %v797
        %824 = vmatprep.subr.mxu0 0.0
        %825 = vmatpush1.msra.mxu0 %v796
        %826 = vmatprep.subr.mxu0 0.0
        %827 = vmatpush1.msra.mxu0 %v795
        %828 = vmatprep.subr.mxu0 0.0
        %829 = vmatpush1.msra.mxu0 %v794
        %830 = vmatprep.subr.mxu0 0.0
        %831 = vmatpush1.msra.mxu0 %v793
        %832 = vmatprep.subr.mxu0 0.0
        %833 = vmatpush1.msra.mxu0 %v792
        %834 = vmatprep.subr.mxu0 0.0
        %835 = vmatpush1.msra.mxu0 %v791
        %836 = vmatprep.subr.mxu0 0.0
        %837 = vmatpush1.msra.mxu0 %v790
        %838 = vmatprep.subr.mxu0 0.0
        %839 = vmatpush2.msra.mxu0 0.0
        %840 = vmatprep.subr.mxu0 0.0
        %841 = vmatpush2.msra.mxu0 0.0
        %842 = vmatprep.subr.mxu0 0.0
        %843 = vmatpush2.msra.mxu0 0.0
        %844 = vmatprep.subr.mxu0 0.0
        %845 = vmatpush2.msra.mxu0 0.0
        %846 = vmatprep.subr.mxu0 0.0
        %847 = vmatpush2.msra.mxu0 0.0
        %848 = vmatprep.subr.mxu0 0.0
        %849 = vmatpush2.msra.mxu0 0.0
        %850 = vmatprep.subr.mxu0 0.0
        %851 = vmatpush2.msra.mxu0 0.0
        %852 = vmatprep.subr.mxu0 0.0
        %853 = vmatpush2.msra.mxu0 0.0
        %854 = vmatprep.subr.mxu0 0.0
        %855 = vmatpush2.msra.mxu0 0.0
        %856 = vmatprep.subr.mxu0 0.0
        %857 = vmatpush2.msra.mxu0 0.0
        %858 = vmatprep.subr.mxu0 0.0
        %859 = vmatpush2.msra.mxu0 0.0
        %860 = vmatprep.subr.mxu0 0.0
        %861 = vmatpush2.msra.mxu0 0.0
        %862 = vmatprep.subr.mxu0 0.0
        %863 = vmatpush2.msra.mxu0 0.0
        %864 = vmatprep.subr.mxu0 0.0
        %865 = vmatpush2.msra.mxu0 0.0
        %866 = vmatprep.subr.mxu0 0.0
        %867 = vmatpush2.msra.mxu0 0.0
        %868 = vmatprep.subr.mxu0 0.0
        %869 = vmatpush2.msra.mxu0 0.0
        %870 = vmatprep.mubr.f32.mxu0 0.0
        %871 = vmatmul.mubr.f32.gmra.mxu0 %v712
        %v872 = vpop.f32.mrf.mxu0
        %v873 = vadd.f32 0.0, %v872
        %v874 = vpop.f32.mrf.mxu0
        %875 = vdwg.mxu0
        %vm876 = vcmask 261120
        %v878 = vsel %vm876, %v787, 0
        %880 = vmatprep.subr.mxu0 0.0
        %881 = vmatpush1.msra.mxu0 0.0
        %882 = vmatprep.subr.mxu0 0.0
        %883 = vmatpush1.msra.mxu0 0.0
        %884 = vmatprep.subr.mxu0 0.0
        %885 = vmatpush1.msra.mxu0 0.0
        %886 = vmatprep.subr.mxu0 0.0
        %887 = vmatpush1.msra.mxu0 0.0
        %888 = vmatprep.subr.mxu0 0.0
        %889 = vmatpush1.msra.mxu0 0.0
        %890 = vmatprep.subr.mxu0 0.0
        %891 = vmatpush1.msra.mxu0 0.0
        %892 = vmatprep.subr.mxu0 0.0
        %893 = vmatpush1.msra.mxu0 0.0
        %894 = vmatprep.subr.mxu0 0.0
        %895 = vmatpush1.msra.mxu0 0.0
        %896 = vmatprep.subr.mxu0 0.0
        %897 = vmatpush1.msra.mxu0 0.0
        %898 = vmatprep.subr.mxu0 0.0
        %899 = vmatpush1.msra.mxu0 0.0
        %900 = vmatprep.subr.mxu0 0.0
        %901 = vmatpush1.msra.mxu0 0.0
        %902 = vmatprep.subr.mxu0 0.0
        %903 = vmatpush1.msra.mxu0 0.0
        %904 = vmatprep.subr.mxu0 0.0
        %905 = vmatpush1.msra.mxu0 %v716
        %906 = vmatprep.subr.mxu0 0.0
        %907 = vmatpush1.msra.mxu0 %v715
        %908 = vmatprep.subr.mxu0 0.0
        %909 = vmatpush1.msra.mxu0 %v714
        %910 = vmatprep.subr.mxu0 0.0
        %911 = vmatpush1.msra.mxu0 %v713
        %912 = vmatprep.subr.mxu0 0.0
        %913 = vmatpush2.msra.mxu0 0.0
        %914 = vmatprep.subr.mxu0 0.0
        %915 = vmatpush2.msra.mxu0 0.0
        %916 = vmatprep.subr.mxu0 0.0
        %917 = vmatpush2.msra.mxu0 0.0
        %918 = vmatprep.subr.mxu0 0.0
        %919 = vmatpush2.msra.mxu0 0.0
        %920 = vmatprep.subr.mxu0 0.0
        %921 = vmatpush2.msra.mxu0 0.0
        %922 = vmatprep.subr.mxu0 0.0
        %923 = vmatpush2.msra.mxu0 0.0
        %924 = vmatprep.subr.mxu0 0.0
        %925 = vmatpush2.msra.mxu0 0.0
        %926 = vmatprep.subr.mxu0 0.0
        %927 = vmatpush2.msra.mxu0 0.0
        %928 = vmatprep.subr.mxu0 0.0
        %929 = vmatpush2.msra.mxu0 0.0
        %930 = vmatprep.subr.mxu0 0.0
        %931 = vmatpush2.msra.mxu0 0.0
        %932 = vmatprep.subr.mxu0 0.0
        %933 = vmatpush2.msra.mxu0 0.0
        %934 = vmatprep.subr.mxu0 0.0
        %935 = vmatpush2.msra.mxu0 0.0
        %936 = vmatprep.subr.mxu0 0.0
        %937 = vmatpush2.msra.mxu0 0.0
        %938 = vmatprep.subr.mxu0 0.0
        %939 = vmatpush2.msra.mxu0 0.0
        %940 = vmatprep.subr.mxu0 0.0
        %941 = vmatpush2.msra.mxu0 0.0
        %942 = vmatprep.subr.mxu0 0.0
        %943 = vmatpush2.msra.mxu0 0.0
        %944 = vmatprep.mubr.f32.mxu0 0.0
        %945 = vmatmul.mubr.f32.gmra.mxu0 %v878
        %v946 = vpop.f32.mrf.mxu0
        %v947 = vadd.f32 0.0, %v946
        %v948 = vpop.f32.mrf.mxu0
        %949 = vdwg.mxu0
        %v951 = vsel %vm876, %v873, 0
        %953 = vmatprep.subr.mxu0 0.0
        %954 = vmatpush1.msra.mxu0 0.0
        %955 = vmatprep.subr.mxu0 0.0
        %956 = vmatpush1.msra.mxu0 0.0
        %957 = vmatprep.subr.mxu0 0.0
        %958 = vmatpush1.msra.mxu0 0.0
        %959 = vmatprep.subr.mxu0 0.0
        %960 = vmatpush1.msra.mxu0 0.0
        %961 = vmatprep.subr.mxu0 0.0
        %962 = vmatpush1.msra.mxu0 0.0
        %963 = vmatprep.subr.mxu0 0.0
        %964 = vmatpush1.msra.mxu0 0.0
        %965 = vmatprep.subr.mxu0 0.0
        %966 = vmatpush1.msra.mxu0 0.0
        %967 = vmatprep.subr.mxu0 0.0
        %968 = vmatpush1.msra.mxu0 0.0
        %969 = vmatprep.subr.mxu0 0.0
        %970 = vmatpush1.msra.mxu0 0.0
        %971 = vmatprep.subr.mxu0 0.0
        %972 = vmatpush1.msra.mxu0 0.0
        %973 = vmatprep.subr.mxu0 0.0
        %974 = vmatpush1.msra.mxu0 0.0
        %975 = vmatprep.subr.mxu0 0.0
        %976 = vmatpush1.msra.mxu0 0.0
        %977 = vmatprep.subr.mxu0 0.0
        %978 = vmatpush1.msra.mxu0 %v716
        %979 = vmatprep.subr.mxu0 0.0
        %980 = vmatpush1.msra.mxu0 %v715
        %981 = vmatprep.subr.mxu0 0.0
        %982 = vmatpush1.msra.mxu0 %v714
        %983 = vmatprep.subr.mxu0 0.0
        %984 = vmatpush1.msra.mxu0 %v713
        %985 = vmatprep.subr.mxu0 0.0
        %986 = vmatpush2.msra.mxu0 0.0
        %987 = vmatprep.subr.mxu0 0.0
        %988 = vmatpush2.msra.mxu0 0.0
        %989 = vmatprep.subr.mxu0 0.0
        %990 = vmatpush2.msra.mxu0 0.0
        %991 = vmatprep.subr.mxu0 0.0
        %992 = vmatpush2.msra.mxu0 0.0
        %993 = vmatprep.subr.mxu0 0.0
        %994 = vmatpush2.msra.mxu0 0.0
        %995 = vmatprep.subr.mxu0 0.0
        %996 = vmatpush2.msra.mxu0 0.0
        %997 = vmatprep.subr.mxu0 0.0
        %998 = vmatpush2.msra.mxu0 0.0
        %999 = vmatprep.subr.mxu0 0.0
        %1000 = vmatpush2.msra.mxu0 0.0
        %1001 = vmatprep.subr.mxu0 0.0
        %1002 = vmatpush2.msra.mxu0 0.0
        %1003 = vmatprep.subr.mxu0 0.0
        %1004 = vmatpush2.msra.mxu0 0.0
        %1005 = vmatprep.subr.mxu0 0.0
        %1006 = vmatpush2.msra.mxu0 0.0
        %1007 = vmatprep.subr.mxu0 0.0
        %1008 = vmatpush2.msra.mxu0 0.0
        %1009 = vmatprep.subr.mxu0 0.0
        %1010 = vmatpush2.msra.mxu0 0.0
        %1011 = vmatprep.subr.mxu0 0.0
        %1012 = vmatpush2.msra.mxu0 0.0
        %1013 = vmatprep.subr.mxu0 0.0
        %1014 = vmatpush2.msra.mxu0 0.0
        %1015 = vmatprep.subr.mxu0 0.0
        %1016 = vmatpush2.msra.mxu0 0.0
        %1017 = vmatprep.mubr.f32.mxu0 0.0
        %1018 = vmatmul.mubr.f32.gmra.mxu0 %v951
        %v1019 = vpop.f32.mrf.mxu0
        %v1020 = vadd.f32 0.0, %v1019
        %v1021 = vpop.f32.mrf.mxu0
        %1022 = vdwg.mxu0
        %v1023 = vmul.f32 %v947, 0.0078125
        %v1024 = vmul.f32 %v1020, 0.0078125
        %v1025 = vmul.f32 %v1023, %v1023
        %v1026 = vsub.f32 %v1024, %v1025
        %v1027 = vmax.f32 %v1026, 0.0
        %v1028 = vadd.f32 %v1027, 1e-05
        %v1029 = vrsqrt.pop %v1028
        %vm1030 = vcmask 31744
        %v1032 = vsel %vm1030, %v1023, 0
        %vm1034 = vcmask 1043456
        %v1036 = vsel %vm1034, %v717, 0
        %1038 = vmatprep.subr.mxu0 0.0
        %1039 = vmatpush1.msra.mxu0 0.0
        %1040 = vmatprep.subr.mxu0 0.0
        %1041 = vmatpush1.msra.mxu0 0.0
        %1042 = vmatprep.subr.mxu0 0.0
        %1043 = vmatpush1.msra.mxu0 0.0
        %1044 = vmatprep.subr.mxu0 0.0
        %1045 = vmatpush1.msra.mxu0 0.0
        %1046 = vmatprep.subr.mxu0 0.0
        %1047 = vmatpush1.msra.mxu0 0.0
        %1048 = vmatprep.subr.mxu0 0.0
        %1049 = vmatpush1.msra.mxu0 0.0
        %1050 = vmatprep.subr.mxu0 0.0
        %1051 = vmatpush1.msra.mxu0 0.0
        %1052 = vmatprep.subr.mxu0 0.0
        %1053 = vmatpush1.msra.mxu0 0.0
        %1054 = vmatprep.subr.mxu0 0.0
        %1055 = vmatpush1.msra.mxu0 0.0
        %1056 = vmatprep.subr.mxu0 0.0
        %1057 = vmatpush1.msra.mxu0 0.0
        %1058 = vmatprep.subr.mxu0 0.0
        %1059 = vmatpush1.msra.mxu0 0.0
        %1060 = vmatprep.subr.mxu0 0.0
        %1061 = vmatpush1.msra.mxu0 0.0
        %1062 = vmatprep.subr.mxu0 0.0
        %1063 = vmatpush1.msra.mxu0 0.0
        %1064 = vmatprep.subr.mxu0 0.0
        %1065 = vmatpush1.msra.mxu0 0.0
        %1066 = vmatprep.subr.mxu0 0.0
        %1067 = vmatpush1.msra.mxu0 0.0
        %1068 = vmatprep.subr.mxu0 0.0
        %1069 = vmatpush1.msra.mxu0 %v1036
        %1070 = vmatprep.subr.mxu0 0.0
        %1071 = vmatpush2.msra.mxu0 0.0
        %1072 = vmatprep.subr.mxu0 0.0
        %1073 = vmatpush2.msra.mxu0 0.0
        %1074 = vmatprep.subr.mxu0 0.0
        %1075 = vmatpush2.msra.mxu0 0.0
        %1076 = vmatprep.subr.mxu0 0.0
        %1077 = vmatpush2.msra.mxu0 0.0
        %1078 = vmatprep.subr.mxu0 0.0
        %1079 = vmatpush2.msra.mxu0 0.0
        %1080 = vmatprep.subr.mxu0 0.0
        %1081 = vmatpush2.msra.mxu0 0.0
        %1082 = vmatprep.subr.mxu0 0.0
        %1083 = vmatpush2.msra.mxu0 0.0
        %1084 = vmatprep.subr.mxu0 0.0
        %1085 = vmatpush2.msra.mxu0 0.0
        %1086 = vmatprep.subr.mxu0 0.0
        %1087 = vmatpush2.msra.mxu0 0.0
        %1088 = vmatprep.subr.mxu0 0.0
        %1089 = vmatpush2.msra.mxu0 0.0
        %1090 = vmatprep.subr.mxu0 0.0
        %1091 = vmatpush2.msra.mxu0 0.0
        %1092 = vmatprep.subr.mxu0 0.0
        %1093 = vmatpush2.msra.mxu0 0.0
        %1094 = vmatprep.subr.mxu0 0.0
        %1095 = vmatpush2.msra.mxu0 0.0
        %1096 = vmatprep.subr.mxu0 0.0
        %1097 = vmatpush2.msra.mxu0 0.0
        %1098 = vmatprep.subr.mxu0 0.0
        %1099 = vmatpush2.msra.mxu0 0.0
        %1100 = vmatprep.subr.mxu0 0.0
        %1101 = vmatpush2.msra.mxu0 0.0
        %1102 = vmatprep.mubr.f32.mxu0 0.0
        %1103 = vmatmul.mubr.f32.gmra.mxu0 %v1032
        %v1104 = vpop.f32.mrf.mxu0
        %v1105 = vadd.f32 0.0, %v1104
        %v1106 = vpop.f32.mrf.mxu0
        %1107 = vdwg.mxu0
        %v1109 = vsel %vm1030, %v1029, 0
        %1111 = vmatprep.subr.mxu0 0.0
        %1112 = vmatpush1.msra.mxu0 0.0
        %1113 = vmatprep.subr.mxu0 0.0
        %1114 = vmatpush1.msra.mxu0 0.0
        %1115 = vmatprep.subr.mxu0 0.0
        %1116 = vmatpush1.msra.mxu0 0.0
        %1117 = vmatprep.subr.mxu0 0.0
        %1118 = vmatpush1.msra.mxu0 0.0
        %1119 = vmatprep.subr.mxu0 0.0
        %1120 = vmatpush1.msra.mxu0 0.0
        %1121 = vmatprep.subr.mxu0 0.0
        %1122 = vmatpush1.msra.mxu0 0.0
        %1123 = vmatprep.subr.mxu0 0.0
        %1124 = vmatpush1.msra.mxu0 0.0
        %1125 = vmatprep.subr.mxu0 0.0
        %1126 = vmatpush1.msra.mxu0 0.0
        %1127 = vmatprep.subr.mxu0 0.0
        %1128 = vmatpush1.msra.mxu0 0.0
        %1129 = vmatprep.subr.mxu0 0.0
        %1130 = vmatpush1.msra.mxu0 0.0
        %1131 = vmatprep.subr.mxu0 0.0
        %1132 = vmatpush1.msra.mxu0 0.0
        %1133 = vmatprep.subr.mxu0 0.0
        %1134 = vmatpush1.msra.mxu0 0.0
        %1135 = vmatprep.subr.mxu0 0.0
        %1136 = vmatpush1.msra.mxu0 0.0
        %1137 = vmatprep.subr.mxu0 0.0
        %1138 = vmatpush1.msra.mxu0 0.0
        %1139 = vmatprep.subr.mxu0 0.0
        %1140 = vmatpush1.msra.mxu0 0.0
        %1141 = vmatprep.subr.mxu0 0.0
        %1142 = vmatpush1.msra.mxu0 %v1036
        %1143 = vmatprep.subr.mxu0 0.0
        %1144 = vmatpush2.msra.mxu0 0.0
        %1145 = vmatprep.subr.mxu0 0.0
        %1146 = vmatpush2.msra.mxu0 0.0
        %1147 = vmatprep.subr.mxu0 0.0
        %1148 = vmatpush2.msra.mxu0 0.0
        %1149 = vmatprep.subr.mxu0 0.0
        %1150 = vmatpush2.msra.mxu0 0.0
        %1151 = vmatprep.subr.mxu0 0.0
        %1152 = vmatpush2.msra.mxu0 0.0
        %1153 = vmatprep.subr.mxu0 0.0
        %1154 = vmatpush2.msra.mxu0 0.0
        %1155 = vmatprep.subr.mxu0 0.0
        %1156 = vmatpush2.msra.mxu0 0.0
        %1157 = vmatprep.subr.mxu0 0.0
        %1158 = vmatpush2.msra.mxu0 0.0
        %1159 = vmatprep.subr.mxu0 0.0
        %1160 = vmatpush2.msra.mxu0 0.0
        %1161 = vmatprep.subr.mxu0 0.0
        %1162 = vmatpush2.msra.mxu0 0.0
        %1163 = vmatprep.subr.mxu0 0.0
        %1164 = vmatpush2.msra.mxu0 0.0
        %1165 = vmatprep.subr.mxu0 0.0
        %1166 = vmatpush2.msra.mxu0 0.0
        %1167 = vmatprep.subr.mxu0 0.0
        %1168 = vmatpush2.msra.mxu0 0.0
        %1169 = vmatprep.subr.mxu0 0.0
        %1170 = vmatpush2.msra.mxu0 0.0
        %1171 = vmatprep.subr.mxu0 0.0
        %1172 = vmatpush2.msra.mxu0 0.0
        %1173 = vmatprep.subr.mxu0 0.0
        %1174 = vmatpush2.msra.mxu0 0.0
        %1175 = vmatprep.mubr.f32.mxu0 0.0
        %1176 = vmatmul.mubr.f32.gmra.mxu0 %v1109
        %v1177 = vpop.f32.mrf.mxu0
        %v1178 = vadd.f32 0.0, %v1177
        %v1179 = vpop.f32.mrf.mxu0
        %1180 = vdwg.mxu0
        %v1182 = vlaneseq
        %v1183 = vshrl.u32 %v1182, 7
        %v1184 = vsub.s32 0, %v1183
        %v1185 = vrot.slane %v718, %v1184
        %v1187 = vmul.f32 %v1178, %v1185
        %v1188 = vmul.f32 %v1105, %v1187
        %v1190 = vlaneseq
        %v1191 = vshrl.u32 %v1190, 7
        %v1192 = vsub.s32 0, %v1191
        %v1193 = vrot.slane %v719, %v1192
        %v1195 = vsub.f32 %v1193, %v1188
        %vm1196 = vcmask 64512
        %v1198 = vsel %vm1196, %v696, 0
        %v1201 = vsel %vm1196, %v697, 0
        %v1204 = vsel %vm1196, %v698, 0
        %v1207 = vsel %vm1196, %v699, 0
        %v1210 = vsel %vm1196, %v700, 0
        %v1213 = vsel %vm1196, %v701, 0
        %v1216 = vsel %vm1196, %v702, 0
        %v1219 = vsel %vm1196, %v703, 0
        %v1222 = vsel %vm1196, %v704, 0
        %v1225 = vsel %vm1196, %v705, 0
        %v1228 = vsel %vm1196, %v706, 0
        %v1231 = vsel %vm1196, %v707, 0
        %v1234 = vsel %vm1196, %v708, 0
        %v1237 = vsel %vm1196, %v709, 0
        %v1240 = vsel %vm1196, %v710, 0
        %v1243 = vsel %vm1196, %v711, 0
        %1245 = vmatprep.subr.mxu0 0.0
        %1246 = vmatpush1.msra.mxu0 0.0
        %1247 = vmatprep.subr.mxu0 0.0
        %1248 = vmatpush1.msra.mxu0 0.0
        %1249 = vmatprep.subr.mxu0 0.0
        %1250 = vmatpush1.msra.mxu0 0.0
        %1251 = vmatprep.subr.mxu0 0.0
        %1252 = vmatpush1.msra.mxu0 0.0
        %1253 = vmatprep.subr.mxu0 0.0
        %1254 = vmatpush1.msra.mxu0 0.0
        %1255 = vmatprep.subr.mxu0 0.0
        %1256 = vmatpush1.msra.mxu0 0.0
        %1257 = vmatprep.subr.mxu0 0.0
        %1258 = vmatpush1.msra.mxu0 0.0
        %1259 = vmatprep.subr.mxu0 0.0
        %1260 = vmatpush1.msra.mxu0 0.0
        %1261 = vmatprep.subr.mxu0 0.0
        %1262 = vmatpush1.msra.mxu0 0.0
        %1263 = vmatprep.subr.mxu0 0.0
        %1264 = vmatpush1.msra.mxu0 0.0
        %1265 = vmatprep.subr.mxu0 0.0
        %1266 = vmatpush1.msra.mxu0 0.0
        %1267 = vmatprep.subr.mxu0 0.0
        %1268 = vmatpush1.msra.mxu0 0.0
        %1269 = vmatprep.subr.mxu0 0.0
        %1270 = vmatpush1.msra.mxu0 0.0
        %1271 = vmatprep.subr.mxu0 0.0
        %1272 = vmatpush1.msra.mxu0 0.0
        %1273 = vmatprep.subr.mxu0 0.0
        %1274 = vmatpush1.msra.mxu0 0.0
        %1275 = vmatprep.subr.mxu0 0.0
        %1276 = vmatpush1.msra.mxu0 %v1187
        %1277 = vmatprep.subr.mxu0 0.0
        %1278 = vmatpush2.msra.mxu0 0.0
        %1279 = vmatprep.subr.mxu0 0.0
        %1280 = vmatpush2.msra.mxu0 0.0
        %1281 = vmatprep.subr.mxu0 0.0
        %1282 = vmatpush2.msra.mxu0 0.0
        %1283 = vmatprep.subr.mxu0 0.0
        %1284 = vmatpush2.msra.mxu0 0.0
        %1285 = vmatprep.subr.mxu0 0.0
        %1286 = vmatpush2.msra.mxu0 0.0
        %1287 = vmatprep.subr.mxu0 0.0
        %1288 = vmatpush2.msra.mxu0 0.0
        %1289 = vmatprep.subr.mxu0 0.0
        %1290 = vmatpush2.msra.mxu0 0.0
        %1291 = vmatprep.subr.mxu0 0.0
        %1292 = vmatpush2.msra.mxu0 0.0
        %1293 = vmatprep.subr.mxu0 0.0
        %1294 = vmatpush2.msra.mxu0 0.0
        %1295 = vmatprep.subr.mxu0 0.0
        %1296 = vmatpush2.msra.mxu0 0.0
        %1297 = vmatprep.subr.mxu0 0.0
        %1298 = vmatpush2.msra.mxu0 0.0
        %1299 = vmatprep.subr.mxu0 0.0
        %1300 = vmatpush2.msra.mxu0 0.0
        %1301 = vmatprep.subr.mxu0 0.0
        %1302 = vmatpush2.msra.mxu0 0.0
        %1303 = vmatprep.subr.mxu0 0.0
        %1304 = vmatpush2.msra.mxu0 0.0
        %1305 = vmatprep.subr.mxu0 0.0
        %1306 = vmatpush2.msra.mxu0 0.0
        %1307 = vmatprep.subr.mxu0 0.0
        %1308 = vmatpush2.msra.mxu0 0.0
        %1309 = vmatprep.mubr.f32.mxu0 0.0
        %1310 = vmatmul.mubr.f32.gmra.mxu0 %v1198
        %v1311 = vpop.f32.mrf.mxu0
        %v1312 = vadd.f32 0.0, %v1311
        %v1313 = vpop.f32.mrf.mxu0
        %1314 = vmatprep.mubr.f32.mxu0 0.0
        %1315 = vmatmul.mubr.f32.gmra.mxu0 %v1201
        %v1316 = vpop.f32.mrf.mxu0
        %v1317 = vadd.f32 0.0, %v1316
        %v1318 = vpop.f32.mrf.mxu0
        %1319 = vmatprep.mubr.f32.mxu0 0.0
        %1320 = vmatmul.mubr.f32.gmra.mxu0 %v1204
        %v1321 = vpop.f32.mrf.mxu0
        %v1322 = vadd.f32 0.0, %v1321
        %v1323 = vpop.f32.mrf.mxu0
        %1324 = vmatprep.mubr.f32.mxu0 0.0
        %1325 = vmatmul.mubr.f32.gmra.mxu0 %v1207
        %v1326 = vpop.f32.mrf.mxu0
        %v1327 = vadd.f32 0.0, %v1326
        %v1328 = vpop.f32.mrf.mxu0
        %1329 = vmatprep.mubr.f32.mxu0 0.0
        %1330 = vmatmul.mubr.f32.gmra.mxu0 %v1210
        %v1331 = vpop.f32.mrf.mxu0
        %v1332 = vadd.f32 0.0, %v1331
        %v1333 = vpop.f32.mrf.mxu0
        %1334 = vmatprep.mubr.f32.mxu0 0.0
        %1335 = vmatmul.mubr.f32.gmra.mxu0 %v1213
        %v1336 = vpop.f32.mrf.mxu0
        %v1337 = vadd.f32 0.0, %v1336
        %v1338 = vpop.f32.mrf.mxu0
        %1339 = vmatprep.mubr.f32.mxu0 0.0
        %1340 = vmatmul.mubr.f32.gmra.mxu0 %v1216
        %v1341 = vpop.f32.mrf.mxu0
        %v1342 = vadd.f32 0.0, %v1341
        %v1343 = vpop.f32.mrf.mxu0
        %1344 = vmatprep.mubr.f32.mxu0 0.0
        %1345 = vmatmul.mubr.f32.gmra.mxu0 %v1219
        %v1346 = vpop.f32.mrf.mxu0
        %v1347 = vadd.f32 0.0, %v1346
        %v1348 = vpop.f32.mrf.mxu0
        %1349 = vmatprep.mubr.f32.mxu0 0.0
        %1350 = vmatmul.mubr.f32.gmra.mxu0 %v1222
        %v1351 = vpop.f32.mrf.mxu0
        %v1352 = vadd.f32 0.0, %v1351
        %v1353 = vpop.f32.mrf.mxu0
        %1354 = vmatprep.mubr.f32.mxu0 0.0
        %1355 = vmatmul.mubr.f32.gmra.mxu0 %v1225
        %v1356 = vpop.f32.mrf.mxu0
        %v1357 = vadd.f32 0.0, %v1356
        %v1358 = vpop.f32.mrf.mxu0
        %1359 = vmatprep.mubr.f32.mxu0 0.0
        %1360 = vmatmul.mubr.f32.gmra.mxu0 %v1228
        %v1361 = vpop.f32.mrf.mxu0
        %v1362 = vadd.f32 0.0, %v1361
        %v1363 = vpop.f32.mrf.mxu0
        %1364 = vmatprep.mubr.f32.mxu0 0.0
        %1365 = vmatmul.mubr.f32.gmra.mxu0 %v1231
        %v1366 = vpop.f32.mrf.mxu0
        %v1367 = vadd.f32 0.0, %v1366
        %v1368 = vpop.f32.mrf.mxu0
        %1369 = vmatprep.mubr.f32.mxu0 0.0
        %1370 = vmatmul.mubr.f32.gmra.mxu0 %v1234
        %v1371 = vpop.f32.mrf.mxu0
        %v1372 = vadd.f32 0.0, %v1371
        %v1373 = vpop.f32.mrf.mxu0
        %1374 = vmatprep.mubr.f32.mxu0 0.0
        %1375 = vmatmul.mubr.f32.gmra.mxu0 %v1237
        %v1376 = vpop.f32.mrf.mxu0
        %v1377 = vadd.f32 0.0, %v1376
        %v1378 = vpop.f32.mrf.mxu0
        %1379 = vmatprep.mubr.f32.mxu0 0.0
        %1380 = vmatmul.mubr.f32.gmra.mxu0 %v1240
        %v1381 = vpop.f32.mrf.mxu0
        %v1382 = vadd.f32 0.0, %v1381
        %v1383 = vpop.f32.mrf.mxu0
        %1384 = vmatprep.mubr.f32.mxu0 0.0
        %1385 = vmatmul.mubr.f32.gmra.mxu0 %v1243
        %v1386 = vpop.f32.mrf.mxu0
        %v1387 = vadd.f32 0.0, %v1386
        %v1388 = vpop.f32.mrf.mxu0
        %1389 = vdwg.mxu0
        %1390 = vmatprep.subr.mxu0 0.0
        %1391 = vmatpush1.msra.mxu0 0.0
        %1392 = vmatprep.subr.mxu0 0.0
        %1393 = vmatpush1.msra.mxu0 0.0
        %1394 = vmatprep.subr.mxu0 0.0
        %1395 = vmatpush1.msra.mxu0 0.0
        %1396 = vmatprep.subr.mxu0 0.0
        %1397 = vmatpush1.msra.mxu0 0.0
        %1398 = vmatprep.subr.mxu0 0.0
        %1399 = vmatpush1.msra.mxu0 0.0
        %1400 = vmatprep.subr.mxu0 0.0
        %1401 = vmatpush1.msra.mxu0 0.0
        %1402 = vmatprep.subr.mxu0 0.0
        %1403 = vmatpush1.msra.mxu0 0.0
        %1404 = vmatprep.subr.mxu0 0.0
        %1405 = vmatpush1.msra.mxu0 0.0
        %1406 = vmatprep.subr.mxu0 0.0
        %1407 = vmatpush1.msra.mxu0 0.0
        %1408 = vmatprep.subr.mxu0 0.0
        %1409 = vmatpush1.msra.mxu0 0.0
        %1410 = vmatprep.subr.mxu0 0.0
        %1411 = vmatpush1.msra.mxu0 0.0
        %1412 = vmatprep.subr.mxu0 0.0
        %1413 = vmatpush1.msra.mxu0 0.0
        %1414 = vmatprep.subr.mxu0 0.0
        %1415 = vmatpush1.msra.mxu0 0.0
        %1416 = vmatprep.subr.mxu0 0.0
        %1417 = vmatpush1.msra.mxu0 0.0
        %1418 = vmatprep.subr.mxu0 0.0
        %1419 = vmatpush1.msra.mxu0 0.0
        %1420 = vmatprep.subr.mxu0 0.0
        %1421 = vmatpush1.msra.mxu0 %v1195
        %1422 = vmatprep.subr.mxu0 0.0
        %1423 = vmatpush2.msra.mxu0 0.0
        %1424 = vmatprep.subr.mxu0 0.0
        %1425 = vmatpush2.msra.mxu0 0.0
        %1426 = vmatprep.subr.mxu0 0.0
        %1427 = vmatpush2.msra.mxu0 0.0
        %1428 = vmatprep.subr.mxu0 0.0
        %1429 = vmatpush2.msra.mxu0 0.0
        %1430 = vmatprep.subr.mxu0 0.0
        %1431 = vmatpush2.msra.mxu0 0.0
        %1432 = vmatprep.subr.mxu0 0.0
        %1433 = vmatpush2.msra.mxu0 0.0
        %1434 = vmatprep.subr.mxu0 0.0
        %1435 = vmatpush2.msra.mxu0 0.0
        %1436 = vmatprep.subr.mxu0 0.0
        %1437 = vmatpush2.msra.mxu0 0.0
        %1438 = vmatprep.subr.mxu0 0.0
        %1439 = vmatpush2.msra.mxu0 0.0
        %1440 = vmatprep.subr.mxu0 0.0
        %1441 = vmatpush2.msra.mxu0 0.0
        %1442 = vmatprep.subr.mxu0 0.0
        %1443 = vmatpush2.msra.mxu0 0.0
        %1444 = vmatprep.subr.mxu0 0.0
        %1445 = vmatpush2.msra.mxu0 0.0
        %1446 = vmatprep.subr.mxu0 0.0
        %1447 = vmatpush2.msra.mxu0 0.0
        %1448 = vmatprep.subr.mxu0 0.0
        %1449 = vmatpush2.msra.mxu0 0.0
        %1450 = vmatprep.subr.mxu0 0.0
        %1451 = vmatpush2.msra.mxu0 0.0
        %1452 = vmatprep.subr.mxu0 0.0
        %1453 = vmatpush2.msra.mxu0 0.0
        %1454 = vmatprep.mubr.f32.mxu0 0.0
        %1455 = vmatmul.mubr.f32.gmra.mxu0 %v1198
        %v1456 = vpop.f32.mrf.mxu0
        %v1457 = vadd.f32 0.0, %v1456
        %v1458 = vpop.f32.mrf.mxu0
        %1459 = vmatprep.mubr.f32.mxu0 0.0
        %1460 = vmatmul.mubr.f32.gmra.mxu0 %v1201
        %v1461 = vpop.f32.mrf.mxu0
        %v1462 = vadd.f32 0.0, %v1461
        %v1463 = vpop.f32.mrf.mxu0
        %1464 = vmatprep.mubr.f32.mxu0 0.0
        %1465 = vmatmul.mubr.f32.gmra.mxu0 %v1204
        %v1466 = vpop.f32.mrf.mxu0
        %v1467 = vadd.f32 0.0, %v1466
        %v1468 = vpop.f32.mrf.mxu0
        %1469 = vmatprep.mubr.f32.mxu0 0.0
        %1470 = vmatmul.mubr.f32.gmra.mxu0 %v1207
        %v1471 = vpop.f32.mrf.mxu0
        %v1472 = vadd.f32 0.0, %v1471
        %v1473 = vpop.f32.mrf.mxu0
        %1474 = vmatprep.mubr.f32.mxu0 0.0
        %1475 = vmatmul.mubr.f32.gmra.mxu0 %v1210
        %v1476 = vpop.f32.mrf.mxu0
        %v1477 = vadd.f32 0.0, %v1476
        %v1478 = vpop.f32.mrf.mxu0
        %1479 = vmatprep.mubr.f32.mxu0 0.0
        %1480 = vmatmul.mubr.f32.gmra.mxu0 %v1213
        %v1481 = vpop.f32.mrf.mxu0
        %v1482 = vadd.f32 0.0, %v1481
        %v1483 = vpop.f32.mrf.mxu0
        %1484 = vmatprep.mubr.f32.mxu0 0.0
        %1485 = vmatmul.mubr.f32.gmra.mxu0 %v1216
        %v1486 = vpop.f32.mrf.mxu0
        %v1487 = vadd.f32 0.0, %v1486
        %v1488 = vpop.f32.mrf.mxu0
        %1489 = vmatprep.mubr.f32.mxu0 0.0
        %1490 = vmatmul.mubr.f32.gmra.mxu0 %v1219
        %v1491 = vpop.f32.mrf.mxu0
        %v1492 = vadd.f32 0.0, %v1491
        %v1493 = vpop.f32.mrf.mxu0
        %1494 = vmatprep.mubr.f32.mxu0 0.0
        %1495 = vmatmul.mubr.f32.gmra.mxu0 %v1222
        %v1496 = vpop.f32.mrf.mxu0
        %v1497 = vadd.f32 0.0, %v1496
        %v1498 = vpop.f32.mrf.mxu0
        %1499 = vmatprep.mubr.f32.mxu0 0.0
        %1500 = vmatmul.mubr.f32.gmra.mxu0 %v1225
        %v1501 = vpop.f32.mrf.mxu0
        %v1502 = vadd.f32 0.0, %v1501
        %v1503 = vpop.f32.mrf.mxu0
        %1504 = vmatprep.mubr.f32.mxu0 0.0
        %1505 = vmatmul.mubr.f32.gmra.mxu0 %v1228
        %v1506 = vpop.f32.mrf.mxu0
        %v1507 = vadd.f32 0.0, %v1506
        %v1508 = vpop.f32.mrf.mxu0
        %1509 = vmatprep.mubr.f32.mxu0 0.0
        %1510 = vmatmul.mubr.f32.gmra.mxu0 %v1231
        %v1511 = vpop.f32.mrf.mxu0
        %v1512 = vadd.f32 0.0, %v1511
        %v1513 = vpop.f32.mrf.mxu0
        %1514 = vmatprep.mubr.f32.mxu0 0.0
        %1515 = vmatmul.mubr.f32.gmra.mxu0 %v1234
        %v1516 = vpop.f32.mrf.mxu0
        %v1517 = vadd.f32 0.0, %v1516
        %v1518 = vpop.f32.mrf.mxu0
        %1519 = vmatprep.mubr.f32.mxu0 0.0
        %1520 = vmatmul.mubr.f32.gmra.mxu0 %v1237
        %v1521 = vpop.f32.mrf.mxu0
        %v1522 = vadd.f32 0.0, %v1521
        %v1523 = vpop.f32.mrf.mxu0
        %1524 = vmatprep.mubr.f32.mxu0 0.0
        %1525 = vmatmul.mubr.f32.gmra.mxu0 %v1240
        %v1526 = vpop.f32.mrf.mxu0
        %v1527 = vadd.f32 0.0, %v1526
        %v1528 = vpop.f32.mrf.mxu0
        %1529 = vmatprep.mubr.f32.mxu0 0.0
        %1530 = vmatmul.mubr.f32.gmra.mxu0 %v1243
        %v1531 = vpop.f32.mrf.mxu0
        %v1532 = vadd.f32 0.0, %v1531
        %v1533 = vpop.f32.mrf.mxu0
        %1534 = vdwg.mxu0
        %v1535 = vmul.f32 %v634, %v1312
        %v1536 = vmul.f32 %v637, %v1317
        %v1537 = vmul.f32 %v642, %v1322
        %v1538 = vmul.f32 %v645, %v1327
        %v1539 = vmul.f32 %v650, %v1332
        %v1540 = vmul.f32 %v653, %v1337
        %v1541 = vmul.f32 %v658, %v1342
        %v1542 = vmul.f32 %v661, %v1347
        %v1543 = vmul.f32 %v666, %v1352
        %v1544 = vmul.f32 %v669, %v1357
        %v1545 = vmul.f32 %v674, %v1362
        %v1546 = vmul.f32 %v677, %v1367
        %v1547 = vmul.f32 %v682, %v1372
        %v1548 = vmul.f32 %v685, %v1377
        %v1549 = vmul.f32 %v690, %v1382
        %v1550 = vmul.f32 %v693, %v1387
        %v1551 = vadd.f32 %v1535, %v1457
        %v1552 = vadd.f32 %v1536, %v1462
        %v1553 = vadd.f32 %v1537, %v1467
        %v1554 = vadd.f32 %v1538, %v1472
        %v1555 = vadd.f32 %v1539, %v1477
        %v1556 = vadd.f32 %v1540, %v1482
        %v1557 = vadd.f32 %v1541, %v1487
        %v1558 = vadd.f32 %v1542, %v1492
        %v1559 = vadd.f32 %v1543, %v1497
        %v1560 = vadd.f32 %v1544, %v1502
        %v1561 = vadd.f32 %v1545, %v1507
        %v1562 = vadd.f32 %v1546, %v1512
        %v1563 = vadd.f32 %v1547, %v1517
        %v1564 = vadd.f32 %v1548, %v1522
        %v1565 = vadd.f32 %v1549, %v1527
        %v1566 = vadd.f32 %v1550, %v1532
        %v1567 = vmul.f32 %v1551, 0.5
        %v1568 = vmul.f32 %v1552, 0.5
        %v1569 = vmul.f32 %v1553, 0.5
        %v1570 = vmul.f32 %v1554, 0.5
        %v1571 = vmul.f32 %v1555, 0.5
        %v1572 = vmul.f32 %v1556, 0.5
        %v1573 = vmul.f32 %v1557, 0.5
        %v1574 = vmul.f32 %v1558, 0.5
        %v1575 = vmul.f32 %v1559, 0.5
        %v1576 = vmul.f32 %v1560, 0.5
        %v1577 = vmul.f32 %v1561, 0.5
        %v1578 = vmul.f32 %v1562, 0.5
        %v1579 = vmul.f32 %v1563, 0.5
        %v1580 = vmul.f32 %v1564, 0.5
        %v1581 = vmul.f32 %v1565, 0.5
        %v1582 = vmul.f32 %v1566, 0.5
        %v1583 = vmul.f32 %v1551, 0.70710677
        %v1584 = vmul.f32 %v1552, 0.70710677
        %v1585 = vmul.f32 %v1553, 0.70710677
        %v1586 = vmul.f32 %v1554, 0.70710677
        %v1587 = vmul.f32 %v1555, 0.70710677
        %v1588 = vmul.f32 %v1556, 0.70710677
        %v1589 = vmul.f32 %v1557, 0.70710677
        %v1590 = vmul.f32 %v1558, 0.70710677
        %v1591 = vmul.f32 %v1559, 0.70710677
        %v1592 = vmul.f32 %v1560, 0.70710677
        %v1593 = vmul.f32 %v1561, 0.70710677
        %v1594 = vmul.f32 %v1562, 0.70710677
        %v1595 = vmul.f32 %v1563, 0.70710677
        %v1596 = vmul.f32 %v1564, 0.70710677
        %v1597 = vmul.f32 %v1565, 0.70710677
        %v1598 = vmul.f32 %v1566, 0.70710677
        %v1599 = verf.f32.pop %v1583
        %v1600 = verf.f32.pop %v1584
        %v1601 = verf.f32.pop %v1585
        %v1602 = verf.f32.pop %v1586
        %v1603 = verf.f32.pop %v1587
        %v1604 = verf.f32.pop %v1588
        %v1605 = verf.f32.pop %v1589
        %v1606 = verf.f32.pop %v1590
        %v1607 = verf.f32.pop %v1591
        %v1608 = verf.f32.pop %v1592
        %v1609 = verf.f32.pop %v1593
        %v1610 = verf.f32.pop %v1594
        %v1611 = verf.f32.pop %v1595
        %v1612 = verf.f32.pop %v1596
        %v1613 = verf.f32.pop %v1597
        %v1614 = verf.f32.pop %v1598
        %v1615 = vadd.f32 %v1599, 1.0
        %v1616 = vadd.f32 %v1600, 1.0
        %v1617 = vadd.f32 %v1601, 1.0
        %v1618 = vadd.f32 %v1602, 1.0
        %v1619 = vadd.f32 %v1603, 1.0
        %v1620 = vadd.f32 %v1604, 1.0
        %v1621 = vadd.f32 %v1605, 1.0
        %v1622 = vadd.f32 %v1606, 1.0
        %v1623 = vadd.f32 %v1607, 1.0
        %v1624 = vadd.f32 %v1608, 1.0
        %v1625 = vadd.f32 %v1609, 1.0
        %v1626 = vadd.f32 %v1610, 1.0
        %v1627 = vadd.f32 %v1611, 1.0
        %v1628 = vadd.f32 %v1612, 1.0
        %v1629 = vadd.f32 %v1613, 1.0
        %v1630 = vadd.f32 %v1614, 1.0
        %v1631 = vmul.f32 %v1567, %v1615
        %v1632 = vmul.f32 %v1568, %v1616
        %v1633 = vmul.f32 %v1569, %v1617
        %v1634 = vmul.f32 %v1570, %v1618
        %v1635 = vmul.f32 %v1571, %v1619
        %v1636 = vmul.f32 %v1572, %v1620
        %v1637 = vmul.f32 %v1573, %v1621
        %v1638 = vmul.f32 %v1574, %v1622
        %v1639 = vmul.f32 %v1575, %v1623
        %v1640 = vmul.f32 %v1576, %v1624
        %v1641 = vmul.f32 %v1577, %v1625
        %v1642 = vmul.f32 %v1578, %v1626
        %v1643 = vmul.f32 %v1579, %v1627
        %v1644 = vmul.f32 %v1580, %v1628
        %v1645 = vmul.f32 %v1581, %v1629
        %v1646 = vmul.f32 %v1582, %v1630
        %v1647 = vpack.c.bf16 %v1631, %v1631
        %v1648 = vld [vmem:[%s2] sm:$0xf]
        %v1649 = vld [vmem:[%s2 + $0x4] sm:$0xf]
        %v1650 = vld [vmem:[%s2 + $0x8] sm:$0xf]
        %v1651 = vld [vmem:[%s2 + $0xc] sm:$0xf]
        %v1652 = vpack.c.bf16 %v1632, %v1632
        %s1653 = scalar_lea.vmem %s2, 16
        %v1654 = vld [vmem:[%s1653] sm:$0xf]
        %v1655 = vld [vmem:[%s1653 + $0x4] sm:$0xf]
        %v1656 = vld [vmem:[%s1653 + $0x8] sm:$0xf]
        %v1657 = vld [vmem:[%s1653 + $0xc] sm:$0xf]
        %v1662 = vunpack.c.l.b16 %v1654
        %v1663 = vunpack.c.l.b16 %v1655
        %v1664 = vunpack.c.l.b16 %v1656
        %v1665 = vunpack.c.l.b16 %v1657
        %v1666 = vpack.c.b16 %v1663, %v1662
        %v1667 = vpack.c.b16 %v1665, %v1664
        %v1671 = vsel %vm876, %v1652, 0
        %1673 = vmatprep.subr.bf16.mxu0 0
        %1674 = vmatpush1.bf16.msra.mxu0 0
        %1675 = vmatprep.subr.bf16.mxu0 0
        %1676 = vmatpush1.bf16.msra.mxu0 0
        %1677 = vmatprep.subr.bf16.mxu0 0
        %1678 = vmatpush1.bf16.msra.mxu0 0
        %1679 = vmatprep.subr.bf16.mxu0 0
        %1680 = vmatpush1.bf16.msra.mxu0 0
        %1681 = vmatprep.subr.bf16.mxu0 0
        %1682 = vmatpush1.bf16.msra.mxu0 0
        %1683 = vmatprep.subr.bf16.mxu0 0
        %1684 = vmatpush1.bf16.msra.mxu0 0
        %1685 = vmatprep.subr.bf16.mxu0 0
        %1686 = vmatpush1.bf16.msra.mxu0 %v1667
        %1687 = vmatprep.subr.bf16.mxu0 0
        %1688 = vmatpush1.bf16.msra.mxu0 %v1666
        %1689 = vmatprep.subr.bf16.mxu0 0
        %1690 = vmatpush2.bf16.msra.mxu0 0
        %1691 = vmatprep.subr.bf16.mxu0 0
        %1692 = vmatpush2.bf16.msra.mxu0 0
        %1693 = vmatprep.subr.bf16.mxu0 0
        %1694 = vmatpush2.bf16.msra.mxu0 0
        %1695 = vmatprep.subr.bf16.mxu0 0
        %1696 = vmatpush2.bf16.msra.mxu0 0
        %1697 = vmatprep.subr.bf16.mxu0 0
        %1698 = vmatpush2.bf16.msra.mxu0 0
        %1699 = vmatprep.subr.bf16.mxu0 0
        %1700 = vmatpush2.bf16.msra.mxu0 0
        %1701 = vmatprep.subr.bf16.mxu0 0
        %1702 = vmatpush2.bf16.msra.mxu0 0
        %1703 = vmatprep.subr.bf16.mxu0 0
        %1704 = vmatpush2.bf16.msra.mxu0 0
        %1705 = vmatprep.mubr.bf16.mxu0 0
        %1706 = vmatmul.mubr.bf16.gmra.mxu0 %v1671
        %v1707 = vpop.f32.mrf.mxu0
        %v1708 = vadd.f32 0.0, %v1707
        %v1709 = vpop.f32.mrf.mxu0
        %v1710 = vpop.f32.mrf.mxu0
        %v1711 = vpop.f32.mrf.mxu0
        %1712 = vdwg.mxu0
        %v1717 = vunpack.c.l.b16 %v1648
        %v1718 = vunpack.c.l.b16 %v1649
        %v1719 = vunpack.c.l.b16 %v1650
        %v1720 = vunpack.c.l.b16 %v1651
        %v1721 = vpack.c.b16 %v1718, %v1717
        %v1722 = vpack.c.b16 %v1720, %v1719
        %v1726 = vsel %vm876, %v1647, 0
        %1728 = vmatprep.subr.bf16.mxu0 0
        %1729 = vmatpush1.bf16.msra.mxu0 0
        %1730 = vmatprep.subr.bf16.mxu0 0
        %1731 = vmatpush1.bf16.msra.mxu0 0
        %1732 = vmatprep.subr.bf16.mxu0 0
        %1733 = vmatpush1.bf16.msra.mxu0 0
        %1734 = vmatprep.subr.bf16.mxu0 0
        %1735 = vmatpush1.bf16.msra.mxu0 0
        %1736 = vmatprep.subr.bf16.mxu0 0
        %1737 = vmatpush1.bf16.msra.mxu0 0
        %1738 = vmatprep.subr.bf16.mxu0 0
        %1739 = vmatpush1.bf16.msra.mxu0 0
        %1740 = vmatprep.subr.bf16.mxu0 0
        %1741 = vmatpush1.bf16.msra.mxu0 %v1722
        %1742 = vmatprep.subr.bf16.mxu0 0
        %1743 = vmatpush1.bf16.msra.mxu0 %v1721
        %1744 = vmatprep.subr.bf16.mxu0 0
        %1745 = vmatpush2.bf16.msra.mxu0 0
        %1746 = vmatprep.subr.bf16.mxu0 0
        %1747 = vmatpush2.bf16.msra.mxu0 0
        %1748 = vmatprep.subr.bf16.mxu0 0
        %1749 = vmatpush2.bf16.msra.mxu0 0
        %1750 = vmatprep.subr.bf16.mxu0 0
        %1751 = vmatpush2.bf16.msra.mxu0 0
        %1752 = vmatprep.subr.bf16.mxu0 0
        %1753 = vmatpush2.bf16.msra.mxu0 0
        %1754 = vmatprep.subr.bf16.mxu0 0
        %1755 = vmatpush2.bf16.msra.mxu0 0
        %1756 = vmatprep.subr.bf16.mxu0 0
        %1757 = vmatpush2.bf16.msra.mxu0 0
        %1758 = vmatprep.subr.bf16.mxu0 0
        %1759 = vmatpush2.bf16.msra.mxu0 0
        %1760 = vmatprep.mubr.bf16.mxu0 0
        %1761 = vmatmul.mubr.bf16.gmra.mxu0 %v1726
        %v1762 = vpop.f32.mrf.mxu0
        %v1763 = vadd.f32 %v1708, %v1762
        %v1764 = vpop.f32.mrf.mxu0
        %v1765 = vpop.f32.mrf.mxu0
        %v1766 = vpop.f32.mrf.mxu0
        %1767 = vdwg.mxu0
        %v1768 = vpack.c.bf16 %v1633, %v1633
        %s1769 = scalar_lea.vmem %s2, 32
        %v1770 = vld [vmem:[%s1769] sm:$0xf]
        %v1771 = vld [vmem:[%s1769 + $0x4] sm:$0xf]
        %v1772 = vld [vmem:[%s1769 + $0x8] sm:$0xf]
        %v1773 = vld [vmem:[%s1769 + $0xc] sm:$0xf]
        %v1778 = vunpack.c.l.b16 %v1770
        %v1779 = vunpack.c.l.b16 %v1771
        %v1780 = vunpack.c.l.b16 %v1772
        %v1781 = vunpack.c.l.b16 %v1773
        %v1782 = vpack.c.b16 %v1779, %v1778
        %v1783 = vpack.c.b16 %v1781, %v1780
        %v1787 = vsel %vm876, %v1768, 0
        %1789 = vmatprep.subr.bf16.mxu0 0
        %1790 = vmatpush1.bf16.msra.mxu0 0
        %1791 = vmatprep.subr.bf16.mxu0 0
        %1792 = vmatpush1.bf16.msra.mxu0 0
        %1793 = vmatprep.subr.bf16.mxu0 0
        %1794 = vmatpush1.bf16.msra.mxu0 0
        %1795 = vmatprep.subr.bf16.mxu0 0
        %1796 = vmatpush1.bf16.msra.mxu0 0
        %1797 = vmatprep.subr.bf16.mxu0 0
        %1798 = vmatpush1.bf16.msra.mxu0 0
        %1799 = vmatprep.subr.bf16.mxu0 0
        %1800 = vmatpush1.bf16.msra.mxu0 0
        %1801 = vmatprep.subr.bf16.mxu0 0
        %1802 = vmatpush1.bf16.msra.mxu0 %v1783
        %1803 = vmatprep.subr.bf16.mxu0 0
        %1804 = vmatpush1.bf16.msra.mxu0 %v1782
        %1805 = vmatprep.subr.bf16.mxu0 0
        %1806 = vmatpush2.bf16.msra.mxu0 0
        %1807 = vmatprep.subr.bf16.mxu0 0
        %1808 = vmatpush2.bf16.msra.mxu0 0
        %1809 = vmatprep.subr.bf16.mxu0 0
        %1810 = vmatpush2.bf16.msra.mxu0 0
        %1811 = vmatprep.subr.bf16.mxu0 0
        %1812 = vmatpush2.bf16.msra.mxu0 0
        %1813 = vmatprep.subr.bf16.mxu0 0
        %1814 = vmatpush2.bf16.msra.mxu0 0
        %1815 = vmatprep.subr.bf16.mxu0 0
        %1816 = vmatpush2.bf16.msra.mxu0 0
        %1817 = vmatprep.subr.bf16.mxu0 0
        %1818 = vmatpush2.bf16.msra.mxu0 0
        %1819 = vmatprep.subr.bf16.mxu0 0
        %1820 = vmatpush2.bf16.msra.mxu0 0
        %1821 = vmatprep.mubr.bf16.mxu0 0
        %1822 = vmatmul.mubr.bf16.gmra.mxu0 %v1787
        %v1823 = vpop.f32.mrf.mxu0
        %v1824 = vadd.f32 0.0, %v1823
        %v1825 = vpop.f32.mrf.mxu0
        %v1826 = vpop.f32.mrf.mxu0
        %v1827 = vpop.f32.mrf.mxu0
        %1828 = vdwg.mxu0
        %v1829 = vadd.f32 %v1763, %v1824
        %v1830 = vpack.c.bf16 %v1634, %v1634
        %s1831 = scalar_lea.vmem %s2, 48
        %v1832 = vld [vmem:[%s1831] sm:$0xf]
        %v1833 = vld [vmem:[%s1831 + $0x4] sm:$0xf]
        %v1834 = vld [vmem:[%s1831 + $0x8] sm:$0xf]
        %v1835 = vld [vmem:[%s1831 + $0xc] sm:$0xf]
        %v1840 = vunpack.c.l.b16 %v1832
        %v1841 = vunpack.c.l.b16 %v1833
        %v1842 = vunpack.c.l.b16 %v1834
        %v1843 = vunpack.c.l.b16 %v1835
        %v1844 = vpack.c.b16 %v1841, %v1840
        %v1845 = vpack.c.b16 %v1843, %v1842
        %v1849 = vsel %vm876, %v1830, 0
        %1851 = vmatprep.subr.bf16.mxu0 0
        %1852 = vmatpush1.bf16.msra.mxu0 0
        %1853 = vmatprep.subr.bf16.mxu0 0
        %1854 = vmatpush1.bf16.msra.mxu0 0
        %1855 = vmatprep.subr.bf16.mxu0 0
        %1856 = vmatpush1.bf16.msra.mxu0 0
        %1857 = vmatprep.subr.bf16.mxu0 0
        %1858 = vmatpush1.bf16.msra.mxu0 0
        %1859 = vmatprep.subr.bf16.mxu0 0
        %1860 = vmatpush1.bf16.msra.mxu0 0
        %1861 = vmatprep.subr.bf16.mxu0 0
        %1862 = vmatpush1.bf16.msra.mxu0 0
        %1863 = vmatprep.subr.bf16.mxu0 0
        %1864 = vmatpush1.bf16.msra.mxu0 %v1845
        %1865 = vmatprep.subr.bf16.mxu0 0
        %1866 = vmatpush1.bf16.msra.mxu0 %v1844
        %1867 = vmatprep.subr.bf16.mxu0 0
        %1868 = vmatpush2.bf16.msra.mxu0 0
        %1869 = vmatprep.subr.bf16.mxu0 0
        %1870 = vmatpush2.bf16.msra.mxu0 0
        %1871 = vmatprep.subr.bf16.mxu0 0
        %1872 = vmatpush2.bf16.msra.mxu0 0
        %1873 = vmatprep.subr.bf16.mxu0 0
        %1874 = vmatpush2.bf16.msra.mxu0 0
        %1875 = vmatprep.subr.bf16.mxu0 0
        %1876 = vmatpush2.bf16.msra.mxu0 0
        %1877 = vmatprep.subr.bf16.mxu0 0
        %1878 = vmatpush2.bf16.msra.mxu0 0
        %1879 = vmatprep.subr.bf16.mxu0 0
        %1880 = vmatpush2.bf16.msra.mxu0 0
        %1881 = vmatprep.subr.bf16.mxu0 0
        %1882 = vmatpush2.bf16.msra.mxu0 0
        %1883 = vmatprep.mubr.bf16.mxu0 0
        %1884 = vmatmul.mubr.bf16.gmra.mxu0 %v1849
        %v1885 = vpop.f32.mrf.mxu0
        %v1886 = vadd.f32 0.0, %v1885
        %v1887 = vpop.f32.mrf.mxu0
        %v1888 = vpop.f32.mrf.mxu0
        %v1889 = vpop.f32.mrf.mxu0
        %1890 = vdwg.mxu0
        %v1891 = vadd.f32 %v1829, %v1886
        %v1892 = vpack.c.bf16 %v1635, %v1635
        %s1893 = scalar_lea.vmem %s2, 64
        %v1894 = vld [vmem:[%s1893] sm:$0xf]
        %v1895 = vld [vmem:[%s1893 + $0x4] sm:$0xf]
        %v1896 = vld [vmem:[%s1893 + $0x8] sm:$0xf]
        %v1897 = vld [vmem:[%s1893 + $0xc] sm:$0xf]
        %v1902 = vunpack.c.l.b16 %v1894
        %v1903 = vunpack.c.l.b16 %v1895
        %v1904 = vunpack.c.l.b16 %v1896
        %v1905 = vunpack.c.l.b16 %v1897
        %v1906 = vpack.c.b16 %v1903, %v1902
        %v1907 = vpack.c.b16 %v1905, %v1904
        %v1911 = vsel %vm876, %v1892, 0
        %1913 = vmatprep.subr.bf16.mxu0 0
        %1914 = vmatpush1.bf16.msra.mxu0 0
        %1915 = vmatprep.subr.bf16.mxu0 0
        %1916 = vmatpush1.bf16.msra.mxu0 0
        %1917 = vmatprep.subr.bf16.mxu0 0
        %1918 = vmatpush1.bf16.msra.mxu0 0
        %1919 = vmatprep.subr.bf16.mxu0 0
        %1920 = vmatpush1.bf16.msra.mxu0 0
        %1921 = vmatprep.subr.bf16.mxu0 0
        %1922 = vmatpush1.bf16.msra.mxu0 0
        %1923 = vmatprep.subr.bf16.mxu0 0
        %1924 = vmatpush1.bf16.msra.mxu0 0
        %1925 = vmatprep.subr.bf16.mxu0 0
        %1926 = vmatpush1.bf16.msra.mxu0 %v1907
        %1927 = vmatprep.subr.bf16.mxu0 0
        %1928 = vmatpush1.bf16.msra.mxu0 %v1906
        %1929 = vmatprep.subr.bf16.mxu0 0
        %1930 = vmatpush2.bf16.msra.mxu0 0
        %1931 = vmatprep.subr.bf16.mxu0 0
        %1932 = vmatpush2.bf16.msra.mxu0 0
        %1933 = vmatprep.subr.bf16.mxu0 0
        %1934 = vmatpush2.bf16.msra.mxu0 0
        %1935 = vmatprep.subr.bf16.mxu0 0
        %1936 = vmatpush2.bf16.msra.mxu0 0
        %1937 = vmatprep.subr.bf16.mxu0 0
        %1938 = vmatpush2.bf16.msra.mxu0 0
        %1939 = vmatprep.subr.bf16.mxu0 0
        %1940 = vmatpush2.bf16.msra.mxu0 0
        %1941 = vmatprep.subr.bf16.mxu0 0
        %1942 = vmatpush2.bf16.msra.mxu0 0
        %1943 = vmatprep.subr.bf16.mxu0 0
        %1944 = vmatpush2.bf16.msra.mxu0 0
        %1945 = vmatprep.mubr.bf16.mxu0 0
        %1946 = vmatmul.mubr.bf16.gmra.mxu0 %v1911
        %v1947 = vpop.f32.mrf.mxu0
        %v1948 = vadd.f32 0.0, %v1947
        %v1949 = vpop.f32.mrf.mxu0
        %v1950 = vpop.f32.mrf.mxu0
        %v1951 = vpop.f32.mrf.mxu0
        %1952 = vdwg.mxu0
        %v1953 = vadd.f32 %v1891, %v1948
        %v1954 = vpack.c.bf16 %v1636, %v1636
        %s1955 = scalar_lea.vmem %s2, 80
        %v1956 = vld [vmem:[%s1955] sm:$0xf]
        %v1957 = vld [vmem:[%s1955 + $0x4] sm:$0xf]
        %v1958 = vld [vmem:[%s1955 + $0x8] sm:$0xf]
        %v1959 = vld [vmem:[%s1955 + $0xc] sm:$0xf]
        %v1964 = vunpack.c.l.b16 %v1956
        %v1965 = vunpack.c.l.b16 %v1957
        %v1966 = vunpack.c.l.b16 %v1958
        %v1967 = vunpack.c.l.b16 %v1959
        %v1968 = vpack.c.b16 %v1965, %v1964
        %v1969 = vpack.c.b16 %v1967, %v1966
        %v1973 = vsel %vm876, %v1954, 0
        %1975 = vmatprep.subr.bf16.mxu0 0
        %1976 = vmatpush1.bf16.msra.mxu0 0
        %1977 = vmatprep.subr.bf16.mxu0 0
        %1978 = vmatpush1.bf16.msra.mxu0 0
        %1979 = vmatprep.subr.bf16.mxu0 0
        %1980 = vmatpush1.bf16.msra.mxu0 0
        %1981 = vmatprep.subr.bf16.mxu0 0
        %1982 = vmatpush1.bf16.msra.mxu0 0
        %1983 = vmatprep.subr.bf16.mxu0 0
        %1984 = vmatpush1.bf16.msra.mxu0 0
        %1985 = vmatprep.subr.bf16.mxu0 0
        %1986 = vmatpush1.bf16.msra.mxu0 0
        %1987 = vmatprep.subr.bf16.mxu0 0
        %1988 = vmatpush1.bf16.msra.mxu0 %v1969
        %1989 = vmatprep.subr.bf16.mxu0 0
        %1990 = vmatpush1.bf16.msra.mxu0 %v1968
        %1991 = vmatprep.subr.bf16.mxu0 0
        %1992 = vmatpush2.bf16.msra.mxu0 0
        %1993 = vmatprep.subr.bf16.mxu0 0
        %1994 = vmatpush2.bf16.msra.mxu0 0
        %1995 = vmatprep.subr.bf16.mxu0 0
        %1996 = vmatpush2.bf16.msra.mxu0 0
        %1997 = vmatprep.subr.bf16.mxu0 0
        %1998 = vmatpush2.bf16.msra.mxu0 0
        %1999 = vmatprep.subr.bf16.mxu0 0
        %2000 = vmatpush2.bf16.msra.mxu0 0
        %2001 = vmatprep.subr.bf16.mxu0 0
        %2002 = vmatpush2.bf16.msra.mxu0 0
        %2003 = vmatprep.subr.bf16.mxu0 0
        %2004 = vmatpush2.bf16.msra.mxu0 0
        %2005 = vmatprep.subr.bf16.mxu0 0
        %2006 = vmatpush2.bf16.msra.mxu0 0
        %2007 = vmatprep.mubr.bf16.mxu0 0
        %2008 = vmatmul.mubr.bf16.gmra.mxu0 %v1973
        %v2009 = vpop.f32.mrf.mxu0
        %v2010 = vadd.f32 0.0, %v2009
        %v2011 = vpop.f32.mrf.mxu0
        %v2012 = vpop.f32.mrf.mxu0
        %v2013 = vpop.f32.mrf.mxu0
        %2014 = vdwg.mxu0
        %v2015 = vadd.f32 %v1953, %v2010
        %v2016 = vpack.c.bf16 %v1637, %v1637
        %s2017 = scalar_lea.vmem %s2, 96
        %v2018 = vld [vmem:[%s2017] sm:$0xf]
        %v2019 = vld [vmem:[%s2017 + $0x4] sm:$0xf]
        %v2020 = vld [vmem:[%s2017 + $0x8] sm:$0xf]
        %v2021 = vld [vmem:[%s2017 + $0xc] sm:$0xf]
        %v2026 = vunpack.c.l.b16 %v2018
        %v2027 = vunpack.c.l.b16 %v2019
        %v2028 = vunpack.c.l.b16 %v2020
        %v2029 = vunpack.c.l.b16 %v2021
        %v2030 = vpack.c.b16 %v2027, %v2026
        %v2031 = vpack.c.b16 %v2029, %v2028
        %v2035 = vsel %vm876, %v2016, 0
        %2037 = vmatprep.subr.bf16.mxu0 0
        %2038 = vmatpush1.bf16.msra.mxu0 0
        %2039 = vmatprep.subr.bf16.mxu0 0
        %2040 = vmatpush1.bf16.msra.mxu0 0
        %2041 = vmatprep.subr.bf16.mxu0 0
        %2042 = vmatpush1.bf16.msra.mxu0 0
        %2043 = vmatprep.subr.bf16.mxu0 0
        %2044 = vmatpush1.bf16.msra.mxu0 0
        %2045 = vmatprep.subr.bf16.mxu0 0
        %2046 = vmatpush1.bf16.msra.mxu0 0
        %2047 = vmatprep.subr.bf16.mxu0 0
        %2048 = vmatpush1.bf16.msra.mxu0 0
        %2049 = vmatprep.subr.bf16.mxu0 0
        %2050 = vmatpush1.bf16.msra.mxu0 %v2031
        %2051 = vmatprep.subr.bf16.mxu0 0
        %2052 = vmatpush1.bf16.msra.mxu0 %v2030
        %2053 = vmatprep.subr.bf16.mxu0 0
        %2054 = vmatpush2.bf16.msra.mxu0 0
        %2055 = vmatprep.subr.bf16.mxu0 0
        %2056 = vmatpush2.bf16.msra.mxu0 0
        %2057 = vmatprep.subr.bf16.mxu0 0
        %2058 = vmatpush2.bf16.msra.mxu0 0
        %2059 = vmatprep.subr.bf16.mxu0 0
        %2060 = vmatpush2.bf16.msra.mxu0 0
        %2061 = vmatprep.subr.bf16.mxu0 0
        %2062 = vmatpush2.bf16.msra.mxu0 0
        %2063 = vmatprep.subr.bf16.mxu0 0
        %2064 = vmatpush2.bf16.msra.mxu0 0
        %2065 = vmatprep.subr.bf16.mxu0 0
        %2066 = vmatpush2.bf16.msra.mxu0 0
        %2067 = vmatprep.subr.bf16.mxu0 0
        %2068 = vmatpush2.bf16.msra.mxu0 0
        %2069 = vmatprep.mubr.bf16.mxu0 0
        %2070 = vmatmul.mubr.bf16.gmra.mxu0 %v2035
        %v2071 = vpop.f32.mrf.mxu0
        %v2072 = vadd.f32 0.0, %v2071
        %v2073 = vpop.f32.mrf.mxu0
        %v2074 = vpop.f32.mrf.mxu0
        %v2075 = vpop.f32.mrf.mxu0
        %2076 = vdwg.mxu0
        %v2077 = vadd.f32 %v2015, %v2072
        %v2078 = vpack.c.bf16 %v1638, %v1638
        %s2079 = scalar_lea.vmem %s2, 112
        %v2080 = vld [vmem:[%s2079] sm:$0xf]
        %v2081 = vld [vmem:[%s2079 + $0x4] sm:$0xf]
        %v2082 = vld [vmem:[%s2079 + $0x8] sm:$0xf]
        %v2083 = vld [vmem:[%s2079 + $0xc] sm:$0xf]
        %v2088 = vunpack.c.l.b16 %v2080
        %v2089 = vunpack.c.l.b16 %v2081
        %v2090 = vunpack.c.l.b16 %v2082
        %v2091 = vunpack.c.l.b16 %v2083
        %v2092 = vpack.c.b16 %v2089, %v2088
        %v2093 = vpack.c.b16 %v2091, %v2090
        %v2097 = vsel %vm876, %v2078, 0
        %2099 = vmatprep.subr.bf16.mxu0 0
        %2100 = vmatpush1.bf16.msra.mxu0 0
        %2101 = vmatprep.subr.bf16.mxu0 0
        %2102 = vmatpush1.bf16.msra.mxu0 0
        %2103 = vmatprep.subr.bf16.mxu0 0
        %2104 = vmatpush1.bf16.msra.mxu0 0
        %2105 = vmatprep.subr.bf16.mxu0 0
        %2106 = vmatpush1.bf16.msra.mxu0 0
        %2107 = vmatprep.subr.bf16.mxu0 0
        %2108 = vmatpush1.bf16.msra.mxu0 0
        %2109 = vmatprep.subr.bf16.mxu0 0
        %2110 = vmatpush1.bf16.msra.mxu0 0
        %2111 = vmatprep.subr.bf16.mxu0 0
        %2112 = vmatpush1.bf16.msra.mxu0 %v2093
        %2113 = vmatprep.subr.bf16.mxu0 0
        %2114 = vmatpush1.bf16.msra.mxu0 %v2092
        %2115 = vmatprep.subr.bf16.mxu0 0
        %2116 = vmatpush2.bf16.msra.mxu0 0
        %2117 = vmatprep.subr.bf16.mxu0 0
        %2118 = vmatpush2.bf16.msra.mxu0 0
        %2119 = vmatprep.subr.bf16.mxu0 0
        %2120 = vmatpush2.bf16.msra.mxu0 0
        %2121 = vmatprep.subr.bf16.mxu0 0
        %2122 = vmatpush2.bf16.msra.mxu0 0
        %2123 = vmatprep.subr.bf16.mxu0 0
        %2124 = vmatpush2.bf16.msra.mxu0 0
        %2125 = vmatprep.subr.bf16.mxu0 0
        %2126 = vmatpush2.bf16.msra.mxu0 0
        %2127 = vmatprep.subr.bf16.mxu0 0
        %2128 = vmatpush2.bf16.msra.mxu0 0
        %2129 = vmatprep.subr.bf16.mxu0 0
        %2130 = vmatpush2.bf16.msra.mxu0 0
        %2131 = vmatprep.mubr.bf16.mxu0 0
        %2132 = vmatmul.mubr.bf16.gmra.mxu0 %v2097
        %v2133 = vpop.f32.mrf.mxu0
        %v2134 = vadd.f32 0.0, %v2133
        %v2135 = vpop.f32.mrf.mxu0
        %v2136 = vpop.f32.mrf.mxu0
        %v2137 = vpop.f32.mrf.mxu0
        %2138 = vdwg.mxu0
        %v2139 = vadd.f32 %v2077, %v2134
        %v2140 = vpack.c.bf16 %v1639, %v1639
        %s2141 = scalar_lea.vmem %s2, 128
        %v2142 = vld [vmem:[%s2141] sm:$0xf]
        %v2143 = vld [vmem:[%s2141 + $0x4] sm:$0xf]
        %v2144 = vld [vmem:[%s2141 + $0x8] sm:$0xf]
        %v2145 = vld [vmem:[%s2141 + $0xc] sm:$0xf]
        %v2150 = vunpack.c.l.b16 %v2142
        %v2151 = vunpack.c.l.b16 %v2143
        %v2152 = vunpack.c.l.b16 %v2144
        %v2153 = vunpack.c.l.b16 %v2145
        %v2154 = vpack.c.b16 %v2151, %v2150
        %v2155 = vpack.c.b16 %v2153, %v2152
        %v2159 = vsel %vm876, %v2140, 0
        %2161 = vmatprep.subr.bf16.mxu0 0
        %2162 = vmatpush1.bf16.msra.mxu0 0
        %2163 = vmatprep.subr.bf16.mxu0 0
        %2164 = vmatpush1.bf16.msra.mxu0 0
        %2165 = vmatprep.subr.bf16.mxu0 0
        %2166 = vmatpush1.bf16.msra.mxu0 0
        %2167 = vmatprep.subr.bf16.mxu0 0
        %2168 = vmatpush1.bf16.msra.mxu0 0
        %2169 = vmatprep.subr.bf16.mxu0 0
        %2170 = vmatpush1.bf16.msra.mxu0 0
        %2171 = vmatprep.subr.bf16.mxu0 0
        %2172 = vmatpush1.bf16.msra.mxu0 0
        %2173 = vmatprep.subr.bf16.mxu0 0
        %2174 = vmatpush1.bf16.msra.mxu0 %v2155
        %2175 = vmatprep.subr.bf16.mxu0 0
        %2176 = vmatpush1.bf16.msra.mxu0 %v2154
        %2177 = vmatprep.subr.bf16.mxu0 0
        %2178 = vmatpush2.bf16.msra.mxu0 0
        %2179 = vmatprep.subr.bf16.mxu0 0
        %2180 = vmatpush2.bf16.msra.mxu0 0
        %2181 = vmatprep.subr.bf16.mxu0 0
        %2182 = vmatpush2.bf16.msra.mxu0 0
        %2183 = vmatprep.subr.bf16.mxu0 0
        %2184 = vmatpush2.bf16.msra.mxu0 0
        %2185 = vmatprep.subr.bf16.mxu0 0
        %2186 = vmatpush2.bf16.msra.mxu0 0
        %2187 = vmatprep.subr.bf16.mxu0 0
        %2188 = vmatpush2.bf16.msra.mxu0 0
        %2189 = vmatprep.subr.bf16.mxu0 0
        %2190 = vmatpush2.bf16.msra.mxu0 0
        %2191 = vmatprep.subr.bf16.mxu0 0
        %2192 = vmatpush2.bf16.msra.mxu0 0
        %2193 = vmatprep.mubr.bf16.mxu0 0
        %2194 = vmatmul.mubr.bf16.gmra.mxu0 %v2159
        %v2195 = vpop.f32.mrf.mxu0
        %v2196 = vadd.f32 0.0, %v2195
        %v2197 = vpop.f32.mrf.mxu0
        %v2198 = vpop.f32.mrf.mxu0
        %v2199 = vpop.f32.mrf.mxu0
        %2200 = vdwg.mxu0
        %v2201 = vadd.f32 %v2139, %v2196
        %v2202 = vpack.c.bf16 %v1640, %v1640
        %s2203 = scalar_lea.vmem %s2, 144
        %v2204 = vld [vmem:[%s2203] sm:$0xf]
        %v2205 = vld [vmem:[%s2203 + $0x4] sm:$0xf]
        %v2206 = vld [vmem:[%s2203 + $0x8] sm:$0xf]
        %v2207 = vld [vmem:[%s2203 + $0xc] sm:$0xf]
        %v2212 = vunpack.c.l.b16 %v2204
        %v2213 = vunpack.c.l.b16 %v2205
        %v2214 = vunpack.c.l.b16 %v2206
        %v2215 = vunpack.c.l.b16 %v2207
        %v2216 = vpack.c.b16 %v2213, %v2212
        %v2217 = vpack.c.b16 %v2215, %v2214
        %v2221 = vsel %vm876, %v2202, 0
        %2223 = vmatprep.subr.bf16.mxu0 0
        %2224 = vmatpush1.bf16.msra.mxu0 0
        %2225 = vmatprep.subr.bf16.mxu0 0
        %2226 = vmatpush1.bf16.msra.mxu0 0
        %2227 = vmatprep.subr.bf16.mxu0 0
        %2228 = vmatpush1.bf16.msra.mxu0 0
        %2229 = vmatprep.subr.bf16.mxu0 0
        %2230 = vmatpush1.bf16.msra.mxu0 0
        %2231 = vmatprep.subr.bf16.mxu0 0
        %2232 = vmatpush1.bf16.msra.mxu0 0
        %2233 = vmatprep.subr.bf16.mxu0 0
        %2234 = vmatpush1.bf16.msra.mxu0 0
        %2235 = vmatprep.subr.bf16.mxu0 0
        %2236 = vmatpush1.bf16.msra.mxu0 %v2217
        %2237 = vmatprep.subr.bf16.mxu0 0
        %2238 = vmatpush1.bf16.msra.mxu0 %v2216
        %2239 = vmatprep.subr.bf16.mxu0 0
        %2240 = vmatpush2.bf16.msra.mxu0 0
        %2241 = vmatprep.subr.bf16.mxu0 0
        %2242 = vmatpush2.bf16.msra.mxu0 0
        %2243 = vmatprep.subr.bf16.mxu0 0
        %2244 = vmatpush2.bf16.msra.mxu0 0
        %2245 = vmatprep.subr.bf16.mxu0 0
        %2246 = vmatpush2.bf16.msra.mxu0 0
        %2247 = vmatprep.subr.bf16.mxu0 0
        %2248 = vmatpush2.bf16.msra.mxu0 0
        %2249 = vmatprep.subr.bf16.mxu0 0
        %2250 = vmatpush2.bf16.msra.mxu0 0
        %2251 = vmatprep.subr.bf16.mxu0 0
        %2252 = vmatpush2.bf16.msra.mxu0 0
        %2253 = vmatprep.subr.bf16.mxu0 0
        %2254 = vmatpush2.bf16.msra.mxu0 0
        %2255 = vmatprep.mubr.bf16.mxu0 0
        %2256 = vmatmul.mubr.bf16.gmra.mxu0 %v2221
        %v2257 = vpop.f32.mrf.mxu0
        %v2258 = vadd.f32 0.0, %v2257
        %v2259 = vpop.f32.mrf.mxu0
        %v2260 = vpop.f32.mrf.mxu0
        %v2261 = vpop.f32.mrf.mxu0
        %2262 = vdwg.mxu0
        %v2263 = vadd.f32 %v2201, %v2258
        %v2264 = vpack.c.bf16 %v1641, %v1641
        %s2265 = scalar_lea.vmem %s2, 160
        %v2266 = vld [vmem:[%s2265] sm:$0xf]
        %v2267 = vld [vmem:[%s2265 + $0x4] sm:$0xf]
        %v2268 = vld [vmem:[%s2265 + $0x8] sm:$0xf]
        %v2269 = vld [vmem:[%s2265 + $0xc] sm:$0xf]
        %v2274 = vunpack.c.l.b16 %v2266
        %v2275 = vunpack.c.l.b16 %v2267
        %v2276 = vunpack.c.l.b16 %v2268
        %v2277 = vunpack.c.l.b16 %v2269
        %v2278 = vpack.c.b16 %v2275, %v2274
        %v2279 = vpack.c.b16 %v2277, %v2276
        %v2283 = vsel %vm876, %v2264, 0
        %2285 = vmatprep.subr.bf16.mxu0 0
        %2286 = vmatpush1.bf16.msra.mxu0 0
        %2287 = vmatprep.subr.bf16.mxu0 0
        %2288 = vmatpush1.bf16.msra.mxu0 0
        %2289 = vmatprep.subr.bf16.mxu0 0
        %2290 = vmatpush1.bf16.msra.mxu0 0
        %2291 = vmatprep.subr.bf16.mxu0 0
        %2292 = vmatpush1.bf16.msra.mxu0 0
        %2293 = vmatprep.subr.bf16.mxu0 0
        %2294 = vmatpush1.bf16.msra.mxu0 0
        %2295 = vmatprep.subr.bf16.mxu0 0
        %2296 = vmatpush1.bf16.msra.mxu0 0
        %2297 = vmatprep.subr.bf16.mxu0 0
        %2298 = vmatpush1.bf16.msra.mxu0 %v2279
        %2299 = vmatprep.subr.bf16.mxu0 0
        %2300 = vmatpush1.bf16.msra.mxu0 %v2278
        %2301 = vmatprep.subr.bf16.mxu0 0
        %2302 = vmatpush2.bf16.msra.mxu0 0
        %2303 = vmatprep.subr.bf16.mxu0 0
        %2304 = vmatpush2.bf16.msra.mxu0 0
        %2305 = vmatprep.subr.bf16.mxu0 0
        %2306 = vmatpush2.bf16.msra.mxu0 0
        %2307 = vmatprep.subr.bf16.mxu0 0
        %2308 = vmatpush2.bf16.msra.mxu0 0
        %2309 = vmatprep.subr.bf16.mxu0 0
        %2310 = vmatpush2.bf16.msra.mxu0 0
        %2311 = vmatprep.subr.bf16.mxu0 0
        %2312 = vmatpush2.bf16.msra.mxu0 0
        %2313 = vmatprep.subr.bf16.mxu0 0
        %2314 = vmatpush2.bf16.msra.mxu0 0
        %2315 = vmatprep.subr.bf16.mxu0 0
        %2316 = vmatpush2.bf16.msra.mxu0 0
        %2317 = vmatprep.mubr.bf16.mxu0 0
        %2318 = vmatmul.mubr.bf16.gmra.mxu0 %v2283
        %v2319 = vpop.f32.mrf.mxu0
        %v2320 = vadd.f32 0.0, %v2319
        %v2321 = vpop.f32.mrf.mxu0
        %v2322 = vpop.f32.mrf.mxu0
        %v2323 = vpop.f32.mrf.mxu0
        %2324 = vdwg.mxu0
        %v2325 = vadd.f32 %v2263, %v2320
        %v2326 = vpack.c.bf16 %v1642, %v1642
        %s2327 = scalar_lea.vmem %s2, 176
        %v2328 = vld [vmem:[%s2327] sm:$0xf]
        %v2329 = vld [vmem:[%s2327 + $0x4] sm:$0xf]
        %v2330 = vld [vmem:[%s2327 + $0x8] sm:$0xf]
        %v2331 = vld [vmem:[%s2327 + $0xc] sm:$0xf]
        %v2336 = vunpack.c.l.b16 %v2328
        %v2337 = vunpack.c.l.b16 %v2329
        %v2338 = vunpack.c.l.b16 %v2330
        %v2339 = vunpack.c.l.b16 %v2331
        %v2340 = vpack.c.b16 %v2337, %v2336
        %v2341 = vpack.c.b16 %v2339, %v2338
        %v2345 = vsel %vm876, %v2326, 0
        %2347 = vmatprep.subr.bf16.mxu0 0
        %2348 = vmatpush1.bf16.msra.mxu0 0
        %2349 = vmatprep.subr.bf16.mxu0 0
        %2350 = vmatpush1.bf16.msra.mxu0 0
        %2351 = vmatprep.subr.bf16.mxu0 0
        %2352 = vmatpush1.bf16.msra.mxu0 0
        %2353 = vmatprep.subr.bf16.mxu0 0
        %2354 = vmatpush1.bf16.msra.mxu0 0
        %2355 = vmatprep.subr.bf16.mxu0 0
        %2356 = vmatpush1.bf16.msra.mxu0 0
        %2357 = vmatprep.subr.bf16.mxu0 0
        %2358 = vmatpush1.bf16.msra.mxu0 0
        %2359 = vmatprep.subr.bf16.mxu0 0
        %2360 = vmatpush1.bf16.msra.mxu0 %v2341
        %2361 = vmatprep.subr.bf16.mxu0 0
        %2362 = vmatpush1.bf16.msra.mxu0 %v2340
        %2363 = vmatprep.subr.bf16.mxu0 0
        %2364 = vmatpush2.bf16.msra.mxu0 0
        %2365 = vmatprep.subr.bf16.mxu0 0
        %2366 = vmatpush2.bf16.msra.mxu0 0
        %2367 = vmatprep.subr.bf16.mxu0 0
        %2368 = vmatpush2.bf16.msra.mxu0 0
        %2369 = vmatprep.subr.bf16.mxu0 0
        %2370 = vmatpush2.bf16.msra.mxu0 0
        %2371 = vmatprep.subr.bf16.mxu0 0
        %2372 = vmatpush2.bf16.msra.mxu0 0
        %2373 = vmatprep.subr.bf16.mxu0 0
        %2374 = vmatpush2.bf16.msra.mxu0 0
        %2375 = vmatprep.subr.bf16.mxu0 0
        %2376 = vmatpush2.bf16.msra.mxu0 0
        %2377 = vmatprep.subr.bf16.mxu0 0
        %2378 = vmatpush2.bf16.msra.mxu0 0
        %2379 = vmatprep.mubr.bf16.mxu0 0
        %2380 = vmatmul.mubr.bf16.gmra.mxu0 %v2345
        %v2381 = vpop.f32.mrf.mxu0
        %v2382 = vadd.f32 0.0, %v2381
        %v2383 = vpop.f32.mrf.mxu0
        %v2384 = vpop.f32.mrf.mxu0
        %v2385 = vpop.f32.mrf.mxu0
        %2386 = vdwg.mxu0
        %v2387 = vadd.f32 %v2325, %v2382
        %v2388 = vpack.c.bf16 %v1643, %v1643
        %s2389 = scalar_lea.vmem %s2, 192
        %v2390 = vld [vmem:[%s2389] sm:$0xf]
        %v2391 = vld [vmem:[%s2389 + $0x4] sm:$0xf]
        %v2392 = vld [vmem:[%s2389 + $0x8] sm:$0xf]
        %v2393 = vld [vmem:[%s2389 + $0xc] sm:$0xf]
        %v2398 = vunpack.c.l.b16 %v2390
        %v2399 = vunpack.c.l.b16 %v2391
        %v2400 = vunpack.c.l.b16 %v2392
        %v2401 = vunpack.c.l.b16 %v2393
        %v2402 = vpack.c.b16 %v2399, %v2398
        %v2403 = vpack.c.b16 %v2401, %v2400
        %v2407 = vsel %vm876, %v2388, 0
        %2409 = vmatprep.subr.bf16.mxu0 0
        %2410 = vmatpush1.bf16.msra.mxu0 0
        %2411 = vmatprep.subr.bf16.mxu0 0
        %2412 = vmatpush1.bf16.msra.mxu0 0
        %2413 = vmatprep.subr.bf16.mxu0 0
        %2414 = vmatpush1.bf16.msra.mxu0 0
        %2415 = vmatprep.subr.bf16.mxu0 0
        %2416 = vmatpush1.bf16.msra.mxu0 0
        %2417 = vmatprep.subr.bf16.mxu0 0
        %2418 = vmatpush1.bf16.msra.mxu0 0
        %2419 = vmatprep.subr.bf16.mxu0 0
        %2420 = vmatpush1.bf16.msra.mxu0 0
        %2421 = vmatprep.subr.bf16.mxu0 0
        %2422 = vmatpush1.bf16.msra.mxu0 %v2403
        %2423 = vmatprep.subr.bf16.mxu0 0
        %2424 = vmatpush1.bf16.msra.mxu0 %v2402
        %2425 = vmatprep.subr.bf16.mxu0 0
        %2426 = vmatpush2.bf16.msra.mxu0 0
        %2427 = vmatprep.subr.bf16.mxu0 0
        %2428 = vmatpush2.bf16.msra.mxu0 0
        %2429 = vmatprep.subr.bf16.mxu0 0
        %2430 = vmatpush2.bf16.msra.mxu0 0
        %2431 = vmatprep.subr.bf16.mxu0 0
        %2432 = vmatpush2.bf16.msra.mxu0 0
        %2433 = vmatprep.subr.bf16.mxu0 0
        %2434 = vmatpush2.bf16.msra.mxu0 0
        %2435 = vmatprep.subr.bf16.mxu0 0
        %2436 = vmatpush2.bf16.msra.mxu0 0
        %2437 = vmatprep.subr.bf16.mxu0 0
        %2438 = vmatpush2.bf16.msra.mxu0 0
        %2439 = vmatprep.subr.bf16.mxu0 0
        %2440 = vmatpush2.bf16.msra.mxu0 0
        %2441 = vmatprep.mubr.bf16.mxu0 0
        %2442 = vmatmul.mubr.bf16.gmra.mxu0 %v2407
        %v2443 = vpop.f32.mrf.mxu0
        %v2444 = vadd.f32 0.0, %v2443
        %v2445 = vpop.f32.mrf.mxu0
        %v2446 = vpop.f32.mrf.mxu0
        %v2447 = vpop.f32.mrf.mxu0
        %2448 = vdwg.mxu0
        %v2449 = vadd.f32 %v2387, %v2444
        %v2450 = vpack.c.bf16 %v1644, %v1644
        %s2451 = scalar_lea.vmem %s2, 208
        %v2452 = vld [vmem:[%s2451] sm:$0xf]
        %v2453 = vld [vmem:[%s2451 + $0x4] sm:$0xf]
        %v2454 = vld [vmem:[%s2451 + $0x8] sm:$0xf]
        %v2455 = vld [vmem:[%s2451 + $0xc] sm:$0xf]
        %v2460 = vunpack.c.l.b16 %v2452
        %v2461 = vunpack.c.l.b16 %v2453
        %v2462 = vunpack.c.l.b16 %v2454
        %v2463 = vunpack.c.l.b16 %v2455
        %v2464 = vpack.c.b16 %v2461, %v2460
        %v2465 = vpack.c.b16 %v2463, %v2462
        %v2469 = vsel %vm876, %v2450, 0
        %2471 = vmatprep.subr.bf16.mxu0 0
        %2472 = vmatpush1.bf16.msra.mxu0 0
        %2473 = vmatprep.subr.bf16.mxu0 0
        %2474 = vmatpush1.bf16.msra.mxu0 0
        %2475 = vmatprep.subr.bf16.mxu0 0
        %2476 = vmatpush1.bf16.msra.mxu0 0
        %2477 = vmatprep.subr.bf16.mxu0 0
        %2478 = vmatpush1.bf16.msra.mxu0 0
        %2479 = vmatprep.subr.bf16.mxu0 0
        %2480 = vmatpush1.bf16.msra.mxu0 0
        %2481 = vmatprep.subr.bf16.mxu0 0
        %2482 = vmatpush1.bf16.msra.mxu0 0
        %2483 = vmatprep.subr.bf16.mxu0 0
        %2484 = vmatpush1.bf16.msra.mxu0 %v2465
        %2485 = vmatprep.subr.bf16.mxu0 0
        %2486 = vmatpush1.bf16.msra.mxu0 %v2464
        %2487 = vmatprep.subr.bf16.mxu0 0
        %2488 = vmatpush2.bf16.msra.mxu0 0
        %2489 = vmatprep.subr.bf16.mxu0 0
        %2490 = vmatpush2.bf16.msra.mxu0 0
        %2491 = vmatprep.subr.bf16.mxu0 0
        %2492 = vmatpush2.bf16.msra.mxu0 0
        %2493 = vmatprep.subr.bf16.mxu0 0
        %2494 = vmatpush2.bf16.msra.mxu0 0
        %2495 = vmatprep.subr.bf16.mxu0 0
        %2496 = vmatpush2.bf16.msra.mxu0 0
        %2497 = vmatprep.subr.bf16.mxu0 0
        %2498 = vmatpush2.bf16.msra.mxu0 0
        %2499 = vmatprep.subr.bf16.mxu0 0
        %2500 = vmatpush2.bf16.msra.mxu0 0
        %2501 = vmatprep.subr.bf16.mxu0 0
        %2502 = vmatpush2.bf16.msra.mxu0 0
        %2503 = vmatprep.mubr.bf16.mxu0 0
        %2504 = vmatmul.mubr.bf16.gmra.mxu0 %v2469
        %v2505 = vpop.f32.mrf.mxu0
        %v2506 = vadd.f32 0.0, %v2505
        %v2507 = vpop.f32.mrf.mxu0
        %v2508 = vpop.f32.mrf.mxu0
        %v2509 = vpop.f32.mrf.mxu0
        %2510 = vdwg.mxu0
        %v2511 = vadd.f32 %v2449, %v2506
        %v2512 = vpack.c.bf16 %v1645, %v1645
        %s2513 = scalar_lea.vmem %s2, 224
        %v2514 = vld [vmem:[%s2513] sm:$0xf]
        %v2515 = vld [vmem:[%s2513 + $0x4] sm:$0xf]
        %v2516 = vld [vmem:[%s2513 + $0x8] sm:$0xf]
        %v2517 = vld [vmem:[%s2513 + $0xc] sm:$0xf]
        %v2522 = vunpack.c.l.b16 %v2514
        %v2523 = vunpack.c.l.b16 %v2515
        %v2524 = vunpack.c.l.b16 %v2516
        %v2525 = vunpack.c.l.b16 %v2517
        %v2526 = vpack.c.b16 %v2523, %v2522
        %v2527 = vpack.c.b16 %v2525, %v2524
        %v2531 = vsel %vm876, %v2512, 0
        %2533 = vmatprep.subr.bf16.mxu0 0
        %2534 = vmatpush1.bf16.msra.mxu0 0
        %2535 = vmatprep.subr.bf16.mxu0 0
        %2536 = vmatpush1.bf16.msra.mxu0 0
        %2537 = vmatprep.subr.bf16.mxu0 0
        %2538 = vmatpush1.bf16.msra.mxu0 0
        %2539 = vmatprep.subr.bf16.mxu0 0
        %2540 = vmatpush1.bf16.msra.mxu0 0
        %2541 = vmatprep.subr.bf16.mxu0 0
        %2542 = vmatpush1.bf16.msra.mxu0 0
        %2543 = vmatprep.subr.bf16.mxu0 0
        %2544 = vmatpush1.bf16.msra.mxu0 0
        %2545 = vmatprep.subr.bf16.mxu0 0
        %2546 = vmatpush1.bf16.msra.mxu0 %v2527
        %2547 = vmatprep.subr.bf16.mxu0 0
        %2548 = vmatpush1.bf16.msra.mxu0 %v2526
        %2549 = vmatprep.subr.bf16.mxu0 0
        %2550 = vmatpush2.bf16.msra.mxu0 0
        %2551 = vmatprep.subr.bf16.mxu0 0
        %2552 = vmatpush2.bf16.msra.mxu0 0
        %2553 = vmatprep.subr.bf16.mxu0 0
        %2554 = vmatpush2.bf16.msra.mxu0 0
        %2555 = vmatprep.subr.bf16.mxu0 0
        %2556 = vmatpush2.bf16.msra.mxu0 0
        %2557 = vmatprep.subr.bf16.mxu0 0
        %2558 = vmatpush2.bf16.msra.mxu0 0
        %2559 = vmatprep.subr.bf16.mxu0 0
        %2560 = vmatpush2.bf16.msra.mxu0 0
        %2561 = vmatprep.subr.bf16.mxu0 0
        %2562 = vmatpush2.bf16.msra.mxu0 0
        %2563 = vmatprep.subr.bf16.mxu0 0
        %2564 = vmatpush2.bf16.msra.mxu0 0
        %2565 = vmatprep.mubr.bf16.mxu0 0
        %2566 = vmatmul.mubr.bf16.gmra.mxu0 %v2531
        %v2567 = vpop.f32.mrf.mxu0
        %v2568 = vadd.f32 0.0, %v2567
        %v2569 = vpop.f32.mrf.mxu0
        %v2570 = vpop.f32.mrf.mxu0
        %v2571 = vpop.f32.mrf.mxu0
        %2572 = vdwg.mxu0
        %v2573 = vadd.f32 %v2511, %v2568
        %v2574 = vpack.c.bf16 %v1646, %v1646
        %s2575 = scalar_lea.vmem %s2, 240
        %v2576 = vld [vmem:[%s2575] sm:$0xf]
        %v2577 = vld [vmem:[%s2575 + $0x4] sm:$0xf]
        %v2578 = vld [vmem:[%s2575 + $0x8] sm:$0xf]
        %v2579 = vld [vmem:[%s2575 + $0xc] sm:$0xf]
        %v2584 = vunpack.c.l.b16 %v2576
        %v2585 = vunpack.c.l.b16 %v2577
        %v2586 = vunpack.c.l.b16 %v2578
        %v2587 = vunpack.c.l.b16 %v2579
        %v2588 = vpack.c.b16 %v2585, %v2584
        %v2589 = vpack.c.b16 %v2587, %v2586
        %v2593 = vsel %vm876, %v2574, 0
        %2595 = vmatprep.subr.bf16.mxu0 0
        %2596 = vmatpush1.bf16.msra.mxu0 0
        %2597 = vmatprep.subr.bf16.mxu0 0
        %2598 = vmatpush1.bf16.msra.mxu0 0
        %2599 = vmatprep.subr.bf16.mxu0 0
        %2600 = vmatpush1.bf16.msra.mxu0 0
        %2601 = vmatprep.subr.bf16.mxu0 0
        %2602 = vmatpush1.bf16.msra.mxu0 0
        %2603 = vmatprep.subr.bf16.mxu0 0
        %2604 = vmatpush1.bf16.msra.mxu0 0
        %2605 = vmatprep.subr.bf16.mxu0 0
        %2606 = vmatpush1.bf16.msra.mxu0 0
        %2607 = vmatprep.subr.bf16.mxu0 0
        %2608 = vmatpush1.bf16.msra.mxu0 %v2589
        %2609 = vmatprep.subr.bf16.mxu0 0
        %2610 = vmatpush1.bf16.msra.mxu0 %v2588
        %2611 = vmatprep.subr.bf16.mxu0 0
        %2612 = vmatpush2.bf16.msra.mxu0 0
        %2613 = vmatprep.subr.bf16.mxu0 0
        %2614 = vmatpush2.bf16.msra.mxu0 0
        %2615 = vmatprep.subr.bf16.mxu0 0
        %2616 = vmatpush2.bf16.msra.mxu0 0
        %2617 = vmatprep.subr.bf16.mxu0 0
        %2618 = vmatpush2.bf16.msra.mxu0 0
        %2619 = vmatprep.subr.bf16.mxu0 0
        %2620 = vmatpush2.bf16.msra.mxu0 0
        %2621 = vmatprep.subr.bf16.mxu0 0
        %2622 = vmatpush2.bf16.msra.mxu0 0
        %2623 = vmatprep.subr.bf16.mxu0 0
        %2624 = vmatpush2.bf16.msra.mxu0 0
        %2625 = vmatprep.subr.bf16.mxu0 0
        %2626 = vmatpush2.bf16.msra.mxu0 0
        %2627 = vmatprep.mubr.bf16.mxu0 0
        %2628 = vmatmul.mubr.bf16.gmra.mxu0 %v2593
        %v2629 = vpop.f32.mrf.mxu0
        %v2630 = vadd.f32 0.0, %v2629
        %v2631 = vpop.f32.mrf.mxu0
        %v2632 = vpop.f32.mrf.mxu0
        %v2633 = vpop.f32.mrf.mxu0
        %2634 = vdwg.mxu0
        %v2635 = vadd.f32 %v2573, %v2630
        %v2636 = vld [vmem:[%s5] sm:$0xff]
        %v2637 = vld [vmem:[%s6] sm:$0xff]
        %v2638 = vld [vmem:[%s9] sm:$0xff]
        %v2639 = vld [vmem:[%s9 + $0x8] sm:$0xff]
        %v2640 = vld [vmem:[%s9 + $0x10] sm:$0xff]
        %v2641 = vld [vmem:[%s9 + $0x18] sm:$0xff]
        %v2642 = vld [vmem:[%s9 + $0x20] sm:$0xff]
        %v2643 = vld [vmem:[%s9 + $0x28] sm:$0xff]
        %v2644 = vld [vmem:[%s9 + $0x30] sm:$0xff]
        %v2645 = vld [vmem:[%s9 + $0x38] sm:$0xff]
        %v2646 = vld [vmem:[%s9 + $0x40] sm:$0xff]
        %v2647 = vld [vmem:[%s9 + $0x48] sm:$0xff]
        %v2648 = vld [vmem:[%s9 + $0x50] sm:$0xff]
        %v2649 = vld [vmem:[%s9 + $0x58] sm:$0xff]
        %v2650 = vld [vmem:[%s9 + $0x60] sm:$0xff]
        %v2651 = vld [vmem:[%s9 + $0x68] sm:$0xff]
        %v2652 = vld [vmem:[%s9 + $0x70] sm:$0xff]
        %v2653 = vld [vmem:[%s9 + $0x78] sm:$0xff]
        %v2654 = vld [vmem:[%s10] sm:$0xf]
        %v2655 = vld [vmem:[%s13] sm:$0x1]
        %v2656 = vld [vmem:[%s14] sm:$0x1]
        %v2658 = vsel %vm1196, %v2637, 0
        %2660 = vmatprep.subr.mxu0 0.0
        %2661 = vmatpush1.msra.mxu0 0.0
        %2662 = vmatprep.subr.mxu0 0.0
        %2663 = vmatpush1.msra.mxu0 0.0
        %2664 = vmatprep.subr.mxu0 0.0
        %2665 = vmatpush1.msra.mxu0 0.0
        %2666 = vmatprep.subr.mxu0 0.0
        %2667 = vmatpush1.msra.mxu0 0.0
        %2668 = vmatprep.subr.mxu0 0.0
        %2669 = vmatpush1.msra.mxu0 0.0
        %2670 = vmatprep.subr.mxu0 0.0
        %2671 = vmatpush1.msra.mxu0 0.0
        %2672 = vmatprep.subr.mxu0 0.0
        %2673 = vmatpush1.msra.mxu0 0.0
        %2674 = vmatprep.subr.mxu0 0.0
        %2675 = vmatpush1.msra.mxu0 0.0
        %2676 = vmatprep.subr.mxu0 0.0
        %2677 = vmatpush1.msra.mxu0 0.0
        %2678 = vmatprep.subr.mxu0 0.0
        %2679 = vmatpush1.msra.mxu0 0.0
        %2680 = vmatprep.subr.mxu0 0.0
        %2681 = vmatpush1.msra.mxu0 0.0
        %2682 = vmatprep.subr.mxu0 0.0
        %2683 = vmatpush1.msra.mxu0 0.0
        %2684 = vmatprep.subr.mxu0 0.0
        %2685 = vmatpush1.msra.mxu0 0.0
        %2686 = vmatprep.subr.mxu0 0.0
        %2687 = vmatpush1.msra.mxu0 0.0
        %2688 = vmatprep.subr.mxu0 0.0
        %2689 = vmatpush1.msra.mxu0 0.0
        %2690 = vmatprep.subr.mxu0 0.0
        %2691 = vmatpush1.msra.mxu0 %v2635
        %2692 = vmatprep.subr.mxu0 0.0
        %2693 = vmatpush2.msra.mxu0 0.0
        %2694 = vmatprep.subr.mxu0 0.0
        %2695 = vmatpush2.msra.mxu0 0.0
        %2696 = vmatprep.subr.mxu0 0.0
        %2697 = vmatpush2.msra.mxu0 0.0
        %2698 = vmatprep.subr.mxu0 0.0
        %2699 = vmatpush2.msra.mxu0 0.0
        %2700 = vmatprep.subr.mxu0 0.0
        %2701 = vmatpush2.msra.mxu0 0.0
        %2702 = vmatprep.subr.mxu0 0.0
        %2703 = vmatpush2.msra.mxu0 0.0
        %2704 = vmatprep.subr.mxu0 0.0
        %2705 = vmatpush2.msra.mxu0 0.0
        %2706 = vmatprep.subr.mxu0 0.0
        %2707 = vmatpush2.msra.mxu0 0.0
        %2708 = vmatprep.subr.mxu0 0.0
        %2709 = vmatpush2.msra.mxu0 0.0
        %2710 = vmatprep.subr.mxu0 0.0
        %2711 = vmatpush2.msra.mxu0 0.0
        %2712 = vmatprep.subr.mxu0 0.0
        %2713 = vmatpush2.msra.mxu0 0.0
        %2714 = vmatprep.subr.mxu0 0.0
        %2715 = vmatpush2.msra.mxu0 0.0
        %2716 = vmatprep.subr.mxu0 0.0
        %2717 = vmatpush2.msra.mxu0 0.0
        %2718 = vmatprep.subr.mxu0 0.0
        %2719 = vmatpush2.msra.mxu0 0.0
        %2720 = vmatprep.subr.mxu0 0.0
        %2721 = vmatpush2.msra.mxu0 0.0
        %2722 = vmatprep.subr.mxu0 0.0
        %2723 = vmatpush2.msra.mxu0 0.0
        %2724 = vmatprep.mubr.f32.mxu0 0.0
        %2725 = vmatmul.mubr.f32.gmra.mxu0 %v2658
        %v2726 = vpop.f32.mrf.mxu0
        %v2727 = vadd.f32 0.0, %v2726
        %v2728 = vpop.f32.mrf.mxu0
        %2729 = vdwg.mxu0
        %v2730 = vmul.f32 %v2635, %v2635
        %2731 = vmatprep.subr.mxu0 0.0
        %2732 = vmatpush1.msra.mxu0 0.0
        %2733 = vmatprep.subr.mxu0 0.0
        %2734 = vmatpush1.msra.mxu0 0.0
        %2735 = vmatprep.subr.mxu0 0.0
        %2736 = vmatpush1.msra.mxu0 0.0
        %2737 = vmatprep.subr.mxu0 0.0
        %2738 = vmatpush1.msra.mxu0 0.0
        %2739 = vmatprep.subr.mxu0 0.0
        %2740 = vmatpush1.msra.mxu0 0.0
        %2741 = vmatprep.subr.mxu0 0.0
        %2742 = vmatpush1.msra.mxu0 0.0
        %2743 = vmatprep.subr.mxu0 0.0
        %2744 = vmatpush1.msra.mxu0 0.0
        %2745 = vmatprep.subr.mxu0 0.0
        %2746 = vmatpush1.msra.mxu0 0.0
        %2747 = vmatprep.subr.mxu0 0.0
        %2748 = vmatpush1.msra.mxu0 0.0
        %2749 = vmatprep.subr.mxu0 0.0
        %2750 = vmatpush1.msra.mxu0 0.0
        %2751 = vmatprep.subr.mxu0 0.0
        %2752 = vmatpush1.msra.mxu0 0.0
        %2753 = vmatprep.subr.mxu0 0.0
        %2754 = vmatpush1.msra.mxu0 0.0
        %2755 = vmatprep.subr.mxu0 0.0
        %2756 = vmatpush1.msra.mxu0 0.0
        %2757 = vmatprep.subr.mxu0 0.0
        %2758 = vmatpush1.msra.mxu0 0.0
        %2759 = vmatprep.subr.mxu0 0.0
        %2760 = vmatpush1.msra.mxu0 0.0
        %2761 = vmatprep.subr.mxu0 0.0
        %2762 = vmatpush1.msra.mxu0 %v2730
        %2763 = vmatprep.subr.mxu0 0.0
        %2764 = vmatpush2.msra.mxu0 0.0
        %2765 = vmatprep.subr.mxu0 0.0
        %2766 = vmatpush2.msra.mxu0 0.0
        %2767 = vmatprep.subr.mxu0 0.0
        %2768 = vmatpush2.msra.mxu0 0.0
        %2769 = vmatprep.subr.mxu0 0.0
        %2770 = vmatpush2.msra.mxu0 0.0
        %2771 = vmatprep.subr.mxu0 0.0
        %2772 = vmatpush2.msra.mxu0 0.0
        %2773 = vmatprep.subr.mxu0 0.0
        %2774 = vmatpush2.msra.mxu0 0.0
        %2775 = vmatprep.subr.mxu0 0.0
        %2776 = vmatpush2.msra.mxu0 0.0
        %2777 = vmatprep.subr.mxu0 0.0
        %2778 = vmatpush2.msra.mxu0 0.0
        %2779 = vmatprep.subr.mxu0 0.0
        %2780 = vmatpush2.msra.mxu0 0.0
        %2781 = vmatprep.subr.mxu0 0.0
        %2782 = vmatpush2.msra.mxu0 0.0
        %2783 = vmatprep.subr.mxu0 0.0
        %2784 = vmatpush2.msra.mxu0 0.0
        %2785 = vmatprep.subr.mxu0 0.0
        %2786 = vmatpush2.msra.mxu0 0.0
        %2787 = vmatprep.subr.mxu0 0.0
        %2788 = vmatpush2.msra.mxu0 0.0
        %2789 = vmatprep.subr.mxu0 0.0
        %2790 = vmatpush2.msra.mxu0 0.0
        %2791 = vmatprep.subr.mxu0 0.0
        %2792 = vmatpush2.msra.mxu0 0.0
        %2793 = vmatprep.subr.mxu0 0.0
        %2794 = vmatpush2.msra.mxu0 0.0
        %2795 = vmatprep.mubr.f32.mxu0 0.0
        %2796 = vmatmul.mubr.f32.gmra.mxu0 %v2658
        %v2797 = vpop.f32.mrf.mxu0
        %v2798 = vadd.f32 0.0, %v2797
        %v2799 = vpop.f32.mrf.mxu0
        %2800 = vdwg.mxu0
        %2801 = vmatprep.subr.mxu0 0.0
        %2802 = vmatpush1.msra.mxu0 %v2653
        %2803 = vmatprep.subr.mxu0 0.0
        %2804 = vmatpush1.msra.mxu0 %v2652
        %2805 = vmatprep.subr.mxu0 0.0
        %2806 = vmatpush1.msra.mxu0 %v2651
        %2807 = vmatprep.subr.mxu0 0.0
        %2808 = vmatpush1.msra.mxu0 %v2650
        %2809 = vmatprep.subr.mxu0 0.0
        %2810 = vmatpush1.msra.mxu0 %v2649
        %2811 = vmatprep.subr.mxu0 0.0
        %2812 = vmatpush1.msra.mxu0 %v2648
        %2813 = vmatprep.subr.mxu0 0.0
        %2814 = vmatpush1.msra.mxu0 %v2647
        %2815 = vmatprep.subr.mxu0 0.0
        %2816 = vmatpush1.msra.mxu0 %v2646
        %2817 = vmatprep.subr.mxu0 0.0
        %2818 = vmatpush1.msra.mxu0 %v2645
        %2819 = vmatprep.subr.mxu0 0.0
        %2820 = vmatpush1.msra.mxu0 %v2644
        %2821 = vmatprep.subr.mxu0 0.0
        %2822 = vmatpush1.msra.mxu0 %v2643
        %2823 = vmatprep.subr.mxu0 0.0
        %2824 = vmatpush1.msra.mxu0 %v2642
        %2825 = vmatprep.subr.mxu0 0.0
        %2826 = vmatpush1.msra.mxu0 %v2641
        %2827 = vmatprep.subr.mxu0 0.0
        %2828 = vmatpush1.msra.mxu0 %v2640
        %2829 = vmatprep.subr.mxu0 0.0
        %2830 = vmatpush1.msra.mxu0 %v2639
        %2831 = vmatprep.subr.mxu0 0.0
        %2832 = vmatpush1.msra.mxu0 %v2638
        %2833 = vmatprep.subr.mxu0 0.0
        %2834 = vmatpush2.msra.mxu0 0.0
        %2835 = vmatprep.subr.mxu0 0.0
        %2836 = vmatpush2.msra.mxu0 0.0
        %2837 = vmatprep.subr.mxu0 0.0
        %2838 = vmatpush2.msra.mxu0 0.0
        %2839 = vmatprep.subr.mxu0 0.0
        %2840 = vmatpush2.msra.mxu0 0.0
        %2841 = vmatprep.subr.mxu0 0.0
        %2842 = vmatpush2.msra.mxu0 0.0
        %2843 = vmatprep.subr.mxu0 0.0
        %2844 = vmatpush2.msra.mxu0 0.0
        %2845 = vmatprep.subr.mxu0 0.0
        %2846 = vmatpush2.msra.mxu0 0.0
        %2847 = vmatprep.subr.mxu0 0.0
        %2848 = vmatpush2.msra.mxu0 0.0
        %2849 = vmatprep.subr.mxu0 0.0
        %2850 = vmatpush2.msra.mxu0 0.0
        %2851 = vmatprep.subr.mxu0 0.0
        %2852 = vmatpush2.msra.mxu0 0.0
        %2853 = vmatprep.subr.mxu0 0.0
        %2854 = vmatpush2.msra.mxu0 0.0
        %2855 = vmatprep.subr.mxu0 0.0
        %2856 = vmatpush2.msra.mxu0 0.0
        %2857 = vmatprep.subr.mxu0 0.0
        %2858 = vmatpush2.msra.mxu0 0.0
        %2859 = vmatprep.subr.mxu0 0.0
        %2860 = vmatpush2.msra.mxu0 0.0
        %2861 = vmatprep.subr.mxu0 0.0
        %2862 = vmatpush2.msra.mxu0 0.0
        %2863 = vmatprep.subr.mxu0 0.0
        %2864 = vmatpush2.msra.mxu0 0.0
        %2865 = vmatprep.mubr.f32.mxu0 0.0
        %2866 = vmatmul.mubr.f32.gmra.mxu0 %v2727
        %v2867 = vpop.f32.mrf.mxu0
        %v2868 = vadd.f32 0.0, %v2867
        %v2869 = vpop.f32.mrf.mxu0
        %2870 = vdwg.mxu0
        %2871 = vmatprep.subr.mxu0 0.0
        %2872 = vmatpush1.msra.mxu0 %v2653
        %2873 = vmatprep.subr.mxu0 0.0
        %2874 = vmatpush1.msra.mxu0 %v2652
        %2875 = vmatprep.subr.mxu0 0.0
        %2876 = vmatpush1.msra.mxu0 %v2651
        %2877 = vmatprep.subr.mxu0 0.0
        %2878 = vmatpush1.msra.mxu0 %v2650
        %2879 = vmatprep.subr.mxu0 0.0
        %2880 = vmatpush1.msra.mxu0 %v2649
        %2881 = vmatprep.subr.mxu0 0.0
        %2882 = vmatpush1.msra.mxu0 %v2648
        %2883 = vmatprep.subr.mxu0 0.0
        %2884 = vmatpush1.msra.mxu0 %v2647
        %2885 = vmatprep.subr.mxu0 0.0
        %2886 = vmatpush1.msra.mxu0 %v2646
        %2887 = vmatprep.subr.mxu0 0.0
        %2888 = vmatpush1.msra.mxu0 %v2645
        %2889 = vmatprep.subr.mxu0 0.0
        %2890 = vmatpush1.msra.mxu0 %v2644
        %2891 = vmatprep.subr.mxu0 0.0
        %2892 = vmatpush1.msra.mxu0 %v2643
        %2893 = vmatprep.subr.mxu0 0.0
        %2894 = vmatpush1.msra.mxu0 %v2642
        %2895 = vmatprep.subr.mxu0 0.0
        %2896 = vmatpush1.msra.mxu0 %v2641
        %2897 = vmatprep.subr.mxu0 0.0
        %2898 = vmatpush1.msra.mxu0 %v2640
        %2899 = vmatprep.subr.mxu0 0.0
        %2900 = vmatpush1.msra.mxu0 %v2639
        %2901 = vmatprep.subr.mxu0 0.0
        %2902 = vmatpush1.msra.mxu0 %v2638
        %2903 = vmatprep.subr.mxu0 0.0
        %2904 = vmatpush2.msra.mxu0 0.0
        %2905 = vmatprep.subr.mxu0 0.0
        %2906 = vmatpush2.msra.mxu0 0.0
        %2907 = vmatprep.subr.mxu0 0.0
        %2908 = vmatpush2.msra.mxu0 0.0
        %2909 = vmatprep.subr.mxu0 0.0
        %2910 = vmatpush2.msra.mxu0 0.0
        %2911 = vmatprep.subr.mxu0 0.0
        %2912 = vmatpush2.msra.mxu0 0.0
        %2913 = vmatprep.subr.mxu0 0.0
        %2914 = vmatpush2.msra.mxu0 0.0
        %2915 = vmatprep.subr.mxu0 0.0
        %2916 = vmatpush2.msra.mxu0 0.0
        %2917 = vmatprep.subr.mxu0 0.0
        %2918 = vmatpush2.msra.mxu0 0.0
        %2919 = vmatprep.subr.mxu0 0.0
        %2920 = vmatpush2.msra.mxu0 0.0
        %2921 = vmatprep.subr.mxu0 0.0
        %2922 = vmatpush2.msra.mxu0 0.0
        %2923 = vmatprep.subr.mxu0 0.0
        %2924 = vmatpush2.msra.mxu0 0.0
        %2925 = vmatprep.subr.mxu0 0.0
        %2926 = vmatpush2.msra.mxu0 0.0
        %2927 = vmatprep.subr.mxu0 0.0
        %2928 = vmatpush2.msra.mxu0 0.0
        %2929 = vmatprep.subr.mxu0 0.0
        %2930 = vmatpush2.msra.mxu0 0.0
        %2931 = vmatprep.subr.mxu0 0.0
        %2932 = vmatpush2.msra.mxu0 0.0
        %2933 = vmatprep.subr.mxu0 0.0
        %2934 = vmatpush2.msra.mxu0 0.0
        %2935 = vmatprep.mubr.f32.mxu0 0.0
        %2936 = vmatmul.mubr.f32.gmra.mxu0 %v2798
        %v2937 = vpop.f32.mrf.mxu0
        %v2938 = vadd.f32 0.0, %v2937
        %v2939 = vpop.f32.mrf.mxu0
        %2940 = vdwg.mxu0
        %v2941 = vmul.f32 %v2868, 0.03125
        %v2942 = vmul.f32 %v2938, 0.03125
        %v2943 = vmul.f32 %v2941, %v2941
        %v2944 = vsub.f32 %v2942, %v2943
        %v2945 = vmax.f32 %v2944, 0.0
        %v2946 = vadd.f32 %v2945, 1e-05
        %v2947 = vrsqrt.pop %v2946
        %v2949 = vsel %vm1030, %v2941, 0
        %v2952 = vsel %vm1034, %v2654, 0
        %2954 = vmatprep.subr.mxu0 0.0
        %2955 = vmatpush1.msra.mxu0 0.0
        %2956 = vmatprep.subr.mxu0 0.0
        %2957 = vmatpush1.msra.mxu0 0.0
        %2958 = vmatprep.subr.mxu0 0.0
        %2959 = vmatpush1.msra.mxu0 0.0
        %2960 = vmatprep.subr.mxu0 0.0
        %2961 = vmatpush1.msra.mxu0 0.0
        %2962 = vmatprep.subr.mxu0 0.0
        %2963 = vmatpush1.msra.mxu0 0.0
        %2964 = vmatprep.subr.mxu0 0.0
        %2965 = vmatpush1.msra.mxu0 0.0
        %2966 = vmatprep.subr.mxu0 0.0
        %2967 = vmatpush1.msra.mxu0 0.0
        %2968 = vmatprep.subr.mxu0 0.0
        %2969 = vmatpush1.msra.mxu0 0.0
        %2970 = vmatprep.subr.mxu0 0.0
        %2971 = vmatpush1.msra.mxu0 0.0
        %2972 = vmatprep.subr.mxu0 0.0
        %2973 = vmatpush1.msra.mxu0 0.0
        %2974 = vmatprep.subr.mxu0 0.0
        %2975 = vmatpush1.msra.mxu0 0.0
        %2976 = vmatprep.subr.mxu0 0.0
        %2977 = vmatpush1.msra.mxu0 0.0
        %2978 = vmatprep.subr.mxu0 0.0
        %2979 = vmatpush1.msra.mxu0 0.0
        %2980 = vmatprep.subr.mxu0 0.0
        %2981 = vmatpush1.msra.mxu0 0.0
        %2982 = vmatprep.subr.mxu0 0.0
        %2983 = vmatpush1.msra.mxu0 0.0
        %2984 = vmatprep.subr.mxu0 0.0
        %2985 = vmatpush1.msra.mxu0 %v2952
        %2986 = vmatprep.subr.mxu0 0.0
        %2987 = vmatpush2.msra.mxu0 0.0
        %2988 = vmatprep.subr.mxu0 0.0
        %2989 = vmatpush2.msra.mxu0 0.0
        %2990 = vmatprep.subr.mxu0 0.0
        %2991 = vmatpush2.msra.mxu0 0.0
        %2992 = vmatprep.subr.mxu0 0.0
        %2993 = vmatpush2.msra.mxu0 0.0
        %2994 = vmatprep.subr.mxu0 0.0
        %2995 = vmatpush2.msra.mxu0 0.0
        %2996 = vmatprep.subr.mxu0 0.0
        %2997 = vmatpush2.msra.mxu0 0.0
        %2998 = vmatprep.subr.mxu0 0.0
        %2999 = vmatpush2.msra.mxu0 0.0
        %3000 = vmatprep.subr.mxu0 0.0
        %3001 = vmatpush2.msra.mxu0 0.0
        %3002 = vmatprep.subr.mxu0 0.0
        %3003 = vmatpush2.msra.mxu0 0.0
        %3004 = vmatprep.subr.mxu0 0.0
        %3005 = vmatpush2.msra.mxu0 0.0
        %3006 = vmatprep.subr.mxu0 0.0
        %3007 = vmatpush2.msra.mxu0 0.0
        %3008 = vmatprep.subr.mxu0 0.0
        %3009 = vmatpush2.msra.mxu0 0.0
        %3010 = vmatprep.subr.mxu0 0.0
        %3011 = vmatpush2.msra.mxu0 0.0
        %3012 = vmatprep.subr.mxu0 0.0
        %3013 = vmatpush2.msra.mxu0 0.0
        %3014 = vmatprep.subr.mxu0 0.0
        %3015 = vmatpush2.msra.mxu0 0.0
        %3016 = vmatprep.subr.mxu0 0.0
        %3017 = vmatpush2.msra.mxu0 0.0
        %3018 = vmatprep.mubr.f32.mxu0 0.0
        %3019 = vmatmul.mubr.f32.gmra.mxu0 %v2949
        %v3020 = vpop.f32.mrf.mxu0
        %v3021 = vadd.f32 0.0, %v3020
        %v3022 = vpop.f32.mrf.mxu0
        %3023 = vdwg.mxu0
        %v3025 = vsel %vm1030, %v2947, 0
        %3027 = vmatprep.subr.mxu0 0.0
        %3028 = vmatpush1.msra.mxu0 0.0
        %3029 = vmatprep.subr.mxu0 0.0
        %3030 = vmatpush1.msra.mxu0 0.0
        %3031 = vmatprep.subr.mxu0 0.0
        %3032 = vmatpush1.msra.mxu0 0.0
        %3033 = vmatprep.subr.mxu0 0.0
        %3034 = vmatpush1.msra.mxu0 0.0
        %3035 = vmatprep.subr.mxu0 0.0
        %3036 = vmatpush1.msra.mxu0 0.0
        %3037 = vmatprep.subr.mxu0 0.0
        %3038 = vmatpush1.msra.mxu0 0.0
        %3039 = vmatprep.subr.mxu0 0.0
        %3040 = vmatpush1.msra.mxu0 0.0
        %3041 = vmatprep.subr.mxu0 0.0
        %3042 = vmatpush1.msra.mxu0 0.0
        %3043 = vmatprep.subr.mxu0 0.0
        %3044 = vmatpush1.msra.mxu0 0.0
        %3045 = vmatprep.subr.mxu0 0.0
        %3046 = vmatpush1.msra.mxu0 0.0
        %3047 = vmatprep.subr.mxu0 0.0
        %3048 = vmatpush1.msra.mxu0 0.0
        %3049 = vmatprep.subr.mxu0 0.0
        %3050 = vmatpush1.msra.mxu0 0.0
        %3051 = vmatprep.subr.mxu0 0.0
        %3052 = vmatpush1.msra.mxu0 0.0
        %3053 = vmatprep.subr.mxu0 0.0
        %3054 = vmatpush1.msra.mxu0 0.0
        %3055 = vmatprep.subr.mxu0 0.0
        %3056 = vmatpush1.msra.mxu0 0.0
        %3057 = vmatprep.subr.mxu0 0.0
        %3058 = vmatpush1.msra.mxu0 %v2952
        %3059 = vmatprep.subr.mxu0 0.0
        %3060 = vmatpush2.msra.mxu0 0.0
        %3061 = vmatprep.subr.mxu0 0.0
        %3062 = vmatpush2.msra.mxu0 0.0
        %3063 = vmatprep.subr.mxu0 0.0
        %3064 = vmatpush2.msra.mxu0 0.0
        %3065 = vmatprep.subr.mxu0 0.0
        %3066 = vmatpush2.msra.mxu0 0.0
        %3067 = vmatprep.subr.mxu0 0.0
        %3068 = vmatpush2.msra.mxu0 0.0
        %3069 = vmatprep.subr.mxu0 0.0
        %3070 = vmatpush2.msra.mxu0 0.0
        %3071 = vmatprep.subr.mxu0 0.0
        %3072 = vmatpush2.msra.mxu0 0.0
        %3073 = vmatprep.subr.mxu0 0.0
        %3074 = vmatpush2.msra.mxu0 0.0
        %3075 = vmatprep.subr.mxu0 0.0
        %3076 = vmatpush2.msra.mxu0 0.0
        %3077 = vmatprep.subr.mxu0 0.0
        %3078 = vmatpush2.msra.mxu0 0.0
        %3079 = vmatprep.subr.mxu0 0.0
        %3080 = vmatpush2.msra.mxu0 0.0
        %3081 = vmatprep.subr.mxu0 0.0
        %3082 = vmatpush2.msra.mxu0 0.0
        %3083 = vmatprep.subr.mxu0 0.0
        %3084 = vmatpush2.msra.mxu0 0.0
        %3085 = vmatprep.subr.mxu0 0.0
        %3086 = vmatpush2.msra.mxu0 0.0
        %3087 = vmatprep.subr.mxu0 0.0
        %3088 = vmatpush2.msra.mxu0 0.0
        %3089 = vmatprep.subr.mxu0 0.0
        %3090 = vmatpush2.msra.mxu0 0.0
        %3091 = vmatprep.mubr.f32.mxu0 0.0
        %3092 = vmatmul.mubr.f32.gmra.mxu0 %v3025
        %v3093 = vpop.f32.mrf.mxu0
        %v3094 = vadd.f32 0.0, %v3093
        %v3095 = vpop.f32.mrf.mxu0
        %3096 = vdwg.mxu0
        %v3098 = vlaneseq
        %v3099 = vshrl.u32 %v3098, 7
        %v3100 = vsub.s32 0, %v3099
        %v3101 = vrot.slane %v2655, %v3100
        %v3103 = vmul.f32 %v3094, %v3101
        %v3104 = vmul.f32 %v3021, %v3103
        %v3106 = vlaneseq
        %v3107 = vshrl.u32 %v3106, 7
        %v3108 = vsub.s32 0, %v3107
        %v3109 = vrot.slane %v2656, %v3108
        %v3111 = vsub.f32 %v3109, %v3104
        %v3113 = vsel %vm1196, %v2636, 0
        %3115 = vmatprep.subr.mxu0 0.0
        %3116 = vmatpush1.msra.mxu0 0.0
        %3117 = vmatprep.subr.mxu0 0.0
        %3118 = vmatpush1.msra.mxu0 0.0
        %3119 = vmatprep.subr.mxu0 0.0
        %3120 = vmatpush1.msra.mxu0 0.0
        %3121 = vmatprep.subr.mxu0 0.0
        %3122 = vmatpush1.msra.mxu0 0.0
        %3123 = vmatprep.subr.mxu0 0.0
        %3124 = vmatpush1.msra.mxu0 0.0
        %3125 = vmatprep.subr.mxu0 0.0
        %3126 = vmatpush1.msra.mxu0 0.0
        %3127 = vmatprep.subr.mxu0 0.0
        %3128 = vmatpush1.msra.mxu0 0.0
        %3129 = vmatprep.subr.mxu0 0.0
        %3130 = vmatpush1.msra.mxu0 0.0
        %3131 = vmatprep.subr.mxu0 0.0
        %3132 = vmatpush1.msra.mxu0 0.0
        %3133 = vmatprep.subr.mxu0 0.0
        %3134 = vmatpush1.msra.mxu0 0.0
        %3135 = vmatprep.subr.mxu0 0.0
        %3136 = vmatpush1.msra.mxu0 0.0
        %3137 = vmatprep.subr.mxu0 0.0
        %3138 = vmatpush1.msra.mxu0 0.0
        %3139 = vmatprep.subr.mxu0 0.0
        %3140 = vmatpush1.msra.mxu0 0.0
        %3141 = vmatprep.subr.mxu0 0.0
        %3142 = vmatpush1.msra.mxu0 0.0
        %3143 = vmatprep.subr.mxu0 0.0
        %3144 = vmatpush1.msra.mxu0 0.0
        %3145 = vmatprep.subr.mxu0 0.0
        %3146 = vmatpush1.msra.mxu0 %v3103
        %3147 = vmatprep.subr.mxu0 0.0
        %3148 = vmatpush2.msra.mxu0 0.0
        %3149 = vmatprep.subr.mxu0 0.0
        %3150 = vmatpush2.msra.mxu0 0.0
        %3151 = vmatprep.subr.mxu0 0.0
        %3152 = vmatpush2.msra.mxu0 0.0
        %3153 = vmatprep.subr.mxu0 0.0
        %3154 = vmatpush2.msra.mxu0 0.0
        %3155 = vmatprep.subr.mxu0 0.0
        %3156 = vmatpush2.msra.mxu0 0.0
        %3157 = vmatprep.subr.mxu0 0.0
        %3158 = vmatpush2.msra.mxu0 0.0
        %3159 = vmatprep.subr.mxu0 0.0
        %3160 = vmatpush2.msra.mxu0 0.0
        %3161 = vmatprep.subr.mxu0 0.0
        %3162 = vmatpush2.msra.mxu0 0.0
        %3163 = vmatprep.subr.mxu0 0.0
        %3164 = vmatpush2.msra.mxu0 0.0
        %3165 = vmatprep.subr.mxu0 0.0
        %3166 = vmatpush2.msra.mxu0 0.0
        %3167 = vmatprep.subr.mxu0 0.0
        %3168 = vmatpush2.msra.mxu0 0.0
        %3169 = vmatprep.subr.mxu0 0.0
        %3170 = vmatpush2.msra.mxu0 0.0
        %3171 = vmatprep.subr.mxu0 0.0
        %3172 = vmatpush2.msra.mxu0 0.0
        %3173 = vmatprep.subr.mxu0 0.0
        %3174 = vmatpush2.msra.mxu0 0.0
        %3175 = vmatprep.subr.mxu0 0.0
        %3176 = vmatpush2.msra.mxu0 0.0
        %3177 = vmatprep.subr.mxu0 0.0
        %3178 = vmatpush2.msra.mxu0 0.0
        %3179 = vmatprep.mubr.f32.mxu0 0.0
        %3180 = vmatmul.mubr.f32.gmra.mxu0 %v3113
        %v3181 = vpop.f32.mrf.mxu0
        %v3182 = vadd.f32 0.0, %v3181
        %v3183 = vpop.f32.mrf.mxu0
        %3184 = vdwg.mxu0
        %3185 = vmatprep.subr.mxu0 0.0
        %3186 = vmatpush1.msra.mxu0 0.0
        %3187 = vmatprep.subr.mxu0 0.0
        %3188 = vmatpush1.msra.mxu0 0.0
        %3189 = vmatprep.subr.mxu0 0.0
        %3190 = vmatpush1.msra.mxu0 0.0
        %3191 = vmatprep.subr.mxu0 0.0
        %3192 = vmatpush1.msra.mxu0 0.0
        %3193 = vmatprep.subr.mxu0 0.0
        %3194 = vmatpush1.msra.mxu0 0.0
        %3195 = vmatprep.subr.mxu0 0.0
        %3196 = vmatpush1.msra.mxu0 0.0
        %3197 = vmatprep.subr.mxu0 0.0
        %3198 = vmatpush1.msra.mxu0 0.0
        %3199 = vmatprep.subr.mxu0 0.0
        %3200 = vmatpush1.msra.mxu0 0.0
        %3201 = vmatprep.subr.mxu0 0.0
        %3202 = vmatpush1.msra.mxu0 0.0
        %3203 = vmatprep.subr.mxu0 0.0
        %3204 = vmatpush1.msra.mxu0 0.0
        %3205 = vmatprep.subr.mxu0 0.0
        %3206 = vmatpush1.msra.mxu0 0.0
        %3207 = vmatprep.subr.mxu0 0.0
        %3208 = vmatpush1.msra.mxu0 0.0
        %3209 = vmatprep.subr.mxu0 0.0
        %3210 = vmatpush1.msra.mxu0 0.0
        %3211 = vmatprep.subr.mxu0 0.0
        %3212 = vmatpush1.msra.mxu0 0.0
        %3213 = vmatprep.subr.mxu0 0.0
        %3214 = vmatpush1.msra.mxu0 0.0
        %3215 = vmatprep.subr.mxu0 0.0
        %3216 = vmatpush1.msra.mxu0 %v3111
        %3217 = vmatprep.subr.mxu0 0.0
        %3218 = vmatpush2.msra.mxu0 0.0
        %3219 = vmatprep.subr.mxu0 0.0
        %3220 = vmatpush2.msra.mxu0 0.0
        %3221 = vmatprep.subr.mxu0 0.0
        %3222 = vmatpush2.msra.mxu0 0.0
        %3223 = vmatprep.subr.mxu0 0.0
        %3224 = vmatpush2.msra.mxu0 0.0
        %3225 = vmatprep.subr.mxu0 0.0
        %3226 = vmatpush2.msra.mxu0 0.0
        %3227 = vmatprep.subr.mxu0 0.0
        %3228 = vmatpush2.msra.mxu0 0.0
        %3229 = vmatprep.subr.mxu0 0.0
        %3230 = vmatpush2.msra.mxu0 0.0
        %3231 = vmatprep.subr.mxu0 0.0
        %3232 = vmatpush2.msra.mxu0 0.0
        %3233 = vmatprep.subr.mxu0 0.0
        %3234 = vmatpush2.msra.mxu0 0.0
        %3235 = vmatprep.subr.mxu0 0.0
        %3236 = vmatpush2.msra.mxu0 0.0
        %3237 = vmatprep.subr.mxu0 0.0
        %3238 = vmatpush2.msra.mxu0 0.0
        %3239 = vmatprep.subr.mxu0 0.0
        %3240 = vmatpush2.msra.mxu0 0.0
        %3241 = vmatprep.subr.mxu0 0.0
        %3242 = vmatpush2.msra.mxu0 0.0
        %3243 = vmatprep.subr.mxu0 0.0
        %3244 = vmatpush2.msra.mxu0 0.0
        %3245 = vmatprep.subr.mxu0 0.0
        %3246 = vmatpush2.msra.mxu0 0.0
        %3247 = vmatprep.subr.mxu0 0.0
        %3248 = vmatpush2.msra.mxu0 0.0
        %3249 = vmatprep.mubr.f32.mxu0 0.0
        %3250 = vmatmul.mubr.f32.gmra.mxu0 %v3113
        %v3251 = vpop.f32.mrf.mxu0
        %v3252 = vadd.f32 0.0, %v3251
        %v3253 = vpop.f32.mrf.mxu0
        %3254 = vdwg.mxu0
        %v3255 = vmul.f32 %v2635, %v3182
        %v3256 = vadd.f32 %v3255, %v3252
        %v3257 = vmul.f32 %v3256, 0.5
        %v3258 = vmul.f32 %v3256, 0.70710677
        %v3259 = verf.f32.pop %v3258
        %v3260 = vadd.f32 %v3259, 1.0
        %v3261 = vmul.f32 %v3257, %v3260
        %3262 = vst [vmem:[%s487] sm:$0xff] %v3261
        %s3263 = sand.u32 %s357, 1
        %s3264 = scalar_lea.sflag [#allocation3], %s3263
        %s3265 = sand.u32 %s357, 1
        %s3266 = smul.addr %s3265, 8
        %s3267 = scalar_lea.vmem [#allocation2], %s3266
        // Predicated region
        $region81: #{tpu_custom_call.1} parent=79 // pred_check
          %p3268 = pneg %p367
        $region82: #{tpu_custom_call.1} parent=79 // pred_check_branch
          %3270 = sbr.rel (%p3268) target = $region84
        $region83: #{tpu_custom_call.1} parent=79 // pred_region
          %s3272 = ssub.s32 128, 128
          %3273 = vsyncadd %s3264, %s3272
          %s3274 = smul.addr %s29, 128
          %s3275 = scalar_lea.hbm %s15, %s3274
          %s3277 = sshll.u32 %s3267, 4
          %s3278 = int_to_ptr.vmem [resolvable:$true] %s3277
          %3280 = dma.vmem_to_hbm [thread:$0]  %s3278, 128, %s3275, %s3264
        $region84: #{tpu_custom_call.1} parent=79 // pred_fallthru
          _
      $region80: #{tpu_custom_call.1} parent=5 // pred_fallthru
        _
      %p3281 = scmp.le.s32.totalorder 2, %s24
      // Predicated region
      $region85: #{tpu_custom_call.1} parent=5 // pred_check
        %p3282 = pneg %p3281
      $region86: #{tpu_custom_call.1} parent=5 // pred_check_branch
        %3284 = sbr.rel (%p3282) target = $region88
      $region87: #{tpu_custom_call.1} parent=5 // pred_region
        %s3285 = ssub.s32 %s24, 2
        // Predicated region
        $region89: #{tpu_custom_call.1} parent=87 // pred_check
          %p3286 = pneg %p373
        $region90: #{tpu_custom_call.1} parent=87 // pred_check_branch
          %3288 = sbr.rel (%p3286) target = $region92
        $region91: #{tpu_custom_call.1} parent=87 // pred_region
          %s3289 = sand.u32 %s358, 1
          %s3290 = scalar_lea.sflag [#allocation3], %s3289
          %s3291 = sand.u32 %s358, 1
          %s3292 = smul.addr %s3291, 8
          %s3293 = scalar_lea.vmem [#allocation2], %s3292
          %3294 = dma.done %s3290, 128
        $region92: #{tpu_custom_call.1} parent=87 // pred_fallthru
          _
      $region88: #{tpu_custom_call.1} parent=5 // pred_fallthru
        _
    $region6: #{tpu_custom_call.1} parent=1 // loop_footer
      %s28 = sadd.s32 1, %s24
    $region7: #{tpu_custom_call.1} parent=1 // loop_footer_branch
      %23 = sbr.rel target = $region3
    $region8: #{tpu_custom_call.1} parent=1 // loop_exit
      _
    %3295 = vsyncpa [#allocation3], 1
    %s3296 = scalar_lea.sflag [#allocation3], 1
    %3297 = vsyncpa %s3296, 1

</llo_original>
